<compile_context>
chip_gen: v5e
topology: v5e:2x2
jax: 0.10.0
libtpu: 0.0.40
codegen_flags: <defaults>
</compile_context>

<pallas_src>
import numpy as np
import jax
import jax.numpy as jnp
from jax import lax
from jax.experimental import pallas as pl
from jax.experimental.pallas import tpu as pltpu


def lstm_model_kernel(
    x_ref, mask_ref,
    wih0f_ref, whh0f_ref, b0f_ref,
    wih0b_ref, whh0b_ref, b0b_ref,
    wih1ff_ref, wih1fb_ref, whh1f_ref, b1f_ref,
    wih1bf_ref, wih1bb_ref, whh1b_ref, b1b_ref,
    ue_in_ref, ue_w_ref, ue_b_ref,
    head_w_ref, head_b_ref,
    out_ref,
    xgf_s, xgb_s, y1f_s, y1b_s,
    hf_s, cf_s, hb_s, cb_s, hlast_s,
):
    f32 = jnp.float32
    bf16 = jnp.bfloat16
    H = whh0f_ref.shape[0]
    Bp = hf_s.shape[0]
    T = x_ref.shape[0] // Bp

    def lstm_cell(gates, c_prev):
        ig = jax.nn.sigmoid(gates[:, 0:H])
        fg = jax.nn.sigmoid(gates[:, H:2 * H])
        gg = jnp.tanh(gates[:, 2 * H:3 * H])
        og = jax.nn.sigmoid(gates[:, 3 * H:4 * H])
        c_new = fg * c_prev + ig * gg
        h_new = og * jnp.tanh(c_new)
        return h_new, c_new

    def run_layer(whhf, whhb, store_outputs):
        """One layer: forward & backward directions interleaved over time.

        The x-gates (x @ W_ih + b) are already precomputed for all timesteps in
        xgf_s / xgb_s, so the loop body only carries the h-dependency matmuls.
        """
        hf_s[...] = jnp.zeros_like(hf_s)
        cf_s[...] = jnp.zeros_like(cf_s)
        hb_s[...] = jnp.zeros_like(hb_s)
        cb_s[...] = jnp.zeros_like(cb_s)
        if not store_outputs:
            hlast_s[...] = jnp.zeros_like(hlast_s)
        # Fully unrolled static time loop: every slice below is a static,
        # sublane-tile-aligned slice; fwd/bwd chains are independent and interleave.
        for i in range(T):
            rf = i * Bp                 # forward timestep row offset
            rb = (T - 1 - i) * Bp       # backward timestep row offset
            mf = mask_ref[rf:rf + Bp, :]            # (Bp, 1), 1.0 iff t < length
            mb = mask_ref[rb:rb + Bp, :]
            gf = xgf_s[rf:rf + Bp, :] + jnp.dot(hf_s[...], whhf,
                                                preferred_element_type=f32)
            gb = xgb_s[rb:rb + Bp, :] + jnp.dot(hb_s[...], whhb,
                                                preferred_element_type=f32)
            hf_new, cf_new = lstm_cell(gf, cf_s[...])
            hb_new, cb_new = lstm_cell(gb, cb_s[...])
            hf_s[...] = mf * hf_new                 # keep state zero past length
            cf_s[...] = mf * cf_new
            hb_s[...] = mb * hb_new
            cb_s[...] = mb * cb_new
            if store_outputs:                       # layer 1: feed layer 2
                y1f_s[rf:rf + Bp, :] = mf * hf_new
                y1b_s[rb:rb + Bp, :] = mb * hb_new
            else:                                   # layer 2: h at last valid step
                hlast_s[...] = jnp.where(mf > 0.0, hf_new, hlast_s[...])

    # ---- layer-1 x-gates for ALL timesteps: one bf16 MXU matmul per direction ----
    x = x_ref[...]                                                   # (T*Bp, E) bf16
    xgf_s[...] = jnp.dot(x, wih0f_ref[...], preferred_element_type=f32) + b0f_ref[...]
    xgb_s[...] = jnp.dot(x, wih0b_ref[...], preferred_element_type=f32) + b0b_ref[...]
    run_layer(whh0f_ref[...], whh0b_ref[...], store_outputs=True)

    # ---- layer-2 x-gates (input = concat of layer-1 fwd/bwd outputs, kept split) ----
    y1f = y1f_s[...].astype(bf16)
    y1b = y1b_s[...].astype(bf16)
    xgf_s[...] = (jnp.dot(y1f, wih1ff_ref[...], preferred_element_type=f32)
                  + jnp.dot(y1b, wih1fb_ref[...], preferred_element_type=f32)
                  + b1f_ref[...])
    xgb_s[...] = (jnp.dot(y1f, wih1bf_ref[...], preferred_element_type=f32)
                  + jnp.dot(y1b, wih1bb_ref[...], preferred_element_type=f32)
                  + b1b_ref[...])
    run_layer(whh1f_ref[...], whh1b_ref[...], store_outputs=False)

    featf = hlast_s[...]            # layer-2 forward h at t = len - 1
    featb = hb_s[...]               # layer-2 backward h at t = 0
    relu_b = jnp.maximum(featb, 0.0)
    relu_f = jnp.maximum(featf, 0.0)

    # user/extra hidden layers as one block-diagonal matmul: (Bp, 64+ED) @ (64+ED, 2H)
    ue_hidden = jnp.maximum(
        jnp.dot(ue_in_ref[...], ue_w_ref[...], preferred_element_type=f32)
        + ue_b_ref[...], 0.0)                       # (Bp, 2H) = [user_hidden | extra_hidden]

    # fused heads: single lane-padded (4H, 128) weight, logical feature order
    # [relu(featb), relu(featf), user_hidden, extra_hidden]; applied as split-row
    # matmuls so no in-kernel lane concat is needed. Output is lane-dense (Bp, 128).
    head = (jnp.dot(relu_b, head_w_ref[0:H, :], preferred_element_type=f32)
            + jnp.dot(relu_f, head_w_ref[H:2 * H, :], preferred_element_type=f32)
            + jnp.dot(ue_hidden, head_w_ref[2 * H:4 * H, :], preferred_element_type=f32)
            + head_b_ref[...])

    scalar = head[:, 0:1]
    gate = (jax.nn.sigmoid(head[:, 1:2]) * jax.nn.sigmoid(head[:, 2:3])
            * jax.nn.sigmoid(head[:, 3:4]) * 0.99 + 0.01)

    lane = lax.broadcasted_iota(jnp.int32, out_ref.shape, 1)
    out_ref[...] = jnp.where(lane == 0, scalar, jnp.where(lane == 1, gate, 0.0))


def lstm_model_forward(params, sentence, sentence_length, user_idx, extra_inpts):
    B, T = sentence.shape
    H = params["whh0f"].shape[0]
    E = params["word_emb"].shape[1]
    Bp = ((B + 7) // 8) * 8                      # pad batch to a sublane multiple
    pad_b = Bp - B
    f32 = jnp.float32
    bf16 = jnp.bfloat16
    HEAD_W = 128                                 # lane-padded fused-head width

    # ---- glue (gathers, padding, layout, weight fusion) in plain JAX ----
    embeds = params["word_emb"][sentence]                          # (B, T, E)
    x = jnp.transpose(embeds, (1, 0, 2))                           # (T, B, E) time-major
    x = jnp.pad(x, ((0, 0), (0, pad_b), (0, 0)))
    x2d = x.reshape(T * Bp, E).astype(bf16)                        # (T*Bp, E)

    lens = jnp.pad(sentence_length.astype(jnp.int32), (0, pad_b))  # pad rows: length 0
    mask = (jnp.arange(T)[:, None] < lens[None, :]).astype(f32)    # (T, Bp)
    mask2d = mask.reshape(T * Bp, 1)

    uemb = params["user_emb"][user_idx].astype(f32)                # (B, 64)
    ue_in = jnp.concatenate([uemb, extra_inpts.astype(f32)], axis=1)
    ue_in = jnp.pad(ue_in, ((0, pad_b), (0, 0)))                   # (Bp, 64 + ED)
    U = uemb.shape[1]
    UE = ue_in.shape[1]

    # block-diagonal user/extra weight: [user | extra] -> [user_hidden | extra_hidden]
    ue_w = jnp.zeros((UE, 2 * H), f32)
    ue_w = ue_w.at[:U, :H].set(params["userw_w"])
    ue_w = ue_w.at[U:, H:].set(params["extraw_w"])
    ue_b = jnp.concatenate([params["userw_b"], params["extraw_b"]], axis=1)

    # fused lane-padded head: col 0 = hidden2scalar, cols 1..3 = lstm/user/extra gate logits
    head_w = jnp.zeros((4 * H, HEAD_W), f32)
    head_w = head_w.at[:, 0:1].set(params["h2s_w"])
    head_w = head_w.at[0:2 * H, 1:2].set(params["l2g_w"])
    head_w = head_w.at[2 * H:3 * H, 2:3].set(params["u2g_w"])
    head_w = head_w.at[3 * H:4 * H, 3:4].set(params["e2g_w"])
    head_b = jnp.zeros((1, HEAD_W), f32)
    head_b = head_b.at[:, 0:1].set(params["h2s_b"])
    head_b = head_b.at[:, 1:2].set(params["l2g_b"])
    head_b = head_b.at[:, 2:3].set(params["u2g_b"])
    head_b = head_b.at[:, 3:4].set(params["e2g_b"])

    ins = [
        x2d, mask2d,
        params["wih0f"].astype(bf16), params["whh0f"], params["b0f"],
        params["wih0b"].astype(bf16), params["whh0b"], params["b0b"],
        params["wih1f"][:H].astype(bf16), params["wih1f"][H:].astype(bf16),
        params["whh1f"], params["b1f"],
        params["wih1b"][:H].astype(bf16), params["wih1b"][H:].astype(bf16),
        params["whh1b"], params["b1b"],
        ue_in, ue_w, ue_b, head_w, head_b,
    ]

    out = pl.pallas_call(
        lstm_model_kernel,
        out_shape=jax.ShapeDtypeStruct((Bp, HEAD_W), f32),
        in_specs=[pl.BlockSpec(memory_space=pltpu.MemorySpace.VMEM) for _ in ins],
        out_specs=pl.BlockSpec(memory_space=pltpu.MemorySpace.VMEM),
        scratch_shapes=[
            pltpu.VMEM((T * Bp, 4 * H), f32),   # forward-direction x-gates (reused by both layers)
            pltpu.VMEM((T * Bp, 4 * H), f32),   # backward-direction x-gates (reused by both layers)
            pltpu.VMEM((T * Bp, H), f32),       # layer-1 forward outputs
            pltpu.VMEM((T * Bp, H), f32),       # layer-1 backward outputs
            pltpu.VMEM((Bp, H), f32),           # forward h state
            pltpu.VMEM((Bp, H), f32),           # forward c state
            pltpu.VMEM((Bp, H), f32),           # backward h state
            pltpu.VMEM((Bp, H), f32),           # backward c state
            pltpu.VMEM((Bp, H), f32),           # forward h at last valid step
        ],
        compiler_params=pltpu.CompilerParams(vmem_limit_bytes=32 * 1024 * 1024),
    )(*ins)

    return out[:B, 0:1], out[:B, 1:2]           # (scalar_out, gate)


def init_params(key, E, H, vocab, users, extra_dim, user_embed=64):
    def nrm(k, shape, scale=0.1):
        return scale * jax.random.normal(k, shape, dtype=jnp.float32)

    keys = iter(jax.random.split(key, 32))
    p = {}
    p["word_emb"] = nrm(next(keys), (vocab, E), 1.0)
    p["user_emb"] = nrm(next(keys), (users, user_embed), 1.0)
    # LSTM params: torch layout is (4H, in)/(4H, H) with separate b_ih/b_hh.
    # Here: pre-transposed [in, 4H]/[H, 4H] and a single merged bias (1, 4H).
    for name, in_dim in (("0f", E), ("0b", E), ("1f", 2 * H), ("1b", 2 * H)):
        p["wih" + name] = nrm(next(keys), (in_dim, 4 * H))
        p["whh" + name] = nrm(next(keys), (H, 4 * H))
        p["b" + name] = nrm(next(keys), (1, 4 * H))
    p["userw_w"] = nrm(next(keys), (user_embed, H)); p["userw_b"] = nrm(next(keys), (1, H))
    p["extraw_w"] = nrm(next(keys), (extra_dim, H)); p["extraw_b"] = nrm(next(keys), (1, H))
    p["l2g_w"] = nrm(next(keys), (2 * H, 1)); p["l2g_b"] = nrm(next(keys), (1, 1))
    p["u2g_w"] = nrm(next(keys), (H, 1)); p["u2g_b"] = nrm(next(keys), (1, 1))
    p["e2g_w"] = nrm(next(keys), (H, 1)); p["e2g_b"] = nrm(next(keys), (1, 1))
    p["h2s_w"] = nrm(next(keys), (4 * H, 1)); p["h2s_b"] = nrm(next(keys), (1, 1))
    return p


def reference_forward(params, sentence, sentence_length, user_idx, extra_inpts):
    """Pure-JAX f32 reference with identical (packed-sequence-equivalent) semantics."""
    B, T = sentence.shape
    H = params["whh0f"].shape[0]
    x = jnp.transpose(params["word_emb"][sentence], (1, 0, 2))
    mask = (jnp.arange(T)[:, None] < sentence_length[None, :]).astype(jnp.float32)[:, :, None]

    def run_dir(xs, w_ih, w_hh, b, reverse):
        xs_ = xs[::-1] if reverse else xs
        ms_ = mask[::-1] if reverse else mask

        def step(carry, inp):
            h, c = carry
            xt, mt = inp
            gates = xt @ w_ih + h @ w_hh + b
            ig = jax.nn.sigmoid(gates[:, :H]); fg = jax.nn.sigmoid(gates[:, H:2 * H])
            gg = jnp.tanh(gates[:, 2 * H:3 * H]); og = jax.nn.sigmoid(gates[:, 3 * H:])
            c_new = fg * c + ig * gg
            h_new = og * jnp.tanh(c_new)
            return (mt * h_new, mt * c_new), mt * h_new

        init = (jnp.zeros((B, H), jnp.float32), jnp.zeros((B, H), jnp.float32))
        _, ys = lax.scan(step, init, (xs_, ms_))
        return ys[::-1] if reverse else ys

    y0f = run_dir(x, params["wih0f"], params["whh0f"], params["b0f"], False)
    y0b = run_dir(x, params["wih0b"], params["whh0b"], params["b0b"], True)
    x1 = jnp.concatenate([y0f, y0b], axis=-1)
    y1f = run_dir(x1, params["wih1f"], params["whh1f"], params["b1f"], False)
    y1b = run_dir(x1, params["wih1b"], params["whh1b"], params["b1b"], True)

    featf = y1f[sentence_length - 1, jnp.arange(B), :]
    featb = y1b[0]
    lstm_out = jax.nn.relu(jnp.concatenate([featb, featf], axis=-1))

    uemb = params["user_emb"][user_idx]
    user_hidden = jax.nn.relu(uemb @ params["userw_w"] + params["userw_b"])
    extra_hidden = jax.nn.relu(extra_inpts @ params["extraw_w"] + params["extraw_b"])
    lstm_gate = jax.nn.sigmoid(lstm_out @ params["l2g_w"] + params["l2g_b"])
    user_gate = jax.nn.sigmoid(user_hidden @ params["u2g_w"] + params["u2g_b"])
    extra_gate = jax.nn.sigmoid(extra_hidden @ params["e2g_w"] + params["e2g_b"])
    gate = lstm_gate * user_gate * extra_gate * 0.99 + 0.01
    out = jnp.concatenate([lstm_out, user_hidden, extra_hidden], axis=-1)
    scalar_out = out @ params["h2s_w"] + params["h2s_b"]
    return scalar_out, gate


if __name__ == "__main__":
    B, T, E, H = 2, 8, 32, 32
    VOCAB, USERS, EXTRA_DIM = 100, 10, 16

    key = jax.random.PRNGKey(0)
    kp, ks, ku, ke = jax.random.split(key, 4)
    params = init_params(kp, E, H, VOCAB, USERS, EXTRA_DIM)

    sentence = jax.random.randint(ks, (B, T), 0, VOCAB, dtype=jnp.int32)
    sentence_length = jnp.array([T, 5], dtype=jnp.int32)     # variable lengths (padded seqs)
    user_idx = jax.random.randint(ku, (B,), 0, USERS, dtype=jnp.int32)
    extra_inpts = jax.random.normal(ke, (B, EXTRA_DIM), dtype=jnp.float32)

    scalar_out, gate = jax.block_until_ready(
        lstm_model_forward(params, sentence, sentence_length, user_idx, extra_inpts))

    ref_scalar, ref_gate = reference_forward(params, sentence, sentence_length,
                                             user_idx, extra_inpts)
    # bf16 MXU feeds (f32 accumulation) -> slightly looser tolerance than pure f32.
    np.testing.assert_allclose(np.asarray(scalar_out), np.asarray(ref_scalar),
                               rtol=3e-2, atol=3e-2)
    np.testing.assert_allclose(np.asarray(gate), np.asarray(ref_gate),
                               rtol=3e-2, atol=3e-2)
    print("KERNEL_OK")
</pallas_src>

<mosaic_0001>
module attributes {stable_mosaic.version = 11 : i64} {
  func.func @lstm_model_kernel(%arg0: memref<64x32xbf16, #tpu.memory_space<vmem>>, %arg1: memref<64x1xf32, #tpu.memory_space<vmem>>, %arg2: memref<32x128xbf16, #tpu.memory_space<vmem>>, %arg3: memref<32x128xf32, #tpu.memory_space<vmem>>, %arg4: memref<1x128xf32, #tpu.memory_space<vmem>>, %arg5: memref<32x128xbf16, #tpu.memory_space<vmem>>, %arg6: memref<32x128xf32, #tpu.memory_space<vmem>>, %arg7: memref<1x128xf32, #tpu.memory_space<vmem>>, %arg8: memref<32x128xbf16, #tpu.memory_space<vmem>>, %arg9: memref<32x128xbf16, #tpu.memory_space<vmem>>, %arg10: memref<32x128xf32, #tpu.memory_space<vmem>>, %arg11: memref<1x128xf32, #tpu.memory_space<vmem>>, %arg12: memref<32x128xbf16, #tpu.memory_space<vmem>>, %arg13: memref<32x128xbf16, #tpu.memory_space<vmem>>, %arg14: memref<32x128xf32, #tpu.memory_space<vmem>>, %arg15: memref<1x128xf32, #tpu.memory_space<vmem>>, %arg16: memref<8x80xf32, #tpu.memory_space<vmem>>, %arg17: memref<80x64xf32, #tpu.memory_space<vmem>>, %arg18: memref<1x64xf32, #tpu.memory_space<vmem>>, %arg19: memref<128x128xf32, #tpu.memory_space<vmem>>, %arg20: memref<1x128xf32, #tpu.memory_space<vmem>>, %arg21: memref<8x128xf32, #tpu.memory_space<vmem>>, %arg22: memref<64x128xf32, #tpu.memory_space<vmem>>, %arg23: memref<64x128xf32, #tpu.memory_space<vmem>>, %arg24: memref<64x32xf32, #tpu.memory_space<vmem>>, %arg25: memref<64x32xf32, #tpu.memory_space<vmem>>, %arg26: memref<8x32xf32, #tpu.memory_space<vmem>>, %arg27: memref<8x32xf32, #tpu.memory_space<vmem>>, %arg28: memref<8x32xf32, #tpu.memory_space<vmem>>, %arg29: memref<8x32xf32, #tpu.memory_space<vmem>>, %arg30: memref<8x32xf32, #tpu.memory_space<vmem>>) attributes {dimension_semantics = [], scalar_prefetch = 0 : i64, scratch_operands = 9 : i64, tpu.core_type = #tpu.core_type<tc>} {
    %c0 = arith.constant 0 : index
    %c0_0 = arith.constant 0 : index
    %0 = vector.load %arg0[%c0, %c0_0] : memref<64x32xbf16, #tpu.memory_space<vmem>>, vector<64x32xbf16>
    %c0_1 = arith.constant 0 : index
    %c0_2 = arith.constant 0 : index
    %1 = vector.load %arg2[%c0_1, %c0_2] : memref<32x128xbf16, #tpu.memory_space<vmem>>, vector<32x128xbf16>
    %cst = arith.constant dense<0.000000e+00> : vector<64x128xf32>
    %2 = tpu.matmul %0, %1, %cst {dimension_numbers = #tpu.dot_dimension_numbers<[1], [0], [0], [1], [0, 0, 1, 1], [], []>} : vector<64x32xbf16>, vector<32x128xbf16>, vector<64x128xf32> -> vector<64x128xf32>
    %c0_3 = arith.constant 0 : index
    %c0_4 = arith.constant 0 : index
    %3 = vector.load %arg4[%c0_3, %c0_4] : memref<1x128xf32, #tpu.memory_space<vmem>>, vector<1x128xf32>
    %4 = vector.broadcast %3 : vector<1x128xf32> to vector<64x128xf32>
    %5 = arith.addf %2, %4 : vector<64x128xf32>
    %c0_5 = arith.constant 0 : index
    %c0_6 = arith.constant 0 : index
    %6 = vector.load %arg22[%c0_5, %c0_6] : memref<64x128xf32, #tpu.memory_space<vmem>>, vector<64x128xf32>
    tpu.vector_store %arg22[%c0_5, %c0_6], %5 {strides = array<i32>} : memref<64x128xf32, #tpu.memory_space<vmem>>, vector<64x128xf32>,
    %c0_7 = arith.constant 0 : index
    %c0_8 = arith.constant 0 : index
    %7 = vector.load %arg5[%c0_7, %c0_8] : memref<32x128xbf16, #tpu.memory_space<vmem>>, vector<32x128xbf16>
    %cst_9 = arith.constant dense<0.000000e+00> : vector<64x128xf32>
    %8 = tpu.matmul %0, %7, %cst_9 {dimension_numbers = #tpu.dot_dimension_numbers<[1], [0], [0], [1], [0, 0, 1, 1], [], []>} : vector<64x32xbf16>, vector<32x128xbf16>, vector<64x128xf32> -> vector<64x128xf32>
    %c0_10 = arith.constant 0 : index
    %c0_11 = arith.constant 0 : index
    %9 = vector.load %arg7[%c0_10, %c0_11] : memref<1x128xf32, #tpu.memory_space<vmem>>, vector<1x128xf32>
    %10 = vector.broadcast %9 : vector<1x128xf32> to vector<64x128xf32>
    %11 = arith.addf %8, %10 : vector<64x128xf32>
    %c0_12 = arith.constant 0 : index
    %c0_13 = arith.constant 0 : index
    %12 = vector.load %arg23[%c0_12, %c0_13] : memref<64x128xf32, #tpu.memory_space<vmem>>, vector<64x128xf32>
    tpu.vector_store %arg23[%c0_12, %c0_13], %11 {strides = array<i32>} : memref<64x128xf32, #tpu.memory_space<vmem>>, vector<64x128xf32>,
    %c0_14 = arith.constant 0 : index
    %c0_15 = arith.constant 0 : index
    %13 = vector.load %arg3[%c0_14, %c0_15] : memref<32x128xf32, #tpu.memory_space<vmem>>, vector<32x128xf32>
    %c0_16 = arith.constant 0 : index
    %c0_17 = arith.constant 0 : index
    %14 = vector.load %arg6[%c0_16, %c0_17] : memref<32x128xf32, #tpu.memory_space<vmem>>, vector<32x128xf32>
    %cst_18 = arith.constant 0.000000e+00 : f32
    %15 = vector.broadcast %cst_18 : f32 to vector<8x32xf32>
    %c0_19 = arith.constant 0 : index
    %c0_20 = arith.constant 0 : index
    %16 = vector.load %arg26[%c0_19, %c0_20] : memref<8x32xf32, #tpu.memory_space<vmem>>, vector<8x32xf32>
    tpu.vector_store %arg26[%c0_19, %c0_20], %15 {strides = array<i32>} : memref<8x32xf32, #tpu.memory_space<vmem>>, vector<8x32xf32>,
    %cst_21 = arith.constant 0.000000e+00 : f32
    %17 = vector.broadcast %cst_21 : f32 to vector<8x32xf32>
    %c0_22 = arith.constant 0 : index
    %c0_23 = arith.constant 0 : index
    %18 = vector.load %arg27[%c0_22, %c0_23] : memref<8x32xf32, #tpu.memory_space<vmem>>, vector<8x32xf32>
    tpu.vector_store %arg27[%c0_22, %c0_23], %17 {strides = array<i32>} : memref<8x32xf32, #tpu.memory_space<vmem>>, vector<8x32xf32>,
    %cst_24 = arith.constant 0.000000e+00 : f32
    %19 = vector.broadcast %cst_24 : f32 to vector<8x32xf32>
    %c0_25 = arith.constant 0 : index
    %c0_26 = arith.constant 0 : index
    %20 = vector.load %arg28[%c0_25, %c0_26] : memref<8x32xf32, #tpu.memory_space<vmem>>, vector<8x32xf32>
    tpu.vector_store %arg28[%c0_25, %c0_26], %19 {strides = array<i32>} : memref<8x32xf32, #tpu.memory_space<vmem>>, vector<8x32xf32>,
    %cst_27 = arith.constant 0.000000e+00 : f32
    %21 = vector.broadcast %cst_27 : f32 to vector<8x32xf32>
    %c0_28 = arith.constant 0 : index
    %c0_29 = arith.constant 0 : index
    %22 = vector.load %arg29[%c0_28, %c0_29] : memref<8x32xf32, #tpu.memory_space<vmem>>, vector<8x32xf32>
    tpu.vector_store %arg29[%c0_28, %c0_29], %21 {strides = array<i32>} : memref<8x32xf32, #tpu.memory_space<vmem>>, vector<8x32xf32>,
    %c0_30 = arith.constant 0 : index
    %c0_31 = arith.constant 0 : index
    %23 = vector.load %arg1[%c0_30, %c0_31] : memref<64x1xf32, #tpu.memory_space<vmem>>, vector<8x1xf32>
    %c56 = arith.constant 56 : index
    %c0_32 = arith.constant 0 : index
    %24 = vector.load %arg1[%c56, %c0_32] : memref<64x1xf32, #tpu.memory_space<vmem>>, vector<8x1xf32>
    %c0_33 = arith.constant 0 : index
    %c0_34 = arith.constant 0 : index
    %25 = vector.load %arg22[%c0_33, %c0_34] : memref<64x128xf32, #tpu.memory_space<vmem>>, vector<8x128xf32>
    %c0_35 = arith.constant 0 : index
    %c0_36 = arith.constant 0 : index
    %26 = vector.load %arg26[%c0_35, %c0_36] : memref<8x32xf32, #tpu.memory_space<vmem>>, vector<8x32xf32>
    %cst_37 = arith.constant dense<0.000000e+00> : vector<8x128xf32>
    %27 = tpu.matmul %26, %13, %cst_37 {dimension_numbers = #tpu.dot_dimension_numbers<[1], [0], [0], [1], [0, 0, 1, 1], [], []>} : vector<8x32xf32>, vector<32x128xf32>, vector<8x128xf32> -> vector<8x128xf32>
    %28 = arith.addf %25, %27 : vector<8x128xf32>
    %c56_38 = arith.constant 56 : index
    %c0_39 = arith.constant 0 : index
    %29 = vector.load %arg23[%c56_38, %c0_39] : memref<64x128xf32, #tpu.memory_space<vmem>>, vector<8x128xf32>
    %c0_40 = arith.constant 0 : index
    %c0_41 = arith.constant 0 : index
    %30 = vector.load %arg28[%c0_40, %c0_41] : memref<8x32xf32, #tpu.memory_space<vmem>>, vector<8x32xf32>
    %cst_42 = arith.constant dense<0.000000e+00> : vector<8x128xf32>
    %31 = tpu.matmul %30, %14, %cst_42 {dimension_numbers = #tpu.dot_dimension_numbers<[1], [0], [0], [1], [0, 0, 1, 1], [], []>} : vector<8x32xf32>, vector<32x128xf32>, vector<8x128xf32> -> vector<8x128xf32>
    %32 = arith.addf %29, %31 : vector<8x128xf32>
    %c0_43 = arith.constant 0 : index
    %c0_44 = arith.constant 0 : index
    %33 = vector.load %arg27[%c0_43, %c0_44] : memref<8x32xf32, #tpu.memory_space<vmem>>, vector<8x32xf32>
    %34 = vector.extract_strided_slice %28 {offsets = [0, 0], sizes = [8, 32], strides = [1, 1]} : vector<8x128xf32> to vector<8x32xf32>
    %35 = arith.negf %34 : vector<8x32xf32>
    %36 = math.exp %35 : vector<8x32xf32>
    %cst_45 = arith.constant 1.000000e+00 : f32
    %37 = vector.broadcast %cst_45 : f32 to vector<8x32xf32>
    %38 = arith.addf %37, %36 : vector<8x32xf32>
    %39 = arith.divf %37, %38 : vector<8x32xf32>
    %40 = vector.extract_strided_slice %28 {offsets = [0, 32], sizes = [8, 32], strides = [1, 1]} : vector<8x128xf32> to vector<8x32xf32>
    %41 = arith.negf %40 : vector<8x32xf32>
    %42 = math.exp %41 : vector<8x32xf32>
    %cst_46 = arith.constant 1.000000e+00 : f32
    %43 = vector.broadcast %cst_46 : f32 to vector<8x32xf32>
    %44 = arith.addf %43, %42 : vector<8x32xf32>
    %45 = arith.divf %43, %44 : vector<8x32xf32>
    %46 = vector.extract_strided_slice %28 {offsets = [0, 64], sizes = [8, 32], strides = [1, 1]} : vector<8x128xf32> to vector<8x32xf32>
    %47 = math.tanh %46 : vector<8x32xf32>
    %48 = vector.extract_strided_slice %28 {offsets = [0, 96], sizes = [8, 32], strides = [1, 1]} : vector<8x128xf32> to vector<8x32xf32>
    %49 = arith.negf %48 : vector<8x32xf32>
    %50 = math.exp %49 : vector<8x32xf32>
    %cst_47 = arith.constant 1.000000e+00 : f32
    %51 = vector.broadcast %cst_47 : f32 to vector<8x32xf32>
    %52 = arith.addf %51, %50 : vector<8x32xf32>
    %53 = arith.divf %51, %52 : vector<8x32xf32>
    %54 = arith.mulf %45, %33 : vector<8x32xf32>
    %55 = arith.mulf %39, %47 : vector<8x32xf32>
    %56 = arith.addf %54, %55 : vector<8x32xf32>
    %57 = math.tanh %56 : vector<8x32xf32>
    %58 = arith.mulf %53, %57 : vector<8x32xf32>
    %c0_48 = arith.constant 0 : index
    %c0_49 = arith.constant 0 : index
    %59 = vector.load %arg29[%c0_48, %c0_49] : memref<8x32xf32, #tpu.memory_space<vmem>>, vector<8x32xf32>
    %60 = vector.extract_strided_slice %32 {offsets = [0, 0], sizes = [8, 32], strides = [1, 1]} : vector<8x128xf32> to vector<8x32xf32>
    %61 = arith.negf %60 : vector<8x32xf32>
    %62 = math.exp %61 : vector<8x32xf32>
    %cst_50 = arith.constant 1.000000e+00 : f32
    %63 = vector.broadcast %cst_50 : f32 to vector<8x32xf32>
    %64 = arith.addf %63, %62 : vector<8x32xf32>
    %65 = arith.divf %63, %64 : vector<8x32xf32>
    %66 = vector.extract_strided_slice %32 {offsets = [0, 32], sizes = [8, 32], strides = [1, 1]} : vector<8x128xf32> to vector<8x32xf32>
    %67 = arith.negf %66 : vector<8x32xf32>
    %68 = math.exp %67 : vector<8x32xf32>
    %cst_51 = arith.constant 1.000000e+00 : f32
    %69 = vector.broadcast %cst_51 : f32 to vector<8x32xf32>
    %70 = arith.addf %69, %68 : vector<8x32xf32>
    %71 = arith.divf %69, %70 : vector<8x32xf32>
    %72 = vector.extract_strided_slice %32 {offsets = [0, 64], sizes = [8, 32], strides = [1, 1]} : vector<8x128xf32> to vector<8x32xf32>
    %73 = math.tanh %72 : vector<8x32xf32>
    %74 = vector.extract_strided_slice %32 {offsets = [0, 96], sizes = [8, 32], strides = [1, 1]} : vector<8x128xf32> to vector<8x32xf32>
    %75 = arith.negf %74 : vector<8x32xf32>
    %76 = math.exp %75 : vector<8x32xf32>
    %cst_52 = arith.constant 1.000000e+00 : f32
    %77 = vector.broadcast %cst_52 : f32 to vector<8x32xf32>
    %78 = arith.addf %77, %76 : vector<8x32xf32>
    %79 = arith.divf %77, %78 : vector<8x32xf32>
    %80 = arith.mulf %71, %59 : vector<8x32xf32>
    %81 = arith.mulf %65, %73 : vector<8x32xf32>
    %82 = arith.addf %80, %81 : vector<8x32xf32>
    %83 = math.tanh %82 : vector<8x32xf32>
    %84 = arith.mulf %79, %83 : vector<8x32xf32>
    %85 = vector.broadcast %23 : vector<8x1xf32> to vector<8x32xf32>
    %86 = arith.mulf %85, %58 : vector<8x32xf32>
    %c0_53 = arith.constant 0 : index
    %c0_54 = arith.constant 0 : index
    %87 = vector.load %arg26[%c0_53, %c0_54] : memref<8x32xf32, #tpu.memory_space<vmem>>, vector<8x32xf32>
    tpu.vector_store %arg26[%c0_53, %c0_54], %86 {strides = array<i32>} : memref<8x32xf32, #tpu.memory_space<vmem>>, vector<8x32xf32>,
    %88 = vector.broadcast %23 : vector<8x1xf32> to vector<8x32xf32>
    %89 = arith.mulf %88, %56 : vector<8x32xf32>
    %c0_55 = arith.constant 0 : index
    %c0_56 = arith.constant 0 : index
    %90 = vector.load %arg27[%c0_55, %c0_56] : memref<8x32xf32, #tpu.memory_space<vmem>>, vector<8x32xf32>
    tpu.vector_store %arg27[%c0_55, %c0_56], %89 {strides = array<i32>} : memref<8x32xf32, #tpu.memory_space<vmem>>, vector<8x32xf32>,
    %91 = vector.broadcast %24 : vector<8x1xf32> to vector<8x32xf32>
    %92 = arith.mulf %91, %84 : vector<8x32xf32>
    %c0_57 = arith.constant 0 : index
    %c0_58 = arith.constant 0 : index
    %93 = vector.load %arg28[%c0_57, %c0_58] : memref<8x32xf32, #tpu.memory_space<vmem>>, vector<8x32xf32>
    tpu.vector_store %arg28[%c0_57, %c0_58], %92 {strides = array<i32>} : memref<8x32xf32, #tpu.memory_space<vmem>>, vector<8x32xf32>,
    %94 = vector.broadcast %24 : vector<8x1xf32> to vector<8x32xf32>
    %95 = arith.mulf %94, %82 : vector<8x32xf32>
    %c0_59 = arith.constant 0 : index
    %c0_60 = arith.constant 0 : index
    %96 = vector.load %arg29[%c0_59, %c0_60] : memref<8x32xf32, #tpu.memory_space<vmem>>, vector<8x32xf32>
    tpu.vector_store %arg29[%c0_59, %c0_60], %95 {strides = array<i32>} : memref<8x32xf32, #tpu.memory_space<vmem>>, vector<8x32xf32>,
    %97 = vector.broadcast %23 : vector<8x1xf32> to vector<8x32xf32>
    %98 = arith.mulf %97, %58 : vector<8x32xf32>
    %c0_61 = arith.constant 0 : index
    %c0_62 = arith.constant 0 : index
    %99 = vector.load %arg24[%c0_61, %c0_62] : memref<64x32xf32, #tpu.memory_space<vmem>>, vector<8x32xf32>
    tpu.vector_store %arg24[%c0_61, %c0_62], %98 {strides = array<i32>} : memref<64x32xf32, #tpu.memory_space<vmem>>, vector<8x32xf32>,
    %100 = vector.broadcast %24 : vector<8x1xf32> to vector<8x32xf32>
    %101 = arith.mulf %100, %84 : vector<8x32xf32>
    %c56_63 = arith.constant 56 : index
    %c0_64 = arith.constant 0 : index
    %102 = vector.load %arg25[%c56_63, %c0_64] : memref<64x32xf32, #tpu.memory_space<vmem>>, vector<8x32xf32>
    tpu.vector_store %arg25[%c56_63, %c0_64], %101 {strides = array<i32>} : memref<64x32xf32, #tpu.memory_space<vmem>>, vector<8x32xf32>,
    %c8 = arith.constant 8 : index
    %c0_65 = arith.constant 0 : index
    %103 = vector.load %arg1[%c8, %c0_65] : memref<64x1xf32, #tpu.memory_space<vmem>>, vector<8x1xf32>
    %c48 = arith.constant 48 : index
    %c0_66 = arith.constant 0 : index
    %104 = vector.load %arg1[%c48, %c0_66] : memref<64x1xf32, #tpu.memory_space<vmem>>, vector<8x1xf32>
    %c8_67 = arith.constant 8 : index
    %c0_68 = arith.constant 0 : index
    %105 = vector.load %arg22[%c8_67, %c0_68] : memref<64x128xf32, #tpu.memory_space<vmem>>, vector<8x128xf32>
    %c0_69 = arith.constant 0 : index
    %c0_70 = arith.constant 0 : index
    %106 = vector.load %arg26[%c0_69, %c0_70] : memref<8x32xf32, #tpu.memory_space<vmem>>, vector<8x32xf32>
    %cst_71 = arith.constant dense<0.000000e+00> : vector<8x128xf32>
    %107 = tpu.matmul %106, %13, %cst_71 {dimension_numbers = #tpu.dot_dimension_numbers<[1], [0], [0], [1], [0, 0, 1, 1], [], []>} : vector<8x32xf32>, vector<32x128xf32>, vector<8x128xf32> -> vector<8x128xf32>
    %108 = arith.addf %105, %107 : vector<8x128xf32>
    %c48_72 = arith.constant 48 : index
    %c0_73 = arith.constant 0 : index
    %109 = vector.load %arg23[%c48_72, %c0_73] : memref<64x128xf32, #tpu.memory_space<vmem>>, vector<8x128xf32>
    %c0_74 = arith.constant 0 : index
    %c0_75 = arith.constant 0 : index
    %110 = vector.load %arg28[%c0_74, %c0_75] : memref<8x32xf32, #tpu.memory_space<vmem>>, vector<8x32xf32>
    %cst_76 = arith.constant dense<0.000000e+00> : vector<8x128xf32>
    %111 = tpu.matmul %110, %14, %cst_76 {dimension_numbers = #tpu.dot_dimension_numbers<[1], [0], [0], [1], [0, 0, 1, 1], [], []>} : vector<8x32xf32>, vector<32x128xf32>, vector<8x128xf32> -> vector<8x128xf32>
    %112 = arith.addf %109, %111 : vector<8x128xf32>
    %c0_77 = arith.constant 0 : index
    %c0_78 = arith.constant 0 : index
    %113 = vector.load %arg27[%c0_77, %c0_78] : memref<8x32xf32, #tpu.memory_space<vmem>>, vector<8x32xf32>
    %114 = vector.extract_strided_slice %108 {offsets = [0, 0], sizes = [8, 32], strides = [1, 1]} : vector<8x128xf32> to vector<8x32xf32>
    %115 = arith.negf %114 : vector<8x32xf32>
    %116 = math.exp %115 : vector<8x32xf32>
    %cst_79 = arith.constant 1.000000e+00 : f32
    %117 = vector.broadcast %cst_79 : f32 to vector<8x32xf32>
    %118 = arith.addf %117, %116 : vector<8x32xf32>
    %119 = arith.divf %117, %118 : vector<8x32xf32>
    %120 = vector.extract_strided_slice %108 {offsets = [0, 32], sizes = [8, 32], strides = [1, 1]} : vector<8x128xf32> to vector<8x32xf32>
    %121 = arith.negf %120 : vector<8x32xf32>
    %122 = math.exp %121 : vector<8x32xf32>
    %cst_80 = arith.constant 1.000000e+00 : f32
    %123 = vector.broadcast %cst_80 : f32 to vector<8x32xf32>
    %124 = arith.addf %123, %122 : vector<8x32xf32>
    %125 = arith.divf %123, %124 : vector<8x32xf32>
    %126 = vector.extract_strided_slice %108 {offsets = [0, 64], sizes = [8, 32], strides = [1, 1]} : vector<8x128xf32> to vector<8x32xf32>
    %127 = math.tanh %126 : vector<8x32xf32>
    %128 = vector.extract_strided_slice %108 {offsets = [0, 96], sizes = [8, 32], strides = [1, 1]} : vector<8x128xf32> to vector<8x32xf32>
    %129 = arith.negf %128 : vector<8x32xf32>
    %130 = math.exp %129 : vector<8x32xf32>
    %cst_81 = arith.constant 1.000000e+00 : f32
    %131 = vector.broadcast %cst_81 : f32 to vector<8x32xf32>
    %132 = arith.addf %131, %130 : vector<8x32xf32>
    %133 = arith.divf %131, %132 : vector<8x32xf32>
    %134 = arith.mulf %125, %113 : vector<8x32xf32>
    %135 = arith.mulf %119, %127 : vector<8x32xf32>
    %136 = arith.addf %134, %135 : vector<8x32xf32>
    %137 = math.tanh %136 : vector<8x32xf32>
    %138 = arith.mulf %133, %137 : vector<8x32xf32>
    %c0_82 = arith.constant 0 : index
    %c0_83 = arith.constant 0 : index
    %139 = vector.load %arg29[%c0_82, %c0_83] : memref<8x32xf32, #tpu.memory_space<vmem>>, vector<8x32xf32>
    %140 = vector.extract_strided_slice %112 {offsets = [0, 0], sizes = [8, 32], strides = [1, 1]} : vector<8x128xf32> to vector<8x32xf32>
    %141 = arith.negf %140 : vector<8x32xf32>
    %142 = math.exp %141 : vector<8x32xf32>
    %cst_84 = arith.constant 1.000000e+00 : f32
    %143 = vector.broadcast %cst_84 : f32 to vector<8x32xf32>
    %144 = arith.addf %143, %142 : vector<8x32xf32>
    %145 = arith.divf %143, %144 : vector<8x32xf32>
    %146 = vector.extract_strided_slice %112 {offsets = [0, 32], sizes = [8, 32], strides = [1, 1]} : vector<8x128xf32> to vector<8x32xf32>
    %147 = arith.negf %146 : vector<8x32xf32>
    %148 = math.exp %147 : vector<8x32xf32>
    %cst_85 = arith.constant 1.000000e+00 : f32
    %149 = vector.broadcast %cst_85 : f32 to vector<8x32xf32>
    %150 = arith.addf %149, %148 : vector<8x32xf32>
    %151 = arith.divf %149, %150 : vector<8x32xf32>
    %152 = vector.extract_strided_slice %112 {offsets = [0, 64], sizes = [8, 32], strides = [1, 1]} : vector<8x128xf32> to vector<8x32xf32>
    %153 = math.tanh %152 : vector<8x32xf32>
    %154 = vector.extract_strided_slice %112 {offsets = [0, 96], sizes = [8, 32], strides = [1, 1]} : vector<8x128xf32> to vector<8x32xf32>
    %155 = arith.negf %154 : vector<8x32xf32>
    %156 = math.exp %155 : vector<8x32xf32>
    %cst_86 = arith.constant 1.000000e+00 : f32
    %157 = vector.broadcast %cst_86 : f32 to vector<8x32xf32>
    %158 = arith.addf %157, %156 : vector<8x32xf32>
    %159 = arith.divf %157, %158 : vector<8x32xf32>
    %160 = arith.mulf %151, %139 : vector<8x32xf32>
    %161 = arith.mulf %145, %153 : vector<8x32xf32>
    %162 = arith.addf %160, %161 : vector<8x32xf32>
    %163 = math.tanh %162 : vector<8x32xf32>
    %164 = arith.mulf %159, %163 : vector<8x32xf32>
    %165 = vector.broadcast %103 : vector<8x1xf32> to vector<8x32xf32>
    %166 = arith.mulf %165, %138 : vector<8x32xf32>
    %c0_87 = arith.constant 0 : index
    %c0_88 = arith.constant 0 : index
    %167 = vector.load %arg26[%c0_87, %c0_88] : memref<8x32xf32, #tpu.memory_space<vmem>>, vector<8x32xf32>
    tpu.vector_store %arg26[%c0_87, %c0_88], %166 {strides = array<i32>} : memref<8x32xf32, #tpu.memory_space<vmem>>, vector<8x32xf32>,
    %168 = vector.broadcast %103 : vector<8x1xf32> to vector<8x32xf32>
    %169 = arith.mulf %168, %136 : vector<8x32xf32>
    %c0_89 = arith.constant 0 : index
    %c0_90 = arith.constant 0 : index
    %170 = vector.load %arg27[%c0_89, %c0_90] : memref<8x32xf32, #tpu.memory_space<vmem>>, vector<8x32xf32>
    tpu.vector_store %arg27[%c0_89, %c0_90], %169 {strides = array<i32>} : memref<8x32xf32, #tpu.memory_space<vmem>>, vector<8x32xf32>,
    %171 = vector.broadcast %104 : vector<8x1xf32> to vector<8x32xf32>
    %172 = arith.mulf %171, %164 : vector<8x32xf32>
    %c0_91 = arith.constant 0 : index
    %c0_92 = arith.constant 0 : index
    %173 = vector.load %arg28[%c0_91, %c0_92] : memref<8x32xf32, #tpu.memory_space<vmem>>, vector<8x32xf32>
    tpu.vector_store %arg28[%c0_91, %c0_92], %172 {strides = array<i32>} : memref<8x32xf32, #tpu.memory_space<vmem>>, vector<8x32xf32>,
    %174 = vector.broadcast %104 : vector<8x1xf32> to vector<8x32xf32>
    %175 = arith.mulf %174, %162 : vector<8x32xf32>
    %c0_93 = arith.constant 0 : index
    %c0_94 = arith.constant 0 : index
    %176 = vector.load %arg29[%c0_93, %c0_94] : memref<8x32xf32, #tpu.memory_space<vmem>>, vector<8x32xf32>
    tpu.vector_store %arg29[%c0_93, %c0_94], %175 {strides = array<i32>} : memref<8x32xf32, #tpu.memory_space<vmem>>, vector<8x32xf32>,
    %177 = vector.broadcast %103 : vector<8x1xf32> to vector<8x32xf32>
    %178 = arith.mulf %177, %138 : vector<8x32xf32>
    %c8_95 = arith.constant 8 : index
    %c0_96 = arith.constant 0 : index
    %179 = vector.load %arg24[%c8_95, %c0_96] : memref<64x32xf32, #tpu.memory_space<vmem>>, vector<8x32xf32>
    tpu.vector_store %arg24[%c8_95, %c0_96], %178 {strides = array<i32>} : memref<64x32xf32, #tpu.memory_space<vmem>>, vector<8x32xf32>,
    %180 = vector.broadcast %104 : vector<8x1xf32> to vector<8x32xf32>
    %181 = arith.mulf %180, %164 : vector<8x32xf32>
    %c48_97 = arith.constant 48 : index
    %c0_98 = arith.constant 0 : index
    %182 = vector.load %arg25[%c48_97, %c0_98] : memref<64x32xf32, #tpu.memory_space<vmem>>, vector<8x32xf32>
    tpu.vector_store %arg25[%c48_97, %c0_98], %181 {strides = array<i32>} : memref<64x32xf32, #tpu.memory_space<vmem>>, vector<8x32xf32>,
    %c16 = arith.constant 16 : index
    %c0_99 = arith.constant 0 : index
    %183 = vector.load %arg1[%c16, %c0_99] : memref<64x1xf32, #tpu.memory_space<vmem>>, vector<8x1xf32>
    %c40 = arith.constant 40 : index
    %c0_100 = arith.constant 0 : index
    %184 = vector.load %arg1[%c40, %c0_100] : memref<64x1xf32, #tpu.memory_space<vmem>>, vector<8x1xf32>
    %c16_101 = arith.constant 16 : index
    %c0_102 = arith.constant 0 : index
    %185 = vector.load %arg22[%c16_101, %c0_102] : memref<64x128xf32, #tpu.memory_space<vmem>>, vector<8x128xf32>
    %c0_103 = arith.constant 0 : index
    %c0_104 = arith.constant 0 : index
    %186 = vector.load %arg26[%c0_103, %c0_104] : memref<8x32xf32, #tpu.memory_space<vmem>>, vector<8x32xf32>
    %cst_105 = arith.constant dense<0.000000e+00> : vector<8x128xf32>
    %187 = tpu.matmul %186, %13, %cst_105 {dimension_numbers = #tpu.dot_dimension_numbers<[1], [0], [0], [1], [0, 0, 1, 1], [], []>} : vector<8x32xf32>, vector<32x128xf32>, vector<8x128xf32> -> vector<8x128xf32>
    %188 = arith.addf %185, %187 : vector<8x128xf32>
    %c40_106 = arith.constant 40 : index
    %c0_107 = arith.constant 0 : index
    %189 = vector.load %arg23[%c40_106, %c0_107] : memref<64x128xf32, #tpu.memory_space<vmem>>, vector<8x128xf32>
    %c0_108 = arith.constant 0 : index
    %c0_109 = arith.constant 0 : index
    %190 = vector.load %arg28[%c0_108, %c0_109] : memref<8x32xf32, #tpu.memory_space<vmem>>, vector<8x32xf32>
    %cst_110 = arith.constant dense<0.000000e+00> : vector<8x128xf32>
    %191 = tpu.matmul %190, %14, %cst_110 {dimension_numbers = #tpu.dot_dimension_numbers<[1], [0], [0], [1], [0, 0, 1, 1], [], []>} : vector<8x32xf32>, vector<32x128xf32>, vector<8x128xf32> -> vector<8x128xf32>
    %192 = arith.addf %189, %191 : vector<8x128xf32>
    %c0_111 = arith.constant 0 : index
    %c0_112 = arith.constant 0 : index
    %193 = vector.load %arg27[%c0_111, %c0_112] : memref<8x32xf32, #tpu.memory_space<vmem>>, vector<8x32xf32>
    %194 = vector.extract_strided_slice %188 {offsets = [0, 0], sizes = [8, 32], strides = [1, 1]} : vector<8x128xf32> to vector<8x32xf32>
    %195 = arith.negf %194 : vector<8x32xf32>
    %196 = math.exp %195 : vector<8x32xf32>
    %cst_113 = arith.constant 1.000000e+00 : f32
    %197 = vector.broadcast %cst_113 : f32 to vector<8x32xf32>
    %198 = arith.addf %197, %196 : vector<8x32xf32>
    %199 = arith.divf %197, %198 : vector<8x32xf32>
    %200 = vector.extract_strided_slice %188 {offsets = [0, 32], sizes = [8, 32], strides = [1, 1]} : vector<8x128xf32> to vector<8x32xf32>
    %201 = arith.negf %200 : vector<8x32xf32>
    %202 = math.exp %201 : vector<8x32xf32>
    %cst_114 = arith.constant 1.000000e+00 : f32
    %203 = vector.broadcast %cst_114 : f32 to vector<8x32xf32>
    %204 = arith.addf %203, %202 : vector<8x32xf32>
    %205 = arith.divf %203, %204 : vector<8x32xf32>
    %206 = vector.extract_strided_slice %188 {offsets = [0, 64], sizes = [8, 32], strides = [1, 1]} : vector<8x128xf32> to vector<8x32xf32>
    %207 = math.tanh %206 : vector<8x32xf32>
    %208 = vector.extract_strided_slice %188 {offsets = [0, 96], sizes = [8, 32], strides = [1, 1]} : vector<8x128xf32> to vector<8x32xf32>
    %209 = arith.negf %208 : vector<8x32xf32>
    %210 = math.exp %209 : vector<8x32xf32>
    %cst_115 = arith.constant 1.000000e+00 : f32
    %211 = vector.broadcast %cst_115 : f32 to vector<8x32xf32>
    %212 = arith.addf %211, %210 : vector<8x32xf32>
    %213 = arith.divf %211, %212 : vector<8x32xf32>
    %214 = arith.mulf %205, %193 : vector<8x32xf32>
    %215 = arith.mulf %199, %207 : vector<8x32xf32>
    %216 = arith.addf %214, %215 : vector<8x32xf32>
    %217 = math.tanh %216 : vector<8x32xf32>
    %218 = arith.mulf %213, %217 : vector<8x32xf32>
    %c0_116 = arith.constant 0 : index
    %c0_117 = arith.constant 0 : index
    %219 = vector.load %arg29[%c0_116, %c0_117] : memref<8x32xf32, #tpu.memory_space<vmem>>, vector<8x32xf32>
    %220 = vector.extract_strided_slice %192 {offsets = [0, 0], sizes = [8, 32], strides = [1, 1]} : vector<8x128xf32> to vector<8x32xf32>
    %221 = arith.negf %220 : vector<8x32xf32>
    %222 = math.exp %221 : vector<8x32xf32>
    %cst_118 = arith.constant 1.000000e+00 : f32
    %223 = vector.broadcast %cst_118 : f32 to vector<8x32xf32>
    %224 = arith.addf %223, %222 : vector<8x32xf32>
    %225 = arith.divf %223, %224 : vector<8x32xf32>
    %226 = vector.extract_strided_slice %192 {offsets = [0, 32], sizes = [8, 32], strides = [1, 1]} : vector<8x128xf32> to vector<8x32xf32>
    %227 = arith.negf %226 : vector<8x32xf32>
    %228 = math.exp %227 : vector<8x32xf32>
    %cst_119 = arith.constant 1.000000e+00 : f32
    %229 = vector.broadcast %cst_119 : f32 to vector<8x32xf32>
    %230 = arith.addf %229, %228 : vector<8x32xf32>
    %231 = arith.divf %229, %230 : vector<8x32xf32>
    %232 = vector.extract_strided_slice %192 {offsets = [0, 64], sizes = [8, 32], strides = [1, 1]} : vector<8x128xf32> to vector<8x32xf32>
    %233 = math.tanh %232 : vector<8x32xf32>
    %234 = vector.extract_strided_slice %192 {offsets = [0, 96], sizes = [8, 32], strides = [1, 1]} : vector<8x128xf32> to vector<8x32xf32>
    %235 = arith.negf %234 : vector<8x32xf32>
    %236 = math.exp %235 : vector<8x32xf32>
    %cst_120 = arith.constant 1.000000e+00 : f32
    %237 = vector.broadcast %cst_120 : f32 to vector<8x32xf32>
    %238 = arith.addf %237, %236 : vector<8x32xf32>
    %239 = arith.divf %237, %238 : vector<8x32xf32>
    %240 = arith.mulf %231, %219 : vector<8x32xf32>
    %241 = arith.mulf %225, %233 : vector<8x32xf32>
    %242 = arith.addf %240, %241 : vector<8x32xf32>
    %243 = math.tanh %242 : vector<8x32xf32>
    %244 = arith.mulf %239, %243 : vector<8x32xf32>
    %245 = vector.broadcast %183 : vector<8x1xf32> to vector<8x32xf32>
    %246 = arith.mulf %245, %218 : vector<8x32xf32>
    %c0_121 = arith.constant 0 : index
    %c0_122 = arith.constant 0 : index
    %247 = vector.load %arg26[%c0_121, %c0_122] : memref<8x32xf32, #tpu.memory_space<vmem>>, vector<8x32xf32>
    tpu.vector_store %arg26[%c0_121, %c0_122], %246 {strides = array<i32>} : memref<8x32xf32, #tpu.memory_space<vmem>>, vector<8x32xf32>,
    %248 = vector.broadcast %183 : vector<8x1xf32> to vector<8x32xf32>
    %249 = arith.mulf %248, %216 : vector<8x32xf32>
    %c0_123 = arith.constant 0 : index
    %c0_124 = arith.constant 0 : index
    %250 = vector.load %arg27[%c0_123, %c0_124] : memref<8x32xf32, #tpu.memory_space<vmem>>, vector<8x32xf32>
    tpu.vector_store %arg27[%c0_123, %c0_124], %249 {strides = array<i32>} : memref<8x32xf32, #tpu.memory_space<vmem>>, vector<8x32xf32>,
    %251 = vector.broadcast %184 : vector<8x1xf32> to vector<8x32xf32>
    %252 = arith.mulf %251, %244 : vector<8x32xf32>
    %c0_125 = arith.constant 0 : index
    %c0_126 = arith.constant 0 : index
    %253 = vector.load %arg28[%c0_125, %c0_126] : memref<8x32xf32, #tpu.memory_space<vmem>>, vector<8x32xf32>
    tpu.vector_store %arg28[%c0_125, %c0_126], %252 {strides = array<i32>} : memref<8x32xf32, #tpu.memory_space<vmem>>, vector<8x32xf32>,
    %254 = vector.broadcast %184 : vector<8x1xf32> to vector<8x32xf32>
    %255 = arith.mulf %254, %242 : vector<8x32xf32>
    %c0_127 = arith.constant 0 : index
    %c0_128 = arith.constant 0 : index
    %256 = vector.load %arg29[%c0_127, %c0_128] : memref<8x32xf32, #tpu.memory_space<vmem>>, vector<8x32xf32>
    tpu.vector_store %arg29[%c0_127, %c0_128], %255 {strides = array<i32>} : memref<8x32xf32, #tpu.memory_space<vmem>>, vector<8x32xf32>,
    %257 = vector.broadcast %183 : vector<8x1xf32> to vector<8x32xf32>
    %258 = arith.mulf %257, %218 : vector<8x32xf32>
    %c16_129 = arith.constant 16 : index
    %c0_130 = arith.constant 0 : index
    %259 = vector.load %arg24[%c16_129, %c0_130] : memref<64x32xf32, #tpu.memory_space<vmem>>, vector<8x32xf32>
    tpu.vector_store %arg24[%c16_129, %c0_130], %258 {strides = array<i32>} : memref<64x32xf32, #tpu.memory_space<vmem>>, vector<8x32xf32>,
    %260 = vector.broadcast %184 : vector<8x1xf32> to vector<8x32xf32>
    %261 = arith.mulf %260, %244 : vector<8x32xf32>
    %c40_131 = arith.constant 40 : index
    %c0_132 = arith.constant 0 : index
    %262 = vector.load %arg25[%c40_131, %c0_132] : memref<64x32xf32, #tpu.memory_space<vmem>>, vector<8x32xf32>
    tpu.vector_store %arg25[%c40_131, %c0_132], %261 {strides = array<i32>} : memref<64x32xf32, #tpu.memory_space<vmem>>, vector<8x32xf32>,
    %c24 = arith.constant 24 : index
    %c0_133 = arith.constant 0 : index
    %263 = vector.load %arg1[%c24, %c0_133] : memref<64x1xf32, #tpu.memory_space<vmem>>, vector<8x1xf32>
    %c32 = arith.constant 32 : index
    %c0_134 = arith.constant 0 : index
    %264 = vector.load %arg1[%c32, %c0_134] : memref<64x1xf32, #tpu.memory_space<vmem>>, vector<8x1xf32>
    %c24_135 = arith.constant 24 : index
    %c0_136 = arith.constant 0 : index
    %265 = vector.load %arg22[%c24_135, %c0_136] : memref<64x128xf32, #tpu.memory_space<vmem>>, vector<8x128xf32>
    %c0_137 = arith.constant 0 : index
    %c0_138 = arith.constant 0 : index
    %266 = vector.load %arg26[%c0_137, %c0_138] : memref<8x32xf32, #tpu.memory_space<vmem>>, vector<8x32xf32>
    %cst_139 = arith.constant dense<0.000000e+00> : vector<8x128xf32>
    %267 = tpu.matmul %266, %13, %cst_139 {dimension_numbers = #tpu.dot_dimension_numbers<[1], [0], [0], [1], [0, 0, 1, 1], [], []>} : vector<8x32xf32>, vector<32x128xf32>, vector<8x128xf32> -> vector<8x128xf32>
    %268 = arith.addf %265, %267 : vector<8x128xf32>
    %c32_140 = arith.constant 32 : index
    %c0_141 = arith.constant 0 : index
    %269 = vector.load %arg23[%c32_140, %c0_141] : memref<64x128xf32, #tpu.memory_space<vmem>>, vector<8x128xf32>
    %c0_142 = arith.constant 0 : index
    %c0_143 = arith.constant 0 : index
    %270 = vector.load %arg28[%c0_142, %c0_143] : memref<8x32xf32, #tpu.memory_space<vmem>>, vector<8x32xf32>
    %cst_144 = arith.constant dense<0.000000e+00> : vector<8x128xf32>
    %271 = tpu.matmul %270, %14, %cst_144 {dimension_numbers = #tpu.dot_dimension_numbers<[1], [0], [0], [1], [0, 0, 1, 1], [], []>} : vector<8x32xf32>, vector<32x128xf32>, vector<8x128xf32> -> vector<8x128xf32>
    %272 = arith.addf %269, %271 : vector<8x128xf32>
    %c0_145 = arith.constant 0 : index
    %c0_146 = arith.constant 0 : index
    %273 = vector.load %arg27[%c0_145, %c0_146] : memref<8x32xf32, #tpu.memory_space<vmem>>, vector<8x32xf32>
    %274 = vector.extract_strided_slice %268 {offsets = [0, 0], sizes = [8, 32], strides = [1, 1]} : vector<8x128xf32> to vector<8x32xf32>
    %275 = arith.negf %274 : vector<8x32xf32>
    %276 = math.exp %275 : vector<8x32xf32>
    %cst_147 = arith.constant 1.000000e+00 : f32
    %277 = vector.broadcast %cst_147 : f32 to vector<8x32xf32>
    %278 = arith.addf %277, %276 : vector<8x32xf32>
    %279 = arith.divf %277, %278 : vector<8x32xf32>
    %280 = vector.extract_strided_slice %268 {offsets = [0, 32], sizes = [8, 32], strides = [1, 1]} : vector<8x128xf32> to vector<8x32xf32>
    %281 = arith.negf %280 : vector<8x32xf32>
    %282 = math.exp %281 : vector<8x32xf32>
    %cst_148 = arith.constant 1.000000e+00 : f32
    %283 = vector.broadcast %cst_148 : f32 to vector<8x32xf32>
    %284 = arith.addf %283, %282 : vector<8x32xf32>
    %285 = arith.divf %283, %284 : vector<8x32xf32>
    %286 = vector.extract_strided_slice %268 {offsets = [0, 64], sizes = [8, 32], strides = [1, 1]} : vector<8x128xf32> to vector<8x32xf32>
    %287 = math.tanh %286 : vector<8x32xf32>
    %288 = vector.extract_strided_slice %268 {offsets = [0, 96], sizes = [8, 32], strides = [1, 1]} : vector<8x128xf32> to vector<8x32xf32>
    %289 = arith.negf %288 : vector<8x32xf32>
    %290 = math.exp %289 : vector<8x32xf32>
    %cst_149 = arith.constant 1.000000e+00 : f32
    %291 = vector.broadcast %cst_149 : f32 to vector<8x32xf32>
    %292 = arith.addf %291, %290 : vector<8x32xf32>
    %293 = arith.divf %291, %292 : vector<8x32xf32>
    %294 = arith.mulf %285, %273 : vector<8x32xf32>
    %295 = arith.mulf %279, %287 : vector<8x32xf32>
    %296 = arith.addf %294, %295 : vector<8x32xf32>
    %297 = math.tanh %296 : vector<8x32xf32>
    %298 = arith.mulf %293, %297 : vector<8x32xf32>
    %c0_150 = arith.constant 0 : index
    %c0_151 = arith.constant 0 : index
    %299 = vector.load %arg29[%c0_150, %c0_151] : memref<8x32xf32, #tpu.memory_space<vmem>>, vector<8x32xf32>
    %300 = vector.extract_strided_slice %272 {offsets = [0, 0], sizes = [8, 32], strides = [1, 1]} : vector<8x128xf32> to vector<8x32xf32>
    %301 = arith.negf %300 : vector<8x32xf32>
    %302 = math.exp %301 : vector<8x32xf32>
    %cst_152 = arith.constant 1.000000e+00 : f32
    %303 = vector.broadcast %cst_152 : f32 to vector<8x32xf32>
    %304 = arith.addf %303, %302 : vector<8x32xf32>
    %305 = arith.divf %303, %304 : vector<8x32xf32>
    %306 = vector.extract_strided_slice %272 {offsets = [0, 32], sizes = [8, 32], strides = [1, 1]} : vector<8x128xf32> to vector<8x32xf32>
    %307 = arith.negf %306 : vector<8x32xf32>
    %308 = math.exp %307 : vector<8x32xf32>
    %cst_153 = arith.constant 1.000000e+00 : f32
    %309 = vector.broadcast %cst_153 : f32 to vector<8x32xf32>
    %310 = arith.addf %309, %308 : vector<8x32xf32>
    %311 = arith.divf %309, %310 : vector<8x32xf32>
    %312 = vector.extract_strided_slice %272 {offsets = [0, 64], sizes = [8, 32], strides = [1, 1]} : vector<8x128xf32> to vector<8x32xf32>
    %313 = math.tanh %312 : vector<8x32xf32>
    %314 = vector.extract_strided_slice %272 {offsets = [0, 96], sizes = [8, 32], strides = [1, 1]} : vector<8x128xf32> to vector<8x32xf32>
    %315 = arith.negf %314 : vector<8x32xf32>
    %316 = math.exp %315 : vector<8x32xf32>
    %cst_154 = arith.constant 1.000000e+00 : f32
    %317 = vector.broadcast %cst_154 : f32 to vector<8x32xf32>
    %318 = arith.addf %317, %316 : vector<8x32xf32>
    %319 = arith.divf %317, %318 : vector<8x32xf32>
    %320 = arith.mulf %311, %299 : vector<8x32xf32>
    %321 = arith.mulf %305, %313 : vector<8x32xf32>
    %322 = arith.addf %320, %321 : vector<8x32xf32>
    %323 = math.tanh %322 : vector<8x32xf32>
    %324 = arith.mulf %319, %323 : vector<8x32xf32>
    %325 = vector.broadcast %263 : vector<8x1xf32> to vector<8x32xf32>
    %326 = arith.mulf %325, %298 : vector<8x32xf32>
    %c0_155 = arith.constant 0 : index
    %c0_156 = arith.constant 0 : index
    %327 = vector.load %arg26[%c0_155, %c0_156] : memref<8x32xf32, #tpu.memory_space<vmem>>, vector<8x32xf32>
    tpu.vector_store %arg26[%c0_155, %c0_156], %326 {strides = array<i32>} : memref<8x32xf32, #tpu.memory_space<vmem>>, vector<8x32xf32>,
    %328 = vector.broadcast %263 : vector<8x1xf32> to vector<8x32xf32>
    %329 = arith.mulf %328, %296 : vector<8x32xf32>
    %c0_157 = arith.constant 0 : index
    %c0_158 = arith.constant 0 : index
    %330 = vector.load %arg27[%c0_157, %c0_158] : memref<8x32xf32, #tpu.memory_space<vmem>>, vector<8x32xf32>
    tpu.vector_store %arg27[%c0_157, %c0_158], %329 {strides = array<i32>} : memref<8x32xf32, #tpu.memory_space<vmem>>, vector<8x32xf32>,
    %331 = vector.broadcast %264 : vector<8x1xf32> to vector<8x32xf32>
    %332 = arith.mulf %331, %324 : vector<8x32xf32>
    %c0_159 = arith.constant 0 : index
    %c0_160 = arith.constant 0 : index
    %333 = vector.load %arg28[%c0_159, %c0_160] : memref<8x32xf32, #tpu.memory_space<vmem>>, vector<8x32xf32>
    tpu.vector_store %arg28[%c0_159, %c0_160], %332 {strides = array<i32>} : memref<8x32xf32, #tpu.memory_space<vmem>>, vector<8x32xf32>,
    %334 = vector.broadcast %264 : vector<8x1xf32> to vector<8x32xf32>
    %335 = arith.mulf %334, %322 : vector<8x32xf32>
    %c0_161 = arith.constant 0 : index
    %c0_162 = arith.constant 0 : index
    %336 = vector.load %arg29[%c0_161, %c0_162] : memref<8x32xf32, #tpu.memory_space<vmem>>, vector<8x32xf32>
    tpu.vector_store %arg29[%c0_161, %c0_162], %335 {strides = array<i32>} : memref<8x32xf32, #tpu.memory_space<vmem>>, vector<8x32xf32>,
    %337 = vector.broadcast %263 : vector<8x1xf32> to vector<8x32xf32>
    %338 = arith.mulf %337, %298 : vector<8x32xf32>
    %c24_163 = arith.constant 24 : index
    %c0_164 = arith.constant 0 : index
    %339 = vector.load %arg24[%c24_163, %c0_164] : memref<64x32xf32, #tpu.memory_space<vmem>>, vector<8x32xf32>
    tpu.vector_store %arg24[%c24_163, %c0_164], %338 {strides = array<i32>} : memref<64x32xf32, #tpu.memory_space<vmem>>, vector<8x32xf32>,
    %340 = vector.broadcast %264 : vector<8x1xf32> to vector<8x32xf32>
    %341 = arith.mulf %340, %324 : vector<8x32xf32>
    %c32_165 = arith.constant 32 : index
    %c0_166 = arith.constant 0 : index
    %342 = vector.load %arg25[%c32_165, %c0_166] : memref<64x32xf32, #tpu.memory_space<vmem>>, vector<8x32xf32>
    tpu.vector_store %arg25[%c32_165, %c0_166], %341 {strides = array<i32>} : memref<64x32xf32, #tpu.memory_space<vmem>>, vector<8x32xf32>,
    %c32_167 = arith.constant 32 : index
    %c0_168 = arith.constant 0 : index
    %343 = vector.load %arg1[%c32_167, %c0_168] : memref<64x1xf32, #tpu.memory_space<vmem>>, vector<8x1xf32>
    %c24_169 = arith.constant 24 : index
    %c0_170 = arith.constant 0 : index
    %344 = vector.load %arg1[%c24_169, %c0_170] : memref<64x1xf32, #tpu.memory_space<vmem>>, vector<8x1xf32>
    %c32_171 = arith.constant 32 : index
    %c0_172 = arith.constant 0 : index
    %345 = vector.load %arg22[%c32_171, %c0_172] : memref<64x128xf32, #tpu.memory_space<vmem>>, vector<8x128xf32>
    %c0_173 = arith.constant 0 : index
    %c0_174 = arith.constant 0 : index
    %346 = vector.load %arg26[%c0_173, %c0_174] : memref<8x32xf32, #tpu.memory_space<vmem>>, vector<8x32xf32>
    %cst_175 = arith.constant dense<0.000000e+00> : vector<8x128xf32>
    %347 = tpu.matmul %346, %13, %cst_175 {dimension_numbers = #tpu.dot_dimension_numbers<[1], [0], [0], [1], [0, 0, 1, 1], [], []>} : vector<8x32xf32>, vector<32x128xf32>, vector<8x128xf32> -> vector<8x128xf32>
    %348 = arith.addf %345, %347 : vector<8x128xf32>
    %c24_176 = arith.constant 24 : index
    %c0_177 = arith.constant 0 : index
    %349 = vector.load %arg23[%c24_176, %c0_177] : memref<64x128xf32, #tpu.memory_space<vmem>>, vector<8x128xf32>
    %c0_178 = arith.constant 0 : index
    %c0_179 = arith.constant 0 : index
    %350 = vector.load %arg28[%c0_178, %c0_179] : memref<8x32xf32, #tpu.memory_space<vmem>>, vector<8x32xf32>
    %cst_180 = arith.constant dense<0.000000e+00> : vector<8x128xf32>
    %351 = tpu.matmul %350, %14, %cst_180 {dimension_numbers = #tpu.dot_dimension_numbers<[1], [0], [0], [1], [0, 0, 1, 1], [], []>} : vector<8x32xf32>, vector<32x128xf32>, vector<8x128xf32> -> vector<8x128xf32>
    %352 = arith.addf %349, %351 : vector<8x128xf32>
    %c0_181 = arith.constant 0 : index
    %c0_182 = arith.constant 0 : index
    %353 = vector.load %arg27[%c0_181, %c0_182] : memref<8x32xf32, #tpu.memory_space<vmem>>, vector<8x32xf32>
    %354 = vector.extract_strided_slice %348 {offsets = [0, 0], sizes = [8, 32], strides = [1, 1]} : vector<8x128xf32> to vector<8x32xf32>
    %355 = arith.negf %354 : vector<8x32xf32>
    %356 = math.exp %355 : vector<8x32xf32>
    %cst_183 = arith.constant 1.000000e+00 : f32
    %357 = vector.broadcast %cst_183 : f32 to vector<8x32xf32>
    %358 = arith.addf %357, %356 : vector<8x32xf32>
    %359 = arith.divf %357, %358 : vector<8x32xf32>
    %360 = vector.extract_strided_slice %348 {offsets = [0, 32], sizes = [8, 32], strides = [1, 1]} : vector<8x128xf32> to vector<8x32xf32>
    %361 = arith.negf %360 : vector<8x32xf32>
    %362 = math.exp %361 : vector<8x32xf32>
    %cst_184 = arith.constant 1.000000e+00 : f32
    %363 = vector.broadcast %cst_184 : f32 to vector<8x32xf32>
    %364 = arith.addf %363, %362 : vector<8x32xf32>
    %365 = arith.divf %363, %364 : vector<8x32xf32>
    %366 = vector.extract_strided_slice %348 {offsets = [0, 64], sizes = [8, 32], strides = [1, 1]} : vector<8x128xf32> to vector<8x32xf32>
    %367 = math.tanh %366 : vector<8x32xf32>
    %368 = vector.extract_strided_slice %348 {offsets = [0, 96], sizes = [8, 32], strides = [1, 1]} : vector<8x128xf32> to vector<8x32xf32>
    %369 = arith.negf %368 : vector<8x32xf32>
    %370 = math.exp %369 : vector<8x32xf32>
    %cst_185 = arith.constant 1.000000e+00 : f32
    %371 = vector.broadcast %cst_185 : f32 to vector<8x32xf32>
    %372 = arith.addf %371, %370 : vector<8x32xf32>
    %373 = arith.divf %371, %372 : vector<8x32xf32>
    %374 = arith.mulf %365, %353 : vector<8x32xf32>
    %375 = arith.mulf %359, %367 : vector<8x32xf32>
    %376 = arith.addf %374, %375 : vector<8x32xf32>
    %377 = math.tanh %376 : vector<8x32xf32>
    %378 = arith.mulf %373, %377 : vector<8x32xf32>
    %c0_186 = arith.constant 0 : index
    %c0_187 = arith.constant 0 : index
    %379 = vector.load %arg29[%c0_186, %c0_187] : memref<8x32xf32, #tpu.memory_space<vmem>>, vector<8x32xf32>
    %380 = vector.extract_strided_slice %352 {offsets = [0, 0], sizes = [8, 32], strides = [1, 1]} : vector<8x128xf32> to vector<8x32xf32>
    %381 = arith.negf %380 : vector<8x32xf32>
    %382 = math.exp %381 : vector<8x32xf32>
    %cst_188 = arith.constant 1.000000e+00 : f32
    %383 = vector.broadcast %cst_188 : f32 to vector<8x32xf32>
    %384 = arith.addf %383, %382 : vector<8x32xf32>
    %385 = arith.divf %383, %384 : vector<8x32xf32>
    %386 = vector.extract_strided_slice %352 {offsets = [0, 32], sizes = [8, 32], strides = [1, 1]} : vector<8x128xf32> to vector<8x32xf32>
    %387 = arith.negf %386 : vector<8x32xf32>
    %388 = math.exp %387 : vector<8x32xf32>
    %cst_189 = arith.constant 1.000000e+00 : f32
    %389 = vector.broadcast %cst_189 : f32 to vector<8x32xf32>
    %390 = arith.addf %389, %388 : vector<8x32xf32>
    %391 = arith.divf %389, %390 : vector<8x32xf32>
    %392 = vector.extract_strided_slice %352 {offsets = [0, 64], sizes = [8, 32], strides = [1, 1]} : vector<8x128xf32> to vector<8x32xf32>
    %393 = math.tanh %392 : vector<8x32xf32>
    %394 = vector.extract_strided_slice %352 {offsets = [0, 96], sizes = [8, 32], strides = [1, 1]} : vector<8x128xf32> to vector<8x32xf32>
    %395 = arith.negf %394 : vector<8x32xf32>
    %396 = math.exp %395 : vector<8x32xf32>
    %cst_190 = arith.constant 1.000000e+00 : f32
    %397 = vector.broadcast %cst_190 : f32 to vector<8x32xf32>
    %398 = arith.addf %397, %396 : vector<8x32xf32>
    %399 = arith.divf %397, %398 : vector<8x32xf32>
    %400 = arith.mulf %391, %379 : vector<8x32xf32>
    %401 = arith.mulf %385, %393 : vector<8x32xf32>
    %402 = arith.addf %400, %401 : vector<8x32xf32>
    %403 = math.tanh %402 : vector<8x32xf32>
    %404 = arith.mulf %399, %403 : vector<8x32xf32>
    %405 = vector.broadcast %343 : vector<8x1xf32> to vector<8x32xf32>
    %406 = arith.mulf %405, %378 : vector<8x32xf32>
    %c0_191 = arith.constant 0 : index
    %c0_192 = arith.constant 0 : index
    %407 = vector.load %arg26[%c0_191, %c0_192] : memref<8x32xf32, #tpu.memory_space<vmem>>, vector<8x32xf32>
    tpu.vector_store %arg26[%c0_191, %c0_192], %406 {strides = array<i32>} : memref<8x32xf32, #tpu.memory_space<vmem>>, vector<8x32xf32>,
    %408 = vector.broadcast %343 : vector<8x1xf32> to vector<8x32xf32>
    %409 = arith.mulf %408, %376 : vector<8x32xf32>
    %c0_193 = arith.constant 0 : index
    %c0_194 = arith.constant 0 : index
    %410 = vector.load %arg27[%c0_193, %c0_194] : memref<8x32xf32, #tpu.memory_space<vmem>>, vector<8x32xf32>
    tpu.vector_store %arg27[%c0_193, %c0_194], %409 {strides = array<i32>} : memref<8x32xf32, #tpu.memory_space<vmem>>, vector<8x32xf32>,
    %411 = vector.broadcast %344 : vector<8x1xf32> to vector<8x32xf32>
    %412 = arith.mulf %411, %404 : vector<8x32xf32>
    %c0_195 = arith.constant 0 : index
    %c0_196 = arith.constant 0 : index
    %413 = vector.load %arg28[%c0_195, %c0_196] : memref<8x32xf32, #tpu.memory_space<vmem>>, vector<8x32xf32>
    tpu.vector_store %arg28[%c0_195, %c0_196], %412 {strides = array<i32>} : memref<8x32xf32, #tpu.memory_space<vmem>>, vector<8x32xf32>,
    %414 = vector.broadcast %344 : vector<8x1xf32> to vector<8x32xf32>
    %415 = arith.mulf %414, %402 : vector<8x32xf32>
    %c0_197 = arith.constant 0 : index
    %c0_198 = arith.constant 0 : index
    %416 = vector.load %arg29[%c0_197, %c0_198] : memref<8x32xf32, #tpu.memory_space<vmem>>, vector<8x32xf32>
    tpu.vector_store %arg29[%c0_197, %c0_198], %415 {strides = array<i32>} : memref<8x32xf32, #tpu.memory_space<vmem>>, vector<8x32xf32>,
    %417 = vector.broadcast %343 : vector<8x1xf32> to vector<8x32xf32>
    %418 = arith.mulf %417, %378 : vector<8x32xf32>
    %c32_199 = arith.constant 32 : index
    %c0_200 = arith.constant 0 : index
    %419 = vector.load %arg24[%c32_199, %c0_200] : memref<64x32xf32, #tpu.memory_space<vmem>>, vector<8x32xf32>
    tpu.vector_store %arg24[%c32_199, %c0_200], %418 {strides = array<i32>} : memref<64x32xf32, #tpu.memory_space<vmem>>, vector<8x32xf32>,
    %420 = vector.broadcast %344 : vector<8x1xf32> to vector<8x32xf32>
    %421 = arith.mulf %420, %404 : vector<8x32xf32>
    %c24_201 = arith.constant 24 : index
    %c0_202 = arith.constant 0 : index
    %422 = vector.load %arg25[%c24_201, %c0_202] : memref<64x32xf32, #tpu.memory_space<vmem>>, vector<8x32xf32>
    tpu.vector_store %arg25[%c24_201, %c0_202], %421 {strides = array<i32>} : memref<64x32xf32, #tpu.memory_space<vmem>>, vector<8x32xf32>,
    %c40_203 = arith.constant 40 : index
    %c0_204 = arith.constant 0 : index
    %423 = vector.load %arg1[%c40_203, %c0_204] : memref<64x1xf32, #tpu.memory_space<vmem>>, vector<8x1xf32>
    %c16_205 = arith.constant 16 : index
    %c0_206 = arith.constant 0 : index
    %424 = vector.load %arg1[%c16_205, %c0_206] : memref<64x1xf32, #tpu.memory_space<vmem>>, vector<8x1xf32>
    %c40_207 = arith.constant 40 : index
    %c0_208 = arith.constant 0 : index
    %425 = vector.load %arg22[%c40_207, %c0_208] : memref<64x128xf32, #tpu.memory_space<vmem>>, vector<8x128xf32>
    %c0_209 = arith.constant 0 : index
    %c0_210 = arith.constant 0 : index
    %426 = vector.load %arg26[%c0_209, %c0_210] : memref<8x32xf32, #tpu.memory_space<vmem>>, vector<8x32xf32>
    %cst_211 = arith.constant dense<0.000000e+00> : vector<8x128xf32>
    %427 = tpu.matmul %426, %13, %cst_211 {dimension_numbers = #tpu.dot_dimension_numbers<[1], [0], [0], [1], [0, 0, 1, 1], [], []>} : vector<8x32xf32>, vector<32x128xf32>, vector<8x128xf32> -> vector<8x128xf32>
    %428 = arith.addf %425, %427 : vector<8x128xf32>
    %c16_212 = arith.constant 16 : index
    %c0_213 = arith.constant 0 : index
    %429 = vector.load %arg23[%c16_212, %c0_213] : memref<64x128xf32, #tpu.memory_space<vmem>>, vector<8x128xf32>
    %c0_214 = arith.constant 0 : index
    %c0_215 = arith.constant 0 : index
    %430 = vector.load %arg28[%c0_214, %c0_215] : memref<8x32xf32, #tpu.memory_space<vmem>>, vector<8x32xf32>
    %cst_216 = arith.constant dense<0.000000e+00> : vector<8x128xf32>
    %431 = tpu.matmul %430, %14, %cst_216 {dimension_numbers = #tpu.dot_dimension_numbers<[1], [0], [0], [1], [0, 0, 1, 1], [], []>} : vector<8x32xf32>, vector<32x128xf32>, vector<8x128xf32> -> vector<8x128xf32>
    %432 = arith.addf %429, %431 : vector<8x128xf32>
    %c0_217 = arith.constant 0 : index
    %c0_218 = arith.constant 0 : index
    %433 = vector.load %arg27[%c0_217, %c0_218] : memref<8x32xf32, #tpu.memory_space<vmem>>, vector<8x32xf32>
    %434 = vector.extract_strided_slice %428 {offsets = [0, 0], sizes = [8, 32], strides = [1, 1]} : vector<8x128xf32> to vector<8x32xf32>
    %435 = arith.negf %434 : vector<8x32xf32>
    %436 = math.exp %435 : vector<8x32xf32>
    %cst_219 = arith.constant 1.000000e+00 : f32
    %437 = vector.broadcast %cst_219 : f32 to vector<8x32xf32>
    %438 = arith.addf %437, %436 : vector<8x32xf32>
    %439 = arith.divf %437, %438 : vector<8x32xf32>
    %440 = vector.extract_strided_slice %428 {offsets = [0, 32], sizes = [8, 32], strides = [1, 1]} : vector<8x128xf32> to vector<8x32xf32>
    %441 = arith.negf %440 : vector<8x32xf32>
    %442 = math.exp %441 : vector<8x32xf32>
    %cst_220 = arith.constant 1.000000e+00 : f32
    %443 = vector.broadcast %cst_220 : f32 to vector<8x32xf32>
    %444 = arith.addf %443, %442 : vector<8x32xf32>
    %445 = arith.divf %443, %444 : vector<8x32xf32>
    %446 = vector.extract_strided_slice %428 {offsets = [0, 64], sizes = [8, 32], strides = [1, 1]} : vector<8x128xf32> to vector<8x32xf32>
    %447 = math.tanh %446 : vector<8x32xf32>
    %448 = vector.extract_strided_slice %428 {offsets = [0, 96], sizes = [8, 32], strides = [1, 1]} : vector<8x128xf32> to vector<8x32xf32>
    %449 = arith.negf %448 : vector<8x32xf32>
    %450 = math.exp %449 : vector<8x32xf32>
    %cst_221 = arith.constant 1.000000e+00 : f32
    %451 = vector.broadcast %cst_221 : f32 to vector<8x32xf32>
    %452 = arith.addf %451, %450 : vector<8x32xf32>
    %453 = arith.divf %451, %452 : vector<8x32xf32>
    %454 = arith.mulf %445, %433 : vector<8x32xf32>
    %455 = arith.mulf %439, %447 : vector<8x32xf32>
    %456 = arith.addf %454, %455 : vector<8x32xf32>
    %457 = math.tanh %456 : vector<8x32xf32>
    %458 = arith.mulf %453, %457 : vector<8x32xf32>
    %c0_222 = arith.constant 0 : index
    %c0_223 = arith.constant 0 : index
    %459 = vector.load %arg29[%c0_222, %c0_223] : memref<8x32xf32, #tpu.memory_space<vmem>>, vector<8x32xf32>
    %460 = vector.extract_strided_slice %432 {offsets = [0, 0], sizes = [8, 32], strides = [1, 1]} : vector<8x128xf32> to vector<8x32xf32>
    %461 = arith.negf %460 : vector<8x32xf32>
    %462 = math.exp %461 : vector<8x32xf32>
    %cst_224 = arith.constant 1.000000e+00 : f32
    %463 = vector.broadcast %cst_224 : f32 to vector<8x32xf32>
    %464 = arith.addf %463, %462 : vector<8x32xf32>
    %465 = arith.divf %463, %464 : vector<8x32xf32>
    %466 = vector.extract_strided_slice %432 {offsets = [0, 32], sizes = [8, 32], strides = [1, 1]} : vector<8x128xf32> to vector<8x32xf32>
    %467 = arith.negf %466 : vector<8x32xf32>
    %468 = math.exp %467 : vector<8x32xf32>
    %cst_225 = arith.constant 1.000000e+00 : f32
    %469 = vector.broadcast %cst_225 : f32 to vector<8x32xf32>
    %470 = arith.addf %469, %468 : vector<8x32xf32>
    %471 = arith.divf %469, %470 : vector<8x32xf32>
    %472 = vector.extract_strided_slice %432 {offsets = [0, 64], sizes = [8, 32], strides = [1, 1]} : vector<8x128xf32> to vector<8x32xf32>
    %473 = math.tanh %472 : vector<8x32xf32>
    %474 = vector.extract_strided_slice %432 {offsets = [0, 96], sizes = [8, 32], strides = [1, 1]} : vector<8x128xf32> to vector<8x32xf32>
    %475 = arith.negf %474 : vector<8x32xf32>
    %476 = math.exp %475 : vector<8x32xf32>
    %cst_226 = arith.constant 1.000000e+00 : f32
    %477 = vector.broadcast %cst_226 : f32 to vector<8x32xf32>
    %478 = arith.addf %477, %476 : vector<8x32xf32>
    %479 = arith.divf %477, %478 : vector<8x32xf32>
    %480 = arith.mulf %471, %459 : vector<8x32xf32>
    %481 = arith.mulf %465, %473 : vector<8x32xf32>
    %482 = arith.addf %480, %481 : vector<8x32xf32>
    %483 = math.tanh %482 : vector<8x32xf32>
    %484 = arith.mulf %479, %483 : vector<8x32xf32>
    %485 = vector.broadcast %423 : vector<8x1xf32> to vector<8x32xf32>
    %486 = arith.mulf %485, %458 : vector<8x32xf32>
    %c0_227 = arith.constant 0 : index
    %c0_228 = arith.constant 0 : index
    %487 = vector.load %arg26[%c0_227, %c0_228] : memref<8x32xf32, #tpu.memory_space<vmem>>, vector<8x32xf32>
    tpu.vector_store %arg26[%c0_227, %c0_228], %486 {strides = array<i32>} : memref<8x32xf32, #tpu.memory_space<vmem>>, vector<8x32xf32>,
    %488 = vector.broadcast %423 : vector<8x1xf32> to vector<8x32xf32>
    %489 = arith.mulf %488, %456 : vector<8x32xf32>
    %c0_229 = arith.constant 0 : index
    %c0_230 = arith.constant 0 : index
    %490 = vector.load %arg27[%c0_229, %c0_230] : memref<8x32xf32, #tpu.memory_space<vmem>>, vector<8x32xf32>
    tpu.vector_store %arg27[%c0_229, %c0_230], %489 {strides = array<i32>} : memref<8x32xf32, #tpu.memory_space<vmem>>, vector<8x32xf32>,
    %491 = vector.broadcast %424 : vector<8x1xf32> to vector<8x32xf32>
    %492 = arith.mulf %491, %484 : vector<8x32xf32>
    %c0_231 = arith.constant 0 : index
    %c0_232 = arith.constant 0 : index
    %493 = vector.load %arg28[%c0_231, %c0_232] : memref<8x32xf32, #tpu.memory_space<vmem>>, vector<8x32xf32>
    tpu.vector_store %arg28[%c0_231, %c0_232], %492 {strides = array<i32>} : memref<8x32xf32, #tpu.memory_space<vmem>>, vector<8x32xf32>,
    %494 = vector.broadcast %424 : vector<8x1xf32> to vector<8x32xf32>
    %495 = arith.mulf %494, %482 : vector<8x32xf32>
    %c0_233 = arith.constant 0 : index
    %c0_234 = arith.constant 0 : index
    %496 = vector.load %arg29[%c0_233, %c0_234] : memref<8x32xf32, #tpu.memory_space<vmem>>, vector<8x32xf32>
    tpu.vector_store %arg29[%c0_233, %c0_234], %495 {strides = array<i32>} : memref<8x32xf32, #tpu.memory_space<vmem>>, vector<8x32xf32>,
    %497 = vector.broadcast %423 : vector<8x1xf32> to vector<8x32xf32>
    %498 = arith.mulf %497, %458 : vector<8x32xf32>
    %c40_235 = arith.constant 40 : index
    %c0_236 = arith.constant 0 : index
    %499 = vector.load %arg24[%c40_235, %c0_236] : memref<64x32xf32, #tpu.memory_space<vmem>>, vector<8x32xf32>
    tpu.vector_store %arg24[%c40_235, %c0_236], %498 {strides = array<i32>} : memref<64x32xf32, #tpu.memory_space<vmem>>, vector<8x32xf32>,
    %500 = vector.broadcast %424 : vector<8x1xf32> to vector<8x32xf32>
    %501 = arith.mulf %500, %484 : vector<8x32xf32>
    %c16_237 = arith.constant 16 : index
    %c0_238 = arith.constant 0 : index
    %502 = vector.load %arg25[%c16_237, %c0_238] : memref<64x32xf32, #tpu.memory_space<vmem>>, vector<8x32xf32>
    tpu.vector_store %arg25[%c16_237, %c0_238], %501 {strides = array<i32>} : memref<64x32xf32, #tpu.memory_space<vmem>>, vector<8x32xf32>,
    %c48_239 = arith.constant 48 : index
    %c0_240 = arith.constant 0 : index
    %503 = vector.load %arg1[%c48_239, %c0_240] : memref<64x1xf32, #tpu.memory_space<vmem>>, vector<8x1xf32>
    %c8_241 = arith.constant 8 : index
    %c0_242 = arith.constant 0 : index
    %504 = vector.load %arg1[%c8_241, %c0_242] : memref<64x1xf32, #tpu.memory_space<vmem>>, vector<8x1xf32>
    %c48_243 = arith.constant 48 : index
    %c0_244 = arith.constant 0 : index
    %505 = vector.load %arg22[%c48_243, %c0_244] : memref<64x128xf32, #tpu.memory_space<vmem>>, vector<8x128xf32>
    %c0_245 = arith.constant 0 : index
    %c0_246 = arith.constant 0 : index
    %506 = vector.load %arg26[%c0_245, %c0_246] : memref<8x32xf32, #tpu.memory_space<vmem>>, vector<8x32xf32>
    %cst_247 = arith.constant dense<0.000000e+00> : vector<8x128xf32>
    %507 = tpu.matmul %506, %13, %cst_247 {dimension_numbers = #tpu.dot_dimension_numbers<[1], [0], [0], [1], [0, 0, 1, 1], [], []>} : vector<8x32xf32>, vector<32x128xf32>, vector<8x128xf32> -> vector<8x128xf32>
    %508 = arith.addf %505, %507 : vector<8x128xf32>
    %c8_248 = arith.constant 8 : index
    %c0_249 = arith.constant 0 : index
    %509 = vector.load %arg23[%c8_248, %c0_249] : memref<64x128xf32, #tpu.memory_space<vmem>>, vector<8x128xf32>
    %c0_250 = arith.constant 0 : index
    %c0_251 = arith.constant 0 : index
    %510 = vector.load %arg28[%c0_250, %c0_251] : memref<8x32xf32, #tpu.memory_space<vmem>>, vector<8x32xf32>
    %cst_252 = arith.constant dense<0.000000e+00> : vector<8x128xf32>
    %511 = tpu.matmul %510, %14, %cst_252 {dimension_numbers = #tpu.dot_dimension_numbers<[1], [0], [0], [1], [0, 0, 1, 1], [], []>} : vector<8x32xf32>, vector<32x128xf32>, vector<8x128xf32> -> vector<8x128xf32>
    %512 = arith.addf %509, %511 : vector<8x128xf32>
    %c0_253 = arith.constant 0 : index
    %c0_254 = arith.constant 0 : index
    %513 = vector.load %arg27[%c0_253, %c0_254] : memref<8x32xf32, #tpu.memory_space<vmem>>, vector<8x32xf32>
    %514 = vector.extract_strided_slice %508 {offsets = [0, 0], sizes = [8, 32], strides = [1, 1]} : vector<8x128xf32> to vector<8x32xf32>
    %515 = arith.negf %514 : vector<8x32xf32>
    %516 = math.exp %515 : vector<8x32xf32>
    %cst_255 = arith.constant 1.000000e+00 : f32
    %517 = vector.broadcast %cst_255 : f32 to vector<8x32xf32>
    %518 = arith.addf %517, %516 : vector<8x32xf32>
    %519 = arith.divf %517, %518 : vector<8x32xf32>
    %520 = vector.extract_strided_slice %508 {offsets = [0, 32], sizes = [8, 32], strides = [1, 1]} : vector<8x128xf32> to vector<8x32xf32>
    %521 = arith.negf %520 : vector<8x32xf32>
    %522 = math.exp %521 : vector<8x32xf32>
    %cst_256 = arith.constant 1.000000e+00 : f32
    %523 = vector.broadcast %cst_256 : f32 to vector<8x32xf32>
    %524 = arith.addf %523, %522 : vector<8x32xf32>
    %525 = arith.divf %523, %524 : vector<8x32xf32>
    %526 = vector.extract_strided_slice %508 {offsets = [0, 64], sizes = [8, 32], strides = [1, 1]} : vector<8x128xf32> to vector<8x32xf32>
    %527 = math.tanh %526 : vector<8x32xf32>
    %528 = vector.extract_strided_slice %508 {offsets = [0, 96], sizes = [8, 32], strides = [1, 1]} : vector<8x128xf32> to vector<8x32xf32>
    %529 = arith.negf %528 : vector<8x32xf32>
    %530 = math.exp %529 : vector<8x32xf32>
    %cst_257 = arith.constant 1.000000e+00 : f32
    %531 = vector.broadcast %cst_257 : f32 to vector<8x32xf32>
    %532 = arith.addf %531, %530 : vector<8x32xf32>
    %533 = arith.divf %531, %532 : vector<8x32xf32>
    %534 = arith.mulf %525, %513 : vector<8x32xf32>
    %535 = arith.mulf %519, %527 : vector<8x32xf32>
    %536 = arith.addf %534, %535 : vector<8x32xf32>
    %537 = math.tanh %536 : vector<8x32xf32>
    %538 = arith.mulf %533, %537 : vector<8x32xf32>
    %c0_258 = arith.constant 0 : index
    %c0_259 = arith.constant 0 : index
    %539 = vector.load %arg29[%c0_258, %c0_259] : memref<8x32xf32, #tpu.memory_space<vmem>>, vector<8x32xf32>
    %540 = vector.extract_strided_slice %512 {offsets = [0, 0], sizes = [8, 32], strides = [1, 1]} : vector<8x128xf32> to vector<8x32xf32>
    %541 = arith.negf %540 : vector<8x32xf32>
    %542 = math.exp %541 : vector<8x32xf32>
    %cst_260 = arith.constant 1.000000e+00 : f32
    %543 = vector.broadcast %cst_260 : f32 to vector<8x32xf32>
    %544 = arith.addf %543, %542 : vector<8x32xf32>
    %545 = arith.divf %543, %544 : vector<8x32xf32>
    %546 = vector.extract_strided_slice %512 {offsets = [0, 32], sizes = [8, 32], strides = [1, 1]} : vector<8x128xf32> to vector<8x32xf32>
    %547 = arith.negf %546 : vector<8x32xf32>
    %548 = math.exp %547 : vector<8x32xf32>
    %cst_261 = arith.constant 1.000000e+00 : f32
    %549 = vector.broadcast %cst_261 : f32 to vector<8x32xf32>
    %550 = arith.addf %549, %548 : vector<8x32xf32>
    %551 = arith.divf %549, %550 : vector<8x32xf32>
    %552 = vector.extract_strided_slice %512 {offsets = [0, 64], sizes = [8, 32], strides = [1, 1]} : vector<8x128xf32> to vector<8x32xf32>
    %553 = math.tanh %552 : vector<8x32xf32>
    %554 = vector.extract_strided_slice %512 {offsets = [0, 96], sizes = [8, 32], strides = [1, 1]} : vector<8x128xf32> to vector<8x32xf32>
    %555 = arith.negf %554 : vector<8x32xf32>
    %556 = math.exp %555 : vector<8x32xf32>
    %cst_262 = arith.constant 1.000000e+00 : f32
    %557 = vector.broadcast %cst_262 : f32 to vector<8x32xf32>
    %558 = arith.addf %557, %556 : vector<8x32xf32>
    %559 = arith.divf %557, %558 : vector<8x32xf32>
    %560 = arith.mulf %551, %539 : vector<8x32xf32>
    %561 = arith.mulf %545, %553 : vector<8x32xf32>
    %562 = arith.addf %560, %561 : vector<8x32xf32>
    %563 = math.tanh %562 : vector<8x32xf32>
    %564 = arith.mulf %559, %563 : vector<8x32xf32>
    %565 = vector.broadcast %503 : vector<8x1xf32> to vector<8x32xf32>
    %566 = arith.mulf %565, %538 : vector<8x32xf32>
    %c0_263 = arith.constant 0 : index
    %c0_264 = arith.constant 0 : index
    %567 = vector.load %arg26[%c0_263, %c0_264] : memref<8x32xf32, #tpu.memory_space<vmem>>, vector<8x32xf32>
    tpu.vector_store %arg26[%c0_263, %c0_264], %566 {strides = array<i32>} : memref<8x32xf32, #tpu.memory_space<vmem>>, vector<8x32xf32>,
    %568 = vector.broadcast %503 : vector<8x1xf32> to vector<8x32xf32>
    %569 = arith.mulf %568, %536 : vector<8x32xf32>
    %c0_265 = arith.constant 0 : index
    %c0_266 = arith.constant 0 : index
    %570 = vector.load %arg27[%c0_265, %c0_266] : memref<8x32xf32, #tpu.memory_space<vmem>>, vector<8x32xf32>
    tpu.vector_store %arg27[%c0_265, %c0_266], %569 {strides = array<i32>} : memref<8x32xf32, #tpu.memory_space<vmem>>, vector<8x32xf32>,
    %571 = vector.broadcast %504 : vector<8x1xf32> to vector<8x32xf32>
    %572 = arith.mulf %571, %564 : vector<8x32xf32>
    %c0_267 = arith.constant 0 : index
    %c0_268 = arith.constant 0 : index
    %573 = vector.load %arg28[%c0_267, %c0_268] : memref<8x32xf32, #tpu.memory_space<vmem>>, vector<8x32xf32>
    tpu.vector_store %arg28[%c0_267, %c0_268], %572 {strides = array<i32>} : memref<8x32xf32, #tpu.memory_space<vmem>>, vector<8x32xf32>,
    %574 = vector.broadcast %504 : vector<8x1xf32> to vector<8x32xf32>
    %575 = arith.mulf %574, %562 : vector<8x32xf32>
    %c0_269 = arith.constant 0 : index
    %c0_270 = arith.constant 0 : index
    %576 = vector.load %arg29[%c0_269, %c0_270] : memref<8x32xf32, #tpu.memory_space<vmem>>, vector<8x32xf32>
    tpu.vector_store %arg29[%c0_269, %c0_270], %575 {strides = array<i32>} : memref<8x32xf32, #tpu.memory_space<vmem>>, vector<8x32xf32>,
    %577 = vector.broadcast %503 : vector<8x1xf32> to vector<8x32xf32>
    %578 = arith.mulf %577, %538 : vector<8x32xf32>
    %c48_271 = arith.constant 48 : index
    %c0_272 = arith.constant 0 : index
    %579 = vector.load %arg24[%c48_271, %c0_272] : memref<64x32xf32, #tpu.memory_space<vmem>>, vector<8x32xf32>
    tpu.vector_store %arg24[%c48_271, %c0_272], %578 {strides = array<i32>} : memref<64x32xf32, #tpu.memory_space<vmem>>, vector<8x32xf32>,
    %580 = vector.broadcast %504 : vector<8x1xf32> to vector<8x32xf32>
    %581 = arith.mulf %580, %564 : vector<8x32xf32>
    %c8_273 = arith.constant 8 : index
    %c0_274 = arith.constant 0 : index
    %582 = vector.load %arg25[%c8_273, %c0_274] : memref<64x32xf32, #tpu.memory_space<vmem>>, vector<8x32xf32>
    tpu.vector_store %arg25[%c8_273, %c0_274], %581 {strides = array<i32>} : memref<64x32xf32, #tpu.memory_space<vmem>>, vector<8x32xf32>,
    %c56_275 = arith.constant 56 : index
    %c0_276 = arith.constant 0 : index
    %583 = vector.load %arg1[%c56_275, %c0_276] : memref<64x1xf32, #tpu.memory_space<vmem>>, vector<8x1xf32>
    %c0_277 = arith.constant 0 : index
    %c0_278 = arith.constant 0 : index
    %584 = vector.load %arg1[%c0_277, %c0_278] : memref<64x1xf32, #tpu.memory_space<vmem>>, vector<8x1xf32>
    %c56_279 = arith.constant 56 : index
    %c0_280 = arith.constant 0 : index
    %585 = vector.load %arg22[%c56_279, %c0_280] : memref<64x128xf32, #tpu.memory_space<vmem>>, vector<8x128xf32>
    %c0_281 = arith.constant 0 : index
    %c0_282 = arith.constant 0 : index
    %586 = vector.load %arg26[%c0_281, %c0_282] : memref<8x32xf32, #tpu.memory_space<vmem>>, vector<8x32xf32>
    %cst_283 = arith.constant dense<0.000000e+00> : vector<8x128xf32>
    %587 = tpu.matmul %586, %13, %cst_283 {dimension_numbers = #tpu.dot_dimension_numbers<[1], [0], [0], [1], [0, 0, 1, 1], [], []>} : vector<8x32xf32>, vector<32x128xf32>, vector<8x128xf32> -> vector<8x128xf32>
    %588 = arith.addf %585, %587 : vector<8x128xf32>
    %c0_284 = arith.constant 0 : index
    %c0_285 = arith.constant 0 : index
    %589 = vector.load %arg23[%c0_284, %c0_285] : memref<64x128xf32, #tpu.memory_space<vmem>>, vector<8x128xf32>
    %c0_286 = arith.constant 0 : index
    %c0_287 = arith.constant 0 : index
    %590 = vector.load %arg28[%c0_286, %c0_287] : memref<8x32xf32, #tpu.memory_space<vmem>>, vector<8x32xf32>
    %cst_288 = arith.constant dense<0.000000e+00> : vector<8x128xf32>
    %591 = tpu.matmul %590, %14, %cst_288 {dimension_numbers = #tpu.dot_dimension_numbers<[1], [0], [0], [1], [0, 0, 1, 1], [], []>} : vector<8x32xf32>, vector<32x128xf32>, vector<8x128xf32> -> vector<8x128xf32>
    %592 = arith.addf %589, %591 : vector<8x128xf32>
    %c0_289 = arith.constant 0 : index
    %c0_290 = arith.constant 0 : index
    %593 = vector.load %arg27[%c0_289, %c0_290] : memref<8x32xf32, #tpu.memory_space<vmem>>, vector<8x32xf32>
    %594 = vector.extract_strided_slice %588 {offsets = [0, 0], sizes = [8, 32], strides = [1, 1]} : vector<8x128xf32> to vector<8x32xf32>
    %595 = arith.negf %594 : vector<8x32xf32>
    %596 = math.exp %595 : vector<8x32xf32>
    %cst_291 = arith.constant 1.000000e+00 : f32
    %597 = vector.broadcast %cst_291 : f32 to vector<8x32xf32>
    %598 = arith.addf %597, %596 : vector<8x32xf32>
    %599 = arith.divf %597, %598 : vector<8x32xf32>
    %600 = vector.extract_strided_slice %588 {offsets = [0, 32], sizes = [8, 32], strides = [1, 1]} : vector<8x128xf32> to vector<8x32xf32>
    %601 = arith.negf %600 : vector<8x32xf32>
    %602 = math.exp %601 : vector<8x32xf32>
    %cst_292 = arith.constant 1.000000e+00 : f32
    %603 = vector.broadcast %cst_292 : f32 to vector<8x32xf32>
    %604 = arith.addf %603, %602 : vector<8x32xf32>
    %605 = arith.divf %603, %604 : vector<8x32xf32>
    %606 = vector.extract_strided_slice %588 {offsets = [0, 64], sizes = [8, 32], strides = [1, 1]} : vector<8x128xf32> to vector<8x32xf32>
    %607 = math.tanh %606 : vector<8x32xf32>
    %608 = vector.extract_strided_slice %588 {offsets = [0, 96], sizes = [8, 32], strides = [1, 1]} : vector<8x128xf32> to vector<8x32xf32>
    %609 = arith.negf %608 : vector<8x32xf32>
    %610 = math.exp %609 : vector<8x32xf32>
    %cst_293 = arith.constant 1.000000e+00 : f32
    %611 = vector.broadcast %cst_293 : f32 to vector<8x32xf32>
    %612 = arith.addf %611, %610 : vector<8x32xf32>
    %613 = arith.divf %611, %612 : vector<8x32xf32>
    %614 = arith.mulf %605, %593 : vector<8x32xf32>
    %615 = arith.mulf %599, %607 : vector<8x32xf32>
    %616 = arith.addf %614, %615 : vector<8x32xf32>
    %617 = math.tanh %616 : vector<8x32xf32>
    %618 = arith.mulf %613, %617 : vector<8x32xf32>
    %c0_294 = arith.constant 0 : index
    %c0_295 = arith.constant 0 : index
    %619 = vector.load %arg29[%c0_294, %c0_295] : memref<8x32xf32, #tpu.memory_space<vmem>>, vector<8x32xf32>
    %620 = vector.extract_strided_slice %592 {offsets = [0, 0], sizes = [8, 32], strides = [1, 1]} : vector<8x128xf32> to vector<8x32xf32>
    %621 = arith.negf %620 : vector<8x32xf32>
    %622 = math.exp %621 : vector<8x32xf32>
    %cst_296 = arith.constant 1.000000e+00 : f32
    %623 = vector.broadcast %cst_296 : f32 to vector<8x32xf32>
    %624 = arith.addf %623, %622 : vector<8x32xf32>
    %625 = arith.divf %623, %624 : vector<8x32xf32>
    %626 = vector.extract_strided_slice %592 {offsets = [0, 32], sizes = [8, 32], strides = [1, 1]} : vector<8x128xf32> to vector<8x32xf32>
    %627 = arith.negf %626 : vector<8x32xf32>
    %628 = math.exp %627 : vector<8x32xf32>
    %cst_297 = arith.constant 1.000000e+00 : f32
    %629 = vector.broadcast %cst_297 : f32 to vector<8x32xf32>
    %630 = arith.addf %629, %628 : vector<8x32xf32>
    %631 = arith.divf %629, %630 : vector<8x32xf32>
    %632 = vector.extract_strided_slice %592 {offsets = [0, 64], sizes = [8, 32], strides = [1, 1]} : vector<8x128xf32> to vector<8x32xf32>
    %633 = math.tanh %632 : vector<8x32xf32>
    %634 = vector.extract_strided_slice %592 {offsets = [0, 96], sizes = [8, 32], strides = [1, 1]} : vector<8x128xf32> to vector<8x32xf32>
    %635 = arith.negf %634 : vector<8x32xf32>
    %636 = math.exp %635 : vector<8x32xf32>
    %cst_298 = arith.constant 1.000000e+00 : f32
    %637 = vector.broadcast %cst_298 : f32 to vector<8x32xf32>
    %638 = arith.addf %637, %636 : vector<8x32xf32>
    %639 = arith.divf %637, %638 : vector<8x32xf32>
    %640 = arith.mulf %631, %619 : vector<8x32xf32>
    %641 = arith.mulf %625, %633 : vector<8x32xf32>
    %642 = arith.addf %640, %641 : vector<8x32xf32>
    %643 = math.tanh %642 : vector<8x32xf32>
    %644 = arith.mulf %639, %643 : vector<8x32xf32>
    %645 = vector.broadcast %583 : vector<8x1xf32> to vector<8x32xf32>
    %646 = arith.mulf %645, %618 : vector<8x32xf32>
    %c0_299 = arith.constant 0 : index
    %c0_300 = arith.constant 0 : index
    %647 = vector.load %arg26[%c0_299, %c0_300] : memref<8x32xf32, #tpu.memory_space<vmem>>, vector<8x32xf32>
    tpu.vector_store %arg26[%c0_299, %c0_300], %646 {strides = array<i32>} : memref<8x32xf32, #tpu.memory_space<vmem>>, vector<8x32xf32>,
    %648 = vector.broadcast %583 : vector<8x1xf32> to vector<8x32xf32>
    %649 = arith.mulf %648, %616 : vector<8x32xf32>
    %c0_301 = arith.constant 0 : index
    %c0_302 = arith.constant 0 : index
    %650 = vector.load %arg27[%c0_301, %c0_302] : memref<8x32xf32, #tpu.memory_space<vmem>>, vector<8x32xf32>
    tpu.vector_store %arg27[%c0_301, %c0_302], %649 {strides = array<i32>} : memref<8x32xf32, #tpu.memory_space<vmem>>, vector<8x32xf32>,
    %651 = vector.broadcast %584 : vector<8x1xf32> to vector<8x32xf32>
    %652 = arith.mulf %651, %644 : vector<8x32xf32>
    %c0_303 = arith.constant 0 : index
    %c0_304 = arith.constant 0 : index
    %653 = vector.load %arg28[%c0_303, %c0_304] : memref<8x32xf32, #tpu.memory_space<vmem>>, vector<8x32xf32>
    tpu.vector_store %arg28[%c0_303, %c0_304], %652 {strides = array<i32>} : memref<8x32xf32, #tpu.memory_space<vmem>>, vector<8x32xf32>,
    %654 = vector.broadcast %584 : vector<8x1xf32> to vector<8x32xf32>
    %655 = arith.mulf %654, %642 : vector<8x32xf32>
    %c0_305 = arith.constant 0 : index
    %c0_306 = arith.constant 0 : index
    %656 = vector.load %arg29[%c0_305, %c0_306] : memref<8x32xf32, #tpu.memory_space<vmem>>, vector<8x32xf32>
    tpu.vector_store %arg29[%c0_305, %c0_306], %655 {strides = array<i32>} : memref<8x32xf32, #tpu.memory_space<vmem>>, vector<8x32xf32>,
    %657 = vector.broadcast %583 : vector<8x1xf32> to vector<8x32xf32>
    %658 = arith.mulf %657, %618 : vector<8x32xf32>
    %c56_307 = arith.constant 56 : index
    %c0_308 = arith.constant 0 : index
    %659 = vector.load %arg24[%c56_307, %c0_308] : memref<64x32xf32, #tpu.memory_space<vmem>>, vector<8x32xf32>
    tpu.vector_store %arg24[%c56_307, %c0_308], %658 {strides = array<i32>} : memref<64x32xf32, #tpu.memory_space<vmem>>, vector<8x32xf32>,
    %660 = vector.broadcast %584 : vector<8x1xf32> to vector<8x32xf32>
    %661 = arith.mulf %660, %644 : vector<8x32xf32>
    %c0_309 = arith.constant 0 : index
    %c0_310 = arith.constant 0 : index
    %662 = vector.load %arg25[%c0_309, %c0_310] : memref<64x32xf32, #tpu.memory_space<vmem>>, vector<8x32xf32>
    tpu.vector_store %arg25[%c0_309, %c0_310], %661 {strides = array<i32>} : memref<64x32xf32, #tpu.memory_space<vmem>>, vector<8x32xf32>,
    %c0_311 = arith.constant 0 : index
    %c0_312 = arith.constant 0 : index
    %663 = vector.load %arg24[%c0_311, %c0_312] : memref<64x32xf32, #tpu.memory_space<vmem>>, vector<64x32xf32>
    %664 = arith.truncf %663 : vector<64x32xf32> to vector<64x32xbf16>
    %c0_313 = arith.constant 0 : index
    %c0_314 = arith.constant 0 : index
    %665 = vector.load %arg25[%c0_313, %c0_314] : memref<64x32xf32, #tpu.memory_space<vmem>>, vector<64x32xf32>
    %666 = arith.truncf %665 : vector<64x32xf32> to vector<64x32xbf16>
    %c0_315 = arith.constant 0 : index
    %c0_316 = arith.constant 0 : index
    %667 = vector.load %arg8[%c0_315, %c0_316] : memref<32x128xbf16, #tpu.memory_space<vmem>>, vector<32x128xbf16>
    %cst_317 = arith.constant dense<0.000000e+00> : vector<64x128xf32>
    %668 = tpu.matmul %664, %667, %cst_317 {dimension_numbers = #tpu.dot_dimension_numbers<[1], [0], [0], [1], [0, 0, 1, 1], [], []>} : vector<64x32xbf16>, vector<32x128xbf16>, vector<64x128xf32> -> vector<64x128xf32>
    %c0_318 = arith.constant 0 : index
    %c0_319 = arith.constant 0 : index
    %669 = vector.load %arg9[%c0_318, %c0_319] : memref<32x128xbf16, #tpu.memory_space<vmem>>, vector<32x128xbf16>
    %cst_320 = arith.constant dense<0.000000e+00> : vector<64x128xf32>
    %670 = tpu.matmul %666, %669, %cst_320 {dimension_numbers = #tpu.dot_dimension_numbers<[1], [0], [0], [1], [0, 0, 1, 1], [], []>} : vector<64x32xbf16>, vector<32x128xbf16>, vector<64x128xf32> -> vector<64x128xf32>
    %671 = arith.addf %668, %670 : vector<64x128xf32>
    %c0_321 = arith.constant 0 : index
    %c0_322 = arith.constant 0 : index
    %672 = vector.load %arg11[%c0_321, %c0_322] : memref<1x128xf32, #tpu.memory_space<vmem>>, vector<1x128xf32>
    %673 = vector.broadcast %672 : vector<1x128xf32> to vector<64x128xf32>
    %674 = arith.addf %671, %673 : vector<64x128xf32>
    %c0_323 = arith.constant 0 : index
    %c0_324 = arith.constant 0 : index
    %675 = vector.load %arg22[%c0_323, %c0_324] : memref<64x128xf32, #tpu.memory_space<vmem>>, vector<64x128xf32>
    tpu.vector_store %arg22[%c0_323, %c0_324], %674 {strides = array<i32>} : memref<64x128xf32, #tpu.memory_space<vmem>>, vector<64x128xf32>,
    %c0_325 = arith.constant 0 : index
    %c0_326 = arith.constant 0 : index
    %676 = vector.load %arg12[%c0_325, %c0_326] : memref<32x128xbf16, #tpu.memory_space<vmem>>, vector<32x128xbf16>
    %cst_327 = arith.constant dense<0.000000e+00> : vector<64x128xf32>
    %677 = tpu.matmul %664, %676, %cst_327 {dimension_numbers = #tpu.dot_dimension_numbers<[1], [0], [0], [1], [0, 0, 1, 1], [], []>} : vector<64x32xbf16>, vector<32x128xbf16>, vector<64x128xf32> -> vector<64x128xf32>
    %c0_328 = arith.constant 0 : index
    %c0_329 = arith.constant 0 : index
    %678 = vector.load %arg13[%c0_328, %c0_329] : memref<32x128xbf16, #tpu.memory_space<vmem>>, vector<32x128xbf16>
    %cst_330 = arith.constant dense<0.000000e+00> : vector<64x128xf32>
    %679 = tpu.matmul %666, %678, %cst_330 {dimension_numbers = #tpu.dot_dimension_numbers<[1], [0], [0], [1], [0, 0, 1, 1], [], []>} : vector<64x32xbf16>, vector<32x128xbf16>, vector<64x128xf32> -> vector<64x128xf32>
    %680 = arith.addf %677, %679 : vector<64x128xf32>
    %c0_331 = arith.constant 0 : index
    %c0_332 = arith.constant 0 : index
    %681 = vector.load %arg15[%c0_331, %c0_332] : memref<1x128xf32, #tpu.memory_space<vmem>>, vector<1x128xf32>
    %682 = vector.broadcast %681 : vector<1x128xf32> to vector<64x128xf32>
    %683 = arith.addf %680, %682 : vector<64x128xf32>
    %c0_333 = arith.constant 0 : index
    %c0_334 = arith.constant 0 : index
    %684 = vector.load %arg23[%c0_333, %c0_334] : memref<64x128xf32, #tpu.memory_space<vmem>>, vector<64x128xf32>
    tpu.vector_store %arg23[%c0_333, %c0_334], %683 {strides = array<i32>} : memref<64x128xf32, #tpu.memory_space<vmem>>, vector<64x128xf32>,
    %c0_335 = arith.constant 0 : index
    %c0_336 = arith.constant 0 : index
    %685 = vector.load %arg10[%c0_335, %c0_336] : memref<32x128xf32, #tpu.memory_space<vmem>>, vector<32x128xf32>
    %c0_337 = arith.constant 0 : index
    %c0_338 = arith.constant 0 : index
    %686 = vector.load %arg14[%c0_337, %c0_338] : memref<32x128xf32, #tpu.memory_space<vmem>>, vector<32x128xf32>
    %cst_339 = arith.constant 0.000000e+00 : f32
    %687 = vector.broadcast %cst_339 : f32 to vector<8x32xf32>
    %c0_340 = arith.constant 0 : index
    %c0_341 = arith.constant 0 : index
    %688 = vector.load %arg26[%c0_340, %c0_341] : memref<8x32xf32, #tpu.memory_space<vmem>>, vector<8x32xf32>
    tpu.vector_store %arg26[%c0_340, %c0_341], %687 {strides = array<i32>} : memref<8x32xf32, #tpu.memory_space<vmem>>, vector<8x32xf32>,
    %cst_342 = arith.constant 0.000000e+00 : f32
    %689 = vector.broadcast %cst_342 : f32 to vector<8x32xf32>
    %c0_343 = arith.constant 0 : index
    %c0_344 = arith.constant 0 : index
    %690 = vector.load %arg27[%c0_343, %c0_344] : memref<8x32xf32, #tpu.memory_space<vmem>>, vector<8x32xf32>
    tpu.vector_store %arg27[%c0_343, %c0_344], %689 {strides = array<i32>} : memref<8x32xf32, #tpu.memory_space<vmem>>, vector<8x32xf32>,
    %cst_345 = arith.constant 0.000000e+00 : f32
    %691 = vector.broadcast %cst_345 : f32 to vector<8x32xf32>
    %c0_346 = arith.constant 0 : index
    %c0_347 = arith.constant 0 : index
    %692 = vector.load %arg28[%c0_346, %c0_347] : memref<8x32xf32, #tpu.memory_space<vmem>>, vector<8x32xf32>
    tpu.vector_store %arg28[%c0_346, %c0_347], %691 {strides = array<i32>} : memref<8x32xf32, #tpu.memory_space<vmem>>, vector<8x32xf32>,
    %cst_348 = arith.constant 0.000000e+00 : f32
    %693 = vector.broadcast %cst_348 : f32 to vector<8x32xf32>
    %c0_349 = arith.constant 0 : index
    %c0_350 = arith.constant 0 : index
    %694 = vector.load %arg29[%c0_349, %c0_350] : memref<8x32xf32, #tpu.memory_space<vmem>>, vector<8x32xf32>
    tpu.vector_store %arg29[%c0_349, %c0_350], %693 {strides = array<i32>} : memref<8x32xf32, #tpu.memory_space<vmem>>, vector<8x32xf32>,
    %cst_351 = arith.constant 0.000000e+00 : f32
    %695 = vector.broadcast %cst_351 : f32 to vector<8x32xf32>
    %c0_352 = arith.constant 0 : index
    %c0_353 = arith.constant 0 : index
    %696 = vector.load %arg30[%c0_352, %c0_353] : memref<8x32xf32, #tpu.memory_space<vmem>>, vector<8x32xf32>
    tpu.vector_store %arg30[%c0_352, %c0_353], %695 {strides = array<i32>} : memref<8x32xf32, #tpu.memory_space<vmem>>, vector<8x32xf32>,
    %c0_354 = arith.constant 0 : index
    %c0_355 = arith.constant 0 : index
    %697 = vector.load %arg1[%c0_354, %c0_355] : memref<64x1xf32, #tpu.memory_space<vmem>>, vector<8x1xf32>
    %c56_356 = arith.constant 56 : index
    %c0_357 = arith.constant 0 : index
    %698 = vector.load %arg1[%c56_356, %c0_357] : memref<64x1xf32, #tpu.memory_space<vmem>>, vector<8x1xf32>
    %c0_358 = arith.constant 0 : index
    %c0_359 = arith.constant 0 : index
    %699 = vector.load %arg22[%c0_358, %c0_359] : memref<64x128xf32, #tpu.memory_space<vmem>>, vector<8x128xf32>
    %c0_360 = arith.constant 0 : index
    %c0_361 = arith.constant 0 : index
    %700 = vector.load %arg26[%c0_360, %c0_361] : memref<8x32xf32, #tpu.memory_space<vmem>>, vector<8x32xf32>
    %cst_362 = arith.constant dense<0.000000e+00> : vector<8x128xf32>
    %701 = tpu.matmul %700, %685, %cst_362 {dimension_numbers = #tpu.dot_dimension_numbers<[1], [0], [0], [1], [0, 0, 1, 1], [], []>} : vector<8x32xf32>, vector<32x128xf32>, vector<8x128xf32> -> vector<8x128xf32>
    %702 = arith.addf %699, %701 : vector<8x128xf32>
    %c56_363 = arith.constant 56 : index
    %c0_364 = arith.constant 0 : index
    %703 = vector.load %arg23[%c56_363, %c0_364] : memref<64x128xf32, #tpu.memory_space<vmem>>, vector<8x128xf32>
    %c0_365 = arith.constant 0 : index
    %c0_366 = arith.constant 0 : index
    %704 = vector.load %arg28[%c0_365, %c0_366] : memref<8x32xf32, #tpu.memory_space<vmem>>, vector<8x32xf32>
    %cst_367 = arith.constant dense<0.000000e+00> : vector<8x128xf32>
    %705 = tpu.matmul %704, %686, %cst_367 {dimension_numbers = #tpu.dot_dimension_numbers<[1], [0], [0], [1], [0, 0, 1, 1], [], []>} : vector<8x32xf32>, vector<32x128xf32>, vector<8x128xf32> -> vector<8x128xf32>
    %706 = arith.addf %703, %705 : vector<8x128xf32>
    %c0_368 = arith.constant 0 : index
    %c0_369 = arith.constant 0 : index
    %707 = vector.load %arg27[%c0_368, %c0_369] : memref<8x32xf32, #tpu.memory_space<vmem>>, vector<8x32xf32>
    %708 = vector.extract_strided_slice %702 {offsets = [0, 0], sizes = [8, 32], strides = [1, 1]} : vector<8x128xf32> to vector<8x32xf32>
    %709 = arith.negf %708 : vector<8x32xf32>
    %710 = math.exp %709 : vector<8x32xf32>
    %cst_370 = arith.constant 1.000000e+00 : f32
    %711 = vector.broadcast %cst_370 : f32 to vector<8x32xf32>
    %712 = arith.addf %711, %710 : vector<8x32xf32>
    %713 = arith.divf %711, %712 : vector<8x32xf32>
    %714 = vector.extract_strided_slice %702 {offsets = [0, 32], sizes = [8, 32], strides = [1, 1]} : vector<8x128xf32> to vector<8x32xf32>
    %715 = arith.negf %714 : vector<8x32xf32>
    %716 = math.exp %715 : vector<8x32xf32>
    %cst_371 = arith.constant 1.000000e+00 : f32
    %717 = vector.broadcast %cst_371 : f32 to vector<8x32xf32>
    %718 = arith.addf %717, %716 : vector<8x32xf32>
    %719 = arith.divf %717, %718 : vector<8x32xf32>
    %720 = vector.extract_strided_slice %702 {offsets = [0, 64], sizes = [8, 32], strides = [1, 1]} : vector<8x128xf32> to vector<8x32xf32>
    %721 = math.tanh %720 : vector<8x32xf32>
    %722 = vector.extract_strided_slice %702 {offsets = [0, 96], sizes = [8, 32], strides = [1, 1]} : vector<8x128xf32> to vector<8x32xf32>
    %723 = arith.negf %722 : vector<8x32xf32>
    %724 = math.exp %723 : vector<8x32xf32>
    %cst_372 = arith.constant 1.000000e+00 : f32
    %725 = vector.broadcast %cst_372 : f32 to vector<8x32xf32>
    %726 = arith.addf %725, %724 : vector<8x32xf32>
    %727 = arith.divf %725, %726 : vector<8x32xf32>
    %728 = arith.mulf %719, %707 : vector<8x32xf32>
    %729 = arith.mulf %713, %721 : vector<8x32xf32>
    %730 = arith.addf %728, %729 : vector<8x32xf32>
    %731 = math.tanh %730 : vector<8x32xf32>
    %732 = arith.mulf %727, %731 : vector<8x32xf32>
    %c0_373 = arith.constant 0 : index
    %c0_374 = arith.constant 0 : index
    %733 = vector.load %arg29[%c0_373, %c0_374] : memref<8x32xf32, #tpu.memory_space<vmem>>, vector<8x32xf32>
    %734 = vector.extract_strided_slice %706 {offsets = [0, 0], sizes = [8, 32], strides = [1, 1]} : vector<8x128xf32> to vector<8x32xf32>
    %735 = arith.negf %734 : vector<8x32xf32>
    %736 = math.exp %735 : vector<8x32xf32>
    %cst_375 = arith.constant 1.000000e+00 : f32
    %737 = vector.broadcast %cst_375 : f32 to vector<8x32xf32>
    %738 = arith.addf %737, %736 : vector<8x32xf32>
    %739 = arith.divf %737, %738 : vector<8x32xf32>
    %740 = vector.extract_strided_slice %706 {offsets = [0, 32], sizes = [8, 32], strides = [1, 1]} : vector<8x128xf32> to vector<8x32xf32>
    %741 = arith.negf %740 : vector<8x32xf32>
    %742 = math.exp %741 : vector<8x32xf32>
    %cst_376 = arith.constant 1.000000e+00 : f32
    %743 = vector.broadcast %cst_376 : f32 to vector<8x32xf32>
    %744 = arith.addf %743, %742 : vector<8x32xf32>
    %745 = arith.divf %743, %744 : vector<8x32xf32>
    %746 = vector.extract_strided_slice %706 {offsets = [0, 64], sizes = [8, 32], strides = [1, 1]} : vector<8x128xf32> to vector<8x32xf32>
    %747 = math.tanh %746 : vector<8x32xf32>
    %748 = vector.extract_strided_slice %706 {offsets = [0, 96], sizes = [8, 32], strides = [1, 1]} : vector<8x128xf32> to vector<8x32xf32>
    %749 = arith.negf %748 : vector<8x32xf32>
    %750 = math.exp %749 : vector<8x32xf32>
    %cst_377 = arith.constant 1.000000e+00 : f32
    %751 = vector.broadcast %cst_377 : f32 to vector<8x32xf32>
    %752 = arith.addf %751, %750 : vector<8x32xf32>
    %753 = arith.divf %751, %752 : vector<8x32xf32>
    %754 = arith.mulf %745, %733 : vector<8x32xf32>
    %755 = arith.mulf %739, %747 : vector<8x32xf32>
    %756 = arith.addf %754, %755 : vector<8x32xf32>
    %757 = math.tanh %756 : vector<8x32xf32>
    %758 = arith.mulf %753, %757 : vector<8x32xf32>
    %759 = vector.broadcast %697 : vector<8x1xf32> to vector<8x32xf32>
    %760 = arith.mulf %759, %732 : vector<8x32xf32>
    %c0_378 = arith.constant 0 : index
    %c0_379 = arith.constant 0 : index
    %761 = vector.load %arg26[%c0_378, %c0_379] : memref<8x32xf32, #tpu.memory_space<vmem>>, vector<8x32xf32>
    tpu.vector_store %arg26[%c0_378, %c0_379], %760 {strides = array<i32>} : memref<8x32xf32, #tpu.memory_space<vmem>>, vector<8x32xf32>,
    %762 = vector.broadcast %697 : vector<8x1xf32> to vector<8x32xf32>
    %763 = arith.mulf %762, %730 : vector<8x32xf32>
    %c0_380 = arith.constant 0 : index
    %c0_381 = arith.constant 0 : index
    %764 = vector.load %arg27[%c0_380, %c0_381] : memref<8x32xf32, #tpu.memory_space<vmem>>, vector<8x32xf32>
    tpu.vector_store %arg27[%c0_380, %c0_381], %763 {strides = array<i32>} : memref<8x32xf32, #tpu.memory_space<vmem>>, vector<8x32xf32>,
    %765 = vector.broadcast %698 : vector<8x1xf32> to vector<8x32xf32>
    %766 = arith.mulf %765, %758 : vector<8x32xf32>
    %c0_382 = arith.constant 0 : index
    %c0_383 = arith.constant 0 : index
    %767 = vector.load %arg28[%c0_382, %c0_383] : memref<8x32xf32, #tpu.memory_space<vmem>>, vector<8x32xf32>
    tpu.vector_store %arg28[%c0_382, %c0_383], %766 {strides = array<i32>} : memref<8x32xf32, #tpu.memory_space<vmem>>, vector<8x32xf32>,
    %768 = vector.broadcast %698 : vector<8x1xf32> to vector<8x32xf32>
    %769 = arith.mulf %768, %756 : vector<8x32xf32>
    %c0_384 = arith.constant 0 : index
    %c0_385 = arith.constant 0 : index
    %770 = vector.load %arg29[%c0_384, %c0_385] : memref<8x32xf32, #tpu.memory_space<vmem>>, vector<8x32xf32>
    tpu.vector_store %arg29[%c0_384, %c0_385], %769 {strides = array<i32>} : memref<8x32xf32, #tpu.memory_space<vmem>>, vector<8x32xf32>,
    %cst_386 = arith.constant 0.000000e+00 : f32
    %771 = vector.broadcast %cst_386 : f32 to vector<8x1xf32>
    %772 = arith.cmpf ogt, %697, %771 : vector<8x1xf32>
    %c0_387 = arith.constant 0 : index
    %c0_388 = arith.constant 0 : index
    %773 = vector.load %arg30[%c0_387, %c0_388] : memref<8x32xf32, #tpu.memory_space<vmem>>, vector<8x32xf32>
    %774 = vector.shape_cast %772 : vector<8x1xi1> to vector<8x1xi1>
    %775 = vector.broadcast %774 : vector<8x1xi1> to vector<8x32xi1>
    %776 = arith.select %775, %732, %773 : vector<8x32xi1>, vector<8x32xf32>
    %c0_389 = arith.constant 0 : index
    %c0_390 = arith.constant 0 : index
    %777 = vector.load %arg30[%c0_389, %c0_390] : memref<8x32xf32, #tpu.memory_space<vmem>>, vector<8x32xf32>
    tpu.vector_store %arg30[%c0_389, %c0_390], %776 {strides = array<i32>} : memref<8x32xf32, #tpu.memory_space<vmem>>, vector<8x32xf32>,
    %c8_391 = arith.constant 8 : index
    %c0_392 = arith.constant 0 : index
    %778 = vector.load %arg1[%c8_391, %c0_392] : memref<64x1xf32, #tpu.memory_space<vmem>>, vector<8x1xf32>
    %c48_393 = arith.constant 48 : index
    %c0_394 = arith.constant 0 : index
    %779 = vector.load %arg1[%c48_393, %c0_394] : memref<64x1xf32, #tpu.memory_space<vmem>>, vector<8x1xf32>
    %c8_395 = arith.constant 8 : index
    %c0_396 = arith.constant 0 : index
    %780 = vector.load %arg22[%c8_395, %c0_396] : memref<64x128xf32, #tpu.memory_space<vmem>>, vector<8x128xf32>
    %c0_397 = arith.constant 0 : index
    %c0_398 = arith.constant 0 : index
    %781 = vector.load %arg26[%c0_397, %c0_398] : memref<8x32xf32, #tpu.memory_space<vmem>>, vector<8x32xf32>
    %cst_399 = arith.constant dense<0.000000e+00> : vector<8x128xf32>
    %782 = tpu.matmul %781, %685, %cst_399 {dimension_numbers = #tpu.dot_dimension_numbers<[1], [0], [0], [1], [0, 0, 1, 1], [], []>} : vector<8x32xf32>, vector<32x128xf32>, vector<8x128xf32> -> vector<8x128xf32>
    %783 = arith.addf %780, %782 : vector<8x128xf32>
    %c48_400 = arith.constant 48 : index
    %c0_401 = arith.constant 0 : index
    %784 = vector.load %arg23[%c48_400, %c0_401] : memref<64x128xf32, #tpu.memory_space<vmem>>, vector<8x128xf32>
    %c0_402 = arith.constant 0 : index
    %c0_403 = arith.constant 0 : index
    %785 = vector.load %arg28[%c0_402, %c0_403] : memref<8x32xf32, #tpu.memory_space<vmem>>, vector<8x32xf32>
    %cst_404 = arith.constant dense<0.000000e+00> : vector<8x128xf32>
    %786 = tpu.matmul %785, %686, %cst_404 {dimension_numbers = #tpu.dot_dimension_numbers<[1], [0], [0], [1], [0, 0, 1, 1], [], []>} : vector<8x32xf32>, vector<32x128xf32>, vector<8x128xf32> -> vector<8x128xf32>
    %787 = arith.addf %784, %786 : vector<8x128xf32>
    %c0_405 = arith.constant 0 : index
    %c0_406 = arith.constant 0 : index
    %788 = vector.load %arg27[%c0_405, %c0_406] : memref<8x32xf32, #tpu.memory_space<vmem>>, vector<8x32xf32>
    %789 = vector.extract_strided_slice %783 {offsets = [0, 0], sizes = [8, 32], strides = [1, 1]} : vector<8x128xf32> to vector<8x32xf32>
    %790 = arith.negf %789 : vector<8x32xf32>
    %791 = math.exp %790 : vector<8x32xf32>
    %cst_407 = arith.constant 1.000000e+00 : f32
    %792 = vector.broadcast %cst_407 : f32 to vector<8x32xf32>
    %793 = arith.addf %792, %791 : vector<8x32xf32>
    %794 = arith.divf %792, %793 : vector<8x32xf32>
    %795 = vector.extract_strided_slice %783 {offsets = [0, 32], sizes = [8, 32], strides = [1, 1]} : vector<8x128xf32> to vector<8x32xf32>
    %796 = arith.negf %795 : vector<8x32xf32>
    %797 = math.exp %796 : vector<8x32xf32>
    %cst_408 = arith.constant 1.000000e+00 : f32
    %798 = vector.broadcast %cst_408 : f32 to vector<8x32xf32>
    %799 = arith.addf %798, %797 : vector<8x32xf32>
    %800 = arith.divf %798, %799 : vector<8x32xf32>
    %801 = vector.extract_strided_slice %783 {offsets = [0, 64], sizes = [8, 32], strides = [1, 1]} : vector<8x128xf32> to vector<8x32xf32>
    %802 = math.tanh %801 : vector<8x32xf32>
    %803 = vector.extract_strided_slice %783 {offsets = [0, 96], sizes = [8, 32], strides = [1, 1]} : vector<8x128xf32> to vector<8x32xf32>
    %804 = arith.negf %803 : vector<8x32xf32>
    %805 = math.exp %804 : vector<8x32xf32>
    %cst_409 = arith.constant 1.000000e+00 : f32
    %806 = vector.broadcast %cst_409 : f32 to vector<8x32xf32>
    %807 = arith.addf %806, %805 : vector<8x32xf32>
    %808 = arith.divf %806, %807 : vector<8x32xf32>
    %809 = arith.mulf %800, %788 : vector<8x32xf32>
    %810 = arith.mulf %794, %802 : vector<8x32xf32>
    %811 = arith.addf %809, %810 : vector<8x32xf32>
    %812 = math.tanh %811 : vector<8x32xf32>
    %813 = arith.mulf %808, %812 : vector<8x32xf32>
    %c0_410 = arith.constant 0 : index
    %c0_411 = arith.constant 0 : index
    %814 = vector.load %arg29[%c0_410, %c0_411] : memref<8x32xf32, #tpu.memory_space<vmem>>, vector<8x32xf32>
    %815 = vector.extract_strided_slice %787 {offsets = [0, 0], sizes = [8, 32], strides = [1, 1]} : vector<8x128xf32> to vector<8x32xf32>
    %816 = arith.negf %815 : vector<8x32xf32>
    %817 = math.exp %816 : vector<8x32xf32>
    %cst_412 = arith.constant 1.000000e+00 : f32
    %818 = vector.broadcast %cst_412 : f32 to vector<8x32xf32>
    %819 = arith.addf %818, %817 : vector<8x32xf32>
    %820 = arith.divf %818, %819 : vector<8x32xf32>
    %821 = vector.extract_strided_slice %787 {offsets = [0, 32], sizes = [8, 32], strides = [1, 1]} : vector<8x128xf32> to vector<8x32xf32>
    %822 = arith.negf %821 : vector<8x32xf32>
    %823 = math.exp %822 : vector<8x32xf32>
    %cst_413 = arith.constant 1.000000e+00 : f32
    %824 = vector.broadcast %cst_413 : f32 to vector<8x32xf32>
    %825 = arith.addf %824, %823 : vector<8x32xf32>
    %826 = arith.divf %824, %825 : vector<8x32xf32>
    %827 = vector.extract_strided_slice %787 {offsets = [0, 64], sizes = [8, 32], strides = [1, 1]} : vector<8x128xf32> to vector<8x32xf32>
    %828 = math.tanh %827 : vector<8x32xf32>
    %829 = vector.extract_strided_slice %787 {offsets = [0, 96], sizes = [8, 32], strides = [1, 1]} : vector<8x128xf32> to vector<8x32xf32>
    %830 = arith.negf %829 : vector<8x32xf32>
    %831 = math.exp %830 : vector<8x32xf32>
    %cst_414 = arith.constant 1.000000e+00 : f32
    %832 = vector.broadcast %cst_414 : f32 to vector<8x32xf32>
    %833 = arith.addf %832, %831 : vector<8x32xf32>
    %834 = arith.divf %832, %833 : vector<8x32xf32>
    %835 = arith.mulf %826, %814 : vector<8x32xf32>
    %836 = arith.mulf %820, %828 : vector<8x32xf32>
    %837 = arith.addf %835, %836 : vector<8x32xf32>
    %838 = math.tanh %837 : vector<8x32xf32>
    %839 = arith.mulf %834, %838 : vector<8x32xf32>
    %840 = vector.broadcast %778 : vector<8x1xf32> to vector<8x32xf32>
    %841 = arith.mulf %840, %813 : vector<8x32xf32>
    %c0_415 = arith.constant 0 : index
    %c0_416 = arith.constant 0 : index
    %842 = vector.load %arg26[%c0_415, %c0_416] : memref<8x32xf32, #tpu.memory_space<vmem>>, vector<8x32xf32>
    tpu.vector_store %arg26[%c0_415, %c0_416], %841 {strides = array<i32>} : memref<8x32xf32, #tpu.memory_space<vmem>>, vector<8x32xf32>,
    %843 = vector.broadcast %778 : vector<8x1xf32> to vector<8x32xf32>
    %844 = arith.mulf %843, %811 : vector<8x32xf32>
    %c0_417 = arith.constant 0 : index
    %c0_418 = arith.constant 0 : index
    %845 = vector.load %arg27[%c0_417, %c0_418] : memref<8x32xf32, #tpu.memory_space<vmem>>, vector<8x32xf32>
    tpu.vector_store %arg27[%c0_417, %c0_418], %844 {strides = array<i32>} : memref<8x32xf32, #tpu.memory_space<vmem>>, vector<8x32xf32>,
    %846 = vector.broadcast %779 : vector<8x1xf32> to vector<8x32xf32>
    %847 = arith.mulf %846, %839 : vector<8x32xf32>
    %c0_419 = arith.constant 0 : index
    %c0_420 = arith.constant 0 : index
    %848 = vector.load %arg28[%c0_419, %c0_420] : memref<8x32xf32, #tpu.memory_space<vmem>>, vector<8x32xf32>
    tpu.vector_store %arg28[%c0_419, %c0_420], %847 {strides = array<i32>} : memref<8x32xf32, #tpu.memory_space<vmem>>, vector<8x32xf32>,
    %849 = vector.broadcast %779 : vector<8x1xf32> to vector<8x32xf32>
    %850 = arith.mulf %849, %837 : vector<8x32xf32>
    %c0_421 = arith.constant 0 : index
    %c0_422 = arith.constant 0 : index
    %851 = vector.load %arg29[%c0_421, %c0_422] : memref<8x32xf32, #tpu.memory_space<vmem>>, vector<8x32xf32>
    tpu.vector_store %arg29[%c0_421, %c0_422], %850 {strides = array<i32>} : memref<8x32xf32, #tpu.memory_space<vmem>>, vector<8x32xf32>,
    %cst_423 = arith.constant 0.000000e+00 : f32
    %852 = vector.broadcast %cst_423 : f32 to vector<8x1xf32>
    %853 = arith.cmpf ogt, %778, %852 : vector<8x1xf32>
    %c0_424 = arith.constant 0 : index
    %c0_425 = arith.constant 0 : index
    %854 = vector.load %arg30[%c0_424, %c0_425] : memref<8x32xf32, #tpu.memory_space<vmem>>, vector<8x32xf32>
    %855 = vector.shape_cast %853 : vector<8x1xi1> to vector<8x1xi1>
    %856 = vector.broadcast %855 : vector<8x1xi1> to vector<8x32xi1>
    %857 = arith.select %856, %813, %854 : vector<8x32xi1>, vector<8x32xf32>
    %c0_426 = arith.constant 0 : index
    %c0_427 = arith.constant 0 : index
    %858 = vector.load %arg30[%c0_426, %c0_427] : memref<8x32xf32, #tpu.memory_space<vmem>>, vector<8x32xf32>
    tpu.vector_store %arg30[%c0_426, %c0_427], %857 {strides = array<i32>} : memref<8x32xf32, #tpu.memory_space<vmem>>, vector<8x32xf32>,
    %c16_428 = arith.constant 16 : index
    %c0_429 = arith.constant 0 : index
    %859 = vector.load %arg1[%c16_428, %c0_429] : memref<64x1xf32, #tpu.memory_space<vmem>>, vector<8x1xf32>
    %c40_430 = arith.constant 40 : index
    %c0_431 = arith.constant 0 : index
    %860 = vector.load %arg1[%c40_430, %c0_431] : memref<64x1xf32, #tpu.memory_space<vmem>>, vector<8x1xf32>
    %c16_432 = arith.constant 16 : index
    %c0_433 = arith.constant 0 : index
    %861 = vector.load %arg22[%c16_432, %c0_433] : memref<64x128xf32, #tpu.memory_space<vmem>>, vector<8x128xf32>
    %c0_434 = arith.constant 0 : index
    %c0_435 = arith.constant 0 : index
    %862 = vector.load %arg26[%c0_434, %c0_435] : memref<8x32xf32, #tpu.memory_space<vmem>>, vector<8x32xf32>
    %cst_436 = arith.constant dense<0.000000e+00> : vector<8x128xf32>
    %863 = tpu.matmul %862, %685, %cst_436 {dimension_numbers = #tpu.dot_dimension_numbers<[1], [0], [0], [1], [0, 0, 1, 1], [], []>} : vector<8x32xf32>, vector<32x128xf32>, vector<8x128xf32> -> vector<8x128xf32>
    %864 = arith.addf %861, %863 : vector<8x128xf32>
    %c40_437 = arith.constant 40 : index
    %c0_438 = arith.constant 0 : index
    %865 = vector.load %arg23[%c40_437, %c0_438] : memref<64x128xf32, #tpu.memory_space<vmem>>, vector<8x128xf32>
    %c0_439 = arith.constant 0 : index
    %c0_440 = arith.constant 0 : index
    %866 = vector.load %arg28[%c0_439, %c0_440] : memref<8x32xf32, #tpu.memory_space<vmem>>, vector<8x32xf32>
    %cst_441 = arith.constant dense<0.000000e+00> : vector<8x128xf32>
    %867 = tpu.matmul %866, %686, %cst_441 {dimension_numbers = #tpu.dot_dimension_numbers<[1], [0], [0], [1], [0, 0, 1, 1], [], []>} : vector<8x32xf32>, vector<32x128xf32>, vector<8x128xf32> -> vector<8x128xf32>
    %868 = arith.addf %865, %867 : vector<8x128xf32>
    %c0_442 = arith.constant 0 : index
    %c0_443 = arith.constant 0 : index
    %869 = vector.load %arg27[%c0_442, %c0_443] : memref<8x32xf32, #tpu.memory_space<vmem>>, vector<8x32xf32>
    %870 = vector.extract_strided_slice %864 {offsets = [0, 0], sizes = [8, 32], strides = [1, 1]} : vector<8x128xf32> to vector<8x32xf32>
    %871 = arith.negf %870 : vector<8x32xf32>
    %872 = math.exp %871 : vector<8x32xf32>
    %cst_444 = arith.constant 1.000000e+00 : f32
    %873 = vector.broadcast %cst_444 : f32 to vector<8x32xf32>
    %874 = arith.addf %873, %872 : vector<8x32xf32>
    %875 = arith.divf %873, %874 : vector<8x32xf32>
    %876 = vector.extract_strided_slice %864 {offsets = [0, 32], sizes = [8, 32], strides = [1, 1]} : vector<8x128xf32> to vector<8x32xf32>
    %877 = arith.negf %876 : vector<8x32xf32>
    %878 = math.exp %877 : vector<8x32xf32>
    %cst_445 = arith.constant 1.000000e+00 : f32
    %879 = vector.broadcast %cst_445 : f32 to vector<8x32xf32>
    %880 = arith.addf %879, %878 : vector<8x32xf32>
    %881 = arith.divf %879, %880 : vector<8x32xf32>
    %882 = vector.extract_strided_slice %864 {offsets = [0, 64], sizes = [8, 32], strides = [1, 1]} : vector<8x128xf32> to vector<8x32xf32>
    %883 = math.tanh %882 : vector<8x32xf32>
    %884 = vector.extract_strided_slice %864 {offsets = [0, 96], sizes = [8, 32], strides = [1, 1]} : vector<8x128xf32> to vector<8x32xf32>
    %885 = arith.negf %884 : vector<8x32xf32>
    %886 = math.exp %885 : vector<8x32xf32>
    %cst_446 = arith.constant 1.000000e+00 : f32
    %887 = vector.broadcast %cst_446 : f32 to vector<8x32xf32>
    %888 = arith.addf %887, %886 : vector<8x32xf32>
    %889 = arith.divf %887, %888 : vector<8x32xf32>
    %890 = arith.mulf %881, %869 : vector<8x32xf32>
    %891 = arith.mulf %875, %883 : vector<8x32xf32>
    %892 = arith.addf %890, %891 : vector<8x32xf32>
    %893 = math.tanh %892 : vector<8x32xf32>
    %894 = arith.mulf %889, %893 : vector<8x32xf32>
    %c0_447 = arith.constant 0 : index
    %c0_448 = arith.constant 0 : index
    %895 = vector.load %arg29[%c0_447, %c0_448] : memref<8x32xf32, #tpu.memory_space<vmem>>, vector<8x32xf32>
    %896 = vector.extract_strided_slice %868 {offsets = [0, 0], sizes = [8, 32], strides = [1, 1]} : vector<8x128xf32> to vector<8x32xf32>
    %897 = arith.negf %896 : vector<8x32xf32>
    %898 = math.exp %897 : vector<8x32xf32>
    %cst_449 = arith.constant 1.000000e+00 : f32
    %899 = vector.broadcast %cst_449 : f32 to vector<8x32xf32>
    %900 = arith.addf %899, %898 : vector<8x32xf32>
    %901 = arith.divf %899, %900 : vector<8x32xf32>
    %902 = vector.extract_strided_slice %868 {offsets = [0, 32], sizes = [8, 32], strides = [1, 1]} : vector<8x128xf32> to vector<8x32xf32>
    %903 = arith.negf %902 : vector<8x32xf32>
    %904 = math.exp %903 : vector<8x32xf32>
    %cst_450 = arith.constant 1.000000e+00 : f32
    %905 = vector.broadcast %cst_450 : f32 to vector<8x32xf32>
    %906 = arith.addf %905, %904 : vector<8x32xf32>
    %907 = arith.divf %905, %906 : vector<8x32xf32>
    %908 = vector.extract_strided_slice %868 {offsets = [0, 64], sizes = [8, 32], strides = [1, 1]} : vector<8x128xf32> to vector<8x32xf32>
    %909 = math.tanh %908 : vector<8x32xf32>
    %910 = vector.extract_strided_slice %868 {offsets = [0, 96], sizes = [8, 32], strides = [1, 1]} : vector<8x128xf32> to vector<8x32xf32>
    %911 = arith.negf %910 : vector<8x32xf32>
    %912 = math.exp %911 : vector<8x32xf32>
    %cst_451 = arith.constant 1.000000e+00 : f32
    %913 = vector.broadcast %cst_451 : f32 to vector<8x32xf32>
    %914 = arith.addf %913, %912 : vector<8x32xf32>
    %915 = arith.divf %913, %914 : vector<8x32xf32>
    %916 = arith.mulf %907, %895 : vector<8x32xf32>
    %917 = arith.mulf %901, %909 : vector<8x32xf32>
    %918 = arith.addf %916, %917 : vector<8x32xf32>
    %919 = math.tanh %918 : vector<8x32xf32>
    %920 = arith.mulf %915, %919 : vector<8x32xf32>
    %921 = vector.broadcast %859 : vector<8x1xf32> to vector<8x32xf32>
    %922 = arith.mulf %921, %894 : vector<8x32xf32>
    %c0_452 = arith.constant 0 : index
    %c0_453 = arith.constant 0 : index
    %923 = vector.load %arg26[%c0_452, %c0_453] : memref<8x32xf32, #tpu.memory_space<vmem>>, vector<8x32xf32>
    tpu.vector_store %arg26[%c0_452, %c0_453], %922 {strides = array<i32>} : memref<8x32xf32, #tpu.memory_space<vmem>>, vector<8x32xf32>,
    %924 = vector.broadcast %859 : vector<8x1xf32> to vector<8x32xf32>
    %925 = arith.mulf %924, %892 : vector<8x32xf32>
    %c0_454 = arith.constant 0 : index
    %c0_455 = arith.constant 0 : index
    %926 = vector.load %arg27[%c0_454, %c0_455] : memref<8x32xf32, #tpu.memory_space<vmem>>, vector<8x32xf32>
    tpu.vector_store %arg27[%c0_454, %c0_455], %925 {strides = array<i32>} : memref<8x32xf32, #tpu.memory_space<vmem>>, vector<8x32xf32>,
    %927 = vector.broadcast %860 : vector<8x1xf32> to vector<8x32xf32>
    %928 = arith.mulf %927, %920 : vector<8x32xf32>
    %c0_456 = arith.constant 0 : index
    %c0_457 = arith.constant 0 : index
    %929 = vector.load %arg28[%c0_456, %c0_457] : memref<8x32xf32, #tpu.memory_space<vmem>>, vector<8x32xf32>
    tpu.vector_store %arg28[%c0_456, %c0_457], %928 {strides = array<i32>} : memref<8x32xf32, #tpu.memory_space<vmem>>, vector<8x32xf32>,
    %930 = vector.broadcast %860 : vector<8x1xf32> to vector<8x32xf32>
    %931 = arith.mulf %930, %918 : vector<8x32xf32>
    %c0_458 = arith.constant 0 : index
    %c0_459 = arith.constant 0 : index
    %932 = vector.load %arg29[%c0_458, %c0_459] : memref<8x32xf32, #tpu.memory_space<vmem>>, vector<8x32xf32>
    tpu.vector_store %arg29[%c0_458, %c0_459], %931 {strides = array<i32>} : memref<8x32xf32, #tpu.memory_space<vmem>>, vector<8x32xf32>,
    %cst_460 = arith.constant 0.000000e+00 : f32
    %933 = vector.broadcast %cst_460 : f32 to vector<8x1xf32>
    %934 = arith.cmpf ogt, %859, %933 : vector<8x1xf32>
    %c0_461 = arith.constant 0 : index
    %c0_462 = arith.constant 0 : index
    %935 = vector.load %arg30[%c0_461, %c0_462] : memref<8x32xf32, #tpu.memory_space<vmem>>, vector<8x32xf32>
    %936 = vector.shape_cast %934 : vector<8x1xi1> to vector<8x1xi1>
    %937 = vector.broadcast %936 : vector<8x1xi1> to vector<8x32xi1>
    %938 = arith.select %937, %894, %935 : vector<8x32xi1>, vector<8x32xf32>
    %c0_463 = arith.constant 0 : index
    %c0_464 = arith.constant 0 : index
    %939 = vector.load %arg30[%c0_463, %c0_464] : memref<8x32xf32, #tpu.memory_space<vmem>>, vector<8x32xf32>
    tpu.vector_store %arg30[%c0_463, %c0_464], %938 {strides = array<i32>} : memref<8x32xf32, #tpu.memory_space<vmem>>, vector<8x32xf32>,
    %c24_465 = arith.constant 24 : index
    %c0_466 = arith.constant 0 : index
    %940 = vector.load %arg1[%c24_465, %c0_466] : memref<64x1xf32, #tpu.memory_space<vmem>>, vector<8x1xf32>
    %c32_467 = arith.constant 32 : index
    %c0_468 = arith.constant 0 : index
    %941 = vector.load %arg1[%c32_467, %c0_468] : memref<64x1xf32, #tpu.memory_space<vmem>>, vector<8x1xf32>
    %c24_469 = arith.constant 24 : index
    %c0_470 = arith.constant 0 : index
    %942 = vector.load %arg22[%c24_469, %c0_470] : memref<64x128xf32, #tpu.memory_space<vmem>>, vector<8x128xf32>
    %c0_471 = arith.constant 0 : index
    %c0_472 = arith.constant 0 : index
    %943 = vector.load %arg26[%c0_471, %c0_472] : memref<8x32xf32, #tpu.memory_space<vmem>>, vector<8x32xf32>
    %cst_473 = arith.constant dense<0.000000e+00> : vector<8x128xf32>
    %944 = tpu.matmul %943, %685, %cst_473 {dimension_numbers = #tpu.dot_dimension_numbers<[1], [0], [0], [1], [0, 0, 1, 1], [], []>} : vector<8x32xf32>, vector<32x128xf32>, vector<8x128xf32> -> vector<8x128xf32>
    %945 = arith.addf %942, %944 : vector<8x128xf32>
    %c32_474 = arith.constant 32 : index
    %c0_475 = arith.constant 0 : index
    %946 = vector.load %arg23[%c32_474, %c0_475] : memref<64x128xf32, #tpu.memory_space<vmem>>, vector<8x128xf32>
    %c0_476 = arith.constant 0 : index
    %c0_477 = arith.constant 0 : index
    %947 = vector.load %arg28[%c0_476, %c0_477] : memref<8x32xf32, #tpu.memory_space<vmem>>, vector<8x32xf32>
    %cst_478 = arith.constant dense<0.000000e+00> : vector<8x128xf32>
    %948 = tpu.matmul %947, %686, %cst_478 {dimension_numbers = #tpu.dot_dimension_numbers<[1], [0], [0], [1], [0, 0, 1, 1], [], []>} : vector<8x32xf32>, vector<32x128xf32>, vector<8x128xf32> -> vector<8x128xf32>
    %949 = arith.addf %946, %948 : vector<8x128xf32>
    %c0_479 = arith.constant 0 : index
    %c0_480 = arith.constant 0 : index
    %950 = vector.load %arg27[%c0_479, %c0_480] : memref<8x32xf32, #tpu.memory_space<vmem>>, vector<8x32xf32>
    %951 = vector.extract_strided_slice %945 {offsets = [0, 0], sizes = [8, 32], strides = [1, 1]} : vector<8x128xf32> to vector<8x32xf32>
    %952 = arith.negf %951 : vector<8x32xf32>
    %953 = math.exp %952 : vector<8x32xf32>
    %cst_481 = arith.constant 1.000000e+00 : f32
    %954 = vector.broadcast %cst_481 : f32 to vector<8x32xf32>
    %955 = arith.addf %954, %953 : vector<8x32xf32>
    %956 = arith.divf %954, %955 : vector<8x32xf32>
    %957 = vector.extract_strided_slice %945 {offsets = [0, 32], sizes = [8, 32], strides = [1, 1]} : vector<8x128xf32> to vector<8x32xf32>
    %958 = arith.negf %957 : vector<8x32xf32>
    %959 = math.exp %958 : vector<8x32xf32>
    %cst_482 = arith.constant 1.000000e+00 : f32
    %960 = vector.broadcast %cst_482 : f32 to vector<8x32xf32>
    %961 = arith.addf %960, %959 : vector<8x32xf32>
    %962 = arith.divf %960, %961 : vector<8x32xf32>
    %963 = vector.extract_strided_slice %945 {offsets = [0, 64], sizes = [8, 32], strides = [1, 1]} : vector<8x128xf32> to vector<8x32xf32>
    %964 = math.tanh %963 : vector<8x32xf32>
    %965 = vector.extract_strided_slice %945 {offsets = [0, 96], sizes = [8, 32], strides = [1, 1]} : vector<8x128xf32> to vector<8x32xf32>
    %966 = arith.negf %965 : vector<8x32xf32>
    %967 = math.exp %966 : vector<8x32xf32>
    %cst_483 = arith.constant 1.000000e+00 : f32
    %968 = vector.broadcast %cst_483 : f32 to vector<8x32xf32>
    %969 = arith.addf %968, %967 : vector<8x32xf32>
    %970 = arith.divf %968, %969 : vector<8x32xf32>
    %971 = arith.mulf %962, %950 : vector<8x32xf32>
    %972 = arith.mulf %956, %964 : vector<8x32xf32>
    %973 = arith.addf %971, %972 : vector<8x32xf32>
    %974 = math.tanh %973 : vector<8x32xf32>
    %975 = arith.mulf %970, %974 : vector<8x32xf32>
    %c0_484 = arith.constant 0 : index
    %c0_485 = arith.constant 0 : index
    %976 = vector.load %arg29[%c0_484, %c0_485] : memref<8x32xf32, #tpu.memory_space<vmem>>, vector<8x32xf32>
    %977 = vector.extract_strided_slice %949 {offsets = [0, 0], sizes = [8, 32], strides = [1, 1]} : vector<8x128xf32> to vector<8x32xf32>
    %978 = arith.negf %977 : vector<8x32xf32>
    %979 = math.exp %978 : vector<8x32xf32>
    %cst_486 = arith.constant 1.000000e+00 : f32
    %980 = vector.broadcast %cst_486 : f32 to vector<8x32xf32>
    %981 = arith.addf %980, %979 : vector<8x32xf32>
    %982 = arith.divf %980, %981 : vector<8x32xf32>
    %983 = vector.extract_strided_slice %949 {offsets = [0, 32], sizes = [8, 32], strides = [1, 1]} : vector<8x128xf32> to vector<8x32xf32>
    %984 = arith.negf %983 : vector<8x32xf32>
    %985 = math.exp %984 : vector<8x32xf32>
    %cst_487 = arith.constant 1.000000e+00 : f32
    %986 = vector.broadcast %cst_487 : f32 to vector<8x32xf32>
    %987 = arith.addf %986, %985 : vector<8x32xf32>
    %988 = arith.divf %986, %987 : vector<8x32xf32>
    %989 = vector.extract_strided_slice %949 {offsets = [0, 64], sizes = [8, 32], strides = [1, 1]} : vector<8x128xf32> to vector<8x32xf32>
    %990 = math.tanh %989 : vector<8x32xf32>
    %991 = vector.extract_strided_slice %949 {offsets = [0, 96], sizes = [8, 32], strides = [1, 1]} : vector<8x128xf32> to vector<8x32xf32>
    %992 = arith.negf %991 : vector<8x32xf32>
    %993 = math.exp %992 : vector<8x32xf32>
    %cst_488 = arith.constant 1.000000e+00 : f32
    %994 = vector.broadcast %cst_488 : f32 to vector<8x32xf32>
    %995 = arith.addf %994, %993 : vector<8x32xf32>
    %996 = arith.divf %994, %995 : vector<8x32xf32>
    %997 = arith.mulf %988, %976 : vector<8x32xf32>
    %998 = arith.mulf %982, %990 : vector<8x32xf32>
    %999 = arith.addf %997, %998 : vector<8x32xf32>
    %1000 = math.tanh %999 : vector<8x32xf32>
    %1001 = arith.mulf %996, %1000 : vector<8x32xf32>
    %1002 = vector.broadcast %940 : vector<8x1xf32> to vector<8x32xf32>
    %1003 = arith.mulf %1002, %975 : vector<8x32xf32>
    %c0_489 = arith.constant 0 : index
    %c0_490 = arith.constant 0 : index
    %1004 = vector.load %arg26[%c0_489, %c0_490] : memref<8x32xf32, #tpu.memory_space<vmem>>, vector<8x32xf32>
    tpu.vector_store %arg26[%c0_489, %c0_490], %1003 {strides = array<i32>} : memref<8x32xf32, #tpu.memory_space<vmem>>, vector<8x32xf32>,
    %1005 = vector.broadcast %940 : vector<8x1xf32> to vector<8x32xf32>
    %1006 = arith.mulf %1005, %973 : vector<8x32xf32>
    %c0_491 = arith.constant 0 : index
    %c0_492 = arith.constant 0 : index
    %1007 = vector.load %arg27[%c0_491, %c0_492] : memref<8x32xf32, #tpu.memory_space<vmem>>, vector<8x32xf32>
    tpu.vector_store %arg27[%c0_491, %c0_492], %1006 {strides = array<i32>} : memref<8x32xf32, #tpu.memory_space<vmem>>, vector<8x32xf32>,
    %1008 = vector.broadcast %941 : vector<8x1xf32> to vector<8x32xf32>
    %1009 = arith.mulf %1008, %1001 : vector<8x32xf32>
    %c0_493 = arith.constant 0 : index
    %c0_494 = arith.constant 0 : index
    %1010 = vector.load %arg28[%c0_493, %c0_494] : memref<8x32xf32, #tpu.memory_space<vmem>>, vector<8x32xf32>
    tpu.vector_store %arg28[%c0_493, %c0_494], %1009 {strides = array<i32>} : memref<8x32xf32, #tpu.memory_space<vmem>>, vector<8x32xf32>,
    %1011 = vector.broadcast %941 : vector<8x1xf32> to vector<8x32xf32>
    %1012 = arith.mulf %1011, %999 : vector<8x32xf32>
    %c0_495 = arith.constant 0 : index
    %c0_496 = arith.constant 0 : index
    %1013 = vector.load %arg29[%c0_495, %c0_496] : memref<8x32xf32, #tpu.memory_space<vmem>>, vector<8x32xf32>
    tpu.vector_store %arg29[%c0_495, %c0_496], %1012 {strides = array<i32>} : memref<8x32xf32, #tpu.memory_space<vmem>>, vector<8x32xf32>,
    %cst_497 = arith.constant 0.000000e+00 : f32
    %1014 = vector.broadcast %cst_497 : f32 to vector<8x1xf32>
    %1015 = arith.cmpf ogt, %940, %1014 : vector<8x1xf32>
    %c0_498 = arith.constant 0 : index
    %c0_499 = arith.constant 0 : index
    %1016 = vector.load %arg30[%c0_498, %c0_499] : memref<8x32xf32, #tpu.memory_space<vmem>>, vector<8x32xf32>
    %1017 = vector.shape_cast %1015 : vector<8x1xi1> to vector<8x1xi1>
    %1018 = vector.broadcast %1017 : vector<8x1xi1> to vector<8x32xi1>
    %1019 = arith.select %1018, %975, %1016 : vector<8x32xi1>, vector<8x32xf32>
    %c0_500 = arith.constant 0 : index
    %c0_501 = arith.constant 0 : index
    %1020 = vector.load %arg30[%c0_500, %c0_501] : memref<8x32xf32, #tpu.memory_space<vmem>>, vector<8x32xf32>
    tpu.vector_store %arg30[%c0_500, %c0_501], %1019 {strides = array<i32>} : memref<8x32xf32, #tpu.memory_space<vmem>>, vector<8x32xf32>,
    %c32_502 = arith.constant 32 : index
    %c0_503 = arith.constant 0 : index
    %1021 = vector.load %arg1[%c32_502, %c0_503] : memref<64x1xf32, #tpu.memory_space<vmem>>, vector<8x1xf32>
    %c24_504 = arith.constant 24 : index
    %c0_505 = arith.constant 0 : index
    %1022 = vector.load %arg1[%c24_504, %c0_505] : memref<64x1xf32, #tpu.memory_space<vmem>>, vector<8x1xf32>
    %c32_506 = arith.constant 32 : index
    %c0_507 = arith.constant 0 : index
    %1023 = vector.load %arg22[%c32_506, %c0_507] : memref<64x128xf32, #tpu.memory_space<vmem>>, vector<8x128xf32>
    %c0_508 = arith.constant 0 : index
    %c0_509 = arith.constant 0 : index
    %1024 = vector.load %arg26[%c0_508, %c0_509] : memref<8x32xf32, #tpu.memory_space<vmem>>, vector<8x32xf32>
    %cst_510 = arith.constant dense<0.000000e+00> : vector<8x128xf32>
    %1025 = tpu.matmul %1024, %685, %cst_510 {dimension_numbers = #tpu.dot_dimension_numbers<[1], [0], [0], [1], [0, 0, 1, 1], [], []>} : vector<8x32xf32>, vector<32x128xf32>, vector<8x128xf32> -> vector<8x128xf32>
    %1026 = arith.addf %1023, %1025 : vector<8x128xf32>
    %c24_511 = arith.constant 24 : index
    %c0_512 = arith.constant 0 : index
    %1027 = vector.load %arg23[%c24_511, %c0_512] : memref<64x128xf32, #tpu.memory_space<vmem>>, vector<8x128xf32>
    %c0_513 = arith.constant 0 : index
    %c0_514 = arith.constant 0 : index
    %1028 = vector.load %arg28[%c0_513, %c0_514] : memref<8x32xf32, #tpu.memory_space<vmem>>, vector<8x32xf32>
    %cst_515 = arith.constant dense<0.000000e+00> : vector<8x128xf32>
    %1029 = tpu.matmul %1028, %686, %cst_515 {dimension_numbers = #tpu.dot_dimension_numbers<[1], [0], [0], [1], [0, 0, 1, 1], [], []>} : vector<8x32xf32>, vector<32x128xf32>, vector<8x128xf32> -> vector<8x128xf32>
    %1030 = arith.addf %1027, %1029 : vector<8x128xf32>
    %c0_516 = arith.constant 0 : index
    %c0_517 = arith.constant 0 : index
    %1031 = vector.load %arg27[%c0_516, %c0_517] : memref<8x32xf32, #tpu.memory_space<vmem>>, vector<8x32xf32>
    %1032 = vector.extract_strided_slice %1026 {offsets = [0, 0], sizes = [8, 32], strides = [1, 1]} : vector<8x128xf32> to vector<8x32xf32>
    %1033 = arith.negf %1032 : vector<8x32xf32>
    %1034 = math.exp %1033 : vector<8x32xf32>
    %cst_518 = arith.constant 1.000000e+00 : f32
    %1035 = vector.broadcast %cst_518 : f32 to vector<8x32xf32>
    %1036 = arith.addf %1035, %1034 : vector<8x32xf32>
    %1037 = arith.divf %1035, %1036 : vector<8x32xf32>
    %1038 = vector.extract_strided_slice %1026 {offsets = [0, 32], sizes = [8, 32], strides = [1, 1]} : vector<8x128xf32> to vector<8x32xf32>
    %1039 = arith.negf %1038 : vector<8x32xf32>
    %1040 = math.exp %1039 : vector<8x32xf32>
    %cst_519 = arith.constant 1.000000e+00 : f32
    %1041 = vector.broadcast %cst_519 : f32 to vector<8x32xf32>
    %1042 = arith.addf %1041, %1040 : vector<8x32xf32>
    %1043 = arith.divf %1041, %1042 : vector<8x32xf32>
    %1044 = vector.extract_strided_slice %1026 {offsets = [0, 64], sizes = [8, 32], strides = [1, 1]} : vector<8x128xf32> to vector<8x32xf32>
    %1045 = math.tanh %1044 : vector<8x32xf32>
    %1046 = vector.extract_strided_slice %1026 {offsets = [0, 96], sizes = [8, 32], strides = [1, 1]} : vector<8x128xf32> to vector<8x32xf32>
    %1047 = arith.negf %1046 : vector<8x32xf32>
    %1048 = math.exp %1047 : vector<8x32xf32>
    %cst_520 = arith.constant 1.000000e+00 : f32
    %1049 = vector.broadcast %cst_520 : f32 to vector<8x32xf32>
    %1050 = arith.addf %1049, %1048 : vector<8x32xf32>
    %1051 = arith.divf %1049, %1050 : vector<8x32xf32>
    %1052 = arith.mulf %1043, %1031 : vector<8x32xf32>
    %1053 = arith.mulf %1037, %1045 : vector<8x32xf32>
    %1054 = arith.addf %1052, %1053 : vector<8x32xf32>
    %1055 = math.tanh %1054 : vector<8x32xf32>
    %1056 = arith.mulf %1051, %1055 : vector<8x32xf32>
    %c0_521 = arith.constant 0 : index
    %c0_522 = arith.constant 0 : index
    %1057 = vector.load %arg29[%c0_521, %c0_522] : memref<8x32xf32, #tpu.memory_space<vmem>>, vector<8x32xf32>
    %1058 = vector.extract_strided_slice %1030 {offsets = [0, 0], sizes = [8, 32], strides = [1, 1]} : vector<8x128xf32> to vector<8x32xf32>
    %1059 = arith.negf %1058 : vector<8x32xf32>
    %1060 = math.exp %1059 : vector<8x32xf32>
    %cst_523 = arith.constant 1.000000e+00 : f32
    %1061 = vector.broadcast %cst_523 : f32 to vector<8x32xf32>
    %1062 = arith.addf %1061, %1060 : vector<8x32xf32>
    %1063 = arith.divf %1061, %1062 : vector<8x32xf32>
    %1064 = vector.extract_strided_slice %1030 {offsets = [0, 32], sizes = [8, 32], strides = [1, 1]} : vector<8x128xf32> to vector<8x32xf32>
    %1065 = arith.negf %1064 : vector<8x32xf32>
    %1066 = math.exp %1065 : vector<8x32xf32>
    %cst_524 = arith.constant 1.000000e+00 : f32
    %1067 = vector.broadcast %cst_524 : f32 to vector<8x32xf32>
    %1068 = arith.addf %1067, %1066 : vector<8x32xf32>
    %1069 = arith.divf %1067, %1068 : vector<8x32xf32>
    %1070 = vector.extract_strided_slice %1030 {offsets = [0, 64], sizes = [8, 32], strides = [1, 1]} : vector<8x128xf32> to vector<8x32xf32>
    %1071 = math.tanh %1070 : vector<8x32xf32>
    %1072 = vector.extract_strided_slice %1030 {offsets = [0, 96], sizes = [8, 32], strides = [1, 1]} : vector<8x128xf32> to vector<8x32xf32>
    %1073 = arith.negf %1072 : vector<8x32xf32>
    %1074 = math.exp %1073 : vector<8x32xf32>
    %cst_525 = arith.constant 1.000000e+00 : f32
    %1075 = vector.broadcast %cst_525 : f32 to vector<8x32xf32>
    %1076 = arith.addf %1075, %1074 : vector<8x32xf32>
    %1077 = arith.divf %1075, %1076 : vector<8x32xf32>
    %1078 = arith.mulf %1069, %1057 : vector<8x32xf32>
    %1079 = arith.mulf %1063, %1071 : vector<8x32xf32>
    %1080 = arith.addf %1078, %1079 : vector<8x32xf32>
    %1081 = math.tanh %1080 : vector<8x32xf32>
    %1082 = arith.mulf %1077, %1081 : vector<8x32xf32>
    %1083 = vector.broadcast %1021 : vector<8x1xf32> to vector<8x32xf32>
    %1084 = arith.mulf %1083, %1056 : vector<8x32xf32>
    %c0_526 = arith.constant 0 : index
    %c0_527 = arith.constant 0 : index
    %1085 = vector.load %arg26[%c0_526, %c0_527] : memref<8x32xf32, #tpu.memory_space<vmem>>, vector<8x32xf32>
    tpu.vector_store %arg26[%c0_526, %c0_527], %1084 {strides = array<i32>} : memref<8x32xf32, #tpu.memory_space<vmem>>, vector<8x32xf32>,
    %1086 = vector.broadcast %1021 : vector<8x1xf32> to vector<8x32xf32>
    %1087 = arith.mulf %1086, %1054 : vector<8x32xf32>
    %c0_528 = arith.constant 0 : index
    %c0_529 = arith.constant 0 : index
    %1088 = vector.load %arg27[%c0_528, %c0_529] : memref<8x32xf32, #tpu.memory_space<vmem>>, vector<8x32xf32>
    tpu.vector_store %arg27[%c0_528, %c0_529], %1087 {strides = array<i32>} : memref<8x32xf32, #tpu.memory_space<vmem>>, vector<8x32xf32>,
    %1089 = vector.broadcast %1022 : vector<8x1xf32> to vector<8x32xf32>
    %1090 = arith.mulf %1089, %1082 : vector<8x32xf32>
    %c0_530 = arith.constant 0 : index
    %c0_531 = arith.constant 0 : index
    %1091 = vector.load %arg28[%c0_530, %c0_531] : memref<8x32xf32, #tpu.memory_space<vmem>>, vector<8x32xf32>
    tpu.vector_store %arg28[%c0_530, %c0_531], %1090 {strides = array<i32>} : memref<8x32xf32, #tpu.memory_space<vmem>>, vector<8x32xf32>,
    %1092 = vector.broadcast %1022 : vector<8x1xf32> to vector<8x32xf32>
    %1093 = arith.mulf %1092, %1080 : vector<8x32xf32>
    %c0_532 = arith.constant 0 : index
    %c0_533 = arith.constant 0 : index
    %1094 = vector.load %arg29[%c0_532, %c0_533] : memref<8x32xf32, #tpu.memory_space<vmem>>, vector<8x32xf32>
    tpu.vector_store %arg29[%c0_532, %c0_533], %1093 {strides = array<i32>} : memref<8x32xf32, #tpu.memory_space<vmem>>, vector<8x32xf32>,
    %cst_534 = arith.constant 0.000000e+00 : f32
    %1095 = vector.broadcast %cst_534 : f32 to vector<8x1xf32>
    %1096 = arith.cmpf ogt, %1021, %1095 : vector<8x1xf32>
    %c0_535 = arith.constant 0 : index
    %c0_536 = arith.constant 0 : index
    %1097 = vector.load %arg30[%c0_535, %c0_536] : memref<8x32xf32, #tpu.memory_space<vmem>>, vector<8x32xf32>
    %1098 = vector.shape_cast %1096 : vector<8x1xi1> to vector<8x1xi1>
    %1099 = vector.broadcast %1098 : vector<8x1xi1> to vector<8x32xi1>
    %1100 = arith.select %1099, %1056, %1097 : vector<8x32xi1>, vector<8x32xf32>
    %c0_537 = arith.constant 0 : index
    %c0_538 = arith.constant 0 : index
    %1101 = vector.load %arg30[%c0_537, %c0_538] : memref<8x32xf32, #tpu.memory_space<vmem>>, vector<8x32xf32>
    tpu.vector_store %arg30[%c0_537, %c0_538], %1100 {strides = array<i32>} : memref<8x32xf32, #tpu.memory_space<vmem>>, vector<8x32xf32>,
    %c40_539 = arith.constant 40 : index
    %c0_540 = arith.constant 0 : index
    %1102 = vector.load %arg1[%c40_539, %c0_540] : memref<64x1xf32, #tpu.memory_space<vmem>>, vector<8x1xf32>
    %c16_541 = arith.constant 16 : index
    %c0_542 = arith.constant 0 : index
    %1103 = vector.load %arg1[%c16_541, %c0_542] : memref<64x1xf32, #tpu.memory_space<vmem>>, vector<8x1xf32>
    %c40_543 = arith.constant 40 : index
    %c0_544 = arith.constant 0 : index
    %1104 = vector.load %arg22[%c40_543, %c0_544] : memref<64x128xf32, #tpu.memory_space<vmem>>, vector<8x128xf32>
    %c0_545 = arith.constant 0 : index
    %c0_546 = arith.constant 0 : index
    %1105 = vector.load %arg26[%c0_545, %c0_546] : memref<8x32xf32, #tpu.memory_space<vmem>>, vector<8x32xf32>
    %cst_547 = arith.constant dense<0.000000e+00> : vector<8x128xf32>
    %1106 = tpu.matmul %1105, %685, %cst_547 {dimension_numbers = #tpu.dot_dimension_numbers<[1], [0], [0], [1], [0, 0, 1, 1], [], []>} : vector<8x32xf32>, vector<32x128xf32>, vector<8x128xf32> -> vector<8x128xf32>
    %1107 = arith.addf %1104, %1106 : vector<8x128xf32>
    %c16_548 = arith.constant 16 : index
    %c0_549 = arith.constant 0 : index
    %1108 = vector.load %arg23[%c16_548, %c0_549] : memref<64x128xf32, #tpu.memory_space<vmem>>, vector<8x128xf32>
    %c0_550 = arith.constant 0 : index
    %c0_551 = arith.constant 0 : index
    %1109 = vector.load %arg28[%c0_550, %c0_551] : memref<8x32xf32, #tpu.memory_space<vmem>>, vector<8x32xf32>
    %cst_552 = arith.constant dense<0.000000e+00> : vector<8x128xf32>
    %1110 = tpu.matmul %1109, %686, %cst_552 {dimension_numbers = #tpu.dot_dimension_numbers<[1], [0], [0], [1], [0, 0, 1, 1], [], []>} : vector<8x32xf32>, vector<32x128xf32>, vector<8x128xf32> -> vector<8x128xf32>
    %1111 = arith.addf %1108, %1110 : vector<8x128xf32>
    %c0_553 = arith.constant 0 : index
    %c0_554 = arith.constant 0 : index
    %1112 = vector.load %arg27[%c0_553, %c0_554] : memref<8x32xf32, #tpu.memory_space<vmem>>, vector<8x32xf32>
    %1113 = vector.extract_strided_slice %1107 {offsets = [0, 0], sizes = [8, 32], strides = [1, 1]} : vector<8x128xf32> to vector<8x32xf32>
    %1114 = arith.negf %1113 : vector<8x32xf32>
    %1115 = math.exp %1114 : vector<8x32xf32>
    %cst_555 = arith.constant 1.000000e+00 : f32
    %1116 = vector.broadcast %cst_555 : f32 to vector<8x32xf32>
    %1117 = arith.addf %1116, %1115 : vector<8x32xf32>
    %1118 = arith.divf %1116, %1117 : vector<8x32xf32>
    %1119 = vector.extract_strided_slice %1107 {offsets = [0, 32], sizes = [8, 32], strides = [1, 1]} : vector<8x128xf32> to vector<8x32xf32>
    %1120 = arith.negf %1119 : vector<8x32xf32>
    %1121 = math.exp %1120 : vector<8x32xf32>
    %cst_556 = arith.constant 1.000000e+00 : f32
    %1122 = vector.broadcast %cst_556 : f32 to vector<8x32xf32>
    %1123 = arith.addf %1122, %1121 : vector<8x32xf32>
    %1124 = arith.divf %1122, %1123 : vector<8x32xf32>
    %1125 = vector.extract_strided_slice %1107 {offsets = [0, 64], sizes = [8, 32], strides = [1, 1]} : vector<8x128xf32> to vector<8x32xf32>
    %1126 = math.tanh %1125 : vector<8x32xf32>
    %1127 = vector.extract_strided_slice %1107 {offsets = [0, 96], sizes = [8, 32], strides = [1, 1]} : vector<8x128xf32> to vector<8x32xf32>
    %1128 = arith.negf %1127 : vector<8x32xf32>
    %1129 = math.exp %1128 : vector<8x32xf32>
    %cst_557 = arith.constant 1.000000e+00 : f32
    %1130 = vector.broadcast %cst_557 : f32 to vector<8x32xf32>
    %1131 = arith.addf %1130, %1129 : vector<8x32xf32>
    %1132 = arith.divf %1130, %1131 : vector<8x32xf32>
    %1133 = arith.mulf %1124, %1112 : vector<8x32xf32>
    %1134 = arith.mulf %1118, %1126 : vector<8x32xf32>
    %1135 = arith.addf %1133, %1134 : vector<8x32xf32>
    %1136 = math.tanh %1135 : vector<8x32xf32>
    %1137 = arith.mulf %1132, %1136 : vector<8x32xf32>
    %c0_558 = arith.constant 0 : index
    %c0_559 = arith.constant 0 : index
    %1138 = vector.load %arg29[%c0_558, %c0_559] : memref<8x32xf32, #tpu.memory_space<vmem>>, vector<8x32xf32>
    %1139 = vector.extract_strided_slice %1111 {offsets = [0, 0], sizes = [8, 32], strides = [1, 1]} : vector<8x128xf32> to vector<8x32xf32>
    %1140 = arith.negf %1139 : vector<8x32xf32>
    %1141 = math.exp %1140 : vector<8x32xf32>
    %cst_560 = arith.constant 1.000000e+00 : f32
    %1142 = vector.broadcast %cst_560 : f32 to vector<8x32xf32>
    %1143 = arith.addf %1142, %1141 : vector<8x32xf32>
    %1144 = arith.divf %1142, %1143 : vector<8x32xf32>
    %1145 = vector.extract_strided_slice %1111 {offsets = [0, 32], sizes = [8, 32], strides = [1, 1]} : vector<8x128xf32> to vector<8x32xf32>
    %1146 = arith.negf %1145 : vector<8x32xf32>
    %1147 = math.exp %1146 : vector<8x32xf32>
    %cst_561 = arith.constant 1.000000e+00 : f32
    %1148 = vector.broadcast %cst_561 : f32 to vector<8x32xf32>
    %1149 = arith.addf %1148, %1147 : vector<8x32xf32>
    %1150 = arith.divf %1148, %1149 : vector<8x32xf32>
    %1151 = vector.extract_strided_slice %1111 {offsets = [0, 64], sizes = [8, 32], strides = [1, 1]} : vector<8x128xf32> to vector<8x32xf32>
    %1152 = math.tanh %1151 : vector<8x32xf32>
    %1153 = vector.extract_strided_slice %1111 {offsets = [0, 96], sizes = [8, 32], strides = [1, 1]} : vector<8x128xf32> to vector<8x32xf32>
    %1154 = arith.negf %1153 : vector<8x32xf32>
    %1155 = math.exp %1154 : vector<8x32xf32>
    %cst_562 = arith.constant 1.000000e+00 : f32
    %1156 = vector.broadcast %cst_562 : f32 to vector<8x32xf32>
    %1157 = arith.addf %1156, %1155 : vector<8x32xf32>
    %1158 = arith.divf %1156, %1157 : vector<8x32xf32>
    %1159 = arith.mulf %1150, %1138 : vector<8x32xf32>
    %1160 = arith.mulf %1144, %1152 : vector<8x32xf32>
    %1161 = arith.addf %1159, %1160 : vector<8x32xf32>
    %1162 = math.tanh %1161 : vector<8x32xf32>
    %1163 = arith.mulf %1158, %1162 : vector<8x32xf32>
    %1164 = vector.broadcast %1102 : vector<8x1xf32> to vector<8x32xf32>
    %1165 = arith.mulf %1164, %1137 : vector<8x32xf32>
    %c0_563 = arith.constant 0 : index
    %c0_564 = arith.constant 0 : index
    %1166 = vector.load %arg26[%c0_563, %c0_564] : memref<8x32xf32, #tpu.memory_space<vmem>>, vector<8x32xf32>
    tpu.vector_store %arg26[%c0_563, %c0_564], %1165 {strides = array<i32>} : memref<8x32xf32, #tpu.memory_space<vmem>>, vector<8x32xf32>,
    %1167 = vector.broadcast %1102 : vector<8x1xf32> to vector<8x32xf32>
    %1168 = arith.mulf %1167, %1135 : vector<8x32xf32>
    %c0_565 = arith.constant 0 : index
    %c0_566 = arith.constant 0 : index
    %1169 = vector.load %arg27[%c0_565, %c0_566] : memref<8x32xf32, #tpu.memory_space<vmem>>, vector<8x32xf32>
    tpu.vector_store %arg27[%c0_565, %c0_566], %1168 {strides = array<i32>} : memref<8x32xf32, #tpu.memory_space<vmem>>, vector<8x32xf32>,
    %1170 = vector.broadcast %1103 : vector<8x1xf32> to vector<8x32xf32>
    %1171 = arith.mulf %1170, %1163 : vector<8x32xf32>
    %c0_567 = arith.constant 0 : index
    %c0_568 = arith.constant 0 : index
    %1172 = vector.load %arg28[%c0_567, %c0_568] : memref<8x32xf32, #tpu.memory_space<vmem>>, vector<8x32xf32>
    tpu.vector_store %arg28[%c0_567, %c0_568], %1171 {strides = array<i32>} : memref<8x32xf32, #tpu.memory_space<vmem>>, vector<8x32xf32>,
    %1173 = vector.broadcast %1103 : vector<8x1xf32> to vector<8x32xf32>
    %1174 = arith.mulf %1173, %1161 : vector<8x32xf32>
    %c0_569 = arith.constant 0 : index
    %c0_570 = arith.constant 0 : index
    %1175 = vector.load %arg29[%c0_569, %c0_570] : memref<8x32xf32, #tpu.memory_space<vmem>>, vector<8x32xf32>
    tpu.vector_store %arg29[%c0_569, %c0_570], %1174 {strides = array<i32>} : memref<8x32xf32, #tpu.memory_space<vmem>>, vector<8x32xf32>,
    %cst_571 = arith.constant 0.000000e+00 : f32
    %1176 = vector.broadcast %cst_571 : f32 to vector<8x1xf32>
    %1177 = arith.cmpf ogt, %1102, %1176 : vector<8x1xf32>
    %c0_572 = arith.constant 0 : index
    %c0_573 = arith.constant 0 : index
    %1178 = vector.load %arg30[%c0_572, %c0_573] : memref<8x32xf32, #tpu.memory_space<vmem>>, vector<8x32xf32>
    %1179 = vector.shape_cast %1177 : vector<8x1xi1> to vector<8x1xi1>
    %1180 = vector.broadcast %1179 : vector<8x1xi1> to vector<8x32xi1>
    %1181 = arith.select %1180, %1137, %1178 : vector<8x32xi1>, vector<8x32xf32>
    %c0_574 = arith.constant 0 : index
    %c0_575 = arith.constant 0 : index
    %1182 = vector.load %arg30[%c0_574, %c0_575] : memref<8x32xf32, #tpu.memory_space<vmem>>, vector<8x32xf32>
    tpu.vector_store %arg30[%c0_574, %c0_575], %1181 {strides = array<i32>} : memref<8x32xf32, #tpu.memory_space<vmem>>, vector<8x32xf32>,
    %c48_576 = arith.constant 48 : index
    %c0_577 = arith.constant 0 : index
    %1183 = vector.load %arg1[%c48_576, %c0_577] : memref<64x1xf32, #tpu.memory_space<vmem>>, vector<8x1xf32>
    %c8_578 = arith.constant 8 : index
    %c0_579 = arith.constant 0 : index
    %1184 = vector.load %arg1[%c8_578, %c0_579] : memref<64x1xf32, #tpu.memory_space<vmem>>, vector<8x1xf32>
    %c48_580 = arith.constant 48 : index
    %c0_581 = arith.constant 0 : index
    %1185 = vector.load %arg22[%c48_580, %c0_581] : memref<64x128xf32, #tpu.memory_space<vmem>>, vector<8x128xf32>
    %c0_582 = arith.constant 0 : index
    %c0_583 = arith.constant 0 : index
    %1186 = vector.load %arg26[%c0_582, %c0_583] : memref<8x32xf32, #tpu.memory_space<vmem>>, vector<8x32xf32>
    %cst_584 = arith.constant dense<0.000000e+00> : vector<8x128xf32>
    %1187 = tpu.matmul %1186, %685, %cst_584 {dimension_numbers = #tpu.dot_dimension_numbers<[1], [0], [0], [1], [0, 0, 1, 1], [], []>} : vector<8x32xf32>, vector<32x128xf32>, vector<8x128xf32> -> vector<8x128xf32>
    %1188 = arith.addf %1185, %1187 : vector<8x128xf32>
    %c8_585 = arith.constant 8 : index
    %c0_586 = arith.constant 0 : index
    %1189 = vector.load %arg23[%c8_585, %c0_586] : memref<64x128xf32, #tpu.memory_space<vmem>>, vector<8x128xf32>
    %c0_587 = arith.constant 0 : index
    %c0_588 = arith.constant 0 : index
    %1190 = vector.load %arg28[%c0_587, %c0_588] : memref<8x32xf32, #tpu.memory_space<vmem>>, vector<8x32xf32>
    %cst_589 = arith.constant dense<0.000000e+00> : vector<8x128xf32>
    %1191 = tpu.matmul %1190, %686, %cst_589 {dimension_numbers = #tpu.dot_dimension_numbers<[1], [0], [0], [1], [0, 0, 1, 1], [], []>} : vector<8x32xf32>, vector<32x128xf32>, vector<8x128xf32> -> vector<8x128xf32>
    %1192 = arith.addf %1189, %1191 : vector<8x128xf32>
    %c0_590 = arith.constant 0 : index
    %c0_591 = arith.constant 0 : index
    %1193 = vector.load %arg27[%c0_590, %c0_591] : memref<8x32xf32, #tpu.memory_space<vmem>>, vector<8x32xf32>
    %1194 = vector.extract_strided_slice %1188 {offsets = [0, 0], sizes = [8, 32], strides = [1, 1]} : vector<8x128xf32> to vector<8x32xf32>
    %1195 = arith.negf %1194 : vector<8x32xf32>
    %1196 = math.exp %1195 : vector<8x32xf32>
    %cst_592 = arith.constant 1.000000e+00 : f32
    %1197 = vector.broadcast %cst_592 : f32 to vector<8x32xf32>
    %1198 = arith.addf %1197, %1196 : vector<8x32xf32>
    %1199 = arith.divf %1197, %1198 : vector<8x32xf32>
    %1200 = vector.extract_strided_slice %1188 {offsets = [0, 32], sizes = [8, 32], strides = [1, 1]} : vector<8x128xf32> to vector<8x32xf32>
    %1201 = arith.negf %1200 : vector<8x32xf32>
    %1202 = math.exp %1201 : vector<8x32xf32>
    %cst_593 = arith.constant 1.000000e+00 : f32
    %1203 = vector.broadcast %cst_593 : f32 to vector<8x32xf32>
    %1204 = arith.addf %1203, %1202 : vector<8x32xf32>
    %1205 = arith.divf %1203, %1204 : vector<8x32xf32>
    %1206 = vector.extract_strided_slice %1188 {offsets = [0, 64], sizes = [8, 32], strides = [1, 1]} : vector<8x128xf32> to vector<8x32xf32>
    %1207 = math.tanh %1206 : vector<8x32xf32>
    %1208 = vector.extract_strided_slice %1188 {offsets = [0, 96], sizes = [8, 32], strides = [1, 1]} : vector<8x128xf32> to vector<8x32xf32>
    %1209 = arith.negf %1208 : vector<8x32xf32>
    %1210 = math.exp %1209 : vector<8x32xf32>
    %cst_594 = arith.constant 1.000000e+00 : f32
    %1211 = vector.broadcast %cst_594 : f32 to vector<8x32xf32>
    %1212 = arith.addf %1211, %1210 : vector<8x32xf32>
    %1213 = arith.divf %1211, %1212 : vector<8x32xf32>
    %1214 = arith.mulf %1205, %1193 : vector<8x32xf32>
    %1215 = arith.mulf %1199, %1207 : vector<8x32xf32>
    %1216 = arith.addf %1214, %1215 : vector<8x32xf32>
    %1217 = math.tanh %1216 : vector<8x32xf32>
    %1218 = arith.mulf %1213, %1217 : vector<8x32xf32>
    %c0_595 = arith.constant 0 : index
    %c0_596 = arith.constant 0 : index
    %1219 = vector.load %arg29[%c0_595, %c0_596] : memref<8x32xf32, #tpu.memory_space<vmem>>, vector<8x32xf32>
    %1220 = vector.extract_strided_slice %1192 {offsets = [0, 0], sizes = [8, 32], strides = [1, 1]} : vector<8x128xf32> to vector<8x32xf32>
    %1221 = arith.negf %1220 : vector<8x32xf32>
    %1222 = math.exp %1221 : vector<8x32xf32>
    %cst_597 = arith.constant 1.000000e+00 : f32
    %1223 = vector.broadcast %cst_597 : f32 to vector<8x32xf32>
    %1224 = arith.addf %1223, %1222 : vector<8x32xf32>
    %1225 = arith.divf %1223, %1224 : vector<8x32xf32>
    %1226 = vector.extract_strided_slice %1192 {offsets = [0, 32], sizes = [8, 32], strides = [1, 1]} : vector<8x128xf32> to vector<8x32xf32>
    %1227 = arith.negf %1226 : vector<8x32xf32>
    %1228 = math.exp %1227 : vector<8x32xf32>
    %cst_598 = arith.constant 1.000000e+00 : f32
    %1229 = vector.broadcast %cst_598 : f32 to vector<8x32xf32>
    %1230 = arith.addf %1229, %1228 : vector<8x32xf32>
    %1231 = arith.divf %1229, %1230 : vector<8x32xf32>
    %1232 = vector.extract_strided_slice %1192 {offsets = [0, 64], sizes = [8, 32], strides = [1, 1]} : vector<8x128xf32> to vector<8x32xf32>
    %1233 = math.tanh %1232 : vector<8x32xf32>
    %1234 = vector.extract_strided_slice %1192 {offsets = [0, 96], sizes = [8, 32], strides = [1, 1]} : vector<8x128xf32> to vector<8x32xf32>
    %1235 = arith.negf %1234 : vector<8x32xf32>
    %1236 = math.exp %1235 : vector<8x32xf32>
    %cst_599 = arith.constant 1.000000e+00 : f32
    %1237 = vector.broadcast %cst_599 : f32 to vector<8x32xf32>
    %1238 = arith.addf %1237, %1236 : vector<8x32xf32>
    %1239 = arith.divf %1237, %1238 : vector<8x32xf32>
    %1240 = arith.mulf %1231, %1219 : vector<8x32xf32>
    %1241 = arith.mulf %1225, %1233 : vector<8x32xf32>
    %1242 = arith.addf %1240, %1241 : vector<8x32xf32>
    %1243 = math.tanh %1242 : vector<8x32xf32>
    %1244 = arith.mulf %1239, %1243 : vector<8x32xf32>
    %1245 = vector.broadcast %1183 : vector<8x1xf32> to vector<8x32xf32>
    %1246 = arith.mulf %1245, %1218 : vector<8x32xf32>
    %c0_600 = arith.constant 0 : index
    %c0_601 = arith.constant 0 : index
    %1247 = vector.load %arg26[%c0_600, %c0_601] : memref<8x32xf32, #tpu.memory_space<vmem>>, vector<8x32xf32>
    tpu.vector_store %arg26[%c0_600, %c0_601], %1246 {strides = array<i32>} : memref<8x32xf32, #tpu.memory_space<vmem>>, vector<8x32xf32>,
    %1248 = vector.broadcast %1183 : vector<8x1xf32> to vector<8x32xf32>
    %1249 = arith.mulf %1248, %1216 : vector<8x32xf32>
    %c0_602 = arith.constant 0 : index
    %c0_603 = arith.constant 0 : index
    %1250 = vector.load %arg27[%c0_602, %c0_603] : memref<8x32xf32, #tpu.memory_space<vmem>>, vector<8x32xf32>
    tpu.vector_store %arg27[%c0_602, %c0_603], %1249 {strides = array<i32>} : memref<8x32xf32, #tpu.memory_space<vmem>>, vector<8x32xf32>,
    %1251 = vector.broadcast %1184 : vector<8x1xf32> to vector<8x32xf32>
    %1252 = arith.mulf %1251, %1244 : vector<8x32xf32>
    %c0_604 = arith.constant 0 : index
    %c0_605 = arith.constant 0 : index
    %1253 = vector.load %arg28[%c0_604, %c0_605] : memref<8x32xf32, #tpu.memory_space<vmem>>, vector<8x32xf32>
    tpu.vector_store %arg28[%c0_604, %c0_605], %1252 {strides = array<i32>} : memref<8x32xf32, #tpu.memory_space<vmem>>, vector<8x32xf32>,
    %1254 = vector.broadcast %1184 : vector<8x1xf32> to vector<8x32xf32>
    %1255 = arith.mulf %1254, %1242 : vector<8x32xf32>
    %c0_606 = arith.constant 0 : index
    %c0_607 = arith.constant 0 : index
    %1256 = vector.load %arg29[%c0_606, %c0_607] : memref<8x32xf32, #tpu.memory_space<vmem>>, vector<8x32xf32>
    tpu.vector_store %arg29[%c0_606, %c0_607], %1255 {strides = array<i32>} : memref<8x32xf32, #tpu.memory_space<vmem>>, vector<8x32xf32>,
    %cst_608 = arith.constant 0.000000e+00 : f32
    %1257 = vector.broadcast %cst_608 : f32 to vector<8x1xf32>
    %1258 = arith.cmpf ogt, %1183, %1257 : vector<8x1xf32>
    %c0_609 = arith.constant 0 : index
    %c0_610 = arith.constant 0 : index
    %1259 = vector.load %arg30[%c0_609, %c0_610] : memref<8x32xf32, #tpu.memory_space<vmem>>, vector<8x32xf32>
    %1260 = vector.shape_cast %1258 : vector<8x1xi1> to vector<8x1xi1>
    %1261 = vector.broadcast %1260 : vector<8x1xi1> to vector<8x32xi1>
    %1262 = arith.select %1261, %1218, %1259 : vector<8x32xi1>, vector<8x32xf32>
    %c0_611 = arith.constant 0 : index
    %c0_612 = arith.constant 0 : index
    %1263 = vector.load %arg30[%c0_611, %c0_612] : memref<8x32xf32, #tpu.memory_space<vmem>>, vector<8x32xf32>
    tpu.vector_store %arg30[%c0_611, %c0_612], %1262 {strides = array<i32>} : memref<8x32xf32, #tpu.memory_space<vmem>>, vector<8x32xf32>,
    %c56_613 = arith.constant 56 : index
    %c0_614 = arith.constant 0 : index
    %1264 = vector.load %arg1[%c56_613, %c0_614] : memref<64x1xf32, #tpu.memory_space<vmem>>, vector<8x1xf32>
    %c0_615 = arith.constant 0 : index
    %c0_616 = arith.constant 0 : index
    %1265 = vector.load %arg1[%c0_615, %c0_616] : memref<64x1xf32, #tpu.memory_space<vmem>>, vector<8x1xf32>
    %c56_617 = arith.constant 56 : index
    %c0_618 = arith.constant 0 : index
    %1266 = vector.load %arg22[%c56_617, %c0_618] : memref<64x128xf32, #tpu.memory_space<vmem>>, vector<8x128xf32>
    %c0_619 = arith.constant 0 : index
    %c0_620 = arith.constant 0 : index
    %1267 = vector.load %arg26[%c0_619, %c0_620] : memref<8x32xf32, #tpu.memory_space<vmem>>, vector<8x32xf32>
    %cst_621 = arith.constant dense<0.000000e+00> : vector<8x128xf32>
    %1268 = tpu.matmul %1267, %685, %cst_621 {dimension_numbers = #tpu.dot_dimension_numbers<[1], [0], [0], [1], [0, 0, 1, 1], [], []>} : vector<8x32xf32>, vector<32x128xf32>, vector<8x128xf32> -> vector<8x128xf32>
    %1269 = arith.addf %1266, %1268 : vector<8x128xf32>
    %c0_622 = arith.constant 0 : index
    %c0_623 = arith.constant 0 : index
    %1270 = vector.load %arg23[%c0_622, %c0_623] : memref<64x128xf32, #tpu.memory_space<vmem>>, vector<8x128xf32>
    %c0_624 = arith.constant 0 : index
    %c0_625 = arith.constant 0 : index
    %1271 = vector.load %arg28[%c0_624, %c0_625] : memref<8x32xf32, #tpu.memory_space<vmem>>, vector<8x32xf32>
    %cst_626 = arith.constant dense<0.000000e+00> : vector<8x128xf32>
    %1272 = tpu.matmul %1271, %686, %cst_626 {dimension_numbers = #tpu.dot_dimension_numbers<[1], [0], [0], [1], [0, 0, 1, 1], [], []>} : vector<8x32xf32>, vector<32x128xf32>, vector<8x128xf32> -> vector<8x128xf32>
    %1273 = arith.addf %1270, %1272 : vector<8x128xf32>
    %c0_627 = arith.constant 0 : index
    %c0_628 = arith.constant 0 : index
    %1274 = vector.load %arg27[%c0_627, %c0_628] : memref<8x32xf32, #tpu.memory_space<vmem>>, vector<8x32xf32>
    %1275 = vector.extract_strided_slice %1269 {offsets = [0, 0], sizes = [8, 32], strides = [1, 1]} : vector<8x128xf32> to vector<8x32xf32>
    %1276 = arith.negf %1275 : vector<8x32xf32>
    %1277 = math.exp %1276 : vector<8x32xf32>
    %cst_629 = arith.constant 1.000000e+00 : f32
    %1278 = vector.broadcast %cst_629 : f32 to vector<8x32xf32>
    %1279 = arith.addf %1278, %1277 : vector<8x32xf32>
    %1280 = arith.divf %1278, %1279 : vector<8x32xf32>
    %1281 = vector.extract_strided_slice %1269 {offsets = [0, 32], sizes = [8, 32], strides = [1, 1]} : vector<8x128xf32> to vector<8x32xf32>
    %1282 = arith.negf %1281 : vector<8x32xf32>
    %1283 = math.exp %1282 : vector<8x32xf32>
    %cst_630 = arith.constant 1.000000e+00 : f32
    %1284 = vector.broadcast %cst_630 : f32 to vector<8x32xf32>
    %1285 = arith.addf %1284, %1283 : vector<8x32xf32>
    %1286 = arith.divf %1284, %1285 : vector<8x32xf32>
    %1287 = vector.extract_strided_slice %1269 {offsets = [0, 64], sizes = [8, 32], strides = [1, 1]} : vector<8x128xf32> to vector<8x32xf32>
    %1288 = math.tanh %1287 : vector<8x32xf32>
    %1289 = vector.extract_strided_slice %1269 {offsets = [0, 96], sizes = [8, 32], strides = [1, 1]} : vector<8x128xf32> to vector<8x32xf32>
    %1290 = arith.negf %1289 : vector<8x32xf32>
    %1291 = math.exp %1290 : vector<8x32xf32>
    %cst_631 = arith.constant 1.000000e+00 : f32
    %1292 = vector.broadcast %cst_631 : f32 to vector<8x32xf32>
    %1293 = arith.addf %1292, %1291 : vector<8x32xf32>
    %1294 = arith.divf %1292, %1293 : vector<8x32xf32>
    %1295 = arith.mulf %1286, %1274 : vector<8x32xf32>
    %1296 = arith.mulf %1280, %1288 : vector<8x32xf32>
    %1297 = arith.addf %1295, %1296 : vector<8x32xf32>
    %1298 = math.tanh %1297 : vector<8x32xf32>
    %1299 = arith.mulf %1294, %1298 : vector<8x32xf32>
    %c0_632 = arith.constant 0 : index
    %c0_633 = arith.constant 0 : index
    %1300 = vector.load %arg29[%c0_632, %c0_633] : memref<8x32xf32, #tpu.memory_space<vmem>>, vector<8x32xf32>
    %1301 = vector.extract_strided_slice %1273 {offsets = [0, 0], sizes = [8, 32], strides = [1, 1]} : vector<8x128xf32> to vector<8x32xf32>
    %1302 = arith.negf %1301 : vector<8x32xf32>
    %1303 = math.exp %1302 : vector<8x32xf32>
    %cst_634 = arith.constant 1.000000e+00 : f32
    %1304 = vector.broadcast %cst_634 : f32 to vector<8x32xf32>
    %1305 = arith.addf %1304, %1303 : vector<8x32xf32>
    %1306 = arith.divf %1304, %1305 : vector<8x32xf32>
    %1307 = vector.extract_strided_slice %1273 {offsets = [0, 32], sizes = [8, 32], strides = [1, 1]} : vector<8x128xf32> to vector<8x32xf32>
    %1308 = arith.negf %1307 : vector<8x32xf32>
    %1309 = math.exp %1308 : vector<8x32xf32>
    %cst_635 = arith.constant 1.000000e+00 : f32
    %1310 = vector.broadcast %cst_635 : f32 to vector<8x32xf32>
    %1311 = arith.addf %1310, %1309 : vector<8x32xf32>
    %1312 = arith.divf %1310, %1311 : vector<8x32xf32>
    %1313 = vector.extract_strided_slice %1273 {offsets = [0, 64], sizes = [8, 32], strides = [1, 1]} : vector<8x128xf32> to vector<8x32xf32>
    %1314 = math.tanh %1313 : vector<8x32xf32>
    %1315 = vector.extract_strided_slice %1273 {offsets = [0, 96], sizes = [8, 32], strides = [1, 1]} : vector<8x128xf32> to vector<8x32xf32>
    %1316 = arith.negf %1315 : vector<8x32xf32>
    %1317 = math.exp %1316 : vector<8x32xf32>
    %cst_636 = arith.constant 1.000000e+00 : f32
    %1318 = vector.broadcast %cst_636 : f32 to vector<8x32xf32>
    %1319 = arith.addf %1318, %1317 : vector<8x32xf32>
    %1320 = arith.divf %1318, %1319 : vector<8x32xf32>
    %1321 = arith.mulf %1312, %1300 : vector<8x32xf32>
    %1322 = arith.mulf %1306, %1314 : vector<8x32xf32>
    %1323 = arith.addf %1321, %1322 : vector<8x32xf32>
    %1324 = math.tanh %1323 : vector<8x32xf32>
    %1325 = arith.mulf %1320, %1324 : vector<8x32xf32>
    %1326 = vector.broadcast %1264 : vector<8x1xf32> to vector<8x32xf32>
    %1327 = arith.mulf %1326, %1299 : vector<8x32xf32>
    %c0_637 = arith.constant 0 : index
    %c0_638 = arith.constant 0 : index
    %1328 = vector.load %arg26[%c0_637, %c0_638] : memref<8x32xf32, #tpu.memory_space<vmem>>, vector<8x32xf32>
    tpu.vector_store %arg26[%c0_637, %c0_638], %1327 {strides = array<i32>} : memref<8x32xf32, #tpu.memory_space<vmem>>, vector<8x32xf32>,
    %1329 = vector.broadcast %1264 : vector<8x1xf32> to vector<8x32xf32>
    %1330 = arith.mulf %1329, %1297 : vector<8x32xf32>
    %c0_639 = arith.constant 0 : index
    %c0_640 = arith.constant 0 : index
    %1331 = vector.load %arg27[%c0_639, %c0_640] : memref<8x32xf32, #tpu.memory_space<vmem>>, vector<8x32xf32>
    tpu.vector_store %arg27[%c0_639, %c0_640], %1330 {strides = array<i32>} : memref<8x32xf32, #tpu.memory_space<vmem>>, vector<8x32xf32>,
    %1332 = vector.broadcast %1265 : vector<8x1xf32> to vector<8x32xf32>
    %1333 = arith.mulf %1332, %1325 : vector<8x32xf32>
    %c0_641 = arith.constant 0 : index
    %c0_642 = arith.constant 0 : index
    %1334 = vector.load %arg28[%c0_641, %c0_642] : memref<8x32xf32, #tpu.memory_space<vmem>>, vector<8x32xf32>
    tpu.vector_store %arg28[%c0_641, %c0_642], %1333 {strides = array<i32>} : memref<8x32xf32, #tpu.memory_space<vmem>>, vector<8x32xf32>,
    %1335 = vector.broadcast %1265 : vector<8x1xf32> to vector<8x32xf32>
    %1336 = arith.mulf %1335, %1323 : vector<8x32xf32>
    %c0_643 = arith.constant 0 : index
    %c0_644 = arith.constant 0 : index
    %1337 = vector.load %arg29[%c0_643, %c0_644] : memref<8x32xf32, #tpu.memory_space<vmem>>, vector<8x32xf32>
    tpu.vector_store %arg29[%c0_643, %c0_644], %1336 {strides = array<i32>} : memref<8x32xf32, #tpu.memory_space<vmem>>, vector<8x32xf32>,
    %cst_645 = arith.constant 0.000000e+00 : f32
    %1338 = vector.broadcast %cst_645 : f32 to vector<8x1xf32>
    %1339 = arith.cmpf ogt, %1264, %1338 : vector<8x1xf32>
    %c0_646 = arith.constant 0 : index
    %c0_647 = arith.constant 0 : index
    %1340 = vector.load %arg30[%c0_646, %c0_647] : memref<8x32xf32, #tpu.memory_space<vmem>>, vector<8x32xf32>
    %1341 = vector.shape_cast %1339 : vector<8x1xi1> to vector<8x1xi1>
    %1342 = vector.broadcast %1341 : vector<8x1xi1> to vector<8x32xi1>
    %1343 = arith.select %1342, %1299, %1340 : vector<8x32xi1>, vector<8x32xf32>
    %c0_648 = arith.constant 0 : index
    %c0_649 = arith.constant 0 : index
    %1344 = vector.load %arg30[%c0_648, %c0_649] : memref<8x32xf32, #tpu.memory_space<vmem>>, vector<8x32xf32>
    tpu.vector_store %arg30[%c0_648, %c0_649], %1343 {strides = array<i32>} : memref<8x32xf32, #tpu.memory_space<vmem>>, vector<8x32xf32>,
    %c0_650 = arith.constant 0 : index
    %c0_651 = arith.constant 0 : index
    %1345 = vector.load %arg30[%c0_650, %c0_651] : memref<8x32xf32, #tpu.memory_space<vmem>>, vector<8x32xf32>
    %c0_652 = arith.constant 0 : index
    %c0_653 = arith.constant 0 : index
    %1346 = vector.load %arg28[%c0_652, %c0_653] : memref<8x32xf32, #tpu.memory_space<vmem>>, vector<8x32xf32>
    %cst_654 = arith.constant 0.000000e+00 : f32
    %1347 = vector.broadcast %cst_654 : f32 to vector<8x32xf32>
    %1348 = arith.maximumf %1346, %1347 : vector<8x32xf32>
    %cst_655 = arith.constant 0.000000e+00 : f32
    %1349 = vector.broadcast %cst_655 : f32 to vector<8x32xf32>
    %1350 = arith.maximumf %1345, %1349 : vector<8x32xf32>
    %c0_656 = arith.constant 0 : index
    %c0_657 = arith.constant 0 : index
    %1351 = vector.load %arg16[%c0_656, %c0_657] : memref<8x80xf32, #tpu.memory_space<vmem>>, vector<8x80xf32>
    %c0_658 = arith.constant 0 : index
    %c0_659 = arith.constant 0 : index
    %1352 = vector.load %arg17[%c0_658, %c0_659] : memref<80x64xf32, #tpu.memory_space<vmem>>, vector<80x64xf32>
    %cst_660 = arith.constant dense<0.000000e+00> : vector<8x64xf32>
    %1353 = tpu.matmul %1351, %1352, %cst_660 {dimension_numbers = #tpu.dot_dimension_numbers<[1], [0], [0], [1], [0, 0, 1, 1], [], []>} : vector<8x80xf32>, vector<80x64xf32>, vector<8x64xf32> -> vector<8x64xf32>
    %c0_661 = arith.constant 0 : index
    %c0_662 = arith.constant 0 : index
    %1354 = vector.load %arg18[%c0_661, %c0_662] : memref<1x64xf32, #tpu.memory_space<vmem>>, vector<1x64xf32>
    %1355 = vector.broadcast %1354 : vector<1x64xf32> to vector<8x64xf32>
    %1356 = arith.addf %1353, %1355 : vector<8x64xf32>
    %cst_663 = arith.constant 0.000000e+00 : f32
    %1357 = vector.broadcast %cst_663 : f32 to vector<8x64xf32>
    %1358 = arith.maximumf %1356, %1357 : vector<8x64xf32>
    %c0_664 = arith.constant 0 : index
    %c0_665 = arith.constant 0 : index
    %1359 = vector.load %arg19[%c0_664, %c0_665] : memref<128x128xf32, #tpu.memory_space<vmem>>, vector<32x128xf32>
    %cst_666 = arith.constant dense<0.000000e+00> : vector<8x128xf32>
    %1360 = tpu.matmul %1348, %1359, %cst_666 {dimension_numbers = #tpu.dot_dimension_numbers<[1], [0], [0], [1], [0, 0, 1, 1], [], []>} : vector<8x32xf32>, vector<32x128xf32>, vector<8x128xf32> -> vector<8x128xf32>
    %c32_667 = arith.constant 32 : index
    %c0_668 = arith.constant 0 : index
    %1361 = vector.load %arg19[%c32_667, %c0_668] : memref<128x128xf32, #tpu.memory_space<vmem>>, vector<32x128xf32>
    %cst_669 = arith.constant dense<0.000000e+00> : vector<8x128xf32>
    %1362 = tpu.matmul %1350, %1361, %cst_669 {dimension_numbers = #tpu.dot_dimension_numbers<[1], [0], [0], [1], [0, 0, 1, 1], [], []>} : vector<8x32xf32>, vector<32x128xf32>, vector<8x128xf32> -> vector<8x128xf32>
    %1363 = arith.addf %1360, %1362 : vector<8x128xf32>
    %c64 = arith.constant 64 : index
    %c0_670 = arith.constant 0 : index
    %1364 = vector.load %arg19[%c64, %c0_670] : memref<128x128xf32, #tpu.memory_space<vmem>>, vector<64x128xf32>
    %cst_671 = arith.constant dense<0.000000e+00> : vector<8x128xf32>
    %1365 = tpu.matmul %1358, %1364, %cst_671 {dimension_numbers = #tpu.dot_dimension_numbers<[1], [0], [0], [1], [0, 0, 1, 1], [], []>} : vector<8x64xf32>, vector<64x128xf32>, vector<8x128xf32> -> vector<8x128xf32>
    %1366 = arith.addf %1363, %1365 : vector<8x128xf32>
    %c0_672 = arith.constant 0 : index
    %c0_673 = arith.constant 0 : index
    %1367 = vector.load %arg20[%c0_672, %c0_673] : memref<1x128xf32, #tpu.memory_space<vmem>>, vector<1x128xf32>
    %1368 = vector.broadcast %1367 : vector<1x128xf32> to vector<8x128xf32>
    %1369 = arith.addf %1366, %1368 : vector<8x128xf32>
    %1370 = vector.extract_strided_slice %1369 {offsets = [0, 0], sizes = [8, 1], strides = [1, 1]} : vector<8x128xf32> to vector<8x1xf32>
    %1371 = vector.extract_strided_slice %1369 {offsets = [0, 1], sizes = [8, 1], strides = [1, 1]} : vector<8x128xf32> to vector<8x1xf32>
    %1372 = arith.negf %1371 : vector<8x1xf32>
    %1373 = math.exp %1372 : vector<8x1xf32>
    %cst_674 = arith.constant 1.000000e+00 : f32
    %1374 = vector.broadcast %cst_674 : f32 to vector<8x1xf32>
    %1375 = arith.addf %1374, %1373 : vector<8x1xf32>
    %1376 = arith.divf %1374, %1375 : vector<8x1xf32>
    %1377 = vector.extract_strided_slice %1369 {offsets = [0, 2], sizes = [8, 1], strides = [1, 1]} : vector<8x128xf32> to vector<8x1xf32>
    %1378 = arith.negf %1377 : vector<8x1xf32>
    %1379 = math.exp %1378 : vector<8x1xf32>
    %cst_675 = arith.constant 1.000000e+00 : f32
    %1380 = vector.broadcast %cst_675 : f32 to vector<8x1xf32>
    %1381 = arith.addf %1380, %1379 : vector<8x1xf32>
    %1382 = arith.divf %1380, %1381 : vector<8x1xf32>
    %1383 = arith.mulf %1376, %1382 : vector<8x1xf32>
    %1384 = vector.extract_strided_slice %1369 {offsets = [0, 3], sizes = [8, 1], strides = [1, 1]} : vector<8x128xf32> to vector<8x1xf32>
    %1385 = arith.negf %1384 : vector<8x1xf32>
    %1386 = math.exp %1385 : vector<8x1xf32>
    %cst_676 = arith.constant 1.000000e+00 : f32
    %1387 = vector.broadcast %cst_676 : f32 to vector<8x1xf32>
    %1388 = arith.addf %1387, %1386 : vector<8x1xf32>
    %1389 = arith.divf %1387, %1388 : vector<8x1xf32>
    %1390 = arith.mulf %1383, %1389 : vector<8x1xf32>
    %cst_677 = arith.constant 9.900000e-01 : f32
    %1391 = vector.broadcast %cst_677 : f32 to vector<8x1xf32>
    %1392 = arith.mulf %1390, %1391 : vector<8x1xf32>
    %cst_678 = arith.constant 0.00999999977 : f32
    %1393 = vector.broadcast %cst_678 : f32 to vector<8x1xf32>
    %1394 = arith.addf %1392, %1393 : vector<8x1xf32>
    %1395 = tpu.iota {dimensions = array<i32: 1>} : vector<8x128xi32>
    %c0_i32 = arith.constant 0 : i32
    %1396 = vector.broadcast %c0_i32 : i32 to vector<8x128xi32>
    %1397 = arith.cmpi eq, %1395, %1396 : vector<8x128xi32>
    %c1_i32 = arith.constant 1 : i32
    %1398 = vector.broadcast %c1_i32 : i32 to vector<8x128xi32>
    %1399 = arith.cmpi eq, %1395, %1398 : vector<8x128xi32>
    %cst_679 = arith.constant 0.000000e+00 : f32
    %1400 = vector.shape_cast %1394 : vector<8x1xf32> to vector<8x1xf32>
    %1401 = vector.broadcast %1400 : vector<8x1xf32> to vector<8x128xf32>
    %1402 = vector.broadcast %cst_679 : f32 to vector<8x128xf32>
    %1403 = arith.select %1399, %1401, %1402 : vector<8x128xi1>, vector<8x128xf32>
    %1404 = vector.shape_cast %1370 : vector<8x1xf32> to vector<8x1xf32>
    %1405 = vector.broadcast %1404 : vector<8x1xf32> to vector<8x128xf32>
    %1406 = arith.select %1397, %1405, %1403 : vector<8x128xi1>, vector<8x128xf32>
    %c0_680 = arith.constant 0 : index
    %c0_681 = arith.constant 0 : index
    %1407 = vector.load %arg21[%c0_680, %c0_681] : memref<8x128xf32, #tpu.memory_space<vmem>>, vector<8x128xf32>
    tpu.vector_store %arg21[%c0_680, %c0_681], %1406 {strides = array<i32>} : memref<8x128xf32, #tpu.memory_space<vmem>>, vector<8x128xf32>,
    return
  }
}

</mosaic_0001>

<llo_original>
// kernel: tpu_custom_call.1
$region0: #{tpu_custom_call.1}
  #allocation0 [shape = 'u32[]', space=smem, size = 0x4, offset = 0x4, fixed_abs, tag = 'smem constant byte address 0x4 - core index']
  #allocation1 [shape = 'u32[72,128]{1,0:T(1,128)}', space=vmem, size = 0x9000, scoped, tag = 'internal scratch']
  #allocation2 [shape = 'f32[64,128]{1,0:T(8,128)}', space=vmem, size = 0x8000, scoped, tag = 'scratch operand']
  #allocation3 [shape = 'f32[64,128]{1,0:T(8,128)}', space=vmem, size = 0x8000, scoped, tag = 'scratch operand']
  #allocation4 [shape = 'f32[64,32]{1,0:T(8,128)}', space=vmem, size = 0x8000, scoped, tag = 'scratch operand']
  #allocation5 [shape = 'f32[64,32]{1,0:T(8,128)}', space=vmem, size = 0x8000, scoped, tag = 'scratch operand']
  #allocation6 [shape = 'f32[8,32]{1,0:T(8,128)}', space=vmem, size = 0x1000, scoped, tag = 'scratch operand']
  #allocation7 [shape = 'f32[8,32]{1,0:T(8,128)}', space=vmem, size = 0x1000, scoped, tag = 'scratch operand']
  #allocation8 [shape = 'f32[8,32]{1,0:T(8,128)}', space=vmem, size = 0x1000, scoped, tag = 'scratch operand']
  #allocation9 [shape = 'f32[8,32]{1,0:T(8,128)}', space=vmem, size = 0x1000, scoped, tag = 'scratch operand']
  #allocation10 [shape = 'f32[8,32]{1,0:T(8,128)}', space=vmem, size = 0x1000, scoped, tag = 'scratch operand']
  %s0 = inlined_call_operand.vmem [shape: bf16[64,32], index: 0, kind: input, shape index: {}]
  %s1 = inlined_call_operand.vmem [shape: f32[64,1], index: 1, kind: input, shape index: {}]
  %s2 = inlined_call_operand.vmem [shape: bf16[32,128], index: 2, kind: input, shape index: {}]
  %s3 = inlined_call_operand.vmem [shape: f32[32,128], index: 3, kind: input, shape index: {}]
  %s4 = inlined_call_operand.hbm [shape: f32[1,128], index: 4, kind: input, shape index: {}]
  %s5 = inlined_call_operand.hbm [shape: bf16[32,128], index: 5, kind: input, shape index: {}]
  %s6 = inlined_call_operand.vmem [shape: f32[32,128], index: 6, kind: input, shape index: {}]
  %s7 = inlined_call_operand.hbm [shape: f32[1,128], index: 7, kind: input, shape index: {}]
  %s8 = inlined_call_operand.hbm [shape: bf16[32,128], index: 8, kind: input, shape index: {}]
  %s9 = inlined_call_operand.hbm [shape: bf16[32,128], index: 9, kind: input, shape index: {}]
  %s10 = inlined_call_operand.hbm [shape: f32[32,128], index: 10, kind: input, shape index: {}]
  %s11 = inlined_call_operand.hbm [shape: f32[1,128], index: 11, kind: input, shape index: {}]
  %s12 = inlined_call_operand.hbm [shape: bf16[32,128], index: 12, kind: input, shape index: {}]
  %s13 = inlined_call_operand.hbm [shape: bf16[32,128], index: 13, kind: input, shape index: {}]
  %s14 = inlined_call_operand.hbm [shape: f32[32,128], index: 14, kind: input, shape index: {}]
  %s15 = inlined_call_operand.hbm [shape: f32[1,128], index: 15, kind: input, shape index: {}]
  %s16 = inlined_call_operand.hbm [shape: f32[8,80], index: 16, kind: input, shape index: {}]
  %s17 = inlined_call_operand.vmem [shape: f32[80,64], index: 17, kind: input, shape index: {}]
  %s18 = inlined_call_operand.vmem [shape: f32[1,64], index: 18, kind: input, shape index: {}]
  %s19 = inlined_call_operand.vmem [shape: f32[128,128], index: 19, kind: input, shape index: {}]
  %s20 = inlined_call_operand.vmem [shape: f32[1,128], index: 20, kind: input, shape index: {}]
  %s21 = inlined_call_operand.hbm [shape: f32[8,128], index: 21, kind: output, shape index: {}]
  %s22 = sld [smem:[#allocation0]]
  $region142: #{tpu_custom_call.1} parent=0
    _
  %s24 = ssub.s32 1, %s22
  %s25 = scalar_select 0, %s24, %s22
  $region1: #{tpu_custom_call.1} parent=0
    #allocation11 [shape = 'u8[512]{0}', space=vmem, size = 0x400, scoped, tag = 'input window, operand 4, single buffered']
    #allocation12 [shape = 's32[1]{0}', space=sflag, size = 0x4, scoped, tag = 'scoped memory for tpu_custom_call.1']
    #allocation13 [shape = 's32[1]{0}', space=sflag, size = 0x4, scoped, tag = 'scoped memory for tpu_custom_call.1']
    #allocation14 [shape = 'u8[8192]{0}', space=vmem, size = 0x2000, scoped, tag = 'input window, operand 5, single buffered']
    #allocation15 [shape = 's32[1]{0}', space=sflag, size = 0x4, scoped, tag = 'scoped memory for tpu_custom_call.1']
    #allocation16 [shape = 'u8[512]{0}', space=vmem, size = 0x400, scoped, tag = 'input window, operand 7, single buffered']
    #allocation17 [shape = 'u8[8192]{0}', space=vmem, size = 0x2000, scoped, tag = 'input window, operand 8, single buffered']
    #allocation18 [shape = 's32[1]{0}', space=sflag, size = 0x4, scoped, tag = 'scoped memory for tpu_custom_call.1']
    #allocation19 [shape = 'u8[8192]{0}', space=vmem, size = 0x2000, scoped, tag = 'input window, operand 9, single buffered']
    #allocation20 [shape = 'u8[16384]{0}', space=vmem, size = 0x4000, scoped, tag = 'input window, operand 10, single buffered']
    #allocation21 [shape = 's32[1]{0}', space=sflag, size = 0x4, scoped, tag = 'scoped memory for tpu_custom_call.1']
    #allocation22 [shape = 'u8[512]{0}', space=vmem, size = 0x400, scoped, tag = 'input window, operand 11, single buffered']
    #allocation23 [shape = 'u8[8192]{0}', space=vmem, size = 0x2000, scoped, tag = 'input window, operand 12, single buffered']
    #allocation24 [shape = 's32[1]{0}', space=sflag, size = 0x4, scoped, tag = 'scoped memory for tpu_custom_call.1']
    #allocation25 [shape = 'u8[8192]{0}', space=vmem, size = 0x2000, scoped, tag = 'input window, operand 13, single buffered']
    #allocation26 [shape = 'u8[16384]{0}', space=vmem, size = 0x4000, scoped, tag = 'input window, operand 14, single buffered']
    #allocation27 [shape = 's32[1]{0}', space=sflag, size = 0x4, scoped, tag = 'scoped memory for tpu_custom_call.1']
    #allocation28 [shape = 'u8[512]{0}', space=vmem, size = 0x400, scoped, tag = 'input window, operand 15, single buffered']
    #allocation29 [shape = 'u8[4096]{0}', space=vmem, size = 0x1000, scoped, tag = 'input window, operand 16, single buffered']
    #allocation30 [shape = 's32[1]{0}', space=sflag, size = 0x4, scoped, tag = 'scoped memory for tpu_custom_call.1']
    #allocation31 [shape = 'u8[4096]{0}', space=vmem, size = 0x1000, scoped, tag = 'output window, operand 0, single buffered']
    %26 = vsyncpa [#allocation12], 0
    %27 = vsyncpa [#allocation15], 0
    %28 = vsyncpa [#allocation18], 0
    %29 = vsyncpa [#allocation21], 0
    %30 = vsyncpa [#allocation24], 0
    %31 = vsyncpa [#allocation27], 0
    %32 = vsyncpa [#allocation30], 0
    %33 = vsyncpa [#allocation13], 0
    // Predicated region
    $region2: #{tpu_custom_call.1} parent=1 // pred_check
      _
    $region3: #{tpu_custom_call.1} parent=1 // pred_check_branch
      %35 = sbr.rel (0) target = $region5
    $region4: #{tpu_custom_call.1} parent=1 // pred_region
      _
    $region5: #{tpu_custom_call.1} parent=1 // pred_fallthru
      _
    // Predicated region
    $region6: #{tpu_custom_call.1} parent=1 // pred_check
      _
    $region7: #{tpu_custom_call.1} parent=1 // pred_check_branch
      %37 = sbr.rel (0) target = $region9
    $region8: #{tpu_custom_call.1} parent=1 // pred_region
      _
    $region9: #{tpu_custom_call.1} parent=1 // pred_fallthru
      _
    // Predicated region
    $region10: #{tpu_custom_call.1} parent=1 // pred_check
      _
    $region11: #{tpu_custom_call.1} parent=1 // pred_check_branch
      %39 = sbr.rel (0) target = $region13
    $region12: #{tpu_custom_call.1} parent=1 // pred_region
      _
    $region13: #{tpu_custom_call.1} parent=1 // pred_fallthru
      _
    // Predicated region
    $region14: #{tpu_custom_call.1} parent=1 // pred_check
      _
    $region15: #{tpu_custom_call.1} parent=1 // pred_check_branch
      %41 = sbr.rel (0) target = $region17
    $region16: #{tpu_custom_call.1} parent=1 // pred_region
      _
    $region17: #{tpu_custom_call.1} parent=1 // pred_fallthru
      _
    // Predicated region
    $region18: #{tpu_custom_call.1} parent=1 // pred_check
      _
    $region19: #{tpu_custom_call.1} parent=1 // pred_check_branch
      %43 = sbr.rel (0) target = $region21
    $region20: #{tpu_custom_call.1} parent=1 // pred_region
      %45 = vsyncadd [#allocation12], 0
      %s47 = sshll.u32 %s4, 4
      %s48 = int_to_ptr.hbm [resolvable:$true] %s47
      %s49 = sshll.u32 [#allocation11], 4
      %s50 = int_to_ptr.vmem [resolvable:$true] %s49
      %52 = dma.hbm_to_vmem [thread:$0]  %s48, 16, %s50, [#allocation12]
    $region21: #{tpu_custom_call.1} parent=1 // pred_fallthru
      _
    // Predicated region
    $region22: #{tpu_custom_call.1} parent=1 // pred_check
      _
    $region23: #{tpu_custom_call.1} parent=1 // pred_check_branch
      %54 = sbr.rel (0) target = $region25
    $region24: #{tpu_custom_call.1} parent=1 // pred_region
      %56 = vsyncadd [#allocation15], 0
      %s57 = sshll.u32 %s5, 4
      %s58 = int_to_ptr.hbm [resolvable:$true] %s57
      %s59 = sshll.u32 [#allocation14], 4
      %s60 = int_to_ptr.vmem [resolvable:$true] %s59
      %65 = dma.hbm_to_vmem [thread:$0]  %s58, 256, %s60, [#allocation15], 64, 64, 4
    $region25: #{tpu_custom_call.1} parent=1 // pred_fallthru
      _
    // Predicated region
    $region26: #{tpu_custom_call.1} parent=1 // pred_check
      _
    $region27: #{tpu_custom_call.1} parent=1 // pred_check_branch
      %67 = sbr.rel (0) target = $region29
    $region28: #{tpu_custom_call.1} parent=1 // pred_region
      _
    $region29: #{tpu_custom_call.1} parent=1 // pred_fallthru
      _
    // Predicated region
    $region30: #{tpu_custom_call.1} parent=1 // pred_check
      _
    $region31: #{tpu_custom_call.1} parent=1 // pred_check_branch
      %69 = sbr.rel (0) target = $region33
    $region32: #{tpu_custom_call.1} parent=1 // pred_region
      %71 = vsyncadd [#allocation15], 0
      %s73 = sshll.u32 %s7, 4
      %s74 = int_to_ptr.hbm [resolvable:$true] %s73
      %s75 = sshll.u32 [#allocation16], 4
      %s76 = int_to_ptr.vmem [resolvable:$true] %s75
      %78 = dma.hbm_to_vmem [thread:$0]  %s74, 16, %s76, [#allocation15]
    $region33: #{tpu_custom_call.1} parent=1 // pred_fallthru
      _
    // Predicated region
    $region34: #{tpu_custom_call.1} parent=1 // pred_check
      _
    $region35: #{tpu_custom_call.1} parent=1 // pred_check_branch
      %80 = sbr.rel (0) target = $region37
    $region36: #{tpu_custom_call.1} parent=1 // pred_region
      %82 = vsyncadd [#allocation18], 0
      %s83 = sshll.u32 %s8, 4
      %s84 = int_to_ptr.hbm [resolvable:$true] %s83
      %s85 = sshll.u32 [#allocation17], 4
      %s86 = int_to_ptr.vmem [resolvable:$true] %s85
      %91 = dma.hbm_to_vmem [thread:$0]  %s84, 256, %s86, [#allocation18], 64, 64, 4
    $region37: #{tpu_custom_call.1} parent=1 // pred_fallthru
      _
    // Predicated region
    $region38: #{tpu_custom_call.1} parent=1 // pred_check
      _
    $region39: #{tpu_custom_call.1} parent=1 // pred_check_branch
      %93 = sbr.rel (0) target = $region41
    $region40: #{tpu_custom_call.1} parent=1 // pred_region
      %95 = vsyncadd [#allocation18], 0
      %s96 = sshll.u32 %s9, 4
      %s97 = int_to_ptr.hbm [resolvable:$true] %s96
      %s98 = sshll.u32 [#allocation19], 4
      %s99 = int_to_ptr.vmem [resolvable:$true] %s98
      %104 = dma.hbm_to_vmem [thread:$0]  %s97, 256, %s99, [#allocation18], 64, 64, 4
    $region41: #{tpu_custom_call.1} parent=1 // pred_fallthru
      _
    // Predicated region
    $region42: #{tpu_custom_call.1} parent=1 // pred_check
      _
    $region43: #{tpu_custom_call.1} parent=1 // pred_check_branch
      %106 = sbr.rel (0) target = $region45
    $region44: #{tpu_custom_call.1} parent=1 // pred_region
      %108 = vsyncadd [#allocation21], 0
      %s109 = sshll.u32 %s10, 4
      %s110 = int_to_ptr.hbm [resolvable:$true] %s109
      %s111 = sshll.u32 [#allocation20], 4
      %s112 = int_to_ptr.vmem [resolvable:$true] %s111
      %117 = dma.hbm_to_vmem [thread:$0]  %s110, 512, %s112, [#allocation21], 128, 128, 8
    $region45: #{tpu_custom_call.1} parent=1 // pred_fallthru
      _
    // Predicated region
    $region46: #{tpu_custom_call.1} parent=1 // pred_check
      _
    $region47: #{tpu_custom_call.1} parent=1 // pred_check_branch
      %119 = sbr.rel (0) target = $region49
    $region48: #{tpu_custom_call.1} parent=1 // pred_region
      %121 = vsyncadd [#allocation21], 0
      %s123 = sshll.u32 %s11, 4
      %s124 = int_to_ptr.hbm [resolvable:$true] %s123
      %s125 = sshll.u32 [#allocation22], 4
      %s126 = int_to_ptr.vmem [resolvable:$true] %s125
      %128 = dma.hbm_to_vmem [thread:$0]  %s124, 16, %s126, [#allocation21]
    $region49: #{tpu_custom_call.1} parent=1 // pred_fallthru
      _
    // Predicated region
    $region50: #{tpu_custom_call.1} parent=1 // pred_check
      _
    $region51: #{tpu_custom_call.1} parent=1 // pred_check_branch
      %130 = sbr.rel (0) target = $region53
    $region52: #{tpu_custom_call.1} parent=1 // pred_region
      %132 = vsyncadd [#allocation24], 0
      %s133 = sshll.u32 %s12, 4
      %s134 = int_to_ptr.hbm [resolvable:$true] %s133
      %s135 = sshll.u32 [#allocation23], 4
      %s136 = int_to_ptr.vmem [resolvable:$true] %s135
      %141 = dma.hbm_to_vmem [thread:$0]  %s134, 256, %s136, [#allocation24], 64, 64, 4
    $region53: #{tpu_custom_call.1} parent=1 // pred_fallthru
      _
    // Predicated region
    $region54: #{tpu_custom_call.1} parent=1 // pred_check
      _
    $region55: #{tpu_custom_call.1} parent=1 // pred_check_branch
      %143 = sbr.rel (0) target = $region57
    $region56: #{tpu_custom_call.1} parent=1 // pred_region
      %145 = vsyncadd [#allocation24], 0
      %s146 = sshll.u32 %s13, 4
      %s147 = int_to_ptr.hbm [resolvable:$true] %s146
      %s148 = sshll.u32 [#allocation25], 4
      %s149 = int_to_ptr.vmem [resolvable:$true] %s148
      %154 = dma.hbm_to_vmem [thread:$0]  %s147, 256, %s149, [#allocation24], 64, 64, 4
    $region57: #{tpu_custom_call.1} parent=1 // pred_fallthru
      _
    // Predicated region
    $region58: #{tpu_custom_call.1} parent=1 // pred_check
      _
    $region59: #{tpu_custom_call.1} parent=1 // pred_check_branch
      %156 = sbr.rel (0) target = $region61
    $region60: #{tpu_custom_call.1} parent=1 // pred_region
      %158 = vsyncadd [#allocation27], 0
      %s159 = sshll.u32 %s14, 4
      %s160 = int_to_ptr.hbm [resolvable:$true] %s159
      %s161 = sshll.u32 [#allocation26], 4
      %s162 = int_to_ptr.vmem [resolvable:$true] %s161
      %167 = dma.hbm_to_vmem [thread:$0]  %s160, 512, %s162, [#allocation27], 128, 128, 8
    $region61: #{tpu_custom_call.1} parent=1 // pred_fallthru
      _
    // Predicated region
    $region62: #{tpu_custom_call.1} parent=1 // pred_check
      _
    $region63: #{tpu_custom_call.1} parent=1 // pred_check_branch
      %169 = sbr.rel (0) target = $region65
    $region64: #{tpu_custom_call.1} parent=1 // pred_region
      %171 = vsyncadd [#allocation27], 0
      %s173 = sshll.u32 %s15, 4
      %s174 = int_to_ptr.hbm [resolvable:$true] %s173
      %s175 = sshll.u32 [#allocation28], 4
      %s176 = int_to_ptr.vmem [resolvable:$true] %s175
      %178 = dma.hbm_to_vmem [thread:$0]  %s174, 16, %s176, [#allocation27]
    $region65: #{tpu_custom_call.1} parent=1 // pred_fallthru
      _
    // Predicated region
    $region66: #{tpu_custom_call.1} parent=1 // pred_check
      _
    $region67: #{tpu_custom_call.1} parent=1 // pred_check_branch
      %180 = sbr.rel (0) target = $region69
    $region68: #{tpu_custom_call.1} parent=1 // pred_region
      %182 = vsyncadd [#allocation30], 0
      %s184 = sshll.u32 %s16, 4
      %s185 = int_to_ptr.hbm [resolvable:$true] %s184
      %s186 = sshll.u32 [#allocation29], 4
      %s187 = int_to_ptr.vmem [resolvable:$true] %s186
      %189 = dma.hbm_to_vmem [thread:$0]  %s185, 128, %s187, [#allocation30]
    $region69: #{tpu_custom_call.1} parent=1 // pred_fallthru
      _
    // Predicated region
    $region70: #{tpu_custom_call.1} parent=1 // pred_check
      _
    $region71: #{tpu_custom_call.1} parent=1 // pred_check_branch
      %191 = sbr.rel (0) target = $region73
    $region72: #{tpu_custom_call.1} parent=1 // pred_region
      _
    $region73: #{tpu_custom_call.1} parent=1 // pred_fallthru
      _
    // Predicated region
    $region74: #{tpu_custom_call.1} parent=1 // pred_check
      _
    $region75: #{tpu_custom_call.1} parent=1 // pred_check_branch
      %193 = sbr.rel (0) target = $region77
    $region76: #{tpu_custom_call.1} parent=1 // pred_region
      _
    $region77: #{tpu_custom_call.1} parent=1 // pred_fallthru
      _
    // Predicated region
    $region78: #{tpu_custom_call.1} parent=1 // pred_check
      _
    $region79: #{tpu_custom_call.1} parent=1 // pred_check_branch
      %195 = sbr.rel (0) target = $region81
    $region80: #{tpu_custom_call.1} parent=1 // pred_region
      _
    $region81: #{tpu_custom_call.1} parent=1 // pred_fallthru
      _
    // Predicated region
    $region82: #{tpu_custom_call.1} parent=1 // pred_check
      _
    $region83: #{tpu_custom_call.1} parent=1 // pred_check_branch
      %197 = sbr.rel (0) target = $region85
    $region84: #{tpu_custom_call.1} parent=1 // pred_region
      _
    $region85: #{tpu_custom_call.1} parent=1 // pred_fallthru
      _
    // Predicated region
    $region86: #{tpu_custom_call.1} parent=1 // pred_check
      _
    $region87: #{tpu_custom_call.1} parent=1 // pred_check_branch
      %199 = sbr.rel (0) target = $region89
    $region88: #{tpu_custom_call.1} parent=1 // pred_region
      %201 = dma.done [#allocation12], 16
    $region89: #{tpu_custom_call.1} parent=1 // pred_fallthru
      _
    // Predicated region
    $region90: #{tpu_custom_call.1} parent=1 // pred_check
      _
    $region91: #{tpu_custom_call.1} parent=1 // pred_check_branch
      %203 = sbr.rel (0) target = $region93
    $region92: #{tpu_custom_call.1} parent=1 // pred_region
      %205 = dma.done [#allocation15], 256
    $region93: #{tpu_custom_call.1} parent=1 // pred_fallthru
      _
    // Predicated region
    $region94: #{tpu_custom_call.1} parent=1 // pred_check
      _
    $region95: #{tpu_custom_call.1} parent=1 // pred_check_branch
      %207 = sbr.rel (0) target = $region97
    $region96: #{tpu_custom_call.1} parent=1 // pred_region
      %209 = dma.done [#allocation15], 16
    $region97: #{tpu_custom_call.1} parent=1 // pred_fallthru
      _
    // Predicated region
    $region98: #{tpu_custom_call.1} parent=1 // pred_check
      _
    $region99: #{tpu_custom_call.1} parent=1 // pred_check_branch
      %211 = sbr.rel (0) target = $region101
    $region100: #{tpu_custom_call.1} parent=1 // pred_region
      %213 = dma.done [#allocation18], 256
    $region101: #{tpu_custom_call.1} parent=1 // pred_fallthru
      _
    // Predicated region
    $region102: #{tpu_custom_call.1} parent=1 // pred_check
      _
    $region103: #{tpu_custom_call.1} parent=1 // pred_check_branch
      %215 = sbr.rel (0) target = $region105
    $region104: #{tpu_custom_call.1} parent=1 // pred_region
      %217 = dma.done [#allocation18], 256
    $region105: #{tpu_custom_call.1} parent=1 // pred_fallthru
      _
    // Predicated region
    $region106: #{tpu_custom_call.1} parent=1 // pred_check
      _
    $region107: #{tpu_custom_call.1} parent=1 // pred_check_branch
      %219 = sbr.rel (0) target = $region109
    $region108: #{tpu_custom_call.1} parent=1 // pred_region
      %221 = dma.done [#allocation21], 512
    $region109: #{tpu_custom_call.1} parent=1 // pred_fallthru
      _
    // Predicated region
    $region110: #{tpu_custom_call.1} parent=1 // pred_check
      _
    $region111: #{tpu_custom_call.1} parent=1 // pred_check_branch
      %223 = sbr.rel (0) target = $region113
    $region112: #{tpu_custom_call.1} parent=1 // pred_region
      %225 = dma.done [#allocation21], 16
    $region113: #{tpu_custom_call.1} parent=1 // pred_fallthru
      _
    // Predicated region
    $region114: #{tpu_custom_call.1} parent=1 // pred_check
      _
    $region115: #{tpu_custom_call.1} parent=1 // pred_check_branch
      %227 = sbr.rel (0) target = $region117
    $region116: #{tpu_custom_call.1} parent=1 // pred_region
      %229 = dma.done [#allocation24], 256
    $region117: #{tpu_custom_call.1} parent=1 // pred_fallthru
      _
    // Predicated region
    $region118: #{tpu_custom_call.1} parent=1 // pred_check
      _
    $region119: #{tpu_custom_call.1} parent=1 // pred_check_branch
      %231 = sbr.rel (0) target = $region121
    $region120: #{tpu_custom_call.1} parent=1 // pred_region
      %233 = dma.done [#allocation24], 256
    $region121: #{tpu_custom_call.1} parent=1 // pred_fallthru
      _
    // Predicated region
    $region122: #{tpu_custom_call.1} parent=1 // pred_check
      _
    $region123: #{tpu_custom_call.1} parent=1 // pred_check_branch
      %235 = sbr.rel (0) target = $region125
    $region124: #{tpu_custom_call.1} parent=1 // pred_region
      %237 = dma.done [#allocation27], 512
    $region125: #{tpu_custom_call.1} parent=1 // pred_fallthru
      _
    // Predicated region
    $region126: #{tpu_custom_call.1} parent=1 // pred_check
      _
    $region127: #{tpu_custom_call.1} parent=1 // pred_check_branch
      %239 = sbr.rel (0) target = $region129
    $region128: #{tpu_custom_call.1} parent=1 // pred_region
      %241 = dma.done [#allocation27], 16
    $region129: #{tpu_custom_call.1} parent=1 // pred_fallthru
      _
    // Predicated region
    $region130: #{tpu_custom_call.1} parent=1 // pred_check
      _
    $region131: #{tpu_custom_call.1} parent=1 // pred_check_branch
      %243 = sbr.rel (0) target = $region133
    $region132: #{tpu_custom_call.1} parent=1 // pred_region
      %245 = dma.done [#allocation30], 128
    $region133: #{tpu_custom_call.1} parent=1 // pred_fallthru
      _
    %v247 = vld [vmem:[%s0] sm:$0xf]
    %v248 = vld [vmem:[%s0 + $0x4] sm:$0xf]
    %v249 = vld [vmem:[%s0 + $0x8] sm:$0xf]
    %v250 = vld [vmem:[%s0 + $0xc] sm:$0xf]
    %v251 = vld [vmem:[%s0 + $0x10] sm:$0xf]
    %v252 = vld [vmem:[%s0 + $0x14] sm:$0xf]
    %v253 = vld [vmem:[%s0 + $0x18] sm:$0xf]
    %v254 = vld [vmem:[%s0 + $0x1c] sm:$0xf]
    %v255 = vld [vmem:[%s2] sm:$0xf]
    %v256 = vld [vmem:[%s2 + $0x4] sm:$0xf]
    %v257 = vld [vmem:[%s2 + $0x8] sm:$0xf]
    %v258 = vld [vmem:[%s2 + $0xc] sm:$0xf]
    %v259 = vld [vmem:[#allocation11] sm:$0x1]
    %v261 = vperm.slane %v259, 0
    %v271 = vunpack.c.l.b16 %v247
    %v272 = vunpack.c.l.b16 %v248
    %v273 = vunpack.c.l.b16 %v249
    %v274 = vunpack.c.l.b16 %v250
    %v275 = vunpack.c.l.b16 %v251
    %v276 = vunpack.c.l.b16 %v252
    %v277 = vunpack.c.l.b16 %v253
    %v278 = vunpack.c.l.b16 %v254
    %v279 = vpack.c.b16 %v272, %v271
    %v280 = vpack.c.b16 %v274, %v273
    %v281 = vpack.c.b16 %v276, %v275
    %v282 = vpack.c.b16 %v278, %v277
    %v287 = vunpack.c.l.b16 %v255
    %v288 = vunpack.c.l.b16 %v256
    %v289 = vunpack.c.l.b16 %v257
    %v290 = vunpack.c.l.b16 %v258
    %v291 = vpack.c.b16 %v288, %v287
    %v292 = vpack.c.b16 %v290, %v289
    %vm295 = vcmask 261120
    %v297 = vsel %vm295, %v279, 0
    %v300 = vsel %vm295, %v280, 0
    %v303 = vsel %vm295, %v281, 0
    %v306 = vsel %vm295, %v282, 0
    %308 = vmatpush.bf16.msra.mxu0 0
    %309 = vmatpush.bf16.msra.mxu0 0
    %310 = vmatpush.bf16.msra.mxu0 0
    %311 = vmatpush.bf16.msra.mxu0 0
    %312 = vmatpush.bf16.msra.mxu0 0
    %313 = vmatpush.bf16.msra.mxu0 0
    %314 = vmatpush.bf16.msra.mxu0 %v292
    %315 = vmatpush.bf16.msra.mxu0 %v291
    %316 = vmatmul.bf16.gmra.mxu0 %v297
    %v317 = vpop.f32.mrf.mxu0
    %v318 = vadd.f32 %v261, %v317
    %v319 = vpop.f32.mrf.mxu0
    %v320 = vadd.f32 %v261, %v319
    %321 = vmatmul.bf16.gmra.mxu0 %v300
    %v322 = vpop.f32.mrf.mxu0
    %v323 = vadd.f32 %v261, %v322
    %v324 = vpop.f32.mrf.mxu0
    %v325 = vadd.f32 %v261, %v324
    %326 = vmatmul.bf16.gmra.mxu0 %v303
    %v327 = vpop.f32.mrf.mxu0
    %v328 = vadd.f32 %v261, %v327
    %v329 = vpop.f32.mrf.mxu0
    %v330 = vadd.f32 %v261, %v329
    %331 = vmatmul.bf16.gmra.mxu0 %v306
    %v332 = vpop.f32.mrf.mxu0
    %v333 = vadd.f32 %v261, %v332
    %v334 = vpop.f32.mrf.mxu0
    %v335 = vadd.f32 %v261, %v334
    %336 = vdwg.mxu0
    %337 = vst [vmem:[#allocation2] sm:$0xff] %v318
    %338 = vst [vmem:[#allocation2 + $0x8] sm:$0xff] %v320
    %339 = vst [vmem:[#allocation2 + $0x10] sm:$0xff] %v323
    %340 = vst [vmem:[#allocation2 + $0x18] sm:$0xff] %v325
    %341 = vst [vmem:[#allocation2 + $0x20] sm:$0xff] %v328
    %342 = vst [vmem:[#allocation2 + $0x28] sm:$0xff] %v330
    %343 = vst [vmem:[#allocation2 + $0x30] sm:$0xff] %v333
    %344 = vst [vmem:[#allocation2 + $0x38] sm:$0xff] %v335
    %v345 = vld [vmem:[#allocation14] sm:$0xf]
    %v346 = vld [vmem:[#allocation14 + $0x4] sm:$0xf]
    %v347 = vld [vmem:[#allocation14 + $0x8] sm:$0xf]
    %v348 = vld [vmem:[#allocation14 + $0xc] sm:$0xf]
    %v349 = vld [vmem:[#allocation16] sm:$0x1]
    %v351 = vperm.slane %v349, 0
    %v357 = vunpack.c.l.b16 %v345
    %v358 = vunpack.c.l.b16 %v346
    %v359 = vunpack.c.l.b16 %v347
    %v360 = vunpack.c.l.b16 %v348
    %v361 = vpack.c.b16 %v358, %v357
    %v362 = vpack.c.b16 %v360, %v359
    %365 = vmatpush.bf16.msra.mxu0 0
    %366 = vmatpush.bf16.msra.mxu0 0
    %367 = vmatpush.bf16.msra.mxu0 0
    %368 = vmatpush.bf16.msra.mxu0 0
    %369 = vmatpush.bf16.msra.mxu0 0
    %370 = vmatpush.bf16.msra.mxu0 0
    %371 = vmatpush.bf16.msra.mxu0 %v362
    %372 = vmatpush.bf16.msra.mxu0 %v361
    %373 = vmatmul.bf16.gmra.mxu0 %v297
    %v374 = vpop.f32.mrf.mxu0
    %v375 = vadd.f32 %v351, %v374
    %v376 = vpop.f32.mrf.mxu0
    %v377 = vadd.f32 %v351, %v376
    %378 = vmatmul.bf16.gmra.mxu0 %v300
    %v379 = vpop.f32.mrf.mxu0
    %v380 = vadd.f32 %v351, %v379
    %v381 = vpop.f32.mrf.mxu0
    %v382 = vadd.f32 %v351, %v381
    %383 = vmatmul.bf16.gmra.mxu0 %v303
    %v384 = vpop.f32.mrf.mxu0
    %v385 = vadd.f32 %v351, %v384
    %v386 = vpop.f32.mrf.mxu0
    %v387 = vadd.f32 %v351, %v386
    %388 = vmatmul.bf16.gmra.mxu0 %v306
    %v389 = vpop.f32.mrf.mxu0
    %v390 = vadd.f32 %v351, %v389
    %v391 = vpop.f32.mrf.mxu0
    %v392 = vadd.f32 %v351, %v391
    %393 = vdwg.mxu0
    %394 = vst [vmem:[#allocation3] sm:$0xff] %v375
    %395 = vst [vmem:[#allocation3 + $0x8] sm:$0xff] %v377
    %396 = vst [vmem:[#allocation3 + $0x10] sm:$0xff] %v380
    %397 = vst [vmem:[#allocation3 + $0x18] sm:$0xff] %v382
    %398 = vst [vmem:[#allocation3 + $0x20] sm:$0xff] %v385
    %399 = vst [vmem:[#allocation3 + $0x28] sm:$0xff] %v387
    %400 = vst [vmem:[#allocation3 + $0x30] sm:$0xff] %v390
    %401 = vst [vmem:[#allocation3 + $0x38] sm:$0xff] %v392
    %v402 = vld [vmem:[%s3] sm:$0xff]
    %v403 = vld [vmem:[%s3 + $0x8] sm:$0xff]
    %v404 = vld [vmem:[%s3 + $0x10] sm:$0xff]
    %v405 = vld [vmem:[%s3 + $0x18] sm:$0xff]
    %v406 = vld [vmem:[%s6] sm:$0xff]
    %v407 = vld [vmem:[%s6 + $0x8] sm:$0xff]
    %v408 = vld [vmem:[%s6 + $0x10] sm:$0xff]
    %v409 = vld [vmem:[%s6 + $0x18] sm:$0xff]
    %410 = vst.msk [vmem:[#allocation6] sm:$0xff] %vm295, 0.0
    %411 = vst.msk [vmem:[#allocation7] sm:$0xff] %vm295, 0.0
    %412 = vst.msk [vmem:[#allocation8] sm:$0xff] %vm295, 0.0
    %413 = vst.msk [vmem:[#allocation9] sm:$0xff] %vm295, 0.0
    %v414 = vld [vmem:[%s1] sm:$0xff]
    %v415 = vld [vmem:[%s1 + $0x38] sm:$0xff]
    %v416 = vld [vmem:[#allocation2] sm:$0xff]
    %v417 = vld [vmem:[#allocation6] sm:$0xff]
    %v419 = vsel %vm295, %v417, 0
    %421 = vmatpush.msra.mxu0 0.0
    %422 = vmatpush.msra.mxu0 0.0
    %423 = vmatpush.msra.mxu0 0.0
    %424 = vmatpush.msra.mxu0 0.0
    %425 = vmatpush.msra.mxu0 0.0
    %426 = vmatpush.msra.mxu0 0.0
    %427 = vmatpush.msra.mxu0 0.0
    %428 = vmatpush.msra.mxu0 0.0
    %429 = vmatpush.msra.mxu0 0.0
    %430 = vmatpush.msra.mxu0 0.0
    %431 = vmatpush.msra.mxu0 0.0
    %432 = vmatpush.msra.mxu0 0.0
    %433 = vmatpush.msra.mxu0 %v405
    %434 = vmatpush.msra.mxu0 %v404
    %435 = vmatpush.msra.mxu0 %v403
    %436 = vmatpush.msra.mxu0 %v402
    %437 = vmatmul.f32.gmra.mxu0 %v419
    %v438 = vpop.f32.mrf.mxu0
    %v439 = vadd.f32 0.0, %v438
    %440 = vdwg.mxu0
    %v441 = vadd.f32 %v416, %v439
    %v442 = vld [vmem:[#allocation3 + $0x38] sm:$0xff]
    %v443 = vld [vmem:[#allocation8] sm:$0xff]
    %v445 = vsel %vm295, %v443, 0
    %447 = vmatpush.msra.mxu0 0.0
    %448 = vmatpush.msra.mxu0 0.0
    %449 = vmatpush.msra.mxu0 0.0
    %450 = vmatpush.msra.mxu0 0.0
    %451 = vmatpush.msra.mxu0 0.0
    %452 = vmatpush.msra.mxu0 0.0
    %453 = vmatpush.msra.mxu0 0.0
    %454 = vmatpush.msra.mxu0 0.0
    %455 = vmatpush.msra.mxu0 0.0
    %456 = vmatpush.msra.mxu0 0.0
    %457 = vmatpush.msra.mxu0 0.0
    %458 = vmatpush.msra.mxu0 0.0
    %459 = vmatpush.msra.mxu0 %v409
    %460 = vmatpush.msra.mxu0 %v408
    %461 = vmatpush.msra.mxu0 %v407
    %462 = vmatpush.msra.mxu0 %v406
    %463 = vmatmul.f32.gmra.mxu0 %v445
    %v464 = vpop.f32.mrf.mxu0
    %v465 = vadd.f32 0.0, %v464
    %466 = vdwg.mxu0
    %v467 = vadd.f32 %v442, %v465
    %v468 = vld [vmem:[#allocation7] sm:$0xff]
    %v469 = vxor.u32 %v441, 2147483648
    %v470 = vmul.f32 %v469, 1.442695
    %v471 = vpow.pop %v470
    %v472 = vadd.f32 %v471, 1.0
    %v473 = vrcp.pop %v472
    %v474 = vmul.f32 %v472, %v473
    %v475 = vsub.f32 1.0, %v474
    %v476 = vmul.f32 %v473, %v475
    %v477 = vadd.f32 %v473, %v476
    %vm478 = vweird.f32 %v472
    %vm479 = vweird.f32 %v473
    %vm480 = vmor %vm478, %vm479
    %v481 = vsel %vm480, %v473, %v477
    %v482 = vand.u32 2147483647, %v472
    %vm483 = vcmp.eq.f32.partialorder %v482, 8.507059e+37
    %v484 = vand.u32 %v472, 2147483648
    %v485 = vor.u32 1.1754944e-38, %v484
    %v486 = vsel %vm483, %v485, %v481
    %v487 = vmul.f32 1.0, %v486
    %v488 = vtanh.pop %v441
    %490 = vrot.lane.b32.xlu0 %v468, 32
    %v491 = vpop.permute.xlu0 %490
    %v493 = vmul.f32 %v487, %v491
    %495 = vrot.lane.b32.xlu0 %v488, 64
    %v496 = vpop.permute.xlu0 %495
    %v498 = vmul.f32 %v487, %v496
    %500 = vrot.lane.b32.xlu0 %v498, 32
    %v501 = vpop.permute.xlu0 %500
    %v503 = vadd.f32 %v493, %v501
    %v504 = vtanh.pop %v503
    %506 = vrot.lane.b32.xlu0 %v504, 64
    %v507 = vpop.permute.xlu0 %506
    %v509 = vmul.f32 %v487, %v507
    %v510 = vld [vmem:[#allocation9] sm:$0xff]
    %v511 = vxor.u32 %v467, 2147483648
    %v512 = vmul.f32 %v511, 1.442695
    %v513 = vpow.pop %v512
    %v514 = vadd.f32 %v513, 1.0
    %v515 = vrcp.pop %v514
    %v516 = vmul.f32 %v514, %v515
    %v517 = vsub.f32 1.0, %v516
    %v518 = vmul.f32 %v515, %v517
    %v519 = vadd.f32 %v515, %v518
    %vm520 = vweird.f32 %v514
    %vm521 = vweird.f32 %v515
    %vm522 = vmor %vm520, %vm521
    %v523 = vsel %vm522, %v515, %v519
    %v524 = vand.u32 2147483647, %v514
    %vm525 = vcmp.eq.f32.partialorder %v524, 8.507059e+37
    %v526 = vand.u32 %v514, 2147483648
    %v527 = vor.u32 1.1754944e-38, %v526
    %v528 = vsel %vm525, %v527, %v523
    %v529 = vmul.f32 1.0, %v528
    %v530 = vtanh.pop %v467
    %532 = vrot.lane.b32.xlu0 %v510, 32
    %v533 = vpop.permute.xlu0 %532
    %v535 = vmul.f32 %v529, %v533
    %537 = vrot.lane.b32.xlu0 %v530, 64
    %v538 = vpop.permute.xlu0 %537
    %v540 = vmul.f32 %v529, %v538
    %542 = vrot.lane.b32.xlu0 %v540, 32
    %v543 = vpop.permute.xlu0 %542
    %v545 = vadd.f32 %v535, %v543
    %v546 = vtanh.pop %v545
    %548 = vrot.lane.b32.xlu0 %v546, 64
    %v549 = vpop.permute.xlu0 %548
    %v551 = vmul.f32 %v529, %v549
    %553 = vset.pattern.permute.xlu0 0
    %554 = vperm.xlu0 %553, %v414
    %v555 = vpop.permute.xlu0 %554
    %v557 = vmul.f32 %v555, %v509
    %559 = vrot.lane.b32.xlu0 %v557, 32
    %v560 = vpop.permute.xlu0 %559
    %562 = vst.msk [vmem:[#allocation6] sm:$0xff] %vm295, %v560
    %v563 = vmul.f32 %v555, %v503
    %565 = vrot.lane.b32.xlu0 %v563, 96
    %v566 = vpop.permute.xlu0 %565
    %568 = vst.msk [vmem:[#allocation7] sm:$0xff] %vm295, %v566
    %570 = vset.pattern.permute.xlu0 0
    %571 = vperm.xlu0 %570, %v415
    %v572 = vpop.permute.xlu0 %571
    %v574 = vmul.f32 %v572, %v551
    %576 = vrot.lane.b32.xlu0 %v574, 32
    %v577 = vpop.permute.xlu0 %576
    %579 = vst.msk [vmem:[#allocation8] sm:$0xff] %vm295, %v577
    %v580 = vmul.f32 %v572, %v545
    %582 = vrot.lane.b32.xlu0 %v580, 96
    %v583 = vpop.permute.xlu0 %582
    %585 = vst.msk [vmem:[#allocation9] sm:$0xff] %vm295, %v583
    %586 = vst.msk [vmem:[#allocation4] sm:$0xff] %vm295, %v560
    %587 = vst.msk [vmem:[#allocation5 + $0x38] sm:$0xff] %vm295, %v577
    %v588 = vld [vmem:[%s1 + $0x8] sm:$0xff]
    %v589 = vld [vmem:[%s1 + $0x30] sm:$0xff]
    %v590 = vld [vmem:[#allocation2 + $0x8] sm:$0xff]
    %v591 = vld [vmem:[#allocation6] sm:$0xff]
    %v593 = vsel %vm295, %v591, 0
    %595 = vmatpush.msra.mxu0 0.0
    %596 = vmatpush.msra.mxu0 0.0
    %597 = vmatpush.msra.mxu0 0.0
    %598 = vmatpush.msra.mxu0 0.0
    %599 = vmatpush.msra.mxu0 0.0
    %600 = vmatpush.msra.mxu0 0.0
    %601 = vmatpush.msra.mxu0 0.0
    %602 = vmatpush.msra.mxu0 0.0
    %603 = vmatpush.msra.mxu0 0.0
    %604 = vmatpush.msra.mxu0 0.0
    %605 = vmatpush.msra.mxu0 0.0
    %606 = vmatpush.msra.mxu0 0.0
    %607 = vmatpush.msra.mxu0 %v405
    %608 = vmatpush.msra.mxu0 %v404
    %609 = vmatpush.msra.mxu0 %v403
    %610 = vmatpush.msra.mxu0 %v402
    %611 = vmatmul.f32.gmra.mxu0 %v593
    %v612 = vpop.f32.mrf.mxu0
    %v613 = vadd.f32 0.0, %v612
    %614 = vdwg.mxu0
    %v615 = vadd.f32 %v590, %v613
    %v616 = vld [vmem:[#allocation3 + $0x30] sm:$0xff]
    %v617 = vld [vmem:[#allocation8] sm:$0xff]
    %v619 = vsel %vm295, %v617, 0
    %621 = vmatpush.msra.mxu0 0.0
    %622 = vmatpush.msra.mxu0 0.0
    %623 = vmatpush.msra.mxu0 0.0
    %624 = vmatpush.msra.mxu0 0.0
    %625 = vmatpush.msra.mxu0 0.0
    %626 = vmatpush.msra.mxu0 0.0
    %627 = vmatpush.msra.mxu0 0.0
    %628 = vmatpush.msra.mxu0 0.0
    %629 = vmatpush.msra.mxu0 0.0
    %630 = vmatpush.msra.mxu0 0.0
    %631 = vmatpush.msra.mxu0 0.0
    %632 = vmatpush.msra.mxu0 0.0
    %633 = vmatpush.msra.mxu0 %v409
    %634 = vmatpush.msra.mxu0 %v408
    %635 = vmatpush.msra.mxu0 %v407
    %636 = vmatpush.msra.mxu0 %v406
    %637 = vmatmul.f32.gmra.mxu0 %v619
    %v638 = vpop.f32.mrf.mxu0
    %v639 = vadd.f32 0.0, %v638
    %640 = vdwg.mxu0
    %v641 = vadd.f32 %v616, %v639
    %v642 = vld [vmem:[#allocation7] sm:$0xff]
    %v643 = vxor.u32 %v615, 2147483648
    %v644 = vmul.f32 %v643, 1.442695
    %v645 = vpow.pop %v644
    %v646 = vadd.f32 %v645, 1.0
    %v647 = vrcp.pop %v646
    %v648 = vmul.f32 %v646, %v647
    %v649 = vsub.f32 1.0, %v648
    %v650 = vmul.f32 %v647, %v649
    %v651 = vadd.f32 %v647, %v650
    %vm652 = vweird.f32 %v646
    %vm653 = vweird.f32 %v647
    %vm654 = vmor %vm652, %vm653
    %v655 = vsel %vm654, %v647, %v651
    %v656 = vand.u32 2147483647, %v646
    %vm657 = vcmp.eq.f32.partialorder %v656, 8.507059e+37
    %v658 = vand.u32 %v646, 2147483648
    %v659 = vor.u32 1.1754944e-38, %v658
    %v660 = vsel %vm657, %v659, %v655
    %v661 = vmul.f32 1.0, %v660
    %v662 = vtanh.pop %v615
    %664 = vrot.lane.b32.xlu0 %v642, 32
    %v665 = vpop.permute.xlu0 %664
    %v667 = vmul.f32 %v661, %v665
    %669 = vrot.lane.b32.xlu0 %v662, 64
    %v670 = vpop.permute.xlu0 %669
    %v672 = vmul.f32 %v661, %v670
    %674 = vrot.lane.b32.xlu0 %v672, 32
    %v675 = vpop.permute.xlu0 %674
    %v677 = vadd.f32 %v667, %v675
    %v678 = vtanh.pop %v677
    %680 = vrot.lane.b32.xlu0 %v678, 64
    %v681 = vpop.permute.xlu0 %680
    %v683 = vmul.f32 %v661, %v681
    %v684 = vld [vmem:[#allocation9] sm:$0xff]
    %v685 = vxor.u32 %v641, 2147483648
    %v686 = vmul.f32 %v685, 1.442695
    %v687 = vpow.pop %v686
    %v688 = vadd.f32 %v687, 1.0
    %v689 = vrcp.pop %v688
    %v690 = vmul.f32 %v688, %v689
    %v691 = vsub.f32 1.0, %v690
    %v692 = vmul.f32 %v689, %v691
    %v693 = vadd.f32 %v689, %v692
    %vm694 = vweird.f32 %v688
    %vm695 = vweird.f32 %v689
    %vm696 = vmor %vm694, %vm695
    %v697 = vsel %vm696, %v689, %v693
    %v698 = vand.u32 2147483647, %v688
    %vm699 = vcmp.eq.f32.partialorder %v698, 8.507059e+37
    %v700 = vand.u32 %v688, 2147483648
    %v701 = vor.u32 1.1754944e-38, %v700
    %v702 = vsel %vm699, %v701, %v697
    %v703 = vmul.f32 1.0, %v702
    %v704 = vtanh.pop %v641
    %706 = vrot.lane.b32.xlu0 %v684, 32
    %v707 = vpop.permute.xlu0 %706
    %v709 = vmul.f32 %v703, %v707
    %711 = vrot.lane.b32.xlu0 %v704, 64
    %v712 = vpop.permute.xlu0 %711
    %v714 = vmul.f32 %v703, %v712
    %716 = vrot.lane.b32.xlu0 %v714, 32
    %v717 = vpop.permute.xlu0 %716
    %v719 = vadd.f32 %v709, %v717
    %v720 = vtanh.pop %v719
    %722 = vrot.lane.b32.xlu0 %v720, 64
    %v723 = vpop.permute.xlu0 %722
    %v725 = vmul.f32 %v703, %v723
    %727 = vset.pattern.permute.xlu0 0
    %728 = vperm.xlu0 %727, %v588
    %v729 = vpop.permute.xlu0 %728
    %v731 = vmul.f32 %v729, %v683
    %733 = vrot.lane.b32.xlu0 %v731, 32
    %v734 = vpop.permute.xlu0 %733
    %736 = vst.msk [vmem:[#allocation6] sm:$0xff] %vm295, %v734
    %v737 = vmul.f32 %v729, %v677
    %739 = vrot.lane.b32.xlu0 %v737, 96
    %v740 = vpop.permute.xlu0 %739
    %742 = vst.msk [vmem:[#allocation7] sm:$0xff] %vm295, %v740
    %744 = vset.pattern.permute.xlu0 0
    %745 = vperm.xlu0 %744, %v589
    %v746 = vpop.permute.xlu0 %745
    %v748 = vmul.f32 %v746, %v725
    %750 = vrot.lane.b32.xlu0 %v748, 32
    %v751 = vpop.permute.xlu0 %750
    %753 = vst.msk [vmem:[#allocation8] sm:$0xff] %vm295, %v751
    %v754 = vmul.f32 %v746, %v719
    %756 = vrot.lane.b32.xlu0 %v754, 96
    %v757 = vpop.permute.xlu0 %756
    %759 = vst.msk [vmem:[#allocation9] sm:$0xff] %vm295, %v757
    %760 = vst.msk [vmem:[#allocation4 + $0x8] sm:$0xff] %vm295, %v734
    %761 = vst.msk [vmem:[#allocation5 + $0x30] sm:$0xff] %vm295, %v751
    %v762 = vld [vmem:[%s1 + $0x10] sm:$0xff]
    %v763 = vld [vmem:[%s1 + $0x28] sm:$0xff]
    %v764 = vld [vmem:[#allocation2 + $0x10] sm:$0xff]
    %v765 = vld [vmem:[#allocation6] sm:$0xff]
    %v767 = vsel %vm295, %v765, 0
    %769 = vmatpush.msra.mxu0 0.0
    %770 = vmatpush.msra.mxu0 0.0
    %771 = vmatpush.msra.mxu0 0.0
    %772 = vmatpush.msra.mxu0 0.0
    %773 = vmatpush.msra.mxu0 0.0
    %774 = vmatpush.msra.mxu0 0.0
    %775 = vmatpush.msra.mxu0 0.0
    %776 = vmatpush.msra.mxu0 0.0
    %777 = vmatpush.msra.mxu0 0.0
    %778 = vmatpush.msra.mxu0 0.0
    %779 = vmatpush.msra.mxu0 0.0
    %780 = vmatpush.msra.mxu0 0.0
    %781 = vmatpush.msra.mxu0 %v405
    %782 = vmatpush.msra.mxu0 %v404
    %783 = vmatpush.msra.mxu0 %v403
    %784 = vmatpush.msra.mxu0 %v402
    %785 = vmatmul.f32.gmra.mxu0 %v767
    %v786 = vpop.f32.mrf.mxu0
    %v787 = vadd.f32 0.0, %v786
    %788 = vdwg.mxu0
    %v789 = vadd.f32 %v764, %v787
    %v790 = vld [vmem:[#allocation3 + $0x28] sm:$0xff]
    %v791 = vld [vmem:[#allocation8] sm:$0xff]
    %v793 = vsel %vm295, %v791, 0
    %795 = vmatpush.msra.mxu0 0.0
    %796 = vmatpush.msra.mxu0 0.0
    %797 = vmatpush.msra.mxu0 0.0
    %798 = vmatpush.msra.mxu0 0.0
    %799 = vmatpush.msra.mxu0 0.0
    %800 = vmatpush.msra.mxu0 0.0
    %801 = vmatpush.msra.mxu0 0.0
    %802 = vmatpush.msra.mxu0 0.0
    %803 = vmatpush.msra.mxu0 0.0
    %804 = vmatpush.msra.mxu0 0.0
    %805 = vmatpush.msra.mxu0 0.0
    %806 = vmatpush.msra.mxu0 0.0
    %807 = vmatpush.msra.mxu0 %v409
    %808 = vmatpush.msra.mxu0 %v408
    %809 = vmatpush.msra.mxu0 %v407
    %810 = vmatpush.msra.mxu0 %v406
    %811 = vmatmul.f32.gmra.mxu0 %v793
    %v812 = vpop.f32.mrf.mxu0
    %v813 = vadd.f32 0.0, %v812
    %814 = vdwg.mxu0
    %v815 = vadd.f32 %v790, %v813
    %v816 = vld [vmem:[#allocation7] sm:$0xff]
    %v817 = vxor.u32 %v789, 2147483648
    %v818 = vmul.f32 %v817, 1.442695
    %v819 = vpow.pop %v818
    %v820 = vadd.f32 %v819, 1.0
    %v821 = vrcp.pop %v820
    %v822 = vmul.f32 %v820, %v821
    %v823 = vsub.f32 1.0, %v822
    %v824 = vmul.f32 %v821, %v823
    %v825 = vadd.f32 %v821, %v824
    %vm826 = vweird.f32 %v820
    %vm827 = vweird.f32 %v821
    %vm828 = vmor %vm826, %vm827
    %v829 = vsel %vm828, %v821, %v825
    %v830 = vand.u32 2147483647, %v820
    %vm831 = vcmp.eq.f32.partialorder %v830, 8.507059e+37
    %v832 = vand.u32 %v820, 2147483648
    %v833 = vor.u32 1.1754944e-38, %v832
    %v834 = vsel %vm831, %v833, %v829
    %v835 = vmul.f32 1.0, %v834
    %v836 = vtanh.pop %v789
    %838 = vrot.lane.b32.xlu0 %v816, 32
    %v839 = vpop.permute.xlu0 %838
    %v841 = vmul.f32 %v835, %v839
    %843 = vrot.lane.b32.xlu0 %v836, 64
    %v844 = vpop.permute.xlu0 %843
    %v846 = vmul.f32 %v835, %v844
    %848 = vrot.lane.b32.xlu0 %v846, 32
    %v849 = vpop.permute.xlu0 %848
    %v851 = vadd.f32 %v841, %v849
    %v852 = vtanh.pop %v851
    %854 = vrot.lane.b32.xlu0 %v852, 64
    %v855 = vpop.permute.xlu0 %854
    %v857 = vmul.f32 %v835, %v855
    %v858 = vld [vmem:[#allocation9] sm:$0xff]
    %v859 = vxor.u32 %v815, 2147483648
    %v860 = vmul.f32 %v859, 1.442695
    %v861 = vpow.pop %v860
    %v862 = vadd.f32 %v861, 1.0
    %v863 = vrcp.pop %v862
    %v864 = vmul.f32 %v862, %v863
    %v865 = vsub.f32 1.0, %v864
    %v866 = vmul.f32 %v863, %v865
    %v867 = vadd.f32 %v863, %v866
    %vm868 = vweird.f32 %v862
    %vm869 = vweird.f32 %v863
    %vm870 = vmor %vm868, %vm869
    %v871 = vsel %vm870, %v863, %v867
    %v872 = vand.u32 2147483647, %v862
    %vm873 = vcmp.eq.f32.partialorder %v872, 8.507059e+37
    %v874 = vand.u32 %v862, 2147483648
    %v875 = vor.u32 1.1754944e-38, %v874
    %v876 = vsel %vm873, %v875, %v871
    %v877 = vmul.f32 1.0, %v876
    %v878 = vtanh.pop %v815
    %880 = vrot.lane.b32.xlu0 %v858, 32
    %v881 = vpop.permute.xlu0 %880
    %v883 = vmul.f32 %v877, %v881
    %885 = vrot.lane.b32.xlu0 %v878, 64
    %v886 = vpop.permute.xlu0 %885
    %v888 = vmul.f32 %v877, %v886
    %890 = vrot.lane.b32.xlu0 %v888, 32
    %v891 = vpop.permute.xlu0 %890
    %v893 = vadd.f32 %v883, %v891
    %v894 = vtanh.pop %v893
    %896 = vrot.lane.b32.xlu0 %v894, 64
    %v897 = vpop.permute.xlu0 %896
    %v899 = vmul.f32 %v877, %v897
    %901 = vset.pattern.permute.xlu0 0
    %902 = vperm.xlu0 %901, %v762
    %v903 = vpop.permute.xlu0 %902
    %v905 = vmul.f32 %v903, %v857
    %907 = vrot.lane.b32.xlu0 %v905, 32
    %v908 = vpop.permute.xlu0 %907
    %910 = vst.msk [vmem:[#allocation6] sm:$0xff] %vm295, %v908
    %v911 = vmul.f32 %v903, %v851
    %913 = vrot.lane.b32.xlu0 %v911, 96
    %v914 = vpop.permute.xlu0 %913
    %916 = vst.msk [vmem:[#allocation7] sm:$0xff] %vm295, %v914
    %918 = vset.pattern.permute.xlu0 0
    %919 = vperm.xlu0 %918, %v763
    %v920 = vpop.permute.xlu0 %919
    %v922 = vmul.f32 %v920, %v899
    %924 = vrot.lane.b32.xlu0 %v922, 32
    %v925 = vpop.permute.xlu0 %924
    %927 = vst.msk [vmem:[#allocation8] sm:$0xff] %vm295, %v925
    %v928 = vmul.f32 %v920, %v893
    %930 = vrot.lane.b32.xlu0 %v928, 96
    %v931 = vpop.permute.xlu0 %930
    %933 = vst.msk [vmem:[#allocation9] sm:$0xff] %vm295, %v931
    %934 = vst.msk [vmem:[#allocation4 + $0x10] sm:$0xff] %vm295, %v908
    %935 = vst.msk [vmem:[#allocation5 + $0x28] sm:$0xff] %vm295, %v925
    %v936 = vld [vmem:[%s1 + $0x18] sm:$0xff]
    %v937 = vld [vmem:[%s1 + $0x20] sm:$0xff]
    %v938 = vld [vmem:[#allocation2 + $0x18] sm:$0xff]
    %v939 = vld [vmem:[#allocation6] sm:$0xff]
    %v941 = vsel %vm295, %v939, 0
    %943 = vmatpush.msra.mxu0 0.0
    %944 = vmatpush.msra.mxu0 0.0
    %945 = vmatpush.msra.mxu0 0.0
    %946 = vmatpush.msra.mxu0 0.0
    %947 = vmatpush.msra.mxu0 0.0
    %948 = vmatpush.msra.mxu0 0.0
    %949 = vmatpush.msra.mxu0 0.0
    %950 = vmatpush.msra.mxu0 0.0
    %951 = vmatpush.msra.mxu0 0.0
    %952 = vmatpush.msra.mxu0 0.0
    %953 = vmatpush.msra.mxu0 0.0
    %954 = vmatpush.msra.mxu0 0.0
    %955 = vmatpush.msra.mxu0 %v405
    %956 = vmatpush.msra.mxu0 %v404
    %957 = vmatpush.msra.mxu0 %v403
    %958 = vmatpush.msra.mxu0 %v402
    %959 = vmatmul.f32.gmra.mxu0 %v941
    %v960 = vpop.f32.mrf.mxu0
    %v961 = vadd.f32 0.0, %v960
    %962 = vdwg.mxu0
    %v963 = vadd.f32 %v938, %v961
    %v964 = vld [vmem:[#allocation3 + $0x20] sm:$0xff]
    %v965 = vld [vmem:[#allocation8] sm:$0xff]
    %v967 = vsel %vm295, %v965, 0
    %969 = vmatpush.msra.mxu0 0.0
    %970 = vmatpush.msra.mxu0 0.0
    %971 = vmatpush.msra.mxu0 0.0
    %972 = vmatpush.msra.mxu0 0.0
    %973 = vmatpush.msra.mxu0 0.0
    %974 = vmatpush.msra.mxu0 0.0
    %975 = vmatpush.msra.mxu0 0.0
    %976 = vmatpush.msra.mxu0 0.0
    %977 = vmatpush.msra.mxu0 0.0
    %978 = vmatpush.msra.mxu0 0.0
    %979 = vmatpush.msra.mxu0 0.0
    %980 = vmatpush.msra.mxu0 0.0
    %981 = vmatpush.msra.mxu0 %v409
    %982 = vmatpush.msra.mxu0 %v408
    %983 = vmatpush.msra.mxu0 %v407
    %984 = vmatpush.msra.mxu0 %v406
    %985 = vmatmul.f32.gmra.mxu0 %v967
    %v986 = vpop.f32.mrf.mxu0
    %v987 = vadd.f32 0.0, %v986
    %988 = vdwg.mxu0
    %v989 = vadd.f32 %v964, %v987
    %v990 = vld [vmem:[#allocation7] sm:$0xff]
    %v991 = vxor.u32 %v963, 2147483648
    %v992 = vmul.f32 %v991, 1.442695
    %v993 = vpow.pop %v992
    %v994 = vadd.f32 %v993, 1.0
    %v995 = vrcp.pop %v994
    %v996 = vmul.f32 %v994, %v995
    %v997 = vsub.f32 1.0, %v996
    %v998 = vmul.f32 %v995, %v997
    %v999 = vadd.f32 %v995, %v998
    %vm1000 = vweird.f32 %v994
    %vm1001 = vweird.f32 %v995
    %vm1002 = vmor %vm1000, %vm1001
    %v1003 = vsel %vm1002, %v995, %v999
    %v1004 = vand.u32 2147483647, %v994
    %vm1005 = vcmp.eq.f32.partialorder %v1004, 8.507059e+37
    %v1006 = vand.u32 %v994, 2147483648
    %v1007 = vor.u32 1.1754944e-38, %v1006
    %v1008 = vsel %vm1005, %v1007, %v1003
    %v1009 = vmul.f32 1.0, %v1008
    %v1010 = vtanh.pop %v963
    %1012 = vrot.lane.b32.xlu0 %v990, 32
    %v1013 = vpop.permute.xlu0 %1012
    %v1015 = vmul.f32 %v1009, %v1013
    %1017 = vrot.lane.b32.xlu0 %v1010, 64
    %v1018 = vpop.permute.xlu0 %1017
    %v1020 = vmul.f32 %v1009, %v1018
    %1022 = vrot.lane.b32.xlu0 %v1020, 32
    %v1023 = vpop.permute.xlu0 %1022
    %v1025 = vadd.f32 %v1015, %v1023
    %v1026 = vtanh.pop %v1025
    %1028 = vrot.lane.b32.xlu0 %v1026, 64
    %v1029 = vpop.permute.xlu0 %1028
    %v1031 = vmul.f32 %v1009, %v1029
    %v1032 = vld [vmem:[#allocation9] sm:$0xff]
    %v1033 = vxor.u32 %v989, 2147483648
    %v1034 = vmul.f32 %v1033, 1.442695
    %v1035 = vpow.pop %v1034
    %v1036 = vadd.f32 %v1035, 1.0
    %v1037 = vrcp.pop %v1036
    %v1038 = vmul.f32 %v1036, %v1037
    %v1039 = vsub.f32 1.0, %v1038
    %v1040 = vmul.f32 %v1037, %v1039
    %v1041 = vadd.f32 %v1037, %v1040
    %vm1042 = vweird.f32 %v1036
    %vm1043 = vweird.f32 %v1037
    %vm1044 = vmor %vm1042, %vm1043
    %v1045 = vsel %vm1044, %v1037, %v1041
    %v1046 = vand.u32 2147483647, %v1036
    %vm1047 = vcmp.eq.f32.partialorder %v1046, 8.507059e+37
    %v1048 = vand.u32 %v1036, 2147483648
    %v1049 = vor.u32 1.1754944e-38, %v1048
    %v1050 = vsel %vm1047, %v1049, %v1045
    %v1051 = vmul.f32 1.0, %v1050
    %v1052 = vtanh.pop %v989
    %1054 = vrot.lane.b32.xlu0 %v1032, 32
    %v1055 = vpop.permute.xlu0 %1054
    %v1057 = vmul.f32 %v1051, %v1055
    %1059 = vrot.lane.b32.xlu0 %v1052, 64
    %v1060 = vpop.permute.xlu0 %1059
    %v1062 = vmul.f32 %v1051, %v1060
    %1064 = vrot.lane.b32.xlu0 %v1062, 32
    %v1065 = vpop.permute.xlu0 %1064
    %v1067 = vadd.f32 %v1057, %v1065
    %v1068 = vtanh.pop %v1067
    %1070 = vrot.lane.b32.xlu0 %v1068, 64
    %v1071 = vpop.permute.xlu0 %1070
    %v1073 = vmul.f32 %v1051, %v1071
    %1075 = vset.pattern.permute.xlu0 0
    %1076 = vperm.xlu0 %1075, %v936
    %v1077 = vpop.permute.xlu0 %1076
    %v1079 = vmul.f32 %v1077, %v1031
    %1081 = vrot.lane.b32.xlu0 %v1079, 32
    %v1082 = vpop.permute.xlu0 %1081
    %1084 = vst.msk [vmem:[#allocation6] sm:$0xff] %vm295, %v1082
    %v1085 = vmul.f32 %v1077, %v1025
    %1087 = vrot.lane.b32.xlu0 %v1085, 96
    %v1088 = vpop.permute.xlu0 %1087
    %1090 = vst.msk [vmem:[#allocation7] sm:$0xff] %vm295, %v1088
    %1092 = vset.pattern.permute.xlu0 0
    %1093 = vperm.xlu0 %1092, %v937
    %v1094 = vpop.permute.xlu0 %1093
    %v1096 = vmul.f32 %v1094, %v1073
    %1098 = vrot.lane.b32.xlu0 %v1096, 32
    %v1099 = vpop.permute.xlu0 %1098
    %1101 = vst.msk [vmem:[#allocation8] sm:$0xff] %vm295, %v1099
    %v1102 = vmul.f32 %v1094, %v1067
    %1104 = vrot.lane.b32.xlu0 %v1102, 96
    %v1105 = vpop.permute.xlu0 %1104
    %1107 = vst.msk [vmem:[#allocation9] sm:$0xff] %vm295, %v1105
    %1108 = vst.msk [vmem:[#allocation4 + $0x18] sm:$0xff] %vm295, %v1082
    %1109 = vst.msk [vmem:[#allocation5 + $0x20] sm:$0xff] %vm295, %v1099
    %v1110 = vld [vmem:[%s1 + $0x20] sm:$0xff]
    %v1111 = vld [vmem:[%s1 + $0x18] sm:$0xff]
    %v1112 = vld [vmem:[#allocation2 + $0x20] sm:$0xff]
    %v1113 = vld [vmem:[#allocation6] sm:$0xff]
    %v1115 = vsel %vm295, %v1113, 0
    %1117 = vmatpush.msra.mxu0 0.0
    %1118 = vmatpush.msra.mxu0 0.0
    %1119 = vmatpush.msra.mxu0 0.0
    %1120 = vmatpush.msra.mxu0 0.0
    %1121 = vmatpush.msra.mxu0 0.0
    %1122 = vmatpush.msra.mxu0 0.0
    %1123 = vmatpush.msra.mxu0 0.0
    %1124 = vmatpush.msra.mxu0 0.0
    %1125 = vmatpush.msra.mxu0 0.0
    %1126 = vmatpush.msra.mxu0 0.0
    %1127 = vmatpush.msra.mxu0 0.0
    %1128 = vmatpush.msra.mxu0 0.0
    %1129 = vmatpush.msra.mxu0 %v405
    %1130 = vmatpush.msra.mxu0 %v404
    %1131 = vmatpush.msra.mxu0 %v403
    %1132 = vmatpush.msra.mxu0 %v402
    %1133 = vmatmul.f32.gmra.mxu0 %v1115
    %v1134 = vpop.f32.mrf.mxu0
    %v1135 = vadd.f32 0.0, %v1134
    %1136 = vdwg.mxu0
    %v1137 = vadd.f32 %v1112, %v1135
    %v1138 = vld [vmem:[#allocation3 + $0x18] sm:$0xff]
    %v1139 = vld [vmem:[#allocation8] sm:$0xff]
    %v1141 = vsel %vm295, %v1139, 0
    %1143 = vmatpush.msra.mxu0 0.0
    %1144 = vmatpush.msra.mxu0 0.0
    %1145 = vmatpush.msra.mxu0 0.0
    %1146 = vmatpush.msra.mxu0 0.0
    %1147 = vmatpush.msra.mxu0 0.0
    %1148 = vmatpush.msra.mxu0 0.0
    %1149 = vmatpush.msra.mxu0 0.0
    %1150 = vmatpush.msra.mxu0 0.0
    %1151 = vmatpush.msra.mxu0 0.0
    %1152 = vmatpush.msra.mxu0 0.0
    %1153 = vmatpush.msra.mxu0 0.0
    %1154 = vmatpush.msra.mxu0 0.0
    %1155 = vmatpush.msra.mxu0 %v409
    %1156 = vmatpush.msra.mxu0 %v408
    %1157 = vmatpush.msra.mxu0 %v407
    %1158 = vmatpush.msra.mxu0 %v406
    %1159 = vmatmul.f32.gmra.mxu0 %v1141
    %v1160 = vpop.f32.mrf.mxu0
    %v1161 = vadd.f32 0.0, %v1160
    %1162 = vdwg.mxu0
    %v1163 = vadd.f32 %v1138, %v1161
    %v1164 = vld [vmem:[#allocation7] sm:$0xff]
    %v1165 = vxor.u32 %v1137, 2147483648
    %v1166 = vmul.f32 %v1165, 1.442695
    %v1167 = vpow.pop %v1166
    %v1168 = vadd.f32 %v1167, 1.0
    %v1169 = vrcp.pop %v1168
    %v1170 = vmul.f32 %v1168, %v1169
    %v1171 = vsub.f32 1.0, %v1170
    %v1172 = vmul.f32 %v1169, %v1171
    %v1173 = vadd.f32 %v1169, %v1172
    %vm1174 = vweird.f32 %v1168
    %vm1175 = vweird.f32 %v1169
    %vm1176 = vmor %vm1174, %vm1175
    %v1177 = vsel %vm1176, %v1169, %v1173
    %v1178 = vand.u32 2147483647, %v1168
    %vm1179 = vcmp.eq.f32.partialorder %v1178, 8.507059e+37
    %v1180 = vand.u32 %v1168, 2147483648
    %v1181 = vor.u32 1.1754944e-38, %v1180
    %v1182 = vsel %vm1179, %v1181, %v1177
    %v1183 = vmul.f32 1.0, %v1182
    %v1184 = vtanh.pop %v1137
    %1186 = vrot.lane.b32.xlu0 %v1164, 32
    %v1187 = vpop.permute.xlu0 %1186
    %v1189 = vmul.f32 %v1183, %v1187
    %1191 = vrot.lane.b32.xlu0 %v1184, 64
    %v1192 = vpop.permute.xlu0 %1191
    %v1194 = vmul.f32 %v1183, %v1192
    %1196 = vrot.lane.b32.xlu0 %v1194, 32
    %v1197 = vpop.permute.xlu0 %1196
    %v1199 = vadd.f32 %v1189, %v1197
    %v1200 = vtanh.pop %v1199
    %1202 = vrot.lane.b32.xlu0 %v1200, 64
    %v1203 = vpop.permute.xlu0 %1202
    %v1205 = vmul.f32 %v1183, %v1203
    %v1206 = vld [vmem:[#allocation9] sm:$0xff]
    %v1207 = vxor.u32 %v1163, 2147483648
    %v1208 = vmul.f32 %v1207, 1.442695
    %v1209 = vpow.pop %v1208
    %v1210 = vadd.f32 %v1209, 1.0
    %v1211 = vrcp.pop %v1210
    %v1212 = vmul.f32 %v1210, %v1211
    %v1213 = vsub.f32 1.0, %v1212
    %v1214 = vmul.f32 %v1211, %v1213
    %v1215 = vadd.f32 %v1211, %v1214
    %vm1216 = vweird.f32 %v1210
    %vm1217 = vweird.f32 %v1211
    %vm1218 = vmor %vm1216, %vm1217
    %v1219 = vsel %vm1218, %v1211, %v1215
    %v1220 = vand.u32 2147483647, %v1210
    %vm1221 = vcmp.eq.f32.partialorder %v1220, 8.507059e+37
    %v1222 = vand.u32 %v1210, 2147483648
    %v1223 = vor.u32 1.1754944e-38, %v1222
    %v1224 = vsel %vm1221, %v1223, %v1219
    %v1225 = vmul.f32 1.0, %v1224
    %v1226 = vtanh.pop %v1163
    %1228 = vrot.lane.b32.xlu0 %v1206, 32
    %v1229 = vpop.permute.xlu0 %1228
    %v1231 = vmul.f32 %v1225, %v1229
    %1233 = vrot.lane.b32.xlu0 %v1226, 64
    %v1234 = vpop.permute.xlu0 %1233
    %v1236 = vmul.f32 %v1225, %v1234
    %1238 = vrot.lane.b32.xlu0 %v1236, 32
    %v1239 = vpop.permute.xlu0 %1238
    %v1241 = vadd.f32 %v1231, %v1239
    %v1242 = vtanh.pop %v1241
    %1244 = vrot.lane.b32.xlu0 %v1242, 64
    %v1245 = vpop.permute.xlu0 %1244
    %v1247 = vmul.f32 %v1225, %v1245
    %1249 = vset.pattern.permute.xlu0 0
    %1250 = vperm.xlu0 %1249, %v1110
    %v1251 = vpop.permute.xlu0 %1250
    %v1253 = vmul.f32 %v1251, %v1205
    %1255 = vrot.lane.b32.xlu0 %v1253, 32
    %v1256 = vpop.permute.xlu0 %1255
    %1258 = vst.msk [vmem:[#allocation6] sm:$0xff] %vm295, %v1256
    %v1259 = vmul.f32 %v1251, %v1199
    %1261 = vrot.lane.b32.xlu0 %v1259, 96
    %v1262 = vpop.permute.xlu0 %1261
    %1264 = vst.msk [vmem:[#allocation7] sm:$0xff] %vm295, %v1262
    %1266 = vset.pattern.permute.xlu0 0
    %1267 = vperm.xlu0 %1266, %v1111
    %v1268 = vpop.permute.xlu0 %1267
    %v1270 = vmul.f32 %v1268, %v1247
    %1272 = vrot.lane.b32.xlu0 %v1270, 32
    %v1273 = vpop.permute.xlu0 %1272
    %1275 = vst.msk [vmem:[#allocation8] sm:$0xff] %vm295, %v1273
    %v1276 = vmul.f32 %v1268, %v1241
    %1278 = vrot.lane.b32.xlu0 %v1276, 96
    %v1279 = vpop.permute.xlu0 %1278
    %1281 = vst.msk [vmem:[#allocation9] sm:$0xff] %vm295, %v1279
    %1282 = vst.msk [vmem:[#allocation4 + $0x20] sm:$0xff] %vm295, %v1256
    %1283 = vst.msk [vmem:[#allocation5 + $0x18] sm:$0xff] %vm295, %v1273
    %v1284 = vld [vmem:[%s1 + $0x28] sm:$0xff]
    %v1285 = vld [vmem:[%s1 + $0x10] sm:$0xff]
    %v1286 = vld [vmem:[#allocation2 + $0x28] sm:$0xff]
    %v1287 = vld [vmem:[#allocation6] sm:$0xff]
    %v1289 = vsel %vm295, %v1287, 0
    %1291 = vmatpush.msra.mxu0 0.0
    %1292 = vmatpush.msra.mxu0 0.0
    %1293 = vmatpush.msra.mxu0 0.0
    %1294 = vmatpush.msra.mxu0 0.0
    %1295 = vmatpush.msra.mxu0 0.0
    %1296 = vmatpush.msra.mxu0 0.0
    %1297 = vmatpush.msra.mxu0 0.0
    %1298 = vmatpush.msra.mxu0 0.0
    %1299 = vmatpush.msra.mxu0 0.0
    %1300 = vmatpush.msra.mxu0 0.0
    %1301 = vmatpush.msra.mxu0 0.0
    %1302 = vmatpush.msra.mxu0 0.0
    %1303 = vmatpush.msra.mxu0 %v405
    %1304 = vmatpush.msra.mxu0 %v404
    %1305 = vmatpush.msra.mxu0 %v403
    %1306 = vmatpush.msra.mxu0 %v402
    %1307 = vmatmul.f32.gmra.mxu0 %v1289
    %v1308 = vpop.f32.mrf.mxu0
    %v1309 = vadd.f32 0.0, %v1308
    %1310 = vdwg.mxu0
    %v1311 = vadd.f32 %v1286, %v1309
    %v1312 = vld [vmem:[#allocation3 + $0x10] sm:$0xff]
    %v1313 = vld [vmem:[#allocation8] sm:$0xff]
    %v1315 = vsel %vm295, %v1313, 0
    %1317 = vmatpush.msra.mxu0 0.0
    %1318 = vmatpush.msra.mxu0 0.0
    %1319 = vmatpush.msra.mxu0 0.0
    %1320 = vmatpush.msra.mxu0 0.0
    %1321 = vmatpush.msra.mxu0 0.0
    %1322 = vmatpush.msra.mxu0 0.0
    %1323 = vmatpush.msra.mxu0 0.0
    %1324 = vmatpush.msra.mxu0 0.0
    %1325 = vmatpush.msra.mxu0 0.0
    %1326 = vmatpush.msra.mxu0 0.0
    %1327 = vmatpush.msra.mxu0 0.0
    %1328 = vmatpush.msra.mxu0 0.0
    %1329 = vmatpush.msra.mxu0 %v409
    %1330 = vmatpush.msra.mxu0 %v408
    %1331 = vmatpush.msra.mxu0 %v407
    %1332 = vmatpush.msra.mxu0 %v406
    %1333 = vmatmul.f32.gmra.mxu0 %v1315
    %v1334 = vpop.f32.mrf.mxu0
    %v1335 = vadd.f32 0.0, %v1334
    %1336 = vdwg.mxu0
    %v1337 = vadd.f32 %v1312, %v1335
    %v1338 = vld [vmem:[#allocation7] sm:$0xff]
    %v1339 = vxor.u32 %v1311, 2147483648
    %v1340 = vmul.f32 %v1339, 1.442695
    %v1341 = vpow.pop %v1340
    %v1342 = vadd.f32 %v1341, 1.0
    %v1343 = vrcp.pop %v1342
    %v1344 = vmul.f32 %v1342, %v1343
    %v1345 = vsub.f32 1.0, %v1344
    %v1346 = vmul.f32 %v1343, %v1345
    %v1347 = vadd.f32 %v1343, %v1346
    %vm1348 = vweird.f32 %v1342
    %vm1349 = vweird.f32 %v1343
    %vm1350 = vmor %vm1348, %vm1349
    %v1351 = vsel %vm1350, %v1343, %v1347
    %v1352 = vand.u32 2147483647, %v1342
    %vm1353 = vcmp.eq.f32.partialorder %v1352, 8.507059e+37
    %v1354 = vand.u32 %v1342, 2147483648
    %v1355 = vor.u32 1.1754944e-38, %v1354
    %v1356 = vsel %vm1353, %v1355, %v1351
    %v1357 = vmul.f32 1.0, %v1356
    %v1358 = vtanh.pop %v1311
    %1360 = vrot.lane.b32.xlu0 %v1338, 32
    %v1361 = vpop.permute.xlu0 %1360
    %v1363 = vmul.f32 %v1357, %v1361
    %1365 = vrot.lane.b32.xlu0 %v1358, 64
    %v1366 = vpop.permute.xlu0 %1365
    %v1368 = vmul.f32 %v1357, %v1366
    %1370 = vrot.lane.b32.xlu0 %v1368, 32
    %v1371 = vpop.permute.xlu0 %1370
    %v1373 = vadd.f32 %v1363, %v1371
    %v1374 = vtanh.pop %v1373
    %1376 = vrot.lane.b32.xlu0 %v1374, 64
    %v1377 = vpop.permute.xlu0 %1376
    %v1379 = vmul.f32 %v1357, %v1377
    %v1380 = vld [vmem:[#allocation9] sm:$0xff]
    %v1381 = vxor.u32 %v1337, 2147483648
    %v1382 = vmul.f32 %v1381, 1.442695
    %v1383 = vpow.pop %v1382
    %v1384 = vadd.f32 %v1383, 1.0
    %v1385 = vrcp.pop %v1384
    %v1386 = vmul.f32 %v1384, %v1385
    %v1387 = vsub.f32 1.0, %v1386
    %v1388 = vmul.f32 %v1385, %v1387
    %v1389 = vadd.f32 %v1385, %v1388
    %vm1390 = vweird.f32 %v1384
    %vm1391 = vweird.f32 %v1385
    %vm1392 = vmor %vm1390, %vm1391
    %v1393 = vsel %vm1392, %v1385, %v1389
    %v1394 = vand.u32 2147483647, %v1384
    %vm1395 = vcmp.eq.f32.partialorder %v1394, 8.507059e+37
    %v1396 = vand.u32 %v1384, 2147483648
    %v1397 = vor.u32 1.1754944e-38, %v1396
    %v1398 = vsel %vm1395, %v1397, %v1393
    %v1399 = vmul.f32 1.0, %v1398
    %v1400 = vtanh.pop %v1337
    %1402 = vrot.lane.b32.xlu0 %v1380, 32
    %v1403 = vpop.permute.xlu0 %1402
    %v1405 = vmul.f32 %v1399, %v1403
    %1407 = vrot.lane.b32.xlu0 %v1400, 64
    %v1408 = vpop.permute.xlu0 %1407
    %v1410 = vmul.f32 %v1399, %v1408
    %1412 = vrot.lane.b32.xlu0 %v1410, 32
    %v1413 = vpop.permute.xlu0 %1412
    %v1415 = vadd.f32 %v1405, %v1413
    %v1416 = vtanh.pop %v1415
    %1418 = vrot.lane.b32.xlu0 %v1416, 64
    %v1419 = vpop.permute.xlu0 %1418
    %v1421 = vmul.f32 %v1399, %v1419
    %1423 = vset.pattern.permute.xlu0 0
    %1424 = vperm.xlu0 %1423, %v1284
    %v1425 = vpop.permute.xlu0 %1424
    %v1427 = vmul.f32 %v1425, %v1379
    %1429 = vrot.lane.b32.xlu0 %v1427, 32
    %v1430 = vpop.permute.xlu0 %1429
    %1432 = vst.msk [vmem:[#allocation6] sm:$0xff] %vm295, %v1430
    %v1433 = vmul.f32 %v1425, %v1373
    %1435 = vrot.lane.b32.xlu0 %v1433, 96
    %v1436 = vpop.permute.xlu0 %1435
    %1438 = vst.msk [vmem:[#allocation7] sm:$0xff] %vm295, %v1436
    %1440 = vset.pattern.permute.xlu0 0
    %1441 = vperm.xlu0 %1440, %v1285
    %v1442 = vpop.permute.xlu0 %1441
    %v1444 = vmul.f32 %v1442, %v1421
    %1446 = vrot.lane.b32.xlu0 %v1444, 32
    %v1447 = vpop.permute.xlu0 %1446
    %1449 = vst.msk [vmem:[#allocation8] sm:$0xff] %vm295, %v1447
    %v1450 = vmul.f32 %v1442, %v1415
    %1452 = vrot.lane.b32.xlu0 %v1450, 96
    %v1453 = vpop.permute.xlu0 %1452
    %1455 = vst.msk [vmem:[#allocation9] sm:$0xff] %vm295, %v1453
    %1456 = vst.msk [vmem:[#allocation4 + $0x28] sm:$0xff] %vm295, %v1430
    %1457 = vst.msk [vmem:[#allocation5 + $0x10] sm:$0xff] %vm295, %v1447
    %v1458 = vld [vmem:[%s1 + $0x30] sm:$0xff]
    %v1459 = vld [vmem:[%s1 + $0x8] sm:$0xff]
    %v1460 = vld [vmem:[#allocation2 + $0x30] sm:$0xff]
    %v1461 = vld [vmem:[#allocation6] sm:$0xff]
    %v1463 = vsel %vm295, %v1461, 0
    %1465 = vmatpush.msra.mxu0 0.0
    %1466 = vmatpush.msra.mxu0 0.0
    %1467 = vmatpush.msra.mxu0 0.0
    %1468 = vmatpush.msra.mxu0 0.0
    %1469 = vmatpush.msra.mxu0 0.0
    %1470 = vmatpush.msra.mxu0 0.0
    %1471 = vmatpush.msra.mxu0 0.0
    %1472 = vmatpush.msra.mxu0 0.0
    %1473 = vmatpush.msra.mxu0 0.0
    %1474 = vmatpush.msra.mxu0 0.0
    %1475 = vmatpush.msra.mxu0 0.0
    %1476 = vmatpush.msra.mxu0 0.0
    %1477 = vmatpush.msra.mxu0 %v405
    %1478 = vmatpush.msra.mxu0 %v404
    %1479 = vmatpush.msra.mxu0 %v403
    %1480 = vmatpush.msra.mxu0 %v402
    %1481 = vmatmul.f32.gmra.mxu0 %v1463
    %v1482 = vpop.f32.mrf.mxu0
    %v1483 = vadd.f32 0.0, %v1482
    %1484 = vdwg.mxu0
    %v1485 = vadd.f32 %v1460, %v1483
    %v1486 = vld [vmem:[#allocation3 + $0x8] sm:$0xff]
    %v1487 = vld [vmem:[#allocation8] sm:$0xff]
    %v1489 = vsel %vm295, %v1487, 0
    %1491 = vmatpush.msra.mxu0 0.0
    %1492 = vmatpush.msra.mxu0 0.0
    %1493 = vmatpush.msra.mxu0 0.0
    %1494 = vmatpush.msra.mxu0 0.0
    %1495 = vmatpush.msra.mxu0 0.0
    %1496 = vmatpush.msra.mxu0 0.0
    %1497 = vmatpush.msra.mxu0 0.0
    %1498 = vmatpush.msra.mxu0 0.0
    %1499 = vmatpush.msra.mxu0 0.0
    %1500 = vmatpush.msra.mxu0 0.0
    %1501 = vmatpush.msra.mxu0 0.0
    %1502 = vmatpush.msra.mxu0 0.0
    %1503 = vmatpush.msra.mxu0 %v409
    %1504 = vmatpush.msra.mxu0 %v408
    %1505 = vmatpush.msra.mxu0 %v407
    %1506 = vmatpush.msra.mxu0 %v406
    %1507 = vmatmul.f32.gmra.mxu0 %v1489
    %v1508 = vpop.f32.mrf.mxu0
    %v1509 = vadd.f32 0.0, %v1508
    %1510 = vdwg.mxu0
    %v1511 = vadd.f32 %v1486, %v1509
    %v1512 = vld [vmem:[#allocation7] sm:$0xff]
    %v1513 = vxor.u32 %v1485, 2147483648
    %v1514 = vmul.f32 %v1513, 1.442695
    %v1515 = vpow.pop %v1514
    %v1516 = vadd.f32 %v1515, 1.0
    %v1517 = vrcp.pop %v1516
    %v1518 = vmul.f32 %v1516, %v1517
    %v1519 = vsub.f32 1.0, %v1518
    %v1520 = vmul.f32 %v1517, %v1519
    %v1521 = vadd.f32 %v1517, %v1520
    %vm1522 = vweird.f32 %v1516
    %vm1523 = vweird.f32 %v1517
    %vm1524 = vmor %vm1522, %vm1523
    %v1525 = vsel %vm1524, %v1517, %v1521
    %v1526 = vand.u32 2147483647, %v1516
    %vm1527 = vcmp.eq.f32.partialorder %v1526, 8.507059e+37
    %v1528 = vand.u32 %v1516, 2147483648
    %v1529 = vor.u32 1.1754944e-38, %v1528
    %v1530 = vsel %vm1527, %v1529, %v1525
    %v1531 = vmul.f32 1.0, %v1530
    %v1532 = vtanh.pop %v1485
    %1534 = vrot.lane.b32.xlu0 %v1512, 32
    %v1535 = vpop.permute.xlu0 %1534
    %v1537 = vmul.f32 %v1531, %v1535
    %1539 = vrot.lane.b32.xlu0 %v1532, 64
    %v1540 = vpop.permute.xlu0 %1539
    %v1542 = vmul.f32 %v1531, %v1540
    %1544 = vrot.lane.b32.xlu0 %v1542, 32
    %v1545 = vpop.permute.xlu0 %1544
    %v1547 = vadd.f32 %v1537, %v1545
    %v1548 = vtanh.pop %v1547
    %1550 = vrot.lane.b32.xlu0 %v1548, 64
    %v1551 = vpop.permute.xlu0 %1550
    %v1553 = vmul.f32 %v1531, %v1551
    %v1554 = vld [vmem:[#allocation9] sm:$0xff]
    %v1555 = vxor.u32 %v1511, 2147483648
    %v1556 = vmul.f32 %v1555, 1.442695
    %v1557 = vpow.pop %v1556
    %v1558 = vadd.f32 %v1557, 1.0
    %v1559 = vrcp.pop %v1558
    %v1560 = vmul.f32 %v1558, %v1559
    %v1561 = vsub.f32 1.0, %v1560
    %v1562 = vmul.f32 %v1559, %v1561
    %v1563 = vadd.f32 %v1559, %v1562
    %vm1564 = vweird.f32 %v1558
    %vm1565 = vweird.f32 %v1559
    %vm1566 = vmor %vm1564, %vm1565
    %v1567 = vsel %vm1566, %v1559, %v1563
    %v1568 = vand.u32 2147483647, %v1558
    %vm1569 = vcmp.eq.f32.partialorder %v1568, 8.507059e+37
    %v1570 = vand.u32 %v1558, 2147483648
    %v1571 = vor.u32 1.1754944e-38, %v1570
    %v1572 = vsel %vm1569, %v1571, %v1567
    %v1573 = vmul.f32 1.0, %v1572
    %v1574 = vtanh.pop %v1511
    %1576 = vrot.lane.b32.xlu0 %v1554, 32
    %v1577 = vpop.permute.xlu0 %1576
    %v1579 = vmul.f32 %v1573, %v1577
    %1581 = vrot.lane.b32.xlu0 %v1574, 64
    %v1582 = vpop.permute.xlu0 %1581
    %v1584 = vmul.f32 %v1573, %v1582
    %1586 = vrot.lane.b32.xlu0 %v1584, 32
    %v1587 = vpop.permute.xlu0 %1586
    %v1589 = vadd.f32 %v1579, %v1587
    %v1590 = vtanh.pop %v1589
    %1592 = vrot.lane.b32.xlu0 %v1590, 64
    %v1593 = vpop.permute.xlu0 %1592
    %v1595 = vmul.f32 %v1573, %v1593
    %1597 = vset.pattern.permute.xlu0 0
    %1598 = vperm.xlu0 %1597, %v1458
    %v1599 = vpop.permute.xlu0 %1598
    %v1601 = vmul.f32 %v1599, %v1553
    %1603 = vrot.lane.b32.xlu0 %v1601, 32
    %v1604 = vpop.permute.xlu0 %1603
    %1606 = vst.msk [vmem:[#allocation6] sm:$0xff] %vm295, %v1604
    %v1607 = vmul.f32 %v1599, %v1547
    %1609 = vrot.lane.b32.xlu0 %v1607, 96
    %v1610 = vpop.permute.xlu0 %1609
    %1612 = vst.msk [vmem:[#allocation7] sm:$0xff] %vm295, %v1610
    %1614 = vset.pattern.permute.xlu0 0
    %1615 = vperm.xlu0 %1614, %v1459
    %v1616 = vpop.permute.xlu0 %1615
    %v1618 = vmul.f32 %v1616, %v1595
    %1620 = vrot.lane.b32.xlu0 %v1618, 32
    %v1621 = vpop.permute.xlu0 %1620
    %1623 = vst.msk [vmem:[#allocation8] sm:$0xff] %vm295, %v1621
    %v1624 = vmul.f32 %v1616, %v1589
    %1626 = vrot.lane.b32.xlu0 %v1624, 96
    %v1627 = vpop.permute.xlu0 %1626
    %1629 = vst.msk [vmem:[#allocation9] sm:$0xff] %vm295, %v1627
    %1630 = vst.msk [vmem:[#allocation4 + $0x30] sm:$0xff] %vm295, %v1604
    %1631 = vst.msk [vmem:[#allocation5 + $0x8] sm:$0xff] %vm295, %v1621
    %v1632 = vld [vmem:[%s1 + $0x38] sm:$0xff]
    %v1633 = vld [vmem:[%s1] sm:$0xff]
    %v1634 = vld [vmem:[#allocation2 + $0x38] sm:$0xff]
    %v1635 = vld [vmem:[#allocation6] sm:$0xff]
    %v1637 = vsel %vm295, %v1635, 0
    %1639 = vmatpush.msra.mxu0 0.0
    %1640 = vmatpush.msra.mxu0 0.0
    %1641 = vmatpush.msra.mxu0 0.0
    %1642 = vmatpush.msra.mxu0 0.0
    %1643 = vmatpush.msra.mxu0 0.0
    %1644 = vmatpush.msra.mxu0 0.0
    %1645 = vmatpush.msra.mxu0 0.0
    %1646 = vmatpush.msra.mxu0 0.0
    %1647 = vmatpush.msra.mxu0 0.0
    %1648 = vmatpush.msra.mxu0 0.0
    %1649 = vmatpush.msra.mxu0 0.0
    %1650 = vmatpush.msra.mxu0 0.0
    %1651 = vmatpush.msra.mxu0 %v405
    %1652 = vmatpush.msra.mxu0 %v404
    %1653 = vmatpush.msra.mxu0 %v403
    %1654 = vmatpush.msra.mxu0 %v402
    %1655 = vmatmul.f32.gmra.mxu0 %v1637
    %v1656 = vpop.f32.mrf.mxu0
    %v1657 = vadd.f32 0.0, %v1656
    %1658 = vdwg.mxu0
    %v1659 = vadd.f32 %v1634, %v1657
    %v1660 = vld [vmem:[#allocation3] sm:$0xff]
    %v1661 = vld [vmem:[#allocation8] sm:$0xff]
    %v1663 = vsel %vm295, %v1661, 0
    %1665 = vmatpush.msra.mxu0 0.0
    %1666 = vmatpush.msra.mxu0 0.0
    %1667 = vmatpush.msra.mxu0 0.0
    %1668 = vmatpush.msra.mxu0 0.0
    %1669 = vmatpush.msra.mxu0 0.0
    %1670 = vmatpush.msra.mxu0 0.0
    %1671 = vmatpush.msra.mxu0 0.0
    %1672 = vmatpush.msra.mxu0 0.0
    %1673 = vmatpush.msra.mxu0 0.0
    %1674 = vmatpush.msra.mxu0 0.0
    %1675 = vmatpush.msra.mxu0 0.0
    %1676 = vmatpush.msra.mxu0 0.0
    %1677 = vmatpush.msra.mxu0 %v409
    %1678 = vmatpush.msra.mxu0 %v408
    %1679 = vmatpush.msra.mxu0 %v407
    %1680 = vmatpush.msra.mxu0 %v406
    %1681 = vmatmul.f32.gmra.mxu0 %v1663
    %v1682 = vpop.f32.mrf.mxu0
    %v1683 = vadd.f32 0.0, %v1682
    %1684 = vdwg.mxu0
    %v1685 = vadd.f32 %v1660, %v1683
    %v1686 = vld [vmem:[#allocation7] sm:$0xff]
    %v1687 = vxor.u32 %v1659, 2147483648
    %v1688 = vmul.f32 %v1687, 1.442695
    %v1689 = vpow.pop %v1688
    %v1690 = vadd.f32 %v1689, 1.0
    %v1691 = vrcp.pop %v1690
    %v1692 = vmul.f32 %v1690, %v1691
    %v1693 = vsub.f32 1.0, %v1692
    %v1694 = vmul.f32 %v1691, %v1693
    %v1695 = vadd.f32 %v1691, %v1694
    %vm1696 = vweird.f32 %v1690
    %vm1697 = vweird.f32 %v1691
    %vm1698 = vmor %vm1696, %vm1697
    %v1699 = vsel %vm1698, %v1691, %v1695
    %v1700 = vand.u32 2147483647, %v1690
    %vm1701 = vcmp.eq.f32.partialorder %v1700, 8.507059e+37
    %v1702 = vand.u32 %v1690, 2147483648
    %v1703 = vor.u32 1.1754944e-38, %v1702
    %v1704 = vsel %vm1701, %v1703, %v1699
    %v1705 = vmul.f32 1.0, %v1704
    %v1706 = vtanh.pop %v1659
    %1708 = vrot.lane.b32.xlu0 %v1686, 32
    %v1709 = vpop.permute.xlu0 %1708
    %v1711 = vmul.f32 %v1705, %v1709
    %1713 = vrot.lane.b32.xlu0 %v1706, 64
    %v1714 = vpop.permute.xlu0 %1713
    %v1716 = vmul.f32 %v1705, %v1714
    %1718 = vrot.lane.b32.xlu0 %v1716, 32
    %v1719 = vpop.permute.xlu0 %1718
    %v1721 = vadd.f32 %v1711, %v1719
    %v1722 = vtanh.pop %v1721
    %1724 = vrot.lane.b32.xlu0 %v1722, 64
    %v1725 = vpop.permute.xlu0 %1724
    %v1727 = vmul.f32 %v1705, %v1725
    %v1728 = vld [vmem:[#allocation9] sm:$0xff]
    %v1729 = vxor.u32 %v1685, 2147483648
    %v1730 = vmul.f32 %v1729, 1.442695
    %v1731 = vpow.pop %v1730
    %v1732 = vadd.f32 %v1731, 1.0
    %v1733 = vrcp.pop %v1732
    %v1734 = vmul.f32 %v1732, %v1733
    %v1735 = vsub.f32 1.0, %v1734
    %v1736 = vmul.f32 %v1733, %v1735
    %v1737 = vadd.f32 %v1733, %v1736
    %vm1738 = vweird.f32 %v1732
    %vm1739 = vweird.f32 %v1733
    %vm1740 = vmor %vm1738, %vm1739
    %v1741 = vsel %vm1740, %v1733, %v1737
    %v1742 = vand.u32 2147483647, %v1732
    %vm1743 = vcmp.eq.f32.partialorder %v1742, 8.507059e+37
    %v1744 = vand.u32 %v1732, 2147483648
    %v1745 = vor.u32 1.1754944e-38, %v1744
    %v1746 = vsel %vm1743, %v1745, %v1741
    %v1747 = vmul.f32 1.0, %v1746
    %v1748 = vtanh.pop %v1685
    %1750 = vrot.lane.b32.xlu0 %v1728, 32
    %v1751 = vpop.permute.xlu0 %1750
    %v1753 = vmul.f32 %v1747, %v1751
    %1755 = vrot.lane.b32.xlu0 %v1748, 64
    %v1756 = vpop.permute.xlu0 %1755
    %v1758 = vmul.f32 %v1747, %v1756
    %1760 = vrot.lane.b32.xlu0 %v1758, 32
    %v1761 = vpop.permute.xlu0 %1760
    %v1763 = vadd.f32 %v1753, %v1761
    %v1764 = vtanh.pop %v1763
    %1766 = vrot.lane.b32.xlu0 %v1764, 64
    %v1767 = vpop.permute.xlu0 %1766
    %v1769 = vmul.f32 %v1747, %v1767
    %1771 = vset.pattern.permute.xlu0 0
    %1772 = vperm.xlu0 %1771, %v1632
    %v1773 = vpop.permute.xlu0 %1772
    %v1775 = vmul.f32 %v1773, %v1727
    %1777 = vrot.lane.b32.xlu0 %v1775, 32
    %v1778 = vpop.permute.xlu0 %1777
    %1780 = vst.msk [vmem:[#allocation6] sm:$0xff] %vm295, %v1778
    %v1781 = vmul.f32 %v1773, %v1721
    %1783 = vrot.lane.b32.xlu0 %v1781, 96
    %v1784 = vpop.permute.xlu0 %1783
    %1786 = vst.msk [vmem:[#allocation7] sm:$0xff] %vm295, %v1784
    %1788 = vset.pattern.permute.xlu0 0
    %1789 = vperm.xlu0 %1788, %v1633
    %v1790 = vpop.permute.xlu0 %1789
    %v1792 = vmul.f32 %v1790, %v1769
    %1794 = vrot.lane.b32.xlu0 %v1792, 32
    %v1795 = vpop.permute.xlu0 %1794
    %1797 = vst.msk [vmem:[#allocation8] sm:$0xff] %vm295, %v1795
    %v1798 = vmul.f32 %v1790, %v1763
    %1800 = vrot.lane.b32.xlu0 %v1798, 96
    %v1801 = vpop.permute.xlu0 %1800
    %1803 = vst.msk [vmem:[#allocation9] sm:$0xff] %vm295, %v1801
    %1804 = vst.msk [vmem:[#allocation4 + $0x38] sm:$0xff] %vm295, %v1778
    %1805 = vst.msk [vmem:[#allocation5] sm:$0xff] %vm295, %v1795
    %v1806 = vld [vmem:[#allocation4] sm:$0xff]
    %v1807 = vld [vmem:[#allocation4 + $0x8] sm:$0xff]
    %v1808 = vld [vmem:[#allocation4 + $0x10] sm:$0xff]
    %v1809 = vld [vmem:[#allocation4 + $0x18] sm:$0xff]
    %v1810 = vld [vmem:[#allocation4 + $0x20] sm:$0xff]
    %v1811 = vld [vmem:[#allocation4 + $0x28] sm:$0xff]
    %v1812 = vld [vmem:[#allocation4 + $0x30] sm:$0xff]
    %v1813 = vld [vmem:[#allocation4 + $0x38] sm:$0xff]
    %v1814 = vpack.c.bf16 %v1807, %v1806
    %v1815 = vpack.c.bf16 %v1809, %v1808
    %v1816 = vpack.c.bf16 %v1811, %v1810
    %v1817 = vpack.c.bf16 %v1813, %v1812
    %v1818 = vld [vmem:[#allocation5] sm:$0xff]
    %v1819 = vld [vmem:[#allocation5 + $0x8] sm:$0xff]
    %v1820 = vld [vmem:[#allocation5 + $0x10] sm:$0xff]
    %v1821 = vld [vmem:[#allocation5 + $0x18] sm:$0xff]
    %v1822 = vld [vmem:[#allocation5 + $0x20] sm:$0xff]
    %v1823 = vld [vmem:[#allocation5 + $0x28] sm:$0xff]
    %v1824 = vld [vmem:[#allocation5 + $0x30] sm:$0xff]
    %v1825 = vld [vmem:[#allocation5 + $0x38] sm:$0xff]
    %v1826 = vpack.c.bf16 %v1819, %v1818
    %v1827 = vpack.c.bf16 %v1821, %v1820
    %v1828 = vpack.c.bf16 %v1823, %v1822
    %v1829 = vpack.c.bf16 %v1825, %v1824
    %v1830 = vld [vmem:[#allocation17] sm:$0xf]
    %v1831 = vld [vmem:[#allocation17 + $0x4] sm:$0xf]
    %v1832 = vld [vmem:[#allocation17 + $0x8] sm:$0xf]
    %v1833 = vld [vmem:[#allocation17 + $0xc] sm:$0xf]
    %v1834 = vld [vmem:[#allocation19] sm:$0xf]
    %v1835 = vld [vmem:[#allocation19 + $0x4] sm:$0xf]
    %v1836 = vld [vmem:[#allocation19 + $0x8] sm:$0xf]
    %v1837 = vld [vmem:[#allocation19 + $0xc] sm:$0xf]
    %v1842 = vunpack.c.l.b16 %v1834
    %v1843 = vunpack.c.l.b16 %v1835
    %v1844 = vunpack.c.l.b16 %v1836
    %v1845 = vunpack.c.l.b16 %v1837
    %v1846 = vpack.c.b16 %v1843, %v1842
    %v1847 = vpack.c.b16 %v1845, %v1844
    %v1851 = vsel %vm295, %v1826, 0
    %v1854 = vsel %vm295, %v1827, 0
    %v1857 = vsel %vm295, %v1828, 0
    %v1860 = vsel %vm295, %v1829, 0
    %1862 = vmatpush.bf16.msra.mxu0 0
    %1863 = vmatpush.bf16.msra.mxu0 0
    %1864 = vmatpush.bf16.msra.mxu0 0
    %1865 = vmatpush.bf16.msra.mxu0 0
    %1866 = vmatpush.bf16.msra.mxu0 0
    %1867 = vmatpush.bf16.msra.mxu0 0
    %1868 = vmatpush.bf16.msra.mxu0 %v1847
    %1869 = vmatpush.bf16.msra.mxu0 %v1846
    %1870 = vmatmul.bf16.gmra.mxu0 %v1851
    %v1871 = vpop.f32.mrf.mxu0
    %v1872 = vadd.f32 0.0, %v1871
    %v1873 = vpop.f32.mrf.mxu0
    %v1874 = vadd.f32 0.0, %v1873
    %1875 = vmatmul.bf16.gmra.mxu0 %v1854
    %v1876 = vpop.f32.mrf.mxu0
    %v1877 = vadd.f32 0.0, %v1876
    %v1878 = vpop.f32.mrf.mxu0
    %v1879 = vadd.f32 0.0, %v1878
    %1880 = vmatmul.bf16.gmra.mxu0 %v1857
    %v1881 = vpop.f32.mrf.mxu0
    %v1882 = vadd.f32 0.0, %v1881
    %v1883 = vpop.f32.mrf.mxu0
    %v1884 = vadd.f32 0.0, %v1883
    %1885 = vmatmul.bf16.gmra.mxu0 %v1860
    %v1886 = vpop.f32.mrf.mxu0
    %v1887 = vadd.f32 0.0, %v1886
    %v1888 = vpop.f32.mrf.mxu0
    %v1889 = vadd.f32 0.0, %v1888
    %1890 = vdwg.mxu0
    %v1895 = vunpack.c.l.b16 %v1830
    %v1896 = vunpack.c.l.b16 %v1831
    %v1897 = vunpack.c.l.b16 %v1832
    %v1898 = vunpack.c.l.b16 %v1833
    %v1899 = vpack.c.b16 %v1896, %v1895
    %v1900 = vpack.c.b16 %v1898, %v1897
    %v1904 = vsel %vm295, %v1814, 0
    %v1907 = vsel %vm295, %v1815, 0
    %v1910 = vsel %vm295, %v1816, 0
    %v1913 = vsel %vm295, %v1817, 0
    %1915 = vmatpush.bf16.msra.mxu0 0
    %1916 = vmatpush.bf16.msra.mxu0 0
    %1917 = vmatpush.bf16.msra.mxu0 0
    %1918 = vmatpush.bf16.msra.mxu0 0
    %1919 = vmatpush.bf16.msra.mxu0 0
    %1920 = vmatpush.bf16.msra.mxu0 0
    %1921 = vmatpush.bf16.msra.mxu0 %v1900
    %1922 = vmatpush.bf16.msra.mxu0 %v1899
    %1923 = vmatmul.bf16.gmra.mxu0 %v1904
    %v1924 = vpop.f32.mrf.mxu0
    %v1925 = vadd.f32 %v1872, %v1924
    %v1926 = vpop.f32.mrf.mxu0
    %v1927 = vadd.f32 %v1874, %v1926
    %1928 = vmatmul.bf16.gmra.mxu0 %v1907
    %v1929 = vpop.f32.mrf.mxu0
    %v1930 = vadd.f32 %v1877, %v1929
    %v1931 = vpop.f32.mrf.mxu0
    %v1932 = vadd.f32 %v1879, %v1931
    %1933 = vmatmul.bf16.gmra.mxu0 %v1910
    %v1934 = vpop.f32.mrf.mxu0
    %v1935 = vadd.f32 %v1882, %v1934
    %v1936 = vpop.f32.mrf.mxu0
    %v1937 = vadd.f32 %v1884, %v1936
    %1938 = vmatmul.bf16.gmra.mxu0 %v1913
    %v1939 = vpop.f32.mrf.mxu0
    %v1940 = vadd.f32 %v1887, %v1939
    %v1941 = vpop.f32.mrf.mxu0
    %v1942 = vadd.f32 %v1889, %v1941
    %1943 = vdwg.mxu0
    %v1944 = vld [vmem:[#allocation22] sm:$0x1]
    %v1946 = vperm.slane %v1944, 0
    %v1948 = vadd.f32 %v1925, %v1946
    %v1949 = vadd.f32 %v1927, %v1946
    %v1950 = vadd.f32 %v1930, %v1946
    %v1951 = vadd.f32 %v1932, %v1946
    %v1952 = vadd.f32 %v1935, %v1946
    %v1953 = vadd.f32 %v1937, %v1946
    %v1954 = vadd.f32 %v1940, %v1946
    %v1955 = vadd.f32 %v1942, %v1946
    %1956 = vst [vmem:[#allocation2] sm:$0xff] %v1948
    %1957 = vst [vmem:[#allocation2 + $0x8] sm:$0xff] %v1949
    %1958 = vst [vmem:[#allocation2 + $0x10] sm:$0xff] %v1950
    %1959 = vst [vmem:[#allocation2 + $0x18] sm:$0xff] %v1951
    %1960 = vst [vmem:[#allocation2 + $0x20] sm:$0xff] %v1952
    %1961 = vst [vmem:[#allocation2 + $0x28] sm:$0xff] %v1953
    %1962 = vst [vmem:[#allocation2 + $0x30] sm:$0xff] %v1954
    %1963 = vst [vmem:[#allocation2 + $0x38] sm:$0xff] %v1955
    %v1964 = vld [vmem:[#allocation23] sm:$0xf]
    %v1965 = vld [vmem:[#allocation23 + $0x4] sm:$0xf]
    %v1966 = vld [vmem:[#allocation23 + $0x8] sm:$0xf]
    %v1967 = vld [vmem:[#allocation23 + $0xc] sm:$0xf]
    %v1968 = vld [vmem:[#allocation25] sm:$0xf]
    %v1969 = vld [vmem:[#allocation25 + $0x4] sm:$0xf]
    %v1970 = vld [vmem:[#allocation25 + $0x8] sm:$0xf]
    %v1971 = vld [vmem:[#allocation25 + $0xc] sm:$0xf]
    %v1976 = vunpack.c.l.b16 %v1968
    %v1977 = vunpack.c.l.b16 %v1969
    %v1978 = vunpack.c.l.b16 %v1970
    %v1979 = vunpack.c.l.b16 %v1971
    %v1980 = vpack.c.b16 %v1977, %v1976
    %v1981 = vpack.c.b16 %v1979, %v1978
    %1984 = vmatpush.bf16.msra.mxu0 0
    %1985 = vmatpush.bf16.msra.mxu0 0
    %1986 = vmatpush.bf16.msra.mxu0 0
    %1987 = vmatpush.bf16.msra.mxu0 0
    %1988 = vmatpush.bf16.msra.mxu0 0
    %1989 = vmatpush.bf16.msra.mxu0 0
    %1990 = vmatpush.bf16.msra.mxu0 %v1981
    %1991 = vmatpush.bf16.msra.mxu0 %v1980
    %1992 = vmatmul.bf16.gmra.mxu0 %v1851
    %v1993 = vpop.f32.mrf.mxu0
    %v1994 = vadd.f32 0.0, %v1993
    %v1995 = vpop.f32.mrf.mxu0
    %v1996 = vadd.f32 0.0, %v1995
    %1997 = vmatmul.bf16.gmra.mxu0 %v1854
    %v1998 = vpop.f32.mrf.mxu0
    %v1999 = vadd.f32 0.0, %v1998
    %v2000 = vpop.f32.mrf.mxu0
    %v2001 = vadd.f32 0.0, %v2000
    %2002 = vmatmul.bf16.gmra.mxu0 %v1857
    %v2003 = vpop.f32.mrf.mxu0
    %v2004 = vadd.f32 0.0, %v2003
    %v2005 = vpop.f32.mrf.mxu0
    %v2006 = vadd.f32 0.0, %v2005
    %2007 = vmatmul.bf16.gmra.mxu0 %v1860
    %v2008 = vpop.f32.mrf.mxu0
    %v2009 = vadd.f32 0.0, %v2008
    %v2010 = vpop.f32.mrf.mxu0
    %v2011 = vadd.f32 0.0, %v2010
    %2012 = vdwg.mxu0
    %v2017 = vunpack.c.l.b16 %v1964
    %v2018 = vunpack.c.l.b16 %v1965
    %v2019 = vunpack.c.l.b16 %v1966
    %v2020 = vunpack.c.l.b16 %v1967
    %v2021 = vpack.c.b16 %v2018, %v2017
    %v2022 = vpack.c.b16 %v2020, %v2019
    %2025 = vmatpush.bf16.msra.mxu0 0
    %2026 = vmatpush.bf16.msra.mxu0 0
    %2027 = vmatpush.bf16.msra.mxu0 0
    %2028 = vmatpush.bf16.msra.mxu0 0
    %2029 = vmatpush.bf16.msra.mxu0 0
    %2030 = vmatpush.bf16.msra.mxu0 0
    %2031 = vmatpush.bf16.msra.mxu0 %v2022
    %2032 = vmatpush.bf16.msra.mxu0 %v2021
    %2033 = vmatmul.bf16.gmra.mxu0 %v1904
    %v2034 = vpop.f32.mrf.mxu0
    %v2035 = vadd.f32 %v1994, %v2034
    %v2036 = vpop.f32.mrf.mxu0
    %v2037 = vadd.f32 %v1996, %v2036
    %2038 = vmatmul.bf16.gmra.mxu0 %v1907
    %v2039 = vpop.f32.mrf.mxu0
    %v2040 = vadd.f32 %v1999, %v2039
    %v2041 = vpop.f32.mrf.mxu0
    %v2042 = vadd.f32 %v2001, %v2041
    %2043 = vmatmul.bf16.gmra.mxu0 %v1910
    %v2044 = vpop.f32.mrf.mxu0
    %v2045 = vadd.f32 %v2004, %v2044
    %v2046 = vpop.f32.mrf.mxu0
    %v2047 = vadd.f32 %v2006, %v2046
    %2048 = vmatmul.bf16.gmra.mxu0 %v1913
    %v2049 = vpop.f32.mrf.mxu0
    %v2050 = vadd.f32 %v2009, %v2049
    %v2051 = vpop.f32.mrf.mxu0
    %v2052 = vadd.f32 %v2011, %v2051
    %2053 = vdwg.mxu0
    %v2054 = vld [vmem:[#allocation28] sm:$0x1]
    %v2056 = vperm.slane %v2054, 0
    %v2058 = vadd.f32 %v2035, %v2056
    %v2059 = vadd.f32 %v2037, %v2056
    %v2060 = vadd.f32 %v2040, %v2056
    %v2061 = vadd.f32 %v2042, %v2056
    %v2062 = vadd.f32 %v2045, %v2056
    %v2063 = vadd.f32 %v2047, %v2056
    %v2064 = vadd.f32 %v2050, %v2056
    %v2065 = vadd.f32 %v2052, %v2056
    %2066 = vst [vmem:[#allocation3] sm:$0xff] %v2058
    %2067 = vst [vmem:[#allocation3 + $0x8] sm:$0xff] %v2059
    %2068 = vst [vmem:[#allocation3 + $0x10] sm:$0xff] %v2060
    %2069 = vst [vmem:[#allocation3 + $0x18] sm:$0xff] %v2061
    %2070 = vst [vmem:[#allocation3 + $0x20] sm:$0xff] %v2062
    %2071 = vst [vmem:[#allocation3 + $0x28] sm:$0xff] %v2063
    %2072 = vst [vmem:[#allocation3 + $0x30] sm:$0xff] %v2064
    %2073 = vst [vmem:[#allocation3 + $0x38] sm:$0xff] %v2065
    %v2074 = vld [vmem:[#allocation20] sm:$0xff]
    %v2075 = vld [vmem:[#allocation20 + $0x8] sm:$0xff]
    %v2076 = vld [vmem:[#allocation20 + $0x10] sm:$0xff]
    %v2077 = vld [vmem:[#allocation20 + $0x18] sm:$0xff]
    %v2078 = vld [vmem:[#allocation26] sm:$0xff]
    %v2079 = vld [vmem:[#allocation26 + $0x8] sm:$0xff]
    %v2080 = vld [vmem:[#allocation26 + $0x10] sm:$0xff]
    %v2081 = vld [vmem:[#allocation26 + $0x18] sm:$0xff]
    %2082 = vst.msk [vmem:[#allocation6] sm:$0xff] %vm295, 0.0
    %2083 = vst.msk [vmem:[#allocation7] sm:$0xff] %vm295, 0.0
    %2084 = vst.msk [vmem:[#allocation8] sm:$0xff] %vm295, 0.0
    %2085 = vst.msk [vmem:[#allocation9] sm:$0xff] %vm295, 0.0
    %2086 = vst.msk [vmem:[#allocation10] sm:$0xff] %vm295, 0.0
    %v2087 = vld [vmem:[%s1] sm:$0xff]
    %v2088 = vld [vmem:[%s1 + $0x38] sm:$0xff]
    %v2089 = vld [vmem:[#allocation2] sm:$0xff]
    %v2090 = vld [vmem:[#allocation6] sm:$0xff]
    %v2092 = vsel %vm295, %v2090, 0
    %2094 = vmatpush.msra.mxu0 0.0
    %2095 = vmatpush.msra.mxu0 0.0
    %2096 = vmatpush.msra.mxu0 0.0
    %2097 = vmatpush.msra.mxu0 0.0
    %2098 = vmatpush.msra.mxu0 0.0
    %2099 = vmatpush.msra.mxu0 0.0
    %2100 = vmatpush.msra.mxu0 0.0
    %2101 = vmatpush.msra.mxu0 0.0
    %2102 = vmatpush.msra.mxu0 0.0
    %2103 = vmatpush.msra.mxu0 0.0
    %2104 = vmatpush.msra.mxu0 0.0
    %2105 = vmatpush.msra.mxu0 0.0
    %2106 = vmatpush.msra.mxu0 %v2077
    %2107 = vmatpush.msra.mxu0 %v2076
    %2108 = vmatpush.msra.mxu0 %v2075
    %2109 = vmatpush.msra.mxu0 %v2074
    %2110 = vmatmul.f32.gmra.mxu0 %v2092
    %v2111 = vpop.f32.mrf.mxu0
    %v2112 = vadd.f32 0.0, %v2111
    %2113 = vdwg.mxu0
    %v2114 = vadd.f32 %v2089, %v2112
    %v2115 = vld [vmem:[#allocation3 + $0x38] sm:$0xff]
    %v2116 = vld [vmem:[#allocation8] sm:$0xff]
    %v2118 = vsel %vm295, %v2116, 0
    %2120 = vmatpush.msra.mxu0 0.0
    %2121 = vmatpush.msra.mxu0 0.0
    %2122 = vmatpush.msra.mxu0 0.0
    %2123 = vmatpush.msra.mxu0 0.0
    %2124 = vmatpush.msra.mxu0 0.0
    %2125 = vmatpush.msra.mxu0 0.0
    %2126 = vmatpush.msra.mxu0 0.0
    %2127 = vmatpush.msra.mxu0 0.0
    %2128 = vmatpush.msra.mxu0 0.0
    %2129 = vmatpush.msra.mxu0 0.0
    %2130 = vmatpush.msra.mxu0 0.0
    %2131 = vmatpush.msra.mxu0 0.0
    %2132 = vmatpush.msra.mxu0 %v2081
    %2133 = vmatpush.msra.mxu0 %v2080
    %2134 = vmatpush.msra.mxu0 %v2079
    %2135 = vmatpush.msra.mxu0 %v2078
    %2136 = vmatmul.f32.gmra.mxu0 %v2118
    %v2137 = vpop.f32.mrf.mxu0
    %v2138 = vadd.f32 0.0, %v2137
    %2139 = vdwg.mxu0
    %v2140 = vadd.f32 %v2115, %v2138
    %v2141 = vld [vmem:[#allocation7] sm:$0xff]
    %v2142 = vxor.u32 %v2114, 2147483648
    %v2143 = vmul.f32 %v2142, 1.442695
    %v2144 = vpow.pop %v2143
    %v2145 = vadd.f32 %v2144, 1.0
    %v2146 = vrcp.pop %v2145
    %v2147 = vmul.f32 %v2145, %v2146
    %v2148 = vsub.f32 1.0, %v2147
    %v2149 = vmul.f32 %v2146, %v2148
    %v2150 = vadd.f32 %v2146, %v2149
    %vm2151 = vweird.f32 %v2145
    %vm2152 = vweird.f32 %v2146
    %vm2153 = vmor %vm2151, %vm2152
    %v2154 = vsel %vm2153, %v2146, %v2150
    %v2155 = vand.u32 2147483647, %v2145
    %vm2156 = vcmp.eq.f32.partialorder %v2155, 8.507059e+37
    %v2157 = vand.u32 %v2145, 2147483648
    %v2158 = vor.u32 1.1754944e-38, %v2157
    %v2159 = vsel %vm2156, %v2158, %v2154
    %v2160 = vmul.f32 1.0, %v2159
    %v2161 = vtanh.pop %v2114
    %2163 = vrot.lane.b32.xlu0 %v2141, 32
    %v2164 = vpop.permute.xlu0 %2163
    %v2166 = vmul.f32 %v2160, %v2164
    %2168 = vrot.lane.b32.xlu0 %v2161, 64
    %v2169 = vpop.permute.xlu0 %2168
    %v2171 = vmul.f32 %v2160, %v2169
    %2173 = vrot.lane.b32.xlu0 %v2171, 32
    %v2174 = vpop.permute.xlu0 %2173
    %v2176 = vadd.f32 %v2166, %v2174
    %v2177 = vtanh.pop %v2176
    %2179 = vrot.lane.b32.xlu0 %v2177, 64
    %v2180 = vpop.permute.xlu0 %2179
    %v2182 = vmul.f32 %v2160, %v2180
    %v2183 = vld [vmem:[#allocation9] sm:$0xff]
    %v2184 = vxor.u32 %v2140, 2147483648
    %v2185 = vmul.f32 %v2184, 1.442695
    %v2186 = vpow.pop %v2185
    %v2187 = vadd.f32 %v2186, 1.0
    %v2188 = vrcp.pop %v2187
    %v2189 = vmul.f32 %v2187, %v2188
    %v2190 = vsub.f32 1.0, %v2189
    %v2191 = vmul.f32 %v2188, %v2190
    %v2192 = vadd.f32 %v2188, %v2191
    %vm2193 = vweird.f32 %v2187
    %vm2194 = vweird.f32 %v2188
    %vm2195 = vmor %vm2193, %vm2194
    %v2196 = vsel %vm2195, %v2188, %v2192
    %v2197 = vand.u32 2147483647, %v2187
    %vm2198 = vcmp.eq.f32.partialorder %v2197, 8.507059e+37
    %v2199 = vand.u32 %v2187, 2147483648
    %v2200 = vor.u32 1.1754944e-38, %v2199
    %v2201 = vsel %vm2198, %v2200, %v2196
    %v2202 = vmul.f32 1.0, %v2201
    %v2203 = vtanh.pop %v2140
    %2205 = vrot.lane.b32.xlu0 %v2183, 32
    %v2206 = vpop.permute.xlu0 %2205
    %v2208 = vmul.f32 %v2202, %v2206
    %2210 = vrot.lane.b32.xlu0 %v2203, 64
    %v2211 = vpop.permute.xlu0 %2210
    %v2213 = vmul.f32 %v2202, %v2211
    %2215 = vrot.lane.b32.xlu0 %v2213, 32
    %v2216 = vpop.permute.xlu0 %2215
    %v2218 = vadd.f32 %v2208, %v2216
    %v2219 = vtanh.pop %v2218
    %2221 = vrot.lane.b32.xlu0 %v2219, 64
    %v2222 = vpop.permute.xlu0 %2221
    %v2224 = vmul.f32 %v2202, %v2222
    %2226 = vset.pattern.permute.xlu0 0
    %2227 = vperm.xlu0 %2226, %v2087
    %v2228 = vpop.permute.xlu0 %2227
    %v2230 = vmul.f32 %v2228, %v2182
    %2232 = vrot.lane.b32.xlu0 %v2230, 32
    %v2233 = vpop.permute.xlu0 %2232
    %2235 = vst.msk [vmem:[#allocation6] sm:$0xff] %vm295, %v2233
    %v2236 = vmul.f32 %v2228, %v2176
    %2238 = vrot.lane.b32.xlu0 %v2236, 96
    %v2239 = vpop.permute.xlu0 %2238
    %2241 = vst.msk [vmem:[#allocation7] sm:$0xff] %vm295, %v2239
    %2243 = vset.pattern.permute.xlu0 0
    %2244 = vperm.xlu0 %2243, %v2088
    %v2245 = vpop.permute.xlu0 %2244
    %v2247 = vmul.f32 %v2245, %v2224
    %2249 = vrot.lane.b32.xlu0 %v2247, 32
    %v2250 = vpop.permute.xlu0 %2249
    %2252 = vst.msk [vmem:[#allocation8] sm:$0xff] %vm295, %v2250
    %v2253 = vmul.f32 %v2245, %v2218
    %2255 = vrot.lane.b32.xlu0 %v2253, 96
    %v2256 = vpop.permute.xlu0 %2255
    %2258 = vst.msk [vmem:[#allocation9] sm:$0xff] %vm295, %v2256
    %vm2259 = vcmp.gt.f32.partialorder %v2087, 0.0
    %v2260 = vld [vmem:[#allocation10] sm:$0xff]
    %v2261 = vsel %vm2259, 1, 0
    %2262 = vset.pattern.permute.xlu0 0
    %2263 = vperm.xlu0 %2262, %v2261
    %v2264 = vpop.permute.xlu0 %2263
    %vm2265 = vcmp.eq.s32.totalorder %v2264, 1
    %2267 = vrot.lane.b32.xlu0 %v2260, 96
    %v2268 = vpop.permute.xlu0 %2267
    %v2270 = vsel %vm2265, %v2182, %v2268
    %2272 = vrot.lane.b32.xlu0 %v2270, 32
    %v2273 = vpop.permute.xlu0 %2272
    %2275 = vst.msk [vmem:[#allocation10] sm:$0xff] %vm295, %v2273
    %v2276 = vld [vmem:[%s1 + $0x8] sm:$0xff]
    %v2277 = vld [vmem:[%s1 + $0x30] sm:$0xff]
    %v2278 = vld [vmem:[#allocation2 + $0x8] sm:$0xff]
    %v2279 = vld [vmem:[#allocation6] sm:$0xff]
    %v2281 = vsel %vm295, %v2279, 0
    %2283 = vmatpush.msra.mxu0 0.0
    %2284 = vmatpush.msra.mxu0 0.0
    %2285 = vmatpush.msra.mxu0 0.0
    %2286 = vmatpush.msra.mxu0 0.0
    %2287 = vmatpush.msra.mxu0 0.0
    %2288 = vmatpush.msra.mxu0 0.0
    %2289 = vmatpush.msra.mxu0 0.0
    %2290 = vmatpush.msra.mxu0 0.0
    %2291 = vmatpush.msra.mxu0 0.0
    %2292 = vmatpush.msra.mxu0 0.0
    %2293 = vmatpush.msra.mxu0 0.0
    %2294 = vmatpush.msra.mxu0 0.0
    %2295 = vmatpush.msra.mxu0 %v2077
    %2296 = vmatpush.msra.mxu0 %v2076
    %2297 = vmatpush.msra.mxu0 %v2075
    %2298 = vmatpush.msra.mxu0 %v2074
    %2299 = vmatmul.f32.gmra.mxu0 %v2281
    %v2300 = vpop.f32.mrf.mxu0
    %v2301 = vadd.f32 0.0, %v2300
    %2302 = vdwg.mxu0
    %v2303 = vadd.f32 %v2278, %v2301
    %v2304 = vld [vmem:[#allocation3 + $0x30] sm:$0xff]
    %v2305 = vld [vmem:[#allocation8] sm:$0xff]
    %v2307 = vsel %vm295, %v2305, 0
    %2309 = vmatpush.msra.mxu0 0.0
    %2310 = vmatpush.msra.mxu0 0.0
    %2311 = vmatpush.msra.mxu0 0.0
    %2312 = vmatpush.msra.mxu0 0.0
    %2313 = vmatpush.msra.mxu0 0.0
    %2314 = vmatpush.msra.mxu0 0.0
    %2315 = vmatpush.msra.mxu0 0.0
    %2316 = vmatpush.msra.mxu0 0.0
    %2317 = vmatpush.msra.mxu0 0.0
    %2318 = vmatpush.msra.mxu0 0.0
    %2319 = vmatpush.msra.mxu0 0.0
    %2320 = vmatpush.msra.mxu0 0.0
    %2321 = vmatpush.msra.mxu0 %v2081
    %2322 = vmatpush.msra.mxu0 %v2080
    %2323 = vmatpush.msra.mxu0 %v2079
    %2324 = vmatpush.msra.mxu0 %v2078
    %2325 = vmatmul.f32.gmra.mxu0 %v2307
    %v2326 = vpop.f32.mrf.mxu0
    %v2327 = vadd.f32 0.0, %v2326
    %2328 = vdwg.mxu0
    %v2329 = vadd.f32 %v2304, %v2327
    %v2330 = vld [vmem:[#allocation7] sm:$0xff]
    %v2331 = vxor.u32 %v2303, 2147483648
    %v2332 = vmul.f32 %v2331, 1.442695
    %v2333 = vpow.pop %v2332
    %v2334 = vadd.f32 %v2333, 1.0
    %v2335 = vrcp.pop %v2334
    %v2336 = vmul.f32 %v2334, %v2335
    %v2337 = vsub.f32 1.0, %v2336
    %v2338 = vmul.f32 %v2335, %v2337
    %v2339 = vadd.f32 %v2335, %v2338
    %vm2340 = vweird.f32 %v2334
    %vm2341 = vweird.f32 %v2335
    %vm2342 = vmor %vm2340, %vm2341
    %v2343 = vsel %vm2342, %v2335, %v2339
    %v2344 = vand.u32 2147483647, %v2334
    %vm2345 = vcmp.eq.f32.partialorder %v2344, 8.507059e+37
    %v2346 = vand.u32 %v2334, 2147483648
    %v2347 = vor.u32 1.1754944e-38, %v2346
    %v2348 = vsel %vm2345, %v2347, %v2343
    %v2349 = vmul.f32 1.0, %v2348
    %v2350 = vtanh.pop %v2303
    %2352 = vrot.lane.b32.xlu0 %v2330, 32
    %v2353 = vpop.permute.xlu0 %2352
    %v2355 = vmul.f32 %v2349, %v2353
    %2357 = vrot.lane.b32.xlu0 %v2350, 64
    %v2358 = vpop.permute.xlu0 %2357
    %v2360 = vmul.f32 %v2349, %v2358
    %2362 = vrot.lane.b32.xlu0 %v2360, 32
    %v2363 = vpop.permute.xlu0 %2362
    %v2365 = vadd.f32 %v2355, %v2363
    %v2366 = vtanh.pop %v2365
    %2368 = vrot.lane.b32.xlu0 %v2366, 64
    %v2369 = vpop.permute.xlu0 %2368
    %v2371 = vmul.f32 %v2349, %v2369
    %v2372 = vld [vmem:[#allocation9] sm:$0xff]
    %v2373 = vxor.u32 %v2329, 2147483648
    %v2374 = vmul.f32 %v2373, 1.442695
    %v2375 = vpow.pop %v2374
    %v2376 = vadd.f32 %v2375, 1.0
    %v2377 = vrcp.pop %v2376
    %v2378 = vmul.f32 %v2376, %v2377
    %v2379 = vsub.f32 1.0, %v2378
    %v2380 = vmul.f32 %v2377, %v2379
    %v2381 = vadd.f32 %v2377, %v2380
    %vm2382 = vweird.f32 %v2376
    %vm2383 = vweird.f32 %v2377
    %vm2384 = vmor %vm2382, %vm2383
    %v2385 = vsel %vm2384, %v2377, %v2381
    %v2386 = vand.u32 2147483647, %v2376
    %vm2387 = vcmp.eq.f32.partialorder %v2386, 8.507059e+37
    %v2388 = vand.u32 %v2376, 2147483648
    %v2389 = vor.u32 1.1754944e-38, %v2388
    %v2390 = vsel %vm2387, %v2389, %v2385
    %v2391 = vmul.f32 1.0, %v2390
    %v2392 = vtanh.pop %v2329
    %2394 = vrot.lane.b32.xlu0 %v2372, 32
    %v2395 = vpop.permute.xlu0 %2394
    %v2397 = vmul.f32 %v2391, %v2395
    %2399 = vrot.lane.b32.xlu0 %v2392, 64
    %v2400 = vpop.permute.xlu0 %2399
    %v2402 = vmul.f32 %v2391, %v2400
    %2404 = vrot.lane.b32.xlu0 %v2402, 32
    %v2405 = vpop.permute.xlu0 %2404
    %v2407 = vadd.f32 %v2397, %v2405
    %v2408 = vtanh.pop %v2407
    %2410 = vrot.lane.b32.xlu0 %v2408, 64
    %v2411 = vpop.permute.xlu0 %2410
    %v2413 = vmul.f32 %v2391, %v2411
    %2415 = vset.pattern.permute.xlu0 0
    %2416 = vperm.xlu0 %2415, %v2276
    %v2417 = vpop.permute.xlu0 %2416
    %v2419 = vmul.f32 %v2417, %v2371
    %2421 = vrot.lane.b32.xlu0 %v2419, 32
    %v2422 = vpop.permute.xlu0 %2421
    %2424 = vst.msk [vmem:[#allocation6] sm:$0xff] %vm295, %v2422
    %v2425 = vmul.f32 %v2417, %v2365
    %2427 = vrot.lane.b32.xlu0 %v2425, 96
    %v2428 = vpop.permute.xlu0 %2427
    %2430 = vst.msk [vmem:[#allocation7] sm:$0xff] %vm295, %v2428
    %2432 = vset.pattern.permute.xlu0 0
    %2433 = vperm.xlu0 %2432, %v2277
    %v2434 = vpop.permute.xlu0 %2433
    %v2436 = vmul.f32 %v2434, %v2413
    %2438 = vrot.lane.b32.xlu0 %v2436, 32
    %v2439 = vpop.permute.xlu0 %2438
    %2441 = vst.msk [vmem:[#allocation8] sm:$0xff] %vm295, %v2439
    %v2442 = vmul.f32 %v2434, %v2407
    %2444 = vrot.lane.b32.xlu0 %v2442, 96
    %v2445 = vpop.permute.xlu0 %2444
    %2447 = vst.msk [vmem:[#allocation9] sm:$0xff] %vm295, %v2445
    %vm2448 = vcmp.gt.f32.partialorder %v2276, 0.0
    %v2449 = vld [vmem:[#allocation10] sm:$0xff]
    %v2450 = vsel %vm2448, 1, 0
    %2451 = vset.pattern.permute.xlu0 0
    %2452 = vperm.xlu0 %2451, %v2450
    %v2453 = vpop.permute.xlu0 %2452
    %vm2454 = vcmp.eq.s32.totalorder %v2453, 1
    %2456 = vrot.lane.b32.xlu0 %v2449, 96
    %v2457 = vpop.permute.xlu0 %2456
    %v2459 = vsel %vm2454, %v2371, %v2457
    %2461 = vrot.lane.b32.xlu0 %v2459, 32
    %v2462 = vpop.permute.xlu0 %2461
    %2464 = vst.msk [vmem:[#allocation10] sm:$0xff] %vm295, %v2462
    %v2465 = vld [vmem:[%s1 + $0x10] sm:$0xff]
    %v2466 = vld [vmem:[%s1 + $0x28] sm:$0xff]
    %v2467 = vld [vmem:[#allocation2 + $0x10] sm:$0xff]
    %v2468 = vld [vmem:[#allocation6] sm:$0xff]
    %v2470 = vsel %vm295, %v2468, 0
    %2472 = vmatpush.msra.mxu0 0.0
    %2473 = vmatpush.msra.mxu0 0.0
    %2474 = vmatpush.msra.mxu0 0.0
    %2475 = vmatpush.msra.mxu0 0.0
    %2476 = vmatpush.msra.mxu0 0.0
    %2477 = vmatpush.msra.mxu0 0.0
    %2478 = vmatpush.msra.mxu0 0.0
    %2479 = vmatpush.msra.mxu0 0.0
    %2480 = vmatpush.msra.mxu0 0.0
    %2481 = vmatpush.msra.mxu0 0.0
    %2482 = vmatpush.msra.mxu0 0.0
    %2483 = vmatpush.msra.mxu0 0.0
    %2484 = vmatpush.msra.mxu0 %v2077
    %2485 = vmatpush.msra.mxu0 %v2076
    %2486 = vmatpush.msra.mxu0 %v2075
    %2487 = vmatpush.msra.mxu0 %v2074
    %2488 = vmatmul.f32.gmra.mxu0 %v2470
    %v2489 = vpop.f32.mrf.mxu0
    %v2490 = vadd.f32 0.0, %v2489
    %2491 = vdwg.mxu0
    %v2492 = vadd.f32 %v2467, %v2490
    %v2493 = vld [vmem:[#allocation3 + $0x28] sm:$0xff]
    %v2494 = vld [vmem:[#allocation8] sm:$0xff]
    %v2496 = vsel %vm295, %v2494, 0
    %2498 = vmatpush.msra.mxu0 0.0
    %2499 = vmatpush.msra.mxu0 0.0
    %2500 = vmatpush.msra.mxu0 0.0
    %2501 = vmatpush.msra.mxu0 0.0
    %2502 = vmatpush.msra.mxu0 0.0
    %2503 = vmatpush.msra.mxu0 0.0
    %2504 = vmatpush.msra.mxu0 0.0
    %2505 = vmatpush.msra.mxu0 0.0
    %2506 = vmatpush.msra.mxu0 0.0
    %2507 = vmatpush.msra.mxu0 0.0
    %2508 = vmatpush.msra.mxu0 0.0
    %2509 = vmatpush.msra.mxu0 0.0
    %2510 = vmatpush.msra.mxu0 %v2081
    %2511 = vmatpush.msra.mxu0 %v2080
    %2512 = vmatpush.msra.mxu0 %v2079
    %2513 = vmatpush.msra.mxu0 %v2078
    %2514 = vmatmul.f32.gmra.mxu0 %v2496
    %v2515 = vpop.f32.mrf.mxu0
    %v2516 = vadd.f32 0.0, %v2515
    %2517 = vdwg.mxu0
    %v2518 = vadd.f32 %v2493, %v2516
    %v2519 = vld [vmem:[#allocation7] sm:$0xff]
    %v2520 = vxor.u32 %v2492, 2147483648
    %v2521 = vmul.f32 %v2520, 1.442695
    %v2522 = vpow.pop %v2521
    %v2523 = vadd.f32 %v2522, 1.0
    %v2524 = vrcp.pop %v2523
    %v2525 = vmul.f32 %v2523, %v2524
    %v2526 = vsub.f32 1.0, %v2525
    %v2527 = vmul.f32 %v2524, %v2526
    %v2528 = vadd.f32 %v2524, %v2527
    %vm2529 = vweird.f32 %v2523
    %vm2530 = vweird.f32 %v2524
    %vm2531 = vmor %vm2529, %vm2530
    %v2532 = vsel %vm2531, %v2524, %v2528
    %v2533 = vand.u32 2147483647, %v2523
    %vm2534 = vcmp.eq.f32.partialorder %v2533, 8.507059e+37
    %v2535 = vand.u32 %v2523, 2147483648
    %v2536 = vor.u32 1.1754944e-38, %v2535
    %v2537 = vsel %vm2534, %v2536, %v2532
    %v2538 = vmul.f32 1.0, %v2537
    %v2539 = vtanh.pop %v2492
    %2541 = vrot.lane.b32.xlu0 %v2519, 32
    %v2542 = vpop.permute.xlu0 %2541
    %v2544 = vmul.f32 %v2538, %v2542
    %2546 = vrot.lane.b32.xlu0 %v2539, 64
    %v2547 = vpop.permute.xlu0 %2546
    %v2549 = vmul.f32 %v2538, %v2547
    %2551 = vrot.lane.b32.xlu0 %v2549, 32
    %v2552 = vpop.permute.xlu0 %2551
    %v2554 = vadd.f32 %v2544, %v2552
    %v2555 = vtanh.pop %v2554
    %2557 = vrot.lane.b32.xlu0 %v2555, 64
    %v2558 = vpop.permute.xlu0 %2557
    %v2560 = vmul.f32 %v2538, %v2558
    %v2561 = vld [vmem:[#allocation9] sm:$0xff]
    %v2562 = vxor.u32 %v2518, 2147483648
    %v2563 = vmul.f32 %v2562, 1.442695
    %v2564 = vpow.pop %v2563
    %v2565 = vadd.f32 %v2564, 1.0
    %v2566 = vrcp.pop %v2565
    %v2567 = vmul.f32 %v2565, %v2566
    %v2568 = vsub.f32 1.0, %v2567
    %v2569 = vmul.f32 %v2566, %v2568
    %v2570 = vadd.f32 %v2566, %v2569
    %vm2571 = vweird.f32 %v2565
    %vm2572 = vweird.f32 %v2566
    %vm2573 = vmor %vm2571, %vm2572
    %v2574 = vsel %vm2573, %v2566, %v2570
    %v2575 = vand.u32 2147483647, %v2565
    %vm2576 = vcmp.eq.f32.partialorder %v2575, 8.507059e+37
    %v2577 = vand.u32 %v2565, 2147483648
    %v2578 = vor.u32 1.1754944e-38, %v2577
    %v2579 = vsel %vm2576, %v2578, %v2574
    %v2580 = vmul.f32 1.0, %v2579
    %v2581 = vtanh.pop %v2518
    %2583 = vrot.lane.b32.xlu0 %v2561, 32
    %v2584 = vpop.permute.xlu0 %2583
    %v2586 = vmul.f32 %v2580, %v2584
    %2588 = vrot.lane.b32.xlu0 %v2581, 64
    %v2589 = vpop.permute.xlu0 %2588
    %v2591 = vmul.f32 %v2580, %v2589
    %2593 = vrot.lane.b32.xlu0 %v2591, 32
    %v2594 = vpop.permute.xlu0 %2593
    %v2596 = vadd.f32 %v2586, %v2594
    %v2597 = vtanh.pop %v2596
    %2599 = vrot.lane.b32.xlu0 %v2597, 64
    %v2600 = vpop.permute.xlu0 %2599
    %v2602 = vmul.f32 %v2580, %v2600
    %2604 = vset.pattern.permute.xlu0 0
    %2605 = vperm.xlu0 %2604, %v2465
    %v2606 = vpop.permute.xlu0 %2605
    %v2608 = vmul.f32 %v2606, %v2560
    %2610 = vrot.lane.b32.xlu0 %v2608, 32
    %v2611 = vpop.permute.xlu0 %2610
    %2613 = vst.msk [vmem:[#allocation6] sm:$0xff] %vm295, %v2611
    %v2614 = vmul.f32 %v2606, %v2554
    %2616 = vrot.lane.b32.xlu0 %v2614, 96
    %v2617 = vpop.permute.xlu0 %2616
    %2619 = vst.msk [vmem:[#allocation7] sm:$0xff] %vm295, %v2617
    %2621 = vset.pattern.permute.xlu0 0
    %2622 = vperm.xlu0 %2621, %v2466
    %v2623 = vpop.permute.xlu0 %2622
    %v2625 = vmul.f32 %v2623, %v2602
    %2627 = vrot.lane.b32.xlu0 %v2625, 32
    %v2628 = vpop.permute.xlu0 %2627
    %2630 = vst.msk [vmem:[#allocation8] sm:$0xff] %vm295, %v2628
    %v2631 = vmul.f32 %v2623, %v2596
    %2633 = vrot.lane.b32.xlu0 %v2631, 96
    %v2634 = vpop.permute.xlu0 %2633
    %2636 = vst.msk [vmem:[#allocation9] sm:$0xff] %vm295, %v2634
    %vm2637 = vcmp.gt.f32.partialorder %v2465, 0.0
    %v2638 = vld [vmem:[#allocation10] sm:$0xff]
    %v2639 = vsel %vm2637, 1, 0
    %2640 = vset.pattern.permute.xlu0 0
    %2641 = vperm.xlu0 %2640, %v2639
    %v2642 = vpop.permute.xlu0 %2641
    %vm2643 = vcmp.eq.s32.totalorder %v2642, 1
    %2645 = vrot.lane.b32.xlu0 %v2638, 96
    %v2646 = vpop.permute.xlu0 %2645
    %v2648 = vsel %vm2643, %v2560, %v2646
    %2650 = vrot.lane.b32.xlu0 %v2648, 32
    %v2651 = vpop.permute.xlu0 %2650
    %2653 = vst.msk [vmem:[#allocation10] sm:$0xff] %vm295, %v2651
    %v2654 = vld [vmem:[%s1 + $0x18] sm:$0xff]
    %v2655 = vld [vmem:[%s1 + $0x20] sm:$0xff]
    %v2656 = vld [vmem:[#allocation2 + $0x18] sm:$0xff]
    %v2657 = vld [vmem:[#allocation6] sm:$0xff]
    %v2659 = vsel %vm295, %v2657, 0
    %2661 = vmatpush.msra.mxu0 0.0
    %2662 = vmatpush.msra.mxu0 0.0
    %2663 = vmatpush.msra.mxu0 0.0
    %2664 = vmatpush.msra.mxu0 0.0
    %2665 = vmatpush.msra.mxu0 0.0
    %2666 = vmatpush.msra.mxu0 0.0
    %2667 = vmatpush.msra.mxu0 0.0
    %2668 = vmatpush.msra.mxu0 0.0
    %2669 = vmatpush.msra.mxu0 0.0
    %2670 = vmatpush.msra.mxu0 0.0
    %2671 = vmatpush.msra.mxu0 0.0
    %2672 = vmatpush.msra.mxu0 0.0
    %2673 = vmatpush.msra.mxu0 %v2077
    %2674 = vmatpush.msra.mxu0 %v2076
    %2675 = vmatpush.msra.mxu0 %v2075
    %2676 = vmatpush.msra.mxu0 %v2074
    %2677 = vmatmul.f32.gmra.mxu0 %v2659
    %v2678 = vpop.f32.mrf.mxu0
    %v2679 = vadd.f32 0.0, %v2678
    %2680 = vdwg.mxu0
    %v2681 = vadd.f32 %v2656, %v2679
    %v2682 = vld [vmem:[#allocation3 + $0x20] sm:$0xff]
    %v2683 = vld [vmem:[#allocation8] sm:$0xff]
    %v2685 = vsel %vm295, %v2683, 0
    %2687 = vmatpush.msra.mxu0 0.0
    %2688 = vmatpush.msra.mxu0 0.0
    %2689 = vmatpush.msra.mxu0 0.0
    %2690 = vmatpush.msra.mxu0 0.0
    %2691 = vmatpush.msra.mxu0 0.0
    %2692 = vmatpush.msra.mxu0 0.0
    %2693 = vmatpush.msra.mxu0 0.0
    %2694 = vmatpush.msra.mxu0 0.0
    %2695 = vmatpush.msra.mxu0 0.0
    %2696 = vmatpush.msra.mxu0 0.0
    %2697 = vmatpush.msra.mxu0 0.0
    %2698 = vmatpush.msra.mxu0 0.0
    %2699 = vmatpush.msra.mxu0 %v2081
    %2700 = vmatpush.msra.mxu0 %v2080
    %2701 = vmatpush.msra.mxu0 %v2079
    %2702 = vmatpush.msra.mxu0 %v2078
    %2703 = vmatmul.f32.gmra.mxu0 %v2685
    %v2704 = vpop.f32.mrf.mxu0
    %v2705 = vadd.f32 0.0, %v2704
    %2706 = vdwg.mxu0
    %v2707 = vadd.f32 %v2682, %v2705
    %v2708 = vld [vmem:[#allocation7] sm:$0xff]
    %v2709 = vxor.u32 %v2681, 2147483648
    %v2710 = vmul.f32 %v2709, 1.442695
    %v2711 = vpow.pop %v2710
    %v2712 = vadd.f32 %v2711, 1.0
    %v2713 = vrcp.pop %v2712
    %v2714 = vmul.f32 %v2712, %v2713
    %v2715 = vsub.f32 1.0, %v2714
    %v2716 = vmul.f32 %v2713, %v2715
    %v2717 = vadd.f32 %v2713, %v2716
    %vm2718 = vweird.f32 %v2712
    %vm2719 = vweird.f32 %v2713
    %vm2720 = vmor %vm2718, %vm2719
    %v2721 = vsel %vm2720, %v2713, %v2717
    %v2722 = vand.u32 2147483647, %v2712
    %vm2723 = vcmp.eq.f32.partialorder %v2722, 8.507059e+37
    %v2724 = vand.u32 %v2712, 2147483648
    %v2725 = vor.u32 1.1754944e-38, %v2724
    %v2726 = vsel %vm2723, %v2725, %v2721
    %v2727 = vmul.f32 1.0, %v2726
    %v2728 = vtanh.pop %v2681
    %2730 = vrot.lane.b32.xlu0 %v2708, 32
    %v2731 = vpop.permute.xlu0 %2730
    %v2733 = vmul.f32 %v2727, %v2731
    %2735 = vrot.lane.b32.xlu0 %v2728, 64
    %v2736 = vpop.permute.xlu0 %2735
    %v2738 = vmul.f32 %v2727, %v2736
    %2740 = vrot.lane.b32.xlu0 %v2738, 32
    %v2741 = vpop.permute.xlu0 %2740
    %v2743 = vadd.f32 %v2733, %v2741
    %v2744 = vtanh.pop %v2743
    %2746 = vrot.lane.b32.xlu0 %v2744, 64
    %v2747 = vpop.permute.xlu0 %2746
    %v2749 = vmul.f32 %v2727, %v2747
    %v2750 = vld [vmem:[#allocation9] sm:$0xff]
    %v2751 = vxor.u32 %v2707, 2147483648
    %v2752 = vmul.f32 %v2751, 1.442695
    %v2753 = vpow.pop %v2752
    %v2754 = vadd.f32 %v2753, 1.0
    %v2755 = vrcp.pop %v2754
    %v2756 = vmul.f32 %v2754, %v2755
    %v2757 = vsub.f32 1.0, %v2756
    %v2758 = vmul.f32 %v2755, %v2757
    %v2759 = vadd.f32 %v2755, %v2758
    %vm2760 = vweird.f32 %v2754
    %vm2761 = vweird.f32 %v2755
    %vm2762 = vmor %vm2760, %vm2761
    %v2763 = vsel %vm2762, %v2755, %v2759
    %v2764 = vand.u32 2147483647, %v2754
    %vm2765 = vcmp.eq.f32.partialorder %v2764, 8.507059e+37
    %v2766 = vand.u32 %v2754, 2147483648
    %v2767 = vor.u32 1.1754944e-38, %v2766
    %v2768 = vsel %vm2765, %v2767, %v2763
    %v2769 = vmul.f32 1.0, %v2768
    %v2770 = vtanh.pop %v2707
    %2772 = vrot.lane.b32.xlu0 %v2750, 32
    %v2773 = vpop.permute.xlu0 %2772
    %v2775 = vmul.f32 %v2769, %v2773
    %2777 = vrot.lane.b32.xlu0 %v2770, 64
    %v2778 = vpop.permute.xlu0 %2777
    %v2780 = vmul.f32 %v2769, %v2778
    %2782 = vrot.lane.b32.xlu0 %v2780, 32
    %v2783 = vpop.permute.xlu0 %2782
    %v2785 = vadd.f32 %v2775, %v2783
    %v2786 = vtanh.pop %v2785
    %2788 = vrot.lane.b32.xlu0 %v2786, 64
    %v2789 = vpop.permute.xlu0 %2788
    %v2791 = vmul.f32 %v2769, %v2789
    %2793 = vset.pattern.permute.xlu0 0
    %2794 = vperm.xlu0 %2793, %v2654
    %v2795 = vpop.permute.xlu0 %2794
    %v2797 = vmul.f32 %v2795, %v2749
    %2799 = vrot.lane.b32.xlu0 %v2797, 32
    %v2800 = vpop.permute.xlu0 %2799
    %2802 = vst.msk [vmem:[#allocation6] sm:$0xff] %vm295, %v2800
    %v2803 = vmul.f32 %v2795, %v2743
    %2805 = vrot.lane.b32.xlu0 %v2803, 96
    %v2806 = vpop.permute.xlu0 %2805
    %2808 = vst.msk [vmem:[#allocation7] sm:$0xff] %vm295, %v2806
    %2810 = vset.pattern.permute.xlu0 0
    %2811 = vperm.xlu0 %2810, %v2655
    %v2812 = vpop.permute.xlu0 %2811
    %v2814 = vmul.f32 %v2812, %v2791
    %2816 = vrot.lane.b32.xlu0 %v2814, 32
    %v2817 = vpop.permute.xlu0 %2816
    %2819 = vst.msk [vmem:[#allocation8] sm:$0xff] %vm295, %v2817
    %v2820 = vmul.f32 %v2812, %v2785
    %2822 = vrot.lane.b32.xlu0 %v2820, 96
    %v2823 = vpop.permute.xlu0 %2822
    %2825 = vst.msk [vmem:[#allocation9] sm:$0xff] %vm295, %v2823
    %vm2826 = vcmp.gt.f32.partialorder %v2654, 0.0
    %v2827 = vld [vmem:[#allocation10] sm:$0xff]
    %v2828 = vsel %vm2826, 1, 0
    %2829 = vset.pattern.permute.xlu0 0
    %2830 = vperm.xlu0 %2829, %v2828
    %v2831 = vpop.permute.xlu0 %2830
    %vm2832 = vcmp.eq.s32.totalorder %v2831, 1
    %2834 = vrot.lane.b32.xlu0 %v2827, 96
    %v2835 = vpop.permute.xlu0 %2834
    %v2837 = vsel %vm2832, %v2749, %v2835
    %2839 = vrot.lane.b32.xlu0 %v2837, 32
    %v2840 = vpop.permute.xlu0 %2839
    %2842 = vst.msk [vmem:[#allocation10] sm:$0xff] %vm295, %v2840
    %v2843 = vld [vmem:[%s1 + $0x20] sm:$0xff]
    %v2844 = vld [vmem:[%s1 + $0x18] sm:$0xff]
    %v2845 = vld [vmem:[#allocation2 + $0x20] sm:$0xff]
    %v2846 = vld [vmem:[#allocation6] sm:$0xff]
    %v2848 = vsel %vm295, %v2846, 0
    %2850 = vmatpush.msra.mxu0 0.0
    %2851 = vmatpush.msra.mxu0 0.0
    %2852 = vmatpush.msra.mxu0 0.0
    %2853 = vmatpush.msra.mxu0 0.0
    %2854 = vmatpush.msra.mxu0 0.0
    %2855 = vmatpush.msra.mxu0 0.0
    %2856 = vmatpush.msra.mxu0 0.0
    %2857 = vmatpush.msra.mxu0 0.0
    %2858 = vmatpush.msra.mxu0 0.0
    %2859 = vmatpush.msra.mxu0 0.0
    %2860 = vmatpush.msra.mxu0 0.0
    %2861 = vmatpush.msra.mxu0 0.0
    %2862 = vmatpush.msra.mxu0 %v2077
    %2863 = vmatpush.msra.mxu0 %v2076
    %2864 = vmatpush.msra.mxu0 %v2075
    %2865 = vmatpush.msra.mxu0 %v2074
    %2866 = vmatmul.f32.gmra.mxu0 %v2848
    %v2867 = vpop.f32.mrf.mxu0
    %v2868 = vadd.f32 0.0, %v2867
    %2869 = vdwg.mxu0
    %v2870 = vadd.f32 %v2845, %v2868
    %v2871 = vld [vmem:[#allocation3 + $0x18] sm:$0xff]
    %v2872 = vld [vmem:[#allocation8] sm:$0xff]
    %v2874 = vsel %vm295, %v2872, 0
    %2876 = vmatpush.msra.mxu0 0.0
    %2877 = vmatpush.msra.mxu0 0.0
    %2878 = vmatpush.msra.mxu0 0.0
    %2879 = vmatpush.msra.mxu0 0.0
    %2880 = vmatpush.msra.mxu0 0.0
    %2881 = vmatpush.msra.mxu0 0.0
    %2882 = vmatpush.msra.mxu0 0.0
    %2883 = vmatpush.msra.mxu0 0.0
    %2884 = vmatpush.msra.mxu0 0.0
    %2885 = vmatpush.msra.mxu0 0.0
    %2886 = vmatpush.msra.mxu0 0.0
    %2887 = vmatpush.msra.mxu0 0.0
    %2888 = vmatpush.msra.mxu0 %v2081
    %2889 = vmatpush.msra.mxu0 %v2080
    %2890 = vmatpush.msra.mxu0 %v2079
    %2891 = vmatpush.msra.mxu0 %v2078
    %2892 = vmatmul.f32.gmra.mxu0 %v2874
    %v2893 = vpop.f32.mrf.mxu0
    %v2894 = vadd.f32 0.0, %v2893
    %2895 = vdwg.mxu0
    %v2896 = vadd.f32 %v2871, %v2894
    %v2897 = vld [vmem:[#allocation7] sm:$0xff]
    %v2898 = vxor.u32 %v2870, 2147483648
    %v2899 = vmul.f32 %v2898, 1.442695
    %v2900 = vpow.pop %v2899
    %v2901 = vadd.f32 %v2900, 1.0
    %v2902 = vrcp.pop %v2901
    %v2903 = vmul.f32 %v2901, %v2902
    %v2904 = vsub.f32 1.0, %v2903
    %v2905 = vmul.f32 %v2902, %v2904
    %v2906 = vadd.f32 %v2902, %v2905
    %vm2907 = vweird.f32 %v2901
    %vm2908 = vweird.f32 %v2902
    %vm2909 = vmor %vm2907, %vm2908
    %v2910 = vsel %vm2909, %v2902, %v2906
    %v2911 = vand.u32 2147483647, %v2901
    %vm2912 = vcmp.eq.f32.partialorder %v2911, 8.507059e+37
    %v2913 = vand.u32 %v2901, 2147483648
    %v2914 = vor.u32 1.1754944e-38, %v2913
    %v2915 = vsel %vm2912, %v2914, %v2910
    %v2916 = vmul.f32 1.0, %v2915
    %v2917 = vtanh.pop %v2870
    %2919 = vrot.lane.b32.xlu0 %v2897, 32
    %v2920 = vpop.permute.xlu0 %2919
    %v2922 = vmul.f32 %v2916, %v2920
    %2924 = vrot.lane.b32.xlu0 %v2917, 64
    %v2925 = vpop.permute.xlu0 %2924
    %v2927 = vmul.f32 %v2916, %v2925
    %2929 = vrot.lane.b32.xlu0 %v2927, 32
    %v2930 = vpop.permute.xlu0 %2929
    %v2932 = vadd.f32 %v2922, %v2930
    %v2933 = vtanh.pop %v2932
    %2935 = vrot.lane.b32.xlu0 %v2933, 64
    %v2936 = vpop.permute.xlu0 %2935
    %v2938 = vmul.f32 %v2916, %v2936
    %v2939 = vld [vmem:[#allocation9] sm:$0xff]
    %v2940 = vxor.u32 %v2896, 2147483648
    %v2941 = vmul.f32 %v2940, 1.442695
    %v2942 = vpow.pop %v2941
    %v2943 = vadd.f32 %v2942, 1.0
    %v2944 = vrcp.pop %v2943
    %v2945 = vmul.f32 %v2943, %v2944
    %v2946 = vsub.f32 1.0, %v2945
    %v2947 = vmul.f32 %v2944, %v2946
    %v2948 = vadd.f32 %v2944, %v2947
    %vm2949 = vweird.f32 %v2943
    %vm2950 = vweird.f32 %v2944
    %vm2951 = vmor %vm2949, %vm2950
    %v2952 = vsel %vm2951, %v2944, %v2948
    %v2953 = vand.u32 2147483647, %v2943
    %vm2954 = vcmp.eq.f32.partialorder %v2953, 8.507059e+37
    %v2955 = vand.u32 %v2943, 2147483648
    %v2956 = vor.u32 1.1754944e-38, %v2955
    %v2957 = vsel %vm2954, %v2956, %v2952
    %v2958 = vmul.f32 1.0, %v2957
    %v2959 = vtanh.pop %v2896
    %2961 = vrot.lane.b32.xlu0 %v2939, 32
    %v2962 = vpop.permute.xlu0 %2961
    %v2964 = vmul.f32 %v2958, %v2962
    %2966 = vrot.lane.b32.xlu0 %v2959, 64
    %v2967 = vpop.permute.xlu0 %2966
    %v2969 = vmul.f32 %v2958, %v2967
    %2971 = vrot.lane.b32.xlu0 %v2969, 32
    %v2972 = vpop.permute.xlu0 %2971
    %v2974 = vadd.f32 %v2964, %v2972
    %v2975 = vtanh.pop %v2974
    %2977 = vrot.lane.b32.xlu0 %v2975, 64
    %v2978 = vpop.permute.xlu0 %2977
    %v2980 = vmul.f32 %v2958, %v2978
    %2982 = vset.pattern.permute.xlu0 0
    %2983 = vperm.xlu0 %2982, %v2843
    %v2984 = vpop.permute.xlu0 %2983
    %v2986 = vmul.f32 %v2984, %v2938
    %2988 = vrot.lane.b32.xlu0 %v2986, 32
    %v2989 = vpop.permute.xlu0 %2988
    %2991 = vst.msk [vmem:[#allocation6] sm:$0xff] %vm295, %v2989
    %v2992 = vmul.f32 %v2984, %v2932
    %2994 = vrot.lane.b32.xlu0 %v2992, 96
    %v2995 = vpop.permute.xlu0 %2994
    %2997 = vst.msk [vmem:[#allocation7] sm:$0xff] %vm295, %v2995
    %2999 = vset.pattern.permute.xlu0 0
    %3000 = vperm.xlu0 %2999, %v2844
    %v3001 = vpop.permute.xlu0 %3000
    %v3003 = vmul.f32 %v3001, %v2980
    %3005 = vrot.lane.b32.xlu0 %v3003, 32
    %v3006 = vpop.permute.xlu0 %3005
    %3008 = vst.msk [vmem:[#allocation8] sm:$0xff] %vm295, %v3006
    %v3009 = vmul.f32 %v3001, %v2974
    %3011 = vrot.lane.b32.xlu0 %v3009, 96
    %v3012 = vpop.permute.xlu0 %3011
    %3014 = vst.msk [vmem:[#allocation9] sm:$0xff] %vm295, %v3012
    %vm3015 = vcmp.gt.f32.partialorder %v2843, 0.0
    %v3016 = vld [vmem:[#allocation10] sm:$0xff]
    %v3017 = vsel %vm3015, 1, 0
    %3018 = vset.pattern.permute.xlu0 0
    %3019 = vperm.xlu0 %3018, %v3017
    %v3020 = vpop.permute.xlu0 %3019
    %vm3021 = vcmp.eq.s32.totalorder %v3020, 1
    %3023 = vrot.lane.b32.xlu0 %v3016, 96
    %v3024 = vpop.permute.xlu0 %3023
    %v3026 = vsel %vm3021, %v2938, %v3024
    %3028 = vrot.lane.b32.xlu0 %v3026, 32
    %v3029 = vpop.permute.xlu0 %3028
    %3031 = vst.msk [vmem:[#allocation10] sm:$0xff] %vm295, %v3029
    %v3032 = vld [vmem:[%s1 + $0x28] sm:$0xff]
    %v3033 = vld [vmem:[%s1 + $0x10] sm:$0xff]
    %v3034 = vld [vmem:[#allocation2 + $0x28] sm:$0xff]
    %v3035 = vld [vmem:[#allocation6] sm:$0xff]
    %v3037 = vsel %vm295, %v3035, 0
    %3039 = vmatpush.msra.mxu0 0.0
    %3040 = vmatpush.msra.mxu0 0.0
    %3041 = vmatpush.msra.mxu0 0.0
    %3042 = vmatpush.msra.mxu0 0.0
    %3043 = vmatpush.msra.mxu0 0.0
    %3044 = vmatpush.msra.mxu0 0.0
    %3045 = vmatpush.msra.mxu0 0.0
    %3046 = vmatpush.msra.mxu0 0.0
    %3047 = vmatpush.msra.mxu0 0.0
    %3048 = vmatpush.msra.mxu0 0.0
    %3049 = vmatpush.msra.mxu0 0.0
    %3050 = vmatpush.msra.mxu0 0.0
    %3051 = vmatpush.msra.mxu0 %v2077
    %3052 = vmatpush.msra.mxu0 %v2076
    %3053 = vmatpush.msra.mxu0 %v2075
    %3054 = vmatpush.msra.mxu0 %v2074
    %3055 = vmatmul.f32.gmra.mxu0 %v3037
    %v3056 = vpop.f32.mrf.mxu0
    %v3057 = vadd.f32 0.0, %v3056
    %3058 = vdwg.mxu0
    %v3059 = vadd.f32 %v3034, %v3057
    %v3060 = vld [vmem:[#allocation3 + $0x10] sm:$0xff]
    %v3061 = vld [vmem:[#allocation8] sm:$0xff]
    %v3063 = vsel %vm295, %v3061, 0
    %3065 = vmatpush.msra.mxu0 0.0
    %3066 = vmatpush.msra.mxu0 0.0
    %3067 = vmatpush.msra.mxu0 0.0
    %3068 = vmatpush.msra.mxu0 0.0
    %3069 = vmatpush.msra.mxu0 0.0
    %3070 = vmatpush.msra.mxu0 0.0
    %3071 = vmatpush.msra.mxu0 0.0
    %3072 = vmatpush.msra.mxu0 0.0
    %3073 = vmatpush.msra.mxu0 0.0
    %3074 = vmatpush.msra.mxu0 0.0
    %3075 = vmatpush.msra.mxu0 0.0
    %3076 = vmatpush.msra.mxu0 0.0
    %3077 = vmatpush.msra.mxu0 %v2081
    %3078 = vmatpush.msra.mxu0 %v2080
    %3079 = vmatpush.msra.mxu0 %v2079
    %3080 = vmatpush.msra.mxu0 %v2078
    %3081 = vmatmul.f32.gmra.mxu0 %v3063
    %v3082 = vpop.f32.mrf.mxu0
    %v3083 = vadd.f32 0.0, %v3082
    %3084 = vdwg.mxu0
    %v3085 = vadd.f32 %v3060, %v3083
    %v3086 = vld [vmem:[#allocation7] sm:$0xff]
    %v3087 = vxor.u32 %v3059, 2147483648
    %v3088 = vmul.f32 %v3087, 1.442695
    %v3089 = vpow.pop %v3088
    %v3090 = vadd.f32 %v3089, 1.0
    %v3091 = vrcp.pop %v3090
    %v3092 = vmul.f32 %v3090, %v3091
    %v3093 = vsub.f32 1.0, %v3092
    %v3094 = vmul.f32 %v3091, %v3093
    %v3095 = vadd.f32 %v3091, %v3094
    %vm3096 = vweird.f32 %v3090
    %vm3097 = vweird.f32 %v3091
    %vm3098 = vmor %vm3096, %vm3097
    %v3099 = vsel %vm3098, %v3091, %v3095
    %v3100 = vand.u32 2147483647, %v3090
    %vm3101 = vcmp.eq.f32.partialorder %v3100, 8.507059e+37
    %v3102 = vand.u32 %v3090, 2147483648
    %v3103 = vor.u32 1.1754944e-38, %v3102
    %v3104 = vsel %vm3101, %v3103, %v3099
    %v3105 = vmul.f32 1.0, %v3104
    %v3106 = vtanh.pop %v3059
    %3108 = vrot.lane.b32.xlu0 %v3086, 32
    %v3109 = vpop.permute.xlu0 %3108
    %v3111 = vmul.f32 %v3105, %v3109
    %3113 = vrot.lane.b32.xlu0 %v3106, 64
    %v3114 = vpop.permute.xlu0 %3113
    %v3116 = vmul.f32 %v3105, %v3114
    %3118 = vrot.lane.b32.xlu0 %v3116, 32
    %v3119 = vpop.permute.xlu0 %3118
    %v3121 = vadd.f32 %v3111, %v3119
    %v3122 = vtanh.pop %v3121
    %3124 = vrot.lane.b32.xlu0 %v3122, 64
    %v3125 = vpop.permute.xlu0 %3124
    %v3127 = vmul.f32 %v3105, %v3125
    %v3128 = vld [vmem:[#allocation9] sm:$0xff]
    %v3129 = vxor.u32 %v3085, 2147483648
    %v3130 = vmul.f32 %v3129, 1.442695
    %v3131 = vpow.pop %v3130
    %v3132 = vadd.f32 %v3131, 1.0
    %v3133 = vrcp.pop %v3132
    %v3134 = vmul.f32 %v3132, %v3133
    %v3135 = vsub.f32 1.0, %v3134
    %v3136 = vmul.f32 %v3133, %v3135
    %v3137 = vadd.f32 %v3133, %v3136
    %vm3138 = vweird.f32 %v3132
    %vm3139 = vweird.f32 %v3133
    %vm3140 = vmor %vm3138, %vm3139
    %v3141 = vsel %vm3140, %v3133, %v3137
    %v3142 = vand.u32 2147483647, %v3132
    %vm3143 = vcmp.eq.f32.partialorder %v3142, 8.507059e+37
    %v3144 = vand.u32 %v3132, 2147483648
    %v3145 = vor.u32 1.1754944e-38, %v3144
    %v3146 = vsel %vm3143, %v3145, %v3141
    %v3147 = vmul.f32 1.0, %v3146
    %v3148 = vtanh.pop %v3085
    %3150 = vrot.lane.b32.xlu0 %v3128, 32
    %v3151 = vpop.permute.xlu0 %3150
    %v3153 = vmul.f32 %v3147, %v3151
    %3155 = vrot.lane.b32.xlu0 %v3148, 64
    %v3156 = vpop.permute.xlu0 %3155
    %v3158 = vmul.f32 %v3147, %v3156
    %3160 = vrot.lane.b32.xlu0 %v3158, 32
    %v3161 = vpop.permute.xlu0 %3160
    %v3163 = vadd.f32 %v3153, %v3161
    %v3164 = vtanh.pop %v3163
    %3166 = vrot.lane.b32.xlu0 %v3164, 64
    %v3167 = vpop.permute.xlu0 %3166
    %v3169 = vmul.f32 %v3147, %v3167
    %3171 = vset.pattern.permute.xlu0 0
    %3172 = vperm.xlu0 %3171, %v3032
    %v3173 = vpop.permute.xlu0 %3172
    %v3175 = vmul.f32 %v3173, %v3127
    %3177 = vrot.lane.b32.xlu0 %v3175, 32
    %v3178 = vpop.permute.xlu0 %3177
    %3180 = vst.msk [vmem:[#allocation6] sm:$0xff] %vm295, %v3178
    %v3181 = vmul.f32 %v3173, %v3121
    %3183 = vrot.lane.b32.xlu0 %v3181, 96
    %v3184 = vpop.permute.xlu0 %3183
    %3186 = vst.msk [vmem:[#allocation7] sm:$0xff] %vm295, %v3184
    %3188 = vset.pattern.permute.xlu0 0
    %3189 = vperm.xlu0 %3188, %v3033
    %v3190 = vpop.permute.xlu0 %3189
    %v3192 = vmul.f32 %v3190, %v3169
    %3194 = vrot.lane.b32.xlu0 %v3192, 32
    %v3195 = vpop.permute.xlu0 %3194
    %3197 = vst.msk [vmem:[#allocation8] sm:$0xff] %vm295, %v3195
    %v3198 = vmul.f32 %v3190, %v3163
    %3200 = vrot.lane.b32.xlu0 %v3198, 96
    %v3201 = vpop.permute.xlu0 %3200
    %3203 = vst.msk [vmem:[#allocation9] sm:$0xff] %vm295, %v3201
    %vm3204 = vcmp.gt.f32.partialorder %v3032, 0.0
    %v3205 = vld [vmem:[#allocation10] sm:$0xff]
    %v3206 = vsel %vm3204, 1, 0
    %3207 = vset.pattern.permute.xlu0 0
    %3208 = vperm.xlu0 %3207, %v3206
    %v3209 = vpop.permute.xlu0 %3208
    %vm3210 = vcmp.eq.s32.totalorder %v3209, 1
    %3212 = vrot.lane.b32.xlu0 %v3205, 96
    %v3213 = vpop.permute.xlu0 %3212
    %v3215 = vsel %vm3210, %v3127, %v3213
    %3217 = vrot.lane.b32.xlu0 %v3215, 32
    %v3218 = vpop.permute.xlu0 %3217
    %3220 = vst.msk [vmem:[#allocation10] sm:$0xff] %vm295, %v3218
    %v3221 = vld [vmem:[%s1 + $0x30] sm:$0xff]
    %v3222 = vld [vmem:[%s1 + $0x8] sm:$0xff]
    %v3223 = vld [vmem:[#allocation2 + $0x30] sm:$0xff]
    %v3224 = vld [vmem:[#allocation6] sm:$0xff]
    %v3226 = vsel %vm295, %v3224, 0
    %3228 = vmatpush.msra.mxu0 0.0
    %3229 = vmatpush.msra.mxu0 0.0
    %3230 = vmatpush.msra.mxu0 0.0
    %3231 = vmatpush.msra.mxu0 0.0
    %3232 = vmatpush.msra.mxu0 0.0
    %3233 = vmatpush.msra.mxu0 0.0
    %3234 = vmatpush.msra.mxu0 0.0
    %3235 = vmatpush.msra.mxu0 0.0
    %3236 = vmatpush.msra.mxu0 0.0
    %3237 = vmatpush.msra.mxu0 0.0
    %3238 = vmatpush.msra.mxu0 0.0
    %3239 = vmatpush.msra.mxu0 0.0
    %3240 = vmatpush.msra.mxu0 %v2077
    %3241 = vmatpush.msra.mxu0 %v2076
    %3242 = vmatpush.msra.mxu0 %v2075
    %3243 = vmatpush.msra.mxu0 %v2074
    %3244 = vmatmul.f32.gmra.mxu0 %v3226
    %v3245 = vpop.f32.mrf.mxu0
    %v3246 = vadd.f32 0.0, %v3245
    %3247 = vdwg.mxu0
    %v3248 = vadd.f32 %v3223, %v3246
    %v3249 = vld [vmem:[#allocation3 + $0x8] sm:$0xff]
    %v3250 = vld [vmem:[#allocation8] sm:$0xff]
    %v3252 = vsel %vm295, %v3250, 0
    %3254 = vmatpush.msra.mxu0 0.0
    %3255 = vmatpush.msra.mxu0 0.0
    %3256 = vmatpush.msra.mxu0 0.0
    %3257 = vmatpush.msra.mxu0 0.0
    %3258 = vmatpush.msra.mxu0 0.0
    %3259 = vmatpush.msra.mxu0 0.0
    %3260 = vmatpush.msra.mxu0 0.0
    %3261 = vmatpush.msra.mxu0 0.0
    %3262 = vmatpush.msra.mxu0 0.0
    %3263 = vmatpush.msra.mxu0 0.0
    %3264 = vmatpush.msra.mxu0 0.0
    %3265 = vmatpush.msra.mxu0 0.0
    %3266 = vmatpush.msra.mxu0 %v2081
    %3267 = vmatpush.msra.mxu0 %v2080
    %3268 = vmatpush.msra.mxu0 %v2079
    %3269 = vmatpush.msra.mxu0 %v2078
    %3270 = vmatmul.f32.gmra.mxu0 %v3252
    %v3271 = vpop.f32.mrf.mxu0
    %v3272 = vadd.f32 0.0, %v3271
    %3273 = vdwg.mxu0
    %v3274 = vadd.f32 %v3249, %v3272
    %v3275 = vld [vmem:[#allocation7] sm:$0xff]
    %v3276 = vxor.u32 %v3248, 2147483648
    %v3277 = vmul.f32 %v3276, 1.442695
    %v3278 = vpow.pop %v3277
    %v3279 = vadd.f32 %v3278, 1.0
    %v3280 = vrcp.pop %v3279
    %v3281 = vmul.f32 %v3279, %v3280
    %v3282 = vsub.f32 1.0, %v3281
    %v3283 = vmul.f32 %v3280, %v3282
    %v3284 = vadd.f32 %v3280, %v3283
    %vm3285 = vweird.f32 %v3279
    %vm3286 = vweird.f32 %v3280
    %vm3287 = vmor %vm3285, %vm3286
    %v3288 = vsel %vm3287, %v3280, %v3284
    %v3289 = vand.u32 2147483647, %v3279
    %vm3290 = vcmp.eq.f32.partialorder %v3289, 8.507059e+37
    %v3291 = vand.u32 %v3279, 2147483648
    %v3292 = vor.u32 1.1754944e-38, %v3291
    %v3293 = vsel %vm3290, %v3292, %v3288
    %v3294 = vmul.f32 1.0, %v3293
    %v3295 = vtanh.pop %v3248
    %3297 = vrot.lane.b32.xlu0 %v3275, 32
    %v3298 = vpop.permute.xlu0 %3297
    %v3300 = vmul.f32 %v3294, %v3298
    %3302 = vrot.lane.b32.xlu0 %v3295, 64
    %v3303 = vpop.permute.xlu0 %3302
    %v3305 = vmul.f32 %v3294, %v3303
    %3307 = vrot.lane.b32.xlu0 %v3305, 32
    %v3308 = vpop.permute.xlu0 %3307
    %v3310 = vadd.f32 %v3300, %v3308
    %v3311 = vtanh.pop %v3310
    %3313 = vrot.lane.b32.xlu0 %v3311, 64
    %v3314 = vpop.permute.xlu0 %3313
    %v3316 = vmul.f32 %v3294, %v3314
    %v3317 = vld [vmem:[#allocation9] sm:$0xff]
    %v3318 = vxor.u32 %v3274, 2147483648
    %v3319 = vmul.f32 %v3318, 1.442695
    %v3320 = vpow.pop %v3319
    %v3321 = vadd.f32 %v3320, 1.0
    %v3322 = vrcp.pop %v3321
    %v3323 = vmul.f32 %v3321, %v3322
    %v3324 = vsub.f32 1.0, %v3323
    %v3325 = vmul.f32 %v3322, %v3324
    %v3326 = vadd.f32 %v3322, %v3325
    %vm3327 = vweird.f32 %v3321
    %vm3328 = vweird.f32 %v3322
    %vm3329 = vmor %vm3327, %vm3328
    %v3330 = vsel %vm3329, %v3322, %v3326
    %v3331 = vand.u32 2147483647, %v3321
    %vm3332 = vcmp.eq.f32.partialorder %v3331, 8.507059e+37
    %v3333 = vand.u32 %v3321, 2147483648
    %v3334 = vor.u32 1.1754944e-38, %v3333
    %v3335 = vsel %vm3332, %v3334, %v3330
    %v3336 = vmul.f32 1.0, %v3335
    %v3337 = vtanh.pop %v3274
    %3339 = vrot.lane.b32.xlu0 %v3317, 32
    %v3340 = vpop.permute.xlu0 %3339
    %v3342 = vmul.f32 %v3336, %v3340
    %3344 = vrot.lane.b32.xlu0 %v3337, 64
    %v3345 = vpop.permute.xlu0 %3344
    %v3347 = vmul.f32 %v3336, %v3345
    %3349 = vrot.lane.b32.xlu0 %v3347, 32
    %v3350 = vpop.permute.xlu0 %3349
    %v3352 = vadd.f32 %v3342, %v3350
    %v3353 = vtanh.pop %v3352
    %3355 = vrot.lane.b32.xlu0 %v3353, 64
    %v3356 = vpop.permute.xlu0 %3355
    %v3358 = vmul.f32 %v3336, %v3356
    %3360 = vset.pattern.permute.xlu0 0
    %3361 = vperm.xlu0 %3360, %v3221
    %v3362 = vpop.permute.xlu0 %3361
    %v3364 = vmul.f32 %v3362, %v3316
    %3366 = vrot.lane.b32.xlu0 %v3364, 32
    %v3367 = vpop.permute.xlu0 %3366
    %3369 = vst.msk [vmem:[#allocation6] sm:$0xff] %vm295, %v3367
    %v3370 = vmul.f32 %v3362, %v3310
    %3372 = vrot.lane.b32.xlu0 %v3370, 96
    %v3373 = vpop.permute.xlu0 %3372
    %3375 = vst.msk [vmem:[#allocation7] sm:$0xff] %vm295, %v3373
    %3377 = vset.pattern.permute.xlu0 0
    %3378 = vperm.xlu0 %3377, %v3222
    %v3379 = vpop.permute.xlu0 %3378
    %v3381 = vmul.f32 %v3379, %v3358
    %3383 = vrot.lane.b32.xlu0 %v3381, 32
    %v3384 = vpop.permute.xlu0 %3383
    %3386 = vst.msk [vmem:[#allocation8] sm:$0xff] %vm295, %v3384
    %v3387 = vmul.f32 %v3379, %v3352
    %3389 = vrot.lane.b32.xlu0 %v3387, 96
    %v3390 = vpop.permute.xlu0 %3389
    %3392 = vst.msk [vmem:[#allocation9] sm:$0xff] %vm295, %v3390
    %vm3393 = vcmp.gt.f32.partialorder %v3221, 0.0
    %v3394 = vld [vmem:[#allocation10] sm:$0xff]
    %v3395 = vsel %vm3393, 1, 0
    %3396 = vset.pattern.permute.xlu0 0
    %3397 = vperm.xlu0 %3396, %v3395
    %v3398 = vpop.permute.xlu0 %3397
    %vm3399 = vcmp.eq.s32.totalorder %v3398, 1
    %3401 = vrot.lane.b32.xlu0 %v3394, 96
    %v3402 = vpop.permute.xlu0 %3401
    %v3404 = vsel %vm3399, %v3316, %v3402
    %3406 = vrot.lane.b32.xlu0 %v3404, 32
    %v3407 = vpop.permute.xlu0 %3406
    %3409 = vst.msk [vmem:[#allocation10] sm:$0xff] %vm295, %v3407
    %v3410 = vld [vmem:[%s1 + $0x38] sm:$0xff]
    %v3411 = vld [vmem:[%s1] sm:$0xff]
    %v3412 = vld [vmem:[#allocation2 + $0x38] sm:$0xff]
    %v3413 = vld [vmem:[#allocation6] sm:$0xff]
    %v3415 = vsel %vm295, %v3413, 0
    %3417 = vmatpush.msra.mxu0 0.0
    %3418 = vmatpush.msra.mxu0 0.0
    %3419 = vmatpush.msra.mxu0 0.0
    %3420 = vmatpush.msra.mxu0 0.0
    %3421 = vmatpush.msra.mxu0 0.0
    %3422 = vmatpush.msra.mxu0 0.0
    %3423 = vmatpush.msra.mxu0 0.0
    %3424 = vmatpush.msra.mxu0 0.0
    %3425 = vmatpush.msra.mxu0 0.0
    %3426 = vmatpush.msra.mxu0 0.0
    %3427 = vmatpush.msra.mxu0 0.0
    %3428 = vmatpush.msra.mxu0 0.0
    %3429 = vmatpush.msra.mxu0 %v2077
    %3430 = vmatpush.msra.mxu0 %v2076
    %3431 = vmatpush.msra.mxu0 %v2075
    %3432 = vmatpush.msra.mxu0 %v2074
    %3433 = vmatmul.f32.gmra.mxu0 %v3415
    %v3434 = vpop.f32.mrf.mxu0
    %v3435 = vadd.f32 0.0, %v3434
    %3436 = vdwg.mxu0
    %v3437 = vadd.f32 %v3412, %v3435
    %v3438 = vld [vmem:[#allocation3] sm:$0xff]
    %v3439 = vld [vmem:[#allocation8] sm:$0xff]
    %v3441 = vsel %vm295, %v3439, 0
    %3443 = vmatpush.msra.mxu0 0.0
    %3444 = vmatpush.msra.mxu0 0.0
    %3445 = vmatpush.msra.mxu0 0.0
    %3446 = vmatpush.msra.mxu0 0.0
    %3447 = vmatpush.msra.mxu0 0.0
    %3448 = vmatpush.msra.mxu0 0.0
    %3449 = vmatpush.msra.mxu0 0.0
    %3450 = vmatpush.msra.mxu0 0.0
    %3451 = vmatpush.msra.mxu0 0.0
    %3452 = vmatpush.msra.mxu0 0.0
    %3453 = vmatpush.msra.mxu0 0.0
    %3454 = vmatpush.msra.mxu0 0.0
    %3455 = vmatpush.msra.mxu0 %v2081
    %3456 = vmatpush.msra.mxu0 %v2080
    %3457 = vmatpush.msra.mxu0 %v2079
    %3458 = vmatpush.msra.mxu0 %v2078
    %3459 = vmatmul.f32.gmra.mxu0 %v3441
    %v3460 = vpop.f32.mrf.mxu0
    %v3461 = vadd.f32 0.0, %v3460
    %3462 = vdwg.mxu0
    %v3463 = vadd.f32 %v3438, %v3461
    %v3464 = vld [vmem:[#allocation7] sm:$0xff]
    %v3465 = vxor.u32 %v3437, 2147483648
    %v3466 = vmul.f32 %v3465, 1.442695
    %v3467 = vpow.pop %v3466
    %v3468 = vadd.f32 %v3467, 1.0
    %v3469 = vrcp.pop %v3468
    %v3470 = vmul.f32 %v3468, %v3469
    %v3471 = vsub.f32 1.0, %v3470
    %v3472 = vmul.f32 %v3469, %v3471
    %v3473 = vadd.f32 %v3469, %v3472
    %vm3474 = vweird.f32 %v3468
    %vm3475 = vweird.f32 %v3469
    %vm3476 = vmor %vm3474, %vm3475
    %v3477 = vsel %vm3476, %v3469, %v3473
    %v3478 = vand.u32 2147483647, %v3468
    %vm3479 = vcmp.eq.f32.partialorder %v3478, 8.507059e+37
    %v3480 = vand.u32 %v3468, 2147483648
    %v3481 = vor.u32 1.1754944e-38, %v3480
    %v3482 = vsel %vm3479, %v3481, %v3477
    %v3483 = vmul.f32 1.0, %v3482
    %v3484 = vtanh.pop %v3437
    %3486 = vrot.lane.b32.xlu0 %v3464, 32
    %v3487 = vpop.permute.xlu0 %3486
    %v3489 = vmul.f32 %v3483, %v3487
    %3491 = vrot.lane.b32.xlu0 %v3484, 64
    %v3492 = vpop.permute.xlu0 %3491
    %v3494 = vmul.f32 %v3483, %v3492
    %3496 = vrot.lane.b32.xlu0 %v3494, 32
    %v3497 = vpop.permute.xlu0 %3496
    %v3499 = vadd.f32 %v3489, %v3497
    %v3500 = vtanh.pop %v3499
    %3502 = vrot.lane.b32.xlu0 %v3500, 64
    %v3503 = vpop.permute.xlu0 %3502
    %v3505 = vmul.f32 %v3483, %v3503
    %v3506 = vld [vmem:[#allocation9] sm:$0xff]
    %v3507 = vxor.u32 %v3463, 2147483648
    %v3508 = vmul.f32 %v3507, 1.442695
    %v3509 = vpow.pop %v3508
    %v3510 = vadd.f32 %v3509, 1.0
    %v3511 = vrcp.pop %v3510
    %v3512 = vmul.f32 %v3510, %v3511
    %v3513 = vsub.f32 1.0, %v3512
    %v3514 = vmul.f32 %v3511, %v3513
    %v3515 = vadd.f32 %v3511, %v3514
    %vm3516 = vweird.f32 %v3510
    %vm3517 = vweird.f32 %v3511
    %vm3518 = vmor %vm3516, %vm3517
    %v3519 = vsel %vm3518, %v3511, %v3515
    %v3520 = vand.u32 2147483647, %v3510
    %vm3521 = vcmp.eq.f32.partialorder %v3520, 8.507059e+37
    %v3522 = vand.u32 %v3510, 2147483648
    %v3523 = vor.u32 1.1754944e-38, %v3522
    %v3524 = vsel %vm3521, %v3523, %v3519
    %v3525 = vmul.f32 1.0, %v3524
    %v3526 = vtanh.pop %v3463
    %3528 = vrot.lane.b32.xlu0 %v3506, 32
    %v3529 = vpop.permute.xlu0 %3528
    %v3531 = vmul.f32 %v3525, %v3529
    %3533 = vrot.lane.b32.xlu0 %v3526, 64
    %v3534 = vpop.permute.xlu0 %3533
    %v3536 = vmul.f32 %v3525, %v3534
    %3538 = vrot.lane.b32.xlu0 %v3536, 32
    %v3539 = vpop.permute.xlu0 %3538
    %v3541 = vadd.f32 %v3531, %v3539
    %v3542 = vtanh.pop %v3541
    %3544 = vrot.lane.b32.xlu0 %v3542, 64
    %v3545 = vpop.permute.xlu0 %3544
    %v3547 = vmul.f32 %v3525, %v3545
    %3549 = vset.pattern.permute.xlu0 0
    %3550 = vperm.xlu0 %3549, %v3410
    %v3551 = vpop.permute.xlu0 %3550
    %v3553 = vmul.f32 %v3551, %v3505
    %3555 = vrot.lane.b32.xlu0 %v3553, 32
    %v3556 = vpop.permute.xlu0 %3555
    %3558 = vst.msk [vmem:[#allocation6] sm:$0xff] %vm295, %v3556
    %v3559 = vmul.f32 %v3551, %v3499
    %3561 = vrot.lane.b32.xlu0 %v3559, 96
    %v3562 = vpop.permute.xlu0 %3561
    %3564 = vst.msk [vmem:[#allocation7] sm:$0xff] %vm295, %v3562
    %3566 = vset.pattern.permute.xlu0 0
    %3567 = vperm.xlu0 %3566, %v3411
    %v3568 = vpop.permute.xlu0 %3567
    %v3570 = vmul.f32 %v3568, %v3547
    %3572 = vrot.lane.b32.xlu0 %v3570, 32
    %v3573 = vpop.permute.xlu0 %3572
    %3575 = vst.msk [vmem:[#allocation8] sm:$0xff] %vm295, %v3573
    %v3576 = vmul.f32 %v3568, %v3541
    %3578 = vrot.lane.b32.xlu0 %v3576, 96
    %v3579 = vpop.permute.xlu0 %3578
    %3581 = vst.msk [vmem:[#allocation9] sm:$0xff] %vm295, %v3579
    %vm3582 = vcmp.gt.f32.partialorder %v3410, 0.0
    %v3583 = vld [vmem:[#allocation10] sm:$0xff]
    %v3584 = vsel %vm3582, 1, 0
    %3585 = vset.pattern.permute.xlu0 0
    %3586 = vperm.xlu0 %3585, %v3584
    %v3587 = vpop.permute.xlu0 %3586
    %vm3588 = vcmp.eq.s32.totalorder %v3587, 1
    %3590 = vrot.lane.b32.xlu0 %v3583, 96
    %v3591 = vpop.permute.xlu0 %3590
    %v3593 = vsel %vm3588, %v3505, %v3591
    %3595 = vrot.lane.b32.xlu0 %v3593, 32
    %v3596 = vpop.permute.xlu0 %3595
    %3598 = vst.msk [vmem:[#allocation10] sm:$0xff] %vm295, %v3596
    %v3599 = vld [vmem:[#allocation10] sm:$0xff]
    %v3600 = vld [vmem:[#allocation8] sm:$0xff]
    %v3601 = vmax.f32 %v3600, 0.0
    %v3602 = vmax.f32 %v3599, 0.0
    %v3603 = vld [vmem:[#allocation29] sm:$0xff]
    %v3604 = vld [vmem:[%s17] sm:$0xff]
    %v3605 = vld [vmem:[%s17 + $0x8] sm:$0xff]
    %v3606 = vld [vmem:[%s17 + $0x10] sm:$0xff]
    %v3607 = vld [vmem:[%s17 + $0x18] sm:$0xff]
    %v3608 = vld [vmem:[%s17 + $0x20] sm:$0xff]
    %v3609 = vld [vmem:[%s17 + $0x28] sm:$0xff]
    %v3610 = vld [vmem:[%s17 + $0x30] sm:$0xff]
    %v3611 = vld [vmem:[%s17 + $0x38] sm:$0xff]
    %v3612 = vld [vmem:[%s17 + $0x40] sm:$0xff]
    %v3613 = vld [vmem:[%s17 + $0x48] sm:$0xff]
    %v3614 = vld [vmem:[%s18] sm:$0x1]
    %v3616 = vperm.slane %v3614, 0
    %vm3618 = vcmask 654336
    %v3620 = vsel %vm3618, %v3603, 0
    %3622 = vmatpush.msra.mxu0 0.0
    %3623 = vmatpush.msra.mxu0 0.0
    %3624 = vmatpush.msra.mxu0 0.0
    %3625 = vmatpush.msra.mxu0 0.0
    %3626 = vmatpush.msra.mxu0 0.0
    %3627 = vmatpush.msra.mxu0 0.0
    %3628 = vmatpush.msra.mxu0 %v3613
    %3629 = vmatpush.msra.mxu0 %v3612
    %3630 = vmatpush.msra.mxu0 %v3611
    %3631 = vmatpush.msra.mxu0 %v3610
    %3632 = vmatpush.msra.mxu0 %v3609
    %3633 = vmatpush.msra.mxu0 %v3608
    %3634 = vmatpush.msra.mxu0 %v3607
    %3635 = vmatpush.msra.mxu0 %v3606
    %3636 = vmatpush.msra.mxu0 %v3605
    %3637 = vmatpush.msra.mxu0 %v3604
    %3638 = vmatmul.f32.gmra.mxu0 %v3620
    %v3639 = vpop.f32.mrf.mxu0
    %v3640 = vadd.f32 %v3616, %v3639
    %3641 = vdwg.mxu0
    %v3642 = vmax.f32 %v3640, 0.0
    %v3643 = vld [vmem:[%s19] sm:$0xff]
    %v3644 = vld [vmem:[%s19 + $0x8] sm:$0xff]
    %v3645 = vld [vmem:[%s19 + $0x10] sm:$0xff]
    %v3646 = vld [vmem:[%s19 + $0x18] sm:$0xff]
    %v3647 = vld [vmem:[%s19 + $0x20] sm:$0xff]
    %v3648 = vld [vmem:[%s19 + $0x28] sm:$0xff]
    %v3649 = vld [vmem:[%s19 + $0x30] sm:$0xff]
    %v3650 = vld [vmem:[%s19 + $0x38] sm:$0xff]
    %v3652 = vsel %vm295, %v3602, 0
    %3654 = vmatpush.msra.mxu0 0.0
    %3655 = vmatpush.msra.mxu0 0.0
    %3656 = vmatpush.msra.mxu0 0.0
    %3657 = vmatpush.msra.mxu0 0.0
    %3658 = vmatpush.msra.mxu0 0.0
    %3659 = vmatpush.msra.mxu0 0.0
    %3660 = vmatpush.msra.mxu0 0.0
    %3661 = vmatpush.msra.mxu0 0.0
    %3662 = vmatpush.msra.mxu0 0.0
    %3663 = vmatpush.msra.mxu0 0.0
    %3664 = vmatpush.msra.mxu0 0.0
    %3665 = vmatpush.msra.mxu0 0.0
    %3666 = vmatpush.msra.mxu0 %v3650
    %3667 = vmatpush.msra.mxu0 %v3649
    %3668 = vmatpush.msra.mxu0 %v3648
    %3669 = vmatpush.msra.mxu0 %v3647
    %3670 = vmatmul.f32.gmra.mxu0 %v3652
    %v3671 = vpop.f32.mrf.mxu0
    %v3672 = vadd.f32 0.0, %v3671
    %3673 = vdwg.mxu0
    %v3675 = vsel %vm295, %v3601, 0
    %3677 = vmatpush.msra.mxu0 0.0
    %3678 = vmatpush.msra.mxu0 0.0
    %3679 = vmatpush.msra.mxu0 0.0
    %3680 = vmatpush.msra.mxu0 0.0
    %3681 = vmatpush.msra.mxu0 0.0
    %3682 = vmatpush.msra.mxu0 0.0
    %3683 = vmatpush.msra.mxu0 0.0
    %3684 = vmatpush.msra.mxu0 0.0
    %3685 = vmatpush.msra.mxu0 0.0
    %3686 = vmatpush.msra.mxu0 0.0
    %3687 = vmatpush.msra.mxu0 0.0
    %3688 = vmatpush.msra.mxu0 0.0
    %3689 = vmatpush.msra.mxu0 %v3646
    %3690 = vmatpush.msra.mxu0 %v3645
    %3691 = vmatpush.msra.mxu0 %v3644
    %3692 = vmatpush.msra.mxu0 %v3643
    %3693 = vmatmul.f32.gmra.mxu0 %v3675
    %v3694 = vpop.f32.mrf.mxu0
    %v3695 = vadd.f32 %v3672, %v3694
    %3696 = vdwg.mxu0
    %v3697 = vld [vmem:[%s19 + $0x40] sm:$0xff]
    %v3698 = vld [vmem:[%s19 + $0x48] sm:$0xff]
    %v3699 = vld [vmem:[%s19 + $0x50] sm:$0xff]
    %v3700 = vld [vmem:[%s19 + $0x58] sm:$0xff]
    %v3701 = vld [vmem:[%s19 + $0x60] sm:$0xff]
    %v3702 = vld [vmem:[%s19 + $0x68] sm:$0xff]
    %v3703 = vld [vmem:[%s19 + $0x70] sm:$0xff]
    %v3704 = vld [vmem:[%s19 + $0x78] sm:$0xff]
    %vm3705 = vcmask 523264
    %v3707 = vsel %vm3705, %v3642, 0
    %3709 = vmatpush.msra.mxu0 0.0
    %3710 = vmatpush.msra.mxu0 0.0
    %3711 = vmatpush.msra.mxu0 0.0
    %3712 = vmatpush.msra.mxu0 0.0
    %3713 = vmatpush.msra.mxu0 0.0
    %3714 = vmatpush.msra.mxu0 0.0
    %3715 = vmatpush.msra.mxu0 0.0
    %3716 = vmatpush.msra.mxu0 0.0
    %3717 = vmatpush.msra.mxu0 %v3704
    %3718 = vmatpush.msra.mxu0 %v3703
    %3719 = vmatpush.msra.mxu0 %v3702
    %3720 = vmatpush.msra.mxu0 %v3701
    %3721 = vmatpush.msra.mxu0 %v3700
    %3722 = vmatpush.msra.mxu0 %v3699
    %3723 = vmatpush.msra.mxu0 %v3698
    %3724 = vmatpush.msra.mxu0 %v3697
    %3725 = vmatmul.f32.gmra.mxu0 %v3707
    %v3726 = vpop.f32.mrf.mxu0
    %v3727 = vadd.f32 0.0, %v3726
    %3728 = vdwg.mxu0
    %v3729 = vadd.f32 %v3695, %v3727
    %v3730 = vld [vmem:[%s20] sm:$0x1]
    %v3732 = vperm.slane %v3730, 0
    %v3734 = vadd.f32 %v3729, %v3732
    %v3735 = vxor.u32 %v3734, 2147483648
    %v3736 = vmul.f32 %v3735, 1.442695
    %v3737 = vpow.pop %v3736
    %v3738 = vadd.f32 %v3737, 1.0
    %v3739 = vrcp.pop %v3738
    %v3740 = vmul.f32 %v3738, %v3739
    %v3741 = vsub.f32 1.0, %v3740
    %v3742 = vmul.f32 %v3739, %v3741
    %v3743 = vadd.f32 %v3739, %v3742
    %vm3744 = vweird.f32 %v3738
    %vm3745 = vweird.f32 %v3739
    %vm3746 = vmor %vm3744, %vm3745
    %v3747 = vsel %vm3746, %v3739, %v3743
    %v3748 = vand.u32 2147483647, %v3738
    %vm3749 = vcmp.eq.f32.partialorder %v3748, 8.507059e+37
    %v3750 = vand.u32 %v3738, 2147483648
    %v3751 = vor.u32 1.1754944e-38, %v3750
    %v3752 = vsel %vm3749, %v3751, %v3747
    %v3753 = vmul.f32 1.0, %v3752
    %3755 = vrot.lane.b32.xlu0 %v3753, 127
    %v3756 = vpop.permute.xlu0 %3755
    %v3758 = vmul.f32 %v3753, %v3756
    %3759 = vrot.lane.b32.xlu0 %v3753, 126
    %v3760 = vpop.permute.xlu0 %3759
    %v3762 = vmul.f32 %v3758, %v3760
    %v3763 = vmul.f32 %v3762, 0.99
    %v3764 = vadd.f32 %v3763, 0.01
    %v3765 = vlaneseq
    %v3766 = vand.u32 %v3765, 127
    %vm3767 = vcmp.eq.s32.totalorder %v3766, 0
    %vm3768 = vcmp.eq.s32.totalorder %v3766, 1
    %3770 = vset.pattern.permute.xlu0 1
    %3771 = vperm.xlu0 %3770, %v3764
    %v3772 = vpop.permute.xlu0 %3771
    %v3774 = vsel %vm3768, %v3772, 0.0
    %3776 = vset.pattern.permute.xlu0 0
    %3777 = vperm.xlu0 %3776, %v3734
    %v3778 = vpop.permute.xlu0 %3777
    %v3780 = vsel %vm3767, %v3778, %v3774
    %3781 = vst [vmem:[#allocation31] sm:$0xff] %v3780
    // Predicated region
    $region134: #{tpu_custom_call.1} parent=1 // pred_check
      _
    $region135: #{tpu_custom_call.1} parent=1 // pred_check_branch
      %3783 = sbr.rel (0) target = $region137
    $region136: #{tpu_custom_call.1} parent=1 // pred_region
      %3785 = vsyncadd [#allocation13], 0
      %s3787 = sshll.u32 [#allocation31], 4
      %s3788 = int_to_ptr.vmem [resolvable:$true] %s3787
      %s3789 = sshll.u32 %s21, 4
      %s3790 = int_to_ptr.hbm [resolvable:$true] %s3789
      %3792 = dma.vmem_to_hbm [thread:$0]  %s3788, 128, %s3790, [#allocation13]
    $region137: #{tpu_custom_call.1} parent=1 // pred_fallthru
      _
    // Predicated region
    $region138: #{tpu_custom_call.1} parent=1 // pred_check
      _
    $region139: #{tpu_custom_call.1} parent=1 // pred_check_branch
      %3794 = sbr.rel (0) target = $region141
    $region140: #{tpu_custom_call.1} parent=1 // pred_region
      %3796 = dma.done [#allocation13], 128
    $region141: #{tpu_custom_call.1} parent=1 // pred_fallthru
      _
    %3797 = vsyncpa [#allocation12], 1
    %3798 = vsyncpa [#allocation15], 1
    %3799 = vsyncpa [#allocation18], 1
    %3800 = vsyncpa [#allocation21], 1
    %3801 = vsyncpa [#allocation24], 1
    %3802 = vsyncpa [#allocation27], 1
    %3803 = vsyncpa [#allocation30], 1
    %3804 = vsyncpa [#allocation13], 1

</llo_original>
